<compile_context>
chip_gen: v7x
topology: tpu7x:2x2x1
jax: 0.10.0
libtpu: 0.0.40
codegen_flags: <defaults>
</compile_context>

<pallas_src>
import functools

import numpy as np
import jax
import jax.numpy as jnp
from jax.experimental import pallas as pl
from jax.experimental.pallas import tpu as pltpu


# ---------------------------------------------------------------------------
# In-kernel helpers (static shapes, fully unrolled)
# ---------------------------------------------------------------------------
def _gn_relu(acc, g, be, n_batch, spatial, eps):
    """Per-sample, per-channel GroupNorm(C, C) + ReLU on (n_batch*spatial, C) rows.

    One-pass statistics (sum & sum of squares); scale/shift folded so the
    normalization is a single multiply-add per element.
    """
    inv_s = 1.0 / float(spatial)
    outs = []
    for b in range(n_batch):
        xb = acc[b * spatial:(b + 1) * spatial, :]            # (spatial, C) f32
        s1 = jnp.sum(xb, axis=0, keepdims=True)               # (1, C)
        s2 = jnp.sum(xb * xb, axis=0, keepdims=True)          # (1, C)
        mean = s1 * inv_s
        var = jnp.maximum(s2 * inv_s - mean * mean, 0.0)
        scale = g * jax.lax.rsqrt(var + eps)                  # (1, C)
        shift = be - mean * scale                             # (1, C)
        outs.append(jnp.maximum(xb * scale + shift, 0.0))
    return outs[0] if n_batch == 1 else jnp.concatenate(outs, axis=0)


def _conv3x3(x, w_ref, mask_ref, bias, n_batch, H, W):
    """Same-padded 3x3 conv on flat (n_batch*H*W, C) rows in (b, h, w) order.

    Each tap is a tile-aligned sublane rotation (XLU) of the flat activation
    times a precomputed 0/1 edge mask, accumulated with one (M,C)@(C,C) MXU
    matmul.  Rolling the flat batch+spatial axis is safe: any row that would
    cross an image / sample boundary is zeroed by the mask.
    """
    M = n_batch * H * W
    acc = jnp.dot(x.astype(jnp.bfloat16), w_ref[4],
                  preferred_element_type=jnp.float32) + bias          # centre tap
    for dy in (-1, 0, 1):
        for dx in (-1, 0, 1):
            if dy == 0 and dx == 0:
                continue
            t = (dy + 1) * 3 + (dx + 1)
            s = dy * W + dx                                   # out row r reads row r+s
            shifted = pltpu.roll(x, shift=(-s) % M, axis=0)   # == jnp.roll(x, -s, 0)
            tap = (shifted * mask_ref[t]).astype(jnp.bfloat16)
            acc = acc + jnp.dot(tap, w_ref[t], preferred_element_type=jnp.float32)
    return acc


# ---------------------------------------------------------------------------
# Fused kernel: all 3 stages + FC for one batch block
# ---------------------------------------------------------------------------
def fused_forward_kernel(p1_ref, w1_ref, b1_ref, g1_ref, be1_ref, pool1_ref,
                         w2_ref, b2_ref, g2_ref, be2_ref, m2_ref, pool2_ref,
                         w3_ref, b3_ref, g3_ref, be3_ref, m3_ref, pool3_ref,
                         fcw_ref, fcb_ref,
                         emb_ref, logits_ref,
                         *, n_batch, H, W, eps):
    H2, W2 = H // 2, W // 2
    H3, W3 = H // 4, W // 4
    S3 = (H // 8) * (W // 8)

    # ---- stage 1: conv1 (pre-im2col'd input, one matmul) + GN + ReLU + pool ----
    acc1 = jnp.dot(p1_ref[...], w1_ref[...],
                   preferred_element_type=jnp.float32) + b1_ref[...]
    y1 = _gn_relu(acc1, g1_ref[...], be1_ref[...], n_batch, H * W, eps)
    pooled1 = jnp.dot(pool1_ref[...], y1.astype(jnp.bfloat16),
                      preferred_element_type=jnp.float32)      # (n_batch*H2*W2, C)

    # ---- stage 2: conv2 via rolls + masks, GN, ReLU, pool ----
    acc2 = _conv3x3(pooled1, w2_ref, m2_ref, b2_ref[...], n_batch, H2, W2)
    y2 = _gn_relu(acc2, g2_ref[...], be2_ref[...], n_batch, H2 * W2, eps)
    pooled2 = jnp.dot(pool2_ref[...], y2.astype(jnp.bfloat16),
                      preferred_element_type=jnp.float32)      # (n_batch*H3*W3, C)

    # ---- stage 3 ----
    acc3 = _conv3x3(pooled2, w3_ref, m3_ref, b3_ref[...], n_batch, H3, W3)
    y3 = _gn_relu(acc3, g3_ref[...], be3_ref[...], n_batch, H3 * W3, eps)
    # pool3 rows are ordered (s3, b) so the FC LHS below is a pure lane concat.
    pooled3 = jnp.dot(pool3_ref[...], y3.astype(jnp.bfloat16),
                      preferred_element_type=jnp.float32)      # (S3*n_batch, C)

    emb_ref[...] = pooled3

    # ---- FC: a single lane-dense matmul (n_batch, S3*C) @ (S3*C, 128) ----
    lhs = jnp.concatenate(
        [pooled3[s * n_batch:(s + 1) * n_batch, :] for s in range(S3)],
        axis=-1).astype(jnp.bfloat16)                          # (n_batch, S3*C)
    logits_ref[...] = jnp.dot(lhs, fcw_ref[...],
                              preferred_element_type=jnp.float32) + fcb_ref[...]


# ---------------------------------------------------------------------------
# Host-side constant builders
# ---------------------------------------------------------------------------
def make_pool_matrix(H, W, n_batch, out_order="bs"):
    """Left-multiply matrix for 2x2/2 avg-pool on flat (n_batch*H*W, C) rows.

    Input rows are (b, h, w) row-major.  Output rows are (b, h2, w2) for
    out_order="bs", or (h2*W2+w2, b) for out_order="sb" (used by the last pool
    so the embedding / FC LHS can be assembled without strided slicing).
    """
    H2, W2 = H // 2, W // 2
    s_in, s_out = H * W, H2 * W2
    P = np.zeros((n_batch * s_out, n_batch * s_in), np.float32)
    for b in range(n_batch):
        for i in range(H2):
            for j in range(W2):
                r = (b * s_out + i * W2 + j) if out_order == "bs" \
                    else ((i * W2 + j) * n_batch + b)
                for di in range(2):
                    for dj in range(2):
                        P[r, b * s_in + (2 * i + di) * W + (2 * j + dj)] = 0.25
    return P


def make_tap_masks(H, W, n_batch):
    """(9, n_batch*H*W, 1) 0/1 masks: tap t=(dy+1)*3+(dx+1) valid at output row."""
    hh, ww = np.meshgrid(np.arange(H), np.arange(W), indexing="ij")
    masks = np.zeros((9, n_batch * H * W, 1), np.float32)
    for dy in (-1, 0, 1):
        for dx in (-1, 0, 1):
            t = (dy + 1) * 3 + (dx + 1)
            valid = ((hh + dy >= 0) & (hh + dy < H) &
                     (ww + dx >= 0) & (ww + dx < W)).reshape(-1)
            masks[t, :, 0] = np.tile(valid, n_batch).astype(np.float32)
    return masks


# ---------------------------------------------------------------------------
# Wrapper
# ---------------------------------------------------------------------------
def summarizing_model_forward(x_nchw, params, *, num_classes, eps=1e-5,
                              batch_block=None):
    """Full forward pass.  Returns (embedding, output), matching the nn.Module."""
    B, Cin, H, W = x_nchw.shape
    C = params["w1"].shape[-1]
    assert H % 8 == 0 and W % 8 == 0
    H2, W2, H3, W3 = H // 2, W // 2, H // 4, W // 4
    S3 = (H // 8) * (W // 8)
    NPAD = 128                      # lane-dense logits width inside the kernel
    KP = 32                         # stage-1 im2col K, padded 27 -> 32
    assert num_classes <= NPAD

    if batch_block is None:
        # Fold samples until stage-1 M ~ 512 MXU rows.  On v7x pass a smaller
        # explicit batch_block (so grid >= 2) to keep both TensorCores busy.
        target = max(1, 512 // (H * W))
        batch_block = max(d for d in range(1, B + 1) if B % d == 0 and d <= target)
    Bb = batch_block
    assert B % Bb == 0
    G = B // Bb

    # --- stage-1 im2col in the wrapper (Cin=3 is lane-sparse; do it in XLA) ---
    # TODO(synk): at large H*W, build these taps inside the kernel instead of
    # materializing a 9x-sized array in HBM.
    x = jnp.transpose(x_nchw, (0, 2, 3, 1))                   # NCHW -> NHWC
    xpad = jnp.pad(x, ((0, 0), (1, 1), (1, 1), (0, 0)))
    p1 = jnp.concatenate(
        [xpad[:, ky:ky + H, kx:kx + W, :] for ky in range(3) for kx in range(3)],
        axis=-1).reshape(B * H * W, 9 * Cin)
    p1 = jnp.pad(p1, ((0, 0), (0, KP - 9 * Cin))).astype(jnp.bfloat16)

    # --- weights / grid-invariant constants (bf16 for MXU operands) ---
    w1 = jnp.pad(params["w1"].reshape(9 * Cin, C),
                 ((0, KP - 9 * Cin), (0, 0))).astype(jnp.bfloat16)
    w2 = params["w2"].reshape(9, C, C).astype(jnp.bfloat16)
    w3 = params["w3"].reshape(9, C, C).astype(jnp.bfloat16)
    b1, g1, be1 = (params[k].reshape(1, C).astype(jnp.float32)
                   for k in ("b1", "g1", "be1"))
    b2, g2, be2 = (params[k].reshape(1, C).astype(jnp.float32)
                   for k in ("b2", "g2", "be2"))
    b3, g3, be3 = (params[k].reshape(1, C).astype(jnp.float32)
                   for k in ("b3", "g3", "be3"))
    P1 = jnp.asarray(make_pool_matrix(H, W, Bb, "bs"), jnp.bfloat16)
    P2 = jnp.asarray(make_pool_matrix(H2, W2, Bb, "bs"), jnp.bfloat16)
    P3 = jnp.asarray(make_pool_matrix(H3, W3, Bb, "sb"), jnp.bfloat16)
    m2 = jnp.asarray(make_tap_masks(H2, W2, Bb), jnp.float32)
    m3 = jnp.asarray(make_tap_masks(H3, W3, Bb), jnp.float32)
    # fc weight stored transposed (C*S3, num_classes) with row j = c*S3 + s
    # (torch NCHW flatten) -> (S3*C, NPAD) with row s*C + c to match the
    # kernel's (spatial, channel) LHS column order.
    fcw = params["fc_w_t"].reshape(C, S3, num_classes).transpose(1, 0, 2)
    fcw = fcw.reshape(S3 * C, num_classes)
    fcw = jnp.pad(fcw, ((0, 0), (0, NPAD - num_classes))).astype(jnp.bfloat16)
    fcb = jnp.pad(params["fc_b"], (0, NPAD - num_classes)).reshape(1, NPAD)
    fcb = fcb.astype(jnp.float32)

    def const_spec(arr):            # grid-invariant operand, block == full array
        nd = arr.ndim
        return pl.BlockSpec(arr.shape, lambda g, _nd=nd: (0,) * _nd)

    kern = functools.partial(fused_forward_kernel, n_batch=Bb, H=H, W=W, eps=eps)
    emb_raw, logits_pad = pl.pallas_call(
        kern,
        out_shape=(jax.ShapeDtypeStruct((B * S3, C), jnp.float32),
                   jax.ShapeDtypeStruct((B, NPAD), jnp.float32)),
        grid=(G,),
        in_specs=[
            pl.BlockSpec((Bb * H * W, KP), lambda g: (g, 0)),
            const_spec(w1), const_spec(b1), const_spec(g1), const_spec(be1),
            const_spec(P1),
            const_spec(w2), const_spec(b2), const_spec(g2), const_spec(be2),
            const_spec(m2), const_spec(P2),
            const_spec(w3), const_spec(b3), const_spec(g3), const_spec(be3),
            const_spec(m3), const_spec(P3),
            const_spec(fcw), const_spec(fcb),
        ],
        out_specs=(pl.BlockSpec((Bb * S3, C), lambda g: (g, 0)),
                   pl.BlockSpec((Bb, NPAD), lambda g: (g, 0))),
        compiler_params=pltpu.CompilerParams(
            dimension_semantics=("parallel",)),
    )(p1, w1, b1, g1, be1, P1, w2, b2, g2, be2, m2, P2,
      w3, b3, g3, be3, m3, P3, fcw, fcb)

    # emb_raw rows per grid step are (s3, b_local) ordered; convert to the
    # torch NCHW flatten x.view(batch, -1) layout (b, c*S3 + s).
    embedding = emb_raw.reshape(G, S3, Bb, C).transpose(0, 2, 3, 1).reshape(B, C * S3)
    output = logits_pad[:, :num_classes]
    return embedding, output


# ---------------------------------------------------------------------------
# Pure-JAX reference (f32, HIGHEST precision) for a relaxed-tolerance check
# ---------------------------------------------------------------------------
def reference_forward(x_nchw, params, eps=1e-5):
    hp = jax.lax.Precision.HIGHEST

    def stage(y, w, b, g, be):
        y = jax.lax.conv_general_dilated(
            y, w, window_strides=(1, 1), padding="SAME",
            dimension_numbers=("NHWC", "HWIO", "NHWC"), precision=hp) + b
        mean = jnp.mean(y, axis=(1, 2), keepdims=True)
        var = jnp.mean(jnp.square(y - mean), axis=(1, 2), keepdims=True)
        y = (y - mean) * jax.lax.rsqrt(var + eps) * g + be
        y = jnp.maximum(y, 0.0)
        Bq, Hq, Wq, Cq = y.shape
        return y.reshape(Bq, Hq // 2, 2, Wq // 2, 2, Cq).mean(axis=(2, 4))

    y = jnp.transpose(x_nchw, (0, 2, 3, 1))
    y = stage(y, params["w1"], params["b1"], params["g1"], params["be1"])
    y = stage(y, params["w2"], params["b2"], params["g2"], params["be2"])
    y = stage(y, params["w3"], params["b3"], params["g3"], params["be3"])
    emb = jnp.transpose(y, (0, 3, 1, 2)).reshape(x_nchw.shape[0], -1)
    out = jnp.dot(emb, params["fc_w_t"], precision=hp) + params["fc_b"]
    return emb, out


# ---------------------------------------------------------------------------
# Main
# ---------------------------------------------------------------------------
if __name__ == "__main__":
    # GroupNorm(128, 128) in the module hard-codes 128 channels; input has 3.
    B, CIN, HH, WW = 2, 3, 16, 16
    C = 128
    NUM_CLASSES = 10
    FC_IN = C * (HH // 8) * (WW // 8)          # 128 * 2 * 2 = 512

    key = jax.random.PRNGKey(0)
    keys = jax.random.split(key, 16)

    def nrm(k, shape, scale=0.1):
        return (scale * jax.random.normal(k, shape)).astype(jnp.float32)

    params = {
        # conv weights stored HWIO
        "w1": nrm(keys[0], (3, 3, CIN, C)),
        "b1": nrm(keys[1], (C,)),
        "g1": 1.0 + nrm(keys[2], (C,)),
        "be1": nrm(keys[3], (C,)),
        "w2": nrm(keys[4], (3, 3, C, C), scale=0.05),
        "b2": nrm(keys[5], (C,)),
        "g2": 1.0 + nrm(keys[6], (C,)),
        "be2": nrm(keys[7], (C,)),
        "w3": nrm(keys[8], (3, 3, C, C), scale=0.05),
        "b3": nrm(keys[9], (C,)),
        "g3": 1.0 + nrm(keys[10], (C,)),
        "be3": nrm(keys[11], (C,)),
        # fc weight stored transposed: (in_features, num_classes), NCHW row order
        "fc_w_t": nrm(keys[12], (FC_IN, NUM_CLASSES)),
        "fc_b": nrm(keys[13], (NUM_CLASSES,)),
    }

    x = jax.random.normal(keys[14], (B, CIN, HH, WW), dtype=jnp.float32)

    fwd = jax.jit(functools.partial(summarizing_model_forward,
                                    num_classes=NUM_CLASSES))
    embedding, output = fwd(x, params)
    embedding = jax.block_until_ready(embedding)
    output = jax.block_until_ready(output)

    assert embedding.shape == (B, FC_IN), embedding.shape
    assert output.shape == (B, NUM_CLASSES), output.shape
    assert bool(jnp.all(jnp.isfinite(embedding))) and bool(jnp.all(jnp.isfinite(output)))

    # Relaxed-tolerance check against a pure-JAX f32 reference (kernel feeds the
    # MXU bf16 operands, so allow ~a few % relative-to-max error).
    emb_ref, out_ref = jax.jit(reference_forward)(x, params)
    emb_err = float(jnp.max(jnp.abs(embedding - emb_ref)) /
                    (jnp.max(jnp.abs(emb_ref)) + 1e-6))
    out_err = float(jnp.max(jnp.abs(output - out_ref)) /
                    (jnp.max(jnp.abs(out_ref)) + 1e-6))
    assert emb_err < 0.1 and out_err < 0.1, (emb_err, out_err)
    print("KERNEL_OK")
</pallas_src>

<mosaic_0001>
module attributes {stable_mosaic.version = 11 : i64} {
  func.func @fused_forward_kernel(%arg0: i32, %arg1: memref<512x32xbf16, #tpu.memory_space<vmem>>, %arg2: memref<32x128xbf16, #tpu.memory_space<vmem>>, %arg3: memref<1x128xf32, #tpu.memory_space<vmem>>, %arg4: memref<1x128xf32, #tpu.memory_space<vmem>>, %arg5: memref<1x128xf32, #tpu.memory_space<vmem>>, %arg6: memref<128x512xbf16, #tpu.memory_space<vmem>>, %arg7: memref<9x128x128xbf16, #tpu.memory_space<vmem>>, %arg8: memref<1x128xf32, #tpu.memory_space<vmem>>, %arg9: memref<1x128xf32, #tpu.memory_space<vmem>>, %arg10: memref<1x128xf32, #tpu.memory_space<vmem>>, %arg11: memref<9x128x1xf32, #tpu.memory_space<vmem>>, %arg12: memref<32x128xbf16, #tpu.memory_space<vmem>>, %arg13: memref<9x128x128xbf16, #tpu.memory_space<vmem>>, %arg14: memref<1x128xf32, #tpu.memory_space<vmem>>, %arg15: memref<1x128xf32, #tpu.memory_space<vmem>>, %arg16: memref<1x128xf32, #tpu.memory_space<vmem>>, %arg17: memref<9x32x1xf32, #tpu.memory_space<vmem>>, %arg18: memref<8x32xbf16, #tpu.memory_space<vmem>>, %arg19: memref<512x128xbf16, #tpu.memory_space<vmem>>, %arg20: memref<1x128xf32, #tpu.memory_space<vmem>>, %arg21: memref<8x128xf32, #tpu.memory_space<vmem>>, %arg22: memref<2x128xf32, #tpu.memory_space<vmem>>) attributes {dimension_semantics = [#tpu.dimension_semantics<parallel>], iteration_bounds = array<i64: 1>, scalar_prefetch = 0 : i64, scratch_operands = 0 : i64, tpu.core_type = #tpu.core_type<tc>, window_params = [{transform_indices = @transform_0, window_bounds = array<i64: 512, 32>}, {pipeline_mode = #tpu.pipeline_mode<synchronous>, transform_indices = @transform_1, window_bounds = array<i64: 32, 128>}, {pipeline_mode = #tpu.pipeline_mode<synchronous>, transform_indices = @transform_2, window_bounds = array<i64: 1, 128>}, {pipeline_mode = #tpu.pipeline_mode<synchronous>, transform_indices = @transform_3, window_bounds = array<i64: 1, 128>}, {pipeline_mode = #tpu.pipeline_mode<synchronous>, transform_indices = @transform_4, window_bounds = array<i64: 1, 128>}, {pipeline_mode = #tpu.pipeline_mode<synchronous>, transform_indices = @transform_5, window_bounds = array<i64: 128, 512>}, {pipeline_mode = #tpu.pipeline_mode<synchronous>, transform_indices = @transform_6, window_bounds = array<i64: 9, 128, 128>}, {pipeline_mode = #tpu.pipeline_mode<synchronous>, transform_indices = @transform_7, window_bounds = array<i64: 1, 128>}, {pipeline_mode = #tpu.pipeline_mode<synchronous>, transform_indices = @transform_8, window_bounds = array<i64: 1, 128>}, {pipeline_mode = #tpu.pipeline_mode<synchronous>, transform_indices = @transform_9, window_bounds = array<i64: 1, 128>}, {pipeline_mode = #tpu.pipeline_mode<synchronous>, transform_indices = @transform_10, window_bounds = array<i64: 9, 128, 1>}, {pipeline_mode = #tpu.pipeline_mode<synchronous>, transform_indices = @transform_11, window_bounds = array<i64: 32, 128>}, {pipeline_mode = #tpu.pipeline_mode<synchronous>, transform_indices = @transform_12, window_bounds = array<i64: 9, 128, 128>}, {pipeline_mode = #tpu.pipeline_mode<synchronous>, transform_indices = @transform_13, window_bounds = array<i64: 1, 128>}, {pipeline_mode = #tpu.pipeline_mode<synchronous>, transform_indices = @transform_14, window_bounds = array<i64: 1, 128>}, {pipeline_mode = #tpu.pipeline_mode<synchronous>, transform_indices = @transform_15, window_bounds = array<i64: 1, 128>}, {pipeline_mode = #tpu.pipeline_mode<synchronous>, transform_indices = @transform_16, window_bounds = array<i64: 9, 32, 1>}, {pipeline_mode = #tpu.pipeline_mode<synchronous>, transform_indices = @transform_17, window_bounds = array<i64: 8, 32>}, {pipeline_mode = #tpu.pipeline_mode<synchronous>, transform_indices = @transform_18, window_bounds = array<i64: 512, 128>}, {pipeline_mode = #tpu.pipeline_mode<synchronous>, transform_indices = @transform_19, window_bounds = array<i64: 1, 128>}, {transform_indices = @transform_20, window_bounds = array<i64: 8, 128>}, {transform_indices = @transform_21, window_bounds = array<i64: 2, 128>}]} {
    %c0 = arith.constant 0 : index
    %c0_0 = arith.constant 0 : index
    %0 = vector.load %arg1[%c0, %c0_0] : memref<512x32xbf16, #tpu.memory_space<vmem>>, vector<512x32xbf16>
    %c0_1 = arith.constant 0 : index
    %c0_2 = arith.constant 0 : index
    %1 = vector.load %arg2[%c0_1, %c0_2] : memref<32x128xbf16, #tpu.memory_space<vmem>>, vector<32x128xbf16>
    %cst = arith.constant dense<0.000000e+00> : vector<512x128xf32>
    %2 = tpu.matmul %0, %1, %cst {dimension_numbers = #tpu.dot_dimension_numbers<[1], [0], [0], [1], [0, 0, 1, 1], [], []>} : vector<512x32xbf16>, vector<32x128xbf16>, vector<512x128xf32> -> vector<512x128xf32>
    %c0_3 = arith.constant 0 : index
    %c0_4 = arith.constant 0 : index
    %3 = vector.load %arg3[%c0_3, %c0_4] : memref<1x128xf32, #tpu.memory_space<vmem>>, vector<1x128xf32>
    %4 = vector.broadcast %3 : vector<1x128xf32> to vector<512x128xf32>
    %5 = arith.addf %2, %4 : vector<512x128xf32>
    %c0_5 = arith.constant 0 : index
    %c0_6 = arith.constant 0 : index
    %6 = vector.load %arg4[%c0_5, %c0_6] : memref<1x128xf32, #tpu.memory_space<vmem>>, vector<1x128xf32>
    %c0_7 = arith.constant 0 : index
    %c0_8 = arith.constant 0 : index
    %7 = vector.load %arg5[%c0_7, %c0_8] : memref<1x128xf32, #tpu.memory_space<vmem>>, vector<1x128xf32>
    %8 = vector.extract_strided_slice %5 {offsets = [0, 0], sizes = [256, 128], strides = [1, 1]} : vector<512x128xf32> to vector<256x128xf32>
    %cst_9 = arith.constant dense<0.000000e+00> : vector<128xf32>
    %9 = vector.multi_reduction <add>, %8, %cst_9 [0] : vector<256x128xf32> to vector<128xf32>
    %10 = vector.shape_cast %9 : vector<128xf32> to vector<1x128xf32>
    %11 = arith.mulf %8, %8 : vector<256x128xf32>
    %cst_10 = arith.constant dense<0.000000e+00> : vector<128xf32>
    %12 = vector.multi_reduction <add>, %11, %cst_10 [0] : vector<256x128xf32> to vector<128xf32>
    %13 = vector.shape_cast %12 : vector<128xf32> to vector<1x128xf32>
    %cst_11 = arith.constant 3.906250e-03 : f32
    %14 = vector.broadcast %cst_11 : f32 to vector<1x128xf32>
    %15 = arith.mulf %10, %14 : vector<1x128xf32>
    %cst_12 = arith.constant 3.906250e-03 : f32
    %16 = vector.broadcast %cst_12 : f32 to vector<1x128xf32>
    %17 = arith.mulf %13, %16 : vector<1x128xf32>
    %18 = arith.mulf %15, %15 : vector<1x128xf32>
    %19 = arith.subf %17, %18 : vector<1x128xf32>
    %cst_13 = arith.constant 0.000000e+00 : f32
    %20 = vector.broadcast %cst_13 : f32 to vector<1x128xf32>
    %21 = arith.maximumf %19, %20 : vector<1x128xf32>
    %cst_14 = arith.constant 9.99999974E-6 : f32
    %22 = vector.broadcast %cst_14 : f32 to vector<1x128xf32>
    %23 = arith.addf %21, %22 : vector<1x128xf32>
    %24 = math.rsqrt %23 : vector<1x128xf32>
    %25 = arith.mulf %6, %24 : vector<1x128xf32>
    %26 = arith.mulf %15, %25 : vector<1x128xf32>
    %27 = arith.subf %7, %26 : vector<1x128xf32>
    %28 = vector.broadcast %25 : vector<1x128xf32> to vector<256x128xf32>
    %29 = arith.mulf %8, %28 : vector<256x128xf32>
    %30 = vector.broadcast %27 : vector<1x128xf32> to vector<256x128xf32>
    %31 = arith.addf %29, %30 : vector<256x128xf32>
    %cst_15 = arith.constant 0.000000e+00 : f32
    %32 = vector.broadcast %cst_15 : f32 to vector<256x128xf32>
    %33 = arith.maximumf %31, %32 : vector<256x128xf32>
    %34 = vector.extract_strided_slice %5 {offsets = [256, 0], sizes = [256, 128], strides = [1, 1]} : vector<512x128xf32> to vector<256x128xf32>
    %cst_16 = arith.constant dense<0.000000e+00> : vector<128xf32>
    %35 = vector.multi_reduction <add>, %34, %cst_16 [0] : vector<256x128xf32> to vector<128xf32>
    %36 = vector.shape_cast %35 : vector<128xf32> to vector<1x128xf32>
    %37 = arith.mulf %34, %34 : vector<256x128xf32>
    %cst_17 = arith.constant dense<0.000000e+00> : vector<128xf32>
    %38 = vector.multi_reduction <add>, %37, %cst_17 [0] : vector<256x128xf32> to vector<128xf32>
    %39 = vector.shape_cast %38 : vector<128xf32> to vector<1x128xf32>
    %cst_18 = arith.constant 3.906250e-03 : f32
    %40 = vector.broadcast %cst_18 : f32 to vector<1x128xf32>
    %41 = arith.mulf %36, %40 : vector<1x128xf32>
    %cst_19 = arith.constant 3.906250e-03 : f32
    %42 = vector.broadcast %cst_19 : f32 to vector<1x128xf32>
    %43 = arith.mulf %39, %42 : vector<1x128xf32>
    %44 = arith.mulf %41, %41 : vector<1x128xf32>
    %45 = arith.subf %43, %44 : vector<1x128xf32>
    %cst_20 = arith.constant 0.000000e+00 : f32
    %46 = vector.broadcast %cst_20 : f32 to vector<1x128xf32>
    %47 = arith.maximumf %45, %46 : vector<1x128xf32>
    %cst_21 = arith.constant 9.99999974E-6 : f32
    %48 = vector.broadcast %cst_21 : f32 to vector<1x128xf32>
    %49 = arith.addf %47, %48 : vector<1x128xf32>
    %50 = math.rsqrt %49 : vector<1x128xf32>
    %51 = arith.mulf %6, %50 : vector<1x128xf32>
    %52 = arith.mulf %41, %51 : vector<1x128xf32>
    %53 = arith.subf %7, %52 : vector<1x128xf32>
    %54 = vector.broadcast %51 : vector<1x128xf32> to vector<256x128xf32>
    %55 = arith.mulf %34, %54 : vector<256x128xf32>
    %56 = vector.broadcast %53 : vector<1x128xf32> to vector<256x128xf32>
    %57 = arith.addf %55, %56 : vector<256x128xf32>
    %cst_22 = arith.constant 0.000000e+00 : f32
    %58 = vector.broadcast %cst_22 : f32 to vector<256x128xf32>
    %59 = arith.maximumf %57, %58 : vector<256x128xf32>
    %60 = tpu.concatenate %33, %59 in 0 : vector<256x128xf32>, vector<256x128xf32> -> vector<512x128xf32>
    %c0_23 = arith.constant 0 : index
    %c0_24 = arith.constant 0 : index
    %61 = vector.load %arg6[%c0_23, %c0_24] : memref<128x512xbf16, #tpu.memory_space<vmem>>, vector<128x512xbf16>
    %62 = arith.truncf %60 : vector<512x128xf32> to vector<512x128xbf16>
    %cst_25 = arith.constant dense<0.000000e+00> : vector<128x128xf32>
    %63 = tpu.matmul %61, %62, %cst_25 {dimension_numbers = #tpu.dot_dimension_numbers<[1], [0], [0], [1], [0, 0, 1, 1], [], []>} : vector<128x512xbf16>, vector<512x128xbf16>, vector<128x128xf32> -> vector<128x128xf32>
    %c0_26 = arith.constant 0 : index
    %c0_27 = arith.constant 0 : index
    %64 = vector.load %arg8[%c0_26, %c0_27] : memref<1x128xf32, #tpu.memory_space<vmem>>, vector<1x128xf32>
    %65 = arith.truncf %63 : vector<128x128xf32> to vector<128x128xbf16>
    %c4 = arith.constant 4 : index
    %c0_28 = arith.constant 0 : index
    %c0_29 = arith.constant 0 : index
    %66 = vector.load %arg7[%c4, %c0_28, %c0_29] : memref<9x128x128xbf16, #tpu.memory_space<vmem>>, vector<1x128x128xbf16>
    %67 = vector.shape_cast %66 : vector<1x128x128xbf16> to vector<128x128xbf16>
    %cst_30 = arith.constant dense<0.000000e+00> : vector<128x128xf32>
    %68 = tpu.matmul %65, %67, %cst_30 {dimension_numbers = #tpu.dot_dimension_numbers<[1], [0], [0], [1], [0, 0, 1, 1], [], []>} : vector<128x128xbf16>, vector<128x128xbf16>, vector<128x128xf32> -> vector<128x128xf32>
    %69 = vector.broadcast %64 : vector<1x128xf32> to vector<128x128xf32>
    %70 = arith.addf %68, %69 : vector<128x128xf32>
    %c9_i32 = arith.constant 9 : i32
    %71 = tpu.dynamic_rotate %63 by %c9_i32 dim 0 : vector<128x128xf32>, i32 -> vector<128x128xf32>
    %c0_31 = arith.constant 0 : index
    %c0_32 = arith.constant 0 : index
    %c0_33 = arith.constant 0 : index
    %72 = vector.load %arg11[%c0_31, %c0_32, %c0_33] : memref<9x128x1xf32, #tpu.memory_space<vmem>>, vector<1x128x1xf32>
    %73 = vector.shape_cast %72 : vector<1x128x1xf32> to vector<128x1xf32>
    %74 = vector.broadcast %73 : vector<128x1xf32> to vector<128x128xf32>
    %75 = arith.mulf %71, %74 : vector<128x128xf32>
    %76 = arith.truncf %75 : vector<128x128xf32> to vector<128x128xbf16>
    %c0_34 = arith.constant 0 : index
    %c0_35 = arith.constant 0 : index
    %c0_36 = arith.constant 0 : index
    %77 = vector.load %arg7[%c0_34, %c0_35, %c0_36] : memref<9x128x128xbf16, #tpu.memory_space<vmem>>, vector<1x128x128xbf16>
    %78 = vector.shape_cast %77 : vector<1x128x128xbf16> to vector<128x128xbf16>
    %cst_37 = arith.constant dense<0.000000e+00> : vector<128x128xf32>
    %79 = tpu.matmul %76, %78, %cst_37 {dimension_numbers = #tpu.dot_dimension_numbers<[1], [0], [0], [1], [0, 0, 1, 1], [], []>} : vector<128x128xbf16>, vector<128x128xbf16>, vector<128x128xf32> -> vector<128x128xf32>
    %80 = arith.addf %70, %79 : vector<128x128xf32>
    %c8_i32 = arith.constant 8 : i32
    %81 = tpu.dynamic_rotate %63 by %c8_i32 dim 0 : vector<128x128xf32>, i32 -> vector<128x128xf32>
    %c1 = arith.constant 1 : index
    %c0_38 = arith.constant 0 : index
    %c0_39 = arith.constant 0 : index
    %82 = vector.load %arg11[%c1, %c0_38, %c0_39] : memref<9x128x1xf32, #tpu.memory_space<vmem>>, vector<1x128x1xf32>
    %83 = vector.shape_cast %82 : vector<1x128x1xf32> to vector<128x1xf32>
    %84 = vector.broadcast %83 : vector<128x1xf32> to vector<128x128xf32>
    %85 = arith.mulf %81, %84 : vector<128x128xf32>
    %86 = arith.truncf %85 : vector<128x128xf32> to vector<128x128xbf16>
    %c1_40 = arith.constant 1 : index
    %c0_41 = arith.constant 0 : index
    %c0_42 = arith.constant 0 : index
    %87 = vector.load %arg7[%c1_40, %c0_41, %c0_42] : memref<9x128x128xbf16, #tpu.memory_space<vmem>>, vector<1x128x128xbf16>
    %88 = vector.shape_cast %87 : vector<1x128x128xbf16> to vector<128x128xbf16>
    %cst_43 = arith.constant dense<0.000000e+00> : vector<128x128xf32>
    %89 = tpu.matmul %86, %88, %cst_43 {dimension_numbers = #tpu.dot_dimension_numbers<[1], [0], [0], [1], [0, 0, 1, 1], [], []>} : vector<128x128xbf16>, vector<128x128xbf16>, vector<128x128xf32> -> vector<128x128xf32>
    %90 = arith.addf %80, %89 : vector<128x128xf32>
    %c7_i32 = arith.constant 7 : i32
    %91 = tpu.dynamic_rotate %63 by %c7_i32 dim 0 : vector<128x128xf32>, i32 -> vector<128x128xf32>
    %c2 = arith.constant 2 : index
    %c0_44 = arith.constant 0 : index
    %c0_45 = arith.constant 0 : index
    %92 = vector.load %arg11[%c2, %c0_44, %c0_45] : memref<9x128x1xf32, #tpu.memory_space<vmem>>, vector<1x128x1xf32>
    %93 = vector.shape_cast %92 : vector<1x128x1xf32> to vector<128x1xf32>
    %94 = vector.broadcast %93 : vector<128x1xf32> to vector<128x128xf32>
    %95 = arith.mulf %91, %94 : vector<128x128xf32>
    %96 = arith.truncf %95 : vector<128x128xf32> to vector<128x128xbf16>
    %c2_46 = arith.constant 2 : index
    %c0_47 = arith.constant 0 : index
    %c0_48 = arith.constant 0 : index
    %97 = vector.load %arg7[%c2_46, %c0_47, %c0_48] : memref<9x128x128xbf16, #tpu.memory_space<vmem>>, vector<1x128x128xbf16>
    %98 = vector.shape_cast %97 : vector<1x128x128xbf16> to vector<128x128xbf16>
    %cst_49 = arith.constant dense<0.000000e+00> : vector<128x128xf32>
    %99 = tpu.matmul %96, %98, %cst_49 {dimension_numbers = #tpu.dot_dimension_numbers<[1], [0], [0], [1], [0, 0, 1, 1], [], []>} : vector<128x128xbf16>, vector<128x128xbf16>, vector<128x128xf32> -> vector<128x128xf32>
    %100 = arith.addf %90, %99 : vector<128x128xf32>
    %c1_i32 = arith.constant 1 : i32
    %101 = tpu.dynamic_rotate %63 by %c1_i32 dim 0 : vector<128x128xf32>, i32 -> vector<128x128xf32>
    %c3 = arith.constant 3 : index
    %c0_50 = arith.constant 0 : index
    %c0_51 = arith.constant 0 : index
    %102 = vector.load %arg11[%c3, %c0_50, %c0_51] : memref<9x128x1xf32, #tpu.memory_space<vmem>>, vector<1x128x1xf32>
    %103 = vector.shape_cast %102 : vector<1x128x1xf32> to vector<128x1xf32>
    %104 = vector.broadcast %103 : vector<128x1xf32> to vector<128x128xf32>
    %105 = arith.mulf %101, %104 : vector<128x128xf32>
    %106 = arith.truncf %105 : vector<128x128xf32> to vector<128x128xbf16>
    %c3_52 = arith.constant 3 : index
    %c0_53 = arith.constant 0 : index
    %c0_54 = arith.constant 0 : index
    %107 = vector.load %arg7[%c3_52, %c0_53, %c0_54] : memref<9x128x128xbf16, #tpu.memory_space<vmem>>, vector<1x128x128xbf16>
    %108 = vector.shape_cast %107 : vector<1x128x128xbf16> to vector<128x128xbf16>
    %cst_55 = arith.constant dense<0.000000e+00> : vector<128x128xf32>
    %109 = tpu.matmul %106, %108, %cst_55 {dimension_numbers = #tpu.dot_dimension_numbers<[1], [0], [0], [1], [0, 0, 1, 1], [], []>} : vector<128x128xbf16>, vector<128x128xbf16>, vector<128x128xf32> -> vector<128x128xf32>
    %110 = arith.addf %100, %109 : vector<128x128xf32>
    %c127_i32 = arith.constant 127 : i32
    %111 = tpu.dynamic_rotate %63 by %c127_i32 dim 0 : vector<128x128xf32>, i32 -> vector<128x128xf32>
    %c5 = arith.constant 5 : index
    %c0_56 = arith.constant 0 : index
    %c0_57 = arith.constant 0 : index
    %112 = vector.load %arg11[%c5, %c0_56, %c0_57] : memref<9x128x1xf32, #tpu.memory_space<vmem>>, vector<1x128x1xf32>
    %113 = vector.shape_cast %112 : vector<1x128x1xf32> to vector<128x1xf32>
    %114 = vector.broadcast %113 : vector<128x1xf32> to vector<128x128xf32>
    %115 = arith.mulf %111, %114 : vector<128x128xf32>
    %116 = arith.truncf %115 : vector<128x128xf32> to vector<128x128xbf16>
    %c5_58 = arith.constant 5 : index
    %c0_59 = arith.constant 0 : index
    %c0_60 = arith.constant 0 : index
    %117 = vector.load %arg7[%c5_58, %c0_59, %c0_60] : memref<9x128x128xbf16, #tpu.memory_space<vmem>>, vector<1x128x128xbf16>
    %118 = vector.shape_cast %117 : vector<1x128x128xbf16> to vector<128x128xbf16>
    %cst_61 = arith.constant dense<0.000000e+00> : vector<128x128xf32>
    %119 = tpu.matmul %116, %118, %cst_61 {dimension_numbers = #tpu.dot_dimension_numbers<[1], [0], [0], [1], [0, 0, 1, 1], [], []>} : vector<128x128xbf16>, vector<128x128xbf16>, vector<128x128xf32> -> vector<128x128xf32>
    %120 = arith.addf %110, %119 : vector<128x128xf32>
    %c121_i32 = arith.constant 121 : i32
    %121 = tpu.dynamic_rotate %63 by %c121_i32 dim 0 : vector<128x128xf32>, i32 -> vector<128x128xf32>
    %c6 = arith.constant 6 : index
    %c0_62 = arith.constant 0 : index
    %c0_63 = arith.constant 0 : index
    %122 = vector.load %arg11[%c6, %c0_62, %c0_63] : memref<9x128x1xf32, #tpu.memory_space<vmem>>, vector<1x128x1xf32>
    %123 = vector.shape_cast %122 : vector<1x128x1xf32> to vector<128x1xf32>
    %124 = vector.broadcast %123 : vector<128x1xf32> to vector<128x128xf32>
    %125 = arith.mulf %121, %124 : vector<128x128xf32>
    %126 = arith.truncf %125 : vector<128x128xf32> to vector<128x128xbf16>
    %c6_64 = arith.constant 6 : index
    %c0_65 = arith.constant 0 : index
    %c0_66 = arith.constant 0 : index
    %127 = vector.load %arg7[%c6_64, %c0_65, %c0_66] : memref<9x128x128xbf16, #tpu.memory_space<vmem>>, vector<1x128x128xbf16>
    %128 = vector.shape_cast %127 : vector<1x128x128xbf16> to vector<128x128xbf16>
    %cst_67 = arith.constant dense<0.000000e+00> : vector<128x128xf32>
    %129 = tpu.matmul %126, %128, %cst_67 {dimension_numbers = #tpu.dot_dimension_numbers<[1], [0], [0], [1], [0, 0, 1, 1], [], []>} : vector<128x128xbf16>, vector<128x128xbf16>, vector<128x128xf32> -> vector<128x128xf32>
    %130 = arith.addf %120, %129 : vector<128x128xf32>
    %c120_i32 = arith.constant 120 : i32
    %131 = tpu.dynamic_rotate %63 by %c120_i32 dim 0 : vector<128x128xf32>, i32 -> vector<128x128xf32>
    %c7 = arith.constant 7 : index
    %c0_68 = arith.constant 0 : index
    %c0_69 = arith.constant 0 : index
    %132 = vector.load %arg11[%c7, %c0_68, %c0_69] : memref<9x128x1xf32, #tpu.memory_space<vmem>>, vector<1x128x1xf32>
    %133 = vector.shape_cast %132 : vector<1x128x1xf32> to vector<128x1xf32>
    %134 = vector.broadcast %133 : vector<128x1xf32> to vector<128x128xf32>
    %135 = arith.mulf %131, %134 : vector<128x128xf32>
    %136 = arith.truncf %135 : vector<128x128xf32> to vector<128x128xbf16>
    %c7_70 = arith.constant 7 : index
    %c0_71 = arith.constant 0 : index
    %c0_72 = arith.constant 0 : index
    %137 = vector.load %arg7[%c7_70, %c0_71, %c0_72] : memref<9x128x128xbf16, #tpu.memory_space<vmem>>, vector<1x128x128xbf16>
    %138 = vector.shape_cast %137 : vector<1x128x128xbf16> to vector<128x128xbf16>
    %cst_73 = arith.constant dense<0.000000e+00> : vector<128x128xf32>
    %139 = tpu.matmul %136, %138, %cst_73 {dimension_numbers = #tpu.dot_dimension_numbers<[1], [0], [0], [1], [0, 0, 1, 1], [], []>} : vector<128x128xbf16>, vector<128x128xbf16>, vector<128x128xf32> -> vector<128x128xf32>
    %140 = arith.addf %130, %139 : vector<128x128xf32>
    %c119_i32 = arith.constant 119 : i32
    %141 = tpu.dynamic_rotate %63 by %c119_i32 dim 0 : vector<128x128xf32>, i32 -> vector<128x128xf32>
    %c8 = arith.constant 8 : index
    %c0_74 = arith.constant 0 : index
    %c0_75 = arith.constant 0 : index
    %142 = vector.load %arg11[%c8, %c0_74, %c0_75] : memref<9x128x1xf32, #tpu.memory_space<vmem>>, vector<1x128x1xf32>
    %143 = vector.shape_cast %142 : vector<1x128x1xf32> to vector<128x1xf32>
    %144 = vector.broadcast %143 : vector<128x1xf32> to vector<128x128xf32>
    %145 = arith.mulf %141, %144 : vector<128x128xf32>
    %146 = arith.truncf %145 : vector<128x128xf32> to vector<128x128xbf16>
    %c8_76 = arith.constant 8 : index
    %c0_77 = arith.constant 0 : index
    %c0_78 = arith.constant 0 : index
    %147 = vector.load %arg7[%c8_76, %c0_77, %c0_78] : memref<9x128x128xbf16, #tpu.memory_space<vmem>>, vector<1x128x128xbf16>
    %148 = vector.shape_cast %147 : vector<1x128x128xbf16> to vector<128x128xbf16>
    %cst_79 = arith.constant dense<0.000000e+00> : vector<128x128xf32>
    %149 = tpu.matmul %146, %148, %cst_79 {dimension_numbers = #tpu.dot_dimension_numbers<[1], [0], [0], [1], [0, 0, 1, 1], [], []>} : vector<128x128xbf16>, vector<128x128xbf16>, vector<128x128xf32> -> vector<128x128xf32>
    %150 = arith.addf %140, %149 : vector<128x128xf32>
    %c0_80 = arith.constant 0 : index
    %c0_81 = arith.constant 0 : index
    %151 = vector.load %arg9[%c0_80, %c0_81] : memref<1x128xf32, #tpu.memory_space<vmem>>, vector<1x128xf32>
    %c0_82 = arith.constant 0 : index
    %c0_83 = arith.constant 0 : index
    %152 = vector.load %arg10[%c0_82, %c0_83] : memref<1x128xf32, #tpu.memory_space<vmem>>, vector<1x128xf32>
    %153 = vector.extract_strided_slice %150 {offsets = [0, 0], sizes = [64, 128], strides = [1, 1]} : vector<128x128xf32> to vector<64x128xf32>
    %cst_84 = arith.constant dense<0.000000e+00> : vector<128xf32>
    %154 = vector.multi_reduction <add>, %153, %cst_84 [0] : vector<64x128xf32> to vector<128xf32>
    %155 = vector.shape_cast %154 : vector<128xf32> to vector<1x128xf32>
    %156 = arith.mulf %153, %153 : vector<64x128xf32>
    %cst_85 = arith.constant dense<0.000000e+00> : vector<128xf32>
    %157 = vector.multi_reduction <add>, %156, %cst_85 [0] : vector<64x128xf32> to vector<128xf32>
    %158 = vector.shape_cast %157 : vector<128xf32> to vector<1x128xf32>
    %cst_86 = arith.constant 1.562500e-02 : f32
    %159 = vector.broadcast %cst_86 : f32 to vector<1x128xf32>
    %160 = arith.mulf %155, %159 : vector<1x128xf32>
    %cst_87 = arith.constant 1.562500e-02 : f32
    %161 = vector.broadcast %cst_87 : f32 to vector<1x128xf32>
    %162 = arith.mulf %158, %161 : vector<1x128xf32>
    %163 = arith.mulf %160, %160 : vector<1x128xf32>
    %164 = arith.subf %162, %163 : vector<1x128xf32>
    %cst_88 = arith.constant 0.000000e+00 : f32
    %165 = vector.broadcast %cst_88 : f32 to vector<1x128xf32>
    %166 = arith.maximumf %164, %165 : vector<1x128xf32>
    %cst_89 = arith.constant 9.99999974E-6 : f32
    %167 = vector.broadcast %cst_89 : f32 to vector<1x128xf32>
    %168 = arith.addf %166, %167 : vector<1x128xf32>
    %169 = math.rsqrt %168 : vector<1x128xf32>
    %170 = arith.mulf %151, %169 : vector<1x128xf32>
    %171 = arith.mulf %160, %170 : vector<1x128xf32>
    %172 = arith.subf %152, %171 : vector<1x128xf32>
    %173 = vector.broadcast %170 : vector<1x128xf32> to vector<64x128xf32>
    %174 = arith.mulf %153, %173 : vector<64x128xf32>
    %175 = vector.broadcast %172 : vector<1x128xf32> to vector<64x128xf32>
    %176 = arith.addf %174, %175 : vector<64x128xf32>
    %cst_90 = arith.constant 0.000000e+00 : f32
    %177 = vector.broadcast %cst_90 : f32 to vector<64x128xf32>
    %178 = arith.maximumf %176, %177 : vector<64x128xf32>
    %179 = vector.extract_strided_slice %150 {offsets = [64, 0], sizes = [64, 128], strides = [1, 1]} : vector<128x128xf32> to vector<64x128xf32>
    %cst_91 = arith.constant dense<0.000000e+00> : vector<128xf32>
    %180 = vector.multi_reduction <add>, %179, %cst_91 [0] : vector<64x128xf32> to vector<128xf32>
    %181 = vector.shape_cast %180 : vector<128xf32> to vector<1x128xf32>
    %182 = arith.mulf %179, %179 : vector<64x128xf32>
    %cst_92 = arith.constant dense<0.000000e+00> : vector<128xf32>
    %183 = vector.multi_reduction <add>, %182, %cst_92 [0] : vector<64x128xf32> to vector<128xf32>
    %184 = vector.shape_cast %183 : vector<128xf32> to vector<1x128xf32>
    %cst_93 = arith.constant 1.562500e-02 : f32
    %185 = vector.broadcast %cst_93 : f32 to vector<1x128xf32>
    %186 = arith.mulf %181, %185 : vector<1x128xf32>
    %cst_94 = arith.constant 1.562500e-02 : f32
    %187 = vector.broadcast %cst_94 : f32 to vector<1x128xf32>
    %188 = arith.mulf %184, %187 : vector<1x128xf32>
    %189 = arith.mulf %186, %186 : vector<1x128xf32>
    %190 = arith.subf %188, %189 : vector<1x128xf32>
    %cst_95 = arith.constant 0.000000e+00 : f32
    %191 = vector.broadcast %cst_95 : f32 to vector<1x128xf32>
    %192 = arith.maximumf %190, %191 : vector<1x128xf32>
    %cst_96 = arith.constant 9.99999974E-6 : f32
    %193 = vector.broadcast %cst_96 : f32 to vector<1x128xf32>
    %194 = arith.addf %192, %193 : vector<1x128xf32>
    %195 = math.rsqrt %194 : vector<1x128xf32>
    %196 = arith.mulf %151, %195 : vector<1x128xf32>
    %197 = arith.mulf %186, %196 : vector<1x128xf32>
    %198 = arith.subf %152, %197 : vector<1x128xf32>
    %199 = vector.broadcast %196 : vector<1x128xf32> to vector<64x128xf32>
    %200 = arith.mulf %179, %199 : vector<64x128xf32>
    %201 = vector.broadcast %198 : vector<1x128xf32> to vector<64x128xf32>
    %202 = arith.addf %200, %201 : vector<64x128xf32>
    %cst_97 = arith.constant 0.000000e+00 : f32
    %203 = vector.broadcast %cst_97 : f32 to vector<64x128xf32>
    %204 = arith.maximumf %202, %203 : vector<64x128xf32>
    %205 = tpu.concatenate %178, %204 in 0 : vector<64x128xf32>, vector<64x128xf32> -> vector<128x128xf32>
    %c0_98 = arith.constant 0 : index
    %c0_99 = arith.constant 0 : index
    %206 = vector.load %arg12[%c0_98, %c0_99] : memref<32x128xbf16, #tpu.memory_space<vmem>>, vector<32x128xbf16>
    %207 = arith.truncf %205 : vector<128x128xf32> to vector<128x128xbf16>
    %cst_100 = arith.constant dense<0.000000e+00> : vector<32x128xf32>
    %208 = tpu.matmul %206, %207, %cst_100 {dimension_numbers = #tpu.dot_dimension_numbers<[1], [0], [0], [1], [0, 0, 1, 1], [], []>} : vector<32x128xbf16>, vector<128x128xbf16>, vector<32x128xf32> -> vector<32x128xf32>
    %c0_101 = arith.constant 0 : index
    %c0_102 = arith.constant 0 : index
    %209 = vector.load %arg14[%c0_101, %c0_102] : memref<1x128xf32, #tpu.memory_space<vmem>>, vector<1x128xf32>
    %210 = arith.truncf %208 : vector<32x128xf32> to vector<32x128xbf16>
    %c4_103 = arith.constant 4 : index
    %c0_104 = arith.constant 0 : index
    %c0_105 = arith.constant 0 : index
    %211 = vector.load %arg13[%c4_103, %c0_104, %c0_105] : memref<9x128x128xbf16, #tpu.memory_space<vmem>>, vector<1x128x128xbf16>
    %212 = vector.shape_cast %211 : vector<1x128x128xbf16> to vector<128x128xbf16>
    %cst_106 = arith.constant dense<0.000000e+00> : vector<32x128xf32>
    %213 = tpu.matmul %210, %212, %cst_106 {dimension_numbers = #tpu.dot_dimension_numbers<[1], [0], [0], [1], [0, 0, 1, 1], [], []>} : vector<32x128xbf16>, vector<128x128xbf16>, vector<32x128xf32> -> vector<32x128xf32>
    %214 = vector.broadcast %209 : vector<1x128xf32> to vector<32x128xf32>
    %215 = arith.addf %213, %214 : vector<32x128xf32>
    %c5_i32 = arith.constant 5 : i32
    %216 = tpu.dynamic_rotate %208 by %c5_i32 dim 0 : vector<32x128xf32>, i32 -> vector<32x128xf32>
    %c0_107 = arith.constant 0 : index
    %c0_108 = arith.constant 0 : index
    %c0_109 = arith.constant 0 : index
    %217 = vector.load %arg17[%c0_107, %c0_108, %c0_109] : memref<9x32x1xf32, #tpu.memory_space<vmem>>, vector<1x32x1xf32>
    %218 = vector.shape_cast %217 : vector<1x32x1xf32> to vector<32x1xf32>
    %219 = vector.broadcast %218 : vector<32x1xf32> to vector<32x128xf32>
    %220 = arith.mulf %216, %219 : vector<32x128xf32>
    %221 = arith.truncf %220 : vector<32x128xf32> to vector<32x128xbf16>
    %c0_110 = arith.constant 0 : index
    %c0_111 = arith.constant 0 : index
    %c0_112 = arith.constant 0 : index
    %222 = vector.load %arg13[%c0_110, %c0_111, %c0_112] : memref<9x128x128xbf16, #tpu.memory_space<vmem>>, vector<1x128x128xbf16>
    %223 = vector.shape_cast %222 : vector<1x128x128xbf16> to vector<128x128xbf16>
    %cst_113 = arith.constant dense<0.000000e+00> : vector<32x128xf32>
    %224 = tpu.matmul %221, %223, %cst_113 {dimension_numbers = #tpu.dot_dimension_numbers<[1], [0], [0], [1], [0, 0, 1, 1], [], []>} : vector<32x128xbf16>, vector<128x128xbf16>, vector<32x128xf32> -> vector<32x128xf32>
    %225 = arith.addf %215, %224 : vector<32x128xf32>
    %c4_i32 = arith.constant 4 : i32
    %226 = tpu.dynamic_rotate %208 by %c4_i32 dim 0 : vector<32x128xf32>, i32 -> vector<32x128xf32>
    %c1_114 = arith.constant 1 : index
    %c0_115 = arith.constant 0 : index
    %c0_116 = arith.constant 0 : index
    %227 = vector.load %arg17[%c1_114, %c0_115, %c0_116] : memref<9x32x1xf32, #tpu.memory_space<vmem>>, vector<1x32x1xf32>
    %228 = vector.shape_cast %227 : vector<1x32x1xf32> to vector<32x1xf32>
    %229 = vector.broadcast %228 : vector<32x1xf32> to vector<32x128xf32>
    %230 = arith.mulf %226, %229 : vector<32x128xf32>
    %231 = arith.truncf %230 : vector<32x128xf32> to vector<32x128xbf16>
    %c1_117 = arith.constant 1 : index
    %c0_118 = arith.constant 0 : index
    %c0_119 = arith.constant 0 : index
    %232 = vector.load %arg13[%c1_117, %c0_118, %c0_119] : memref<9x128x128xbf16, #tpu.memory_space<vmem>>, vector<1x128x128xbf16>
    %233 = vector.shape_cast %232 : vector<1x128x128xbf16> to vector<128x128xbf16>
    %cst_120 = arith.constant dense<0.000000e+00> : vector<32x128xf32>
    %234 = tpu.matmul %231, %233, %cst_120 {dimension_numbers = #tpu.dot_dimension_numbers<[1], [0], [0], [1], [0, 0, 1, 1], [], []>} : vector<32x128xbf16>, vector<128x128xbf16>, vector<32x128xf32> -> vector<32x128xf32>
    %235 = arith.addf %225, %234 : vector<32x128xf32>
    %c3_i32 = arith.constant 3 : i32
    %236 = tpu.dynamic_rotate %208 by %c3_i32 dim 0 : vector<32x128xf32>, i32 -> vector<32x128xf32>
    %c2_121 = arith.constant 2 : index
    %c0_122 = arith.constant 0 : index
    %c0_123 = arith.constant 0 : index
    %237 = vector.load %arg17[%c2_121, %c0_122, %c0_123] : memref<9x32x1xf32, #tpu.memory_space<vmem>>, vector<1x32x1xf32>
    %238 = vector.shape_cast %237 : vector<1x32x1xf32> to vector<32x1xf32>
    %239 = vector.broadcast %238 : vector<32x1xf32> to vector<32x128xf32>
    %240 = arith.mulf %236, %239 : vector<32x128xf32>
    %241 = arith.truncf %240 : vector<32x128xf32> to vector<32x128xbf16>
    %c2_124 = arith.constant 2 : index
    %c0_125 = arith.constant 0 : index
    %c0_126 = arith.constant 0 : index
    %242 = vector.load %arg13[%c2_124, %c0_125, %c0_126] : memref<9x128x128xbf16, #tpu.memory_space<vmem>>, vector<1x128x128xbf16>
    %243 = vector.shape_cast %242 : vector<1x128x128xbf16> to vector<128x128xbf16>
    %cst_127 = arith.constant dense<0.000000e+00> : vector<32x128xf32>
    %244 = tpu.matmul %241, %243, %cst_127 {dimension_numbers = #tpu.dot_dimension_numbers<[1], [0], [0], [1], [0, 0, 1, 1], [], []>} : vector<32x128xbf16>, vector<128x128xbf16>, vector<32x128xf32> -> vector<32x128xf32>
    %245 = arith.addf %235, %244 : vector<32x128xf32>
    %c1_i32_128 = arith.constant 1 : i32
    %246 = tpu.dynamic_rotate %208 by %c1_i32_128 dim 0 : vector<32x128xf32>, i32 -> vector<32x128xf32>
    %c3_129 = arith.constant 3 : index
    %c0_130 = arith.constant 0 : index
    %c0_131 = arith.constant 0 : index
    %247 = vector.load %arg17[%c3_129, %c0_130, %c0_131] : memref<9x32x1xf32, #tpu.memory_space<vmem>>, vector<1x32x1xf32>
    %248 = vector.shape_cast %247 : vector<1x32x1xf32> to vector<32x1xf32>
    %249 = vector.broadcast %248 : vector<32x1xf32> to vector<32x128xf32>
    %250 = arith.mulf %246, %249 : vector<32x128xf32>
    %251 = arith.truncf %250 : vector<32x128xf32> to vector<32x128xbf16>
    %c3_132 = arith.constant 3 : index
    %c0_133 = arith.constant 0 : index
    %c0_134 = arith.constant 0 : index
    %252 = vector.load %arg13[%c3_132, %c0_133, %c0_134] : memref<9x128x128xbf16, #tpu.memory_space<vmem>>, vector<1x128x128xbf16>
    %253 = vector.shape_cast %252 : vector<1x128x128xbf16> to vector<128x128xbf16>
    %cst_135 = arith.constant dense<0.000000e+00> : vector<32x128xf32>
    %254 = tpu.matmul %251, %253, %cst_135 {dimension_numbers = #tpu.dot_dimension_numbers<[1], [0], [0], [1], [0, 0, 1, 1], [], []>} : vector<32x128xbf16>, vector<128x128xbf16>, vector<32x128xf32> -> vector<32x128xf32>
    %255 = arith.addf %245, %254 : vector<32x128xf32>
    %c31_i32 = arith.constant 31 : i32
    %256 = tpu.dynamic_rotate %208 by %c31_i32 dim 0 : vector<32x128xf32>, i32 -> vector<32x128xf32>
    %c5_136 = arith.constant 5 : index
    %c0_137 = arith.constant 0 : index
    %c0_138 = arith.constant 0 : index
    %257 = vector.load %arg17[%c5_136, %c0_137, %c0_138] : memref<9x32x1xf32, #tpu.memory_space<vmem>>, vector<1x32x1xf32>
    %258 = vector.shape_cast %257 : vector<1x32x1xf32> to vector<32x1xf32>
    %259 = vector.broadcast %258 : vector<32x1xf32> to vector<32x128xf32>
    %260 = arith.mulf %256, %259 : vector<32x128xf32>
    %261 = arith.truncf %260 : vector<32x128xf32> to vector<32x128xbf16>
    %c5_139 = arith.constant 5 : index
    %c0_140 = arith.constant 0 : index
    %c0_141 = arith.constant 0 : index
    %262 = vector.load %arg13[%c5_139, %c0_140, %c0_141] : memref<9x128x128xbf16, #tpu.memory_space<vmem>>, vector<1x128x128xbf16>
    %263 = vector.shape_cast %262 : vector<1x128x128xbf16> to vector<128x128xbf16>
    %cst_142 = arith.constant dense<0.000000e+00> : vector<32x128xf32>
    %264 = tpu.matmul %261, %263, %cst_142 {dimension_numbers = #tpu.dot_dimension_numbers<[1], [0], [0], [1], [0, 0, 1, 1], [], []>} : vector<32x128xbf16>, vector<128x128xbf16>, vector<32x128xf32> -> vector<32x128xf32>
    %265 = arith.addf %255, %264 : vector<32x128xf32>
    %c29_i32 = arith.constant 29 : i32
    %266 = tpu.dynamic_rotate %208 by %c29_i32 dim 0 : vector<32x128xf32>, i32 -> vector<32x128xf32>
    %c6_143 = arith.constant 6 : index
    %c0_144 = arith.constant 0 : index
    %c0_145 = arith.constant 0 : index
    %267 = vector.load %arg17[%c6_143, %c0_144, %c0_145] : memref<9x32x1xf32, #tpu.memory_space<vmem>>, vector<1x32x1xf32>
    %268 = vector.shape_cast %267 : vector<1x32x1xf32> to vector<32x1xf32>
    %269 = vector.broadcast %268 : vector<32x1xf32> to vector<32x128xf32>
    %270 = arith.mulf %266, %269 : vector<32x128xf32>
    %271 = arith.truncf %270 : vector<32x128xf32> to vector<32x128xbf16>
    %c6_146 = arith.constant 6 : index
    %c0_147 = arith.constant 0 : index
    %c0_148 = arith.constant 0 : index
    %272 = vector.load %arg13[%c6_146, %c0_147, %c0_148] : memref<9x128x128xbf16, #tpu.memory_space<vmem>>, vector<1x128x128xbf16>
    %273 = vector.shape_cast %272 : vector<1x128x128xbf16> to vector<128x128xbf16>
    %cst_149 = arith.constant dense<0.000000e+00> : vector<32x128xf32>
    %274 = tpu.matmul %271, %273, %cst_149 {dimension_numbers = #tpu.dot_dimension_numbers<[1], [0], [0], [1], [0, 0, 1, 1], [], []>} : vector<32x128xbf16>, vector<128x128xbf16>, vector<32x128xf32> -> vector<32x128xf32>
    %275 = arith.addf %265, %274 : vector<32x128xf32>
    %c28_i32 = arith.constant 28 : i32
    %276 = tpu.dynamic_rotate %208 by %c28_i32 dim 0 : vector<32x128xf32>, i32 -> vector<32x128xf32>
    %c7_150 = arith.constant 7 : index
    %c0_151 = arith.constant 0 : index
    %c0_152 = arith.constant 0 : index
    %277 = vector.load %arg17[%c7_150, %c0_151, %c0_152] : memref<9x32x1xf32, #tpu.memory_space<vmem>>, vector<1x32x1xf32>
    %278 = vector.shape_cast %277 : vector<1x32x1xf32> to vector<32x1xf32>
    %279 = vector.broadcast %278 : vector<32x1xf32> to vector<32x128xf32>
    %280 = arith.mulf %276, %279 : vector<32x128xf32>
    %281 = arith.truncf %280 : vector<32x128xf32> to vector<32x128xbf16>
    %c7_153 = arith.constant 7 : index
    %c0_154 = arith.constant 0 : index
    %c0_155 = arith.constant 0 : index
    %282 = vector.load %arg13[%c7_153, %c0_154, %c0_155] : memref<9x128x128xbf16, #tpu.memory_space<vmem>>, vector<1x128x128xbf16>
    %283 = vector.shape_cast %282 : vector<1x128x128xbf16> to vector<128x128xbf16>
    %cst_156 = arith.constant dense<0.000000e+00> : vector<32x128xf32>
    %284 = tpu.matmul %281, %283, %cst_156 {dimension_numbers = #tpu.dot_dimension_numbers<[1], [0], [0], [1], [0, 0, 1, 1], [], []>} : vector<32x128xbf16>, vector<128x128xbf16>, vector<32x128xf32> -> vector<32x128xf32>
    %285 = arith.addf %275, %284 : vector<32x128xf32>
    %c27_i32 = arith.constant 27 : i32
    %286 = tpu.dynamic_rotate %208 by %c27_i32 dim 0 : vector<32x128xf32>, i32 -> vector<32x128xf32>
    %c8_157 = arith.constant 8 : index
    %c0_158 = arith.constant 0 : index
    %c0_159 = arith.constant 0 : index
    %287 = vector.load %arg17[%c8_157, %c0_158, %c0_159] : memref<9x32x1xf32, #tpu.memory_space<vmem>>, vector<1x32x1xf32>
    %288 = vector.shape_cast %287 : vector<1x32x1xf32> to vector<32x1xf32>
    %289 = vector.broadcast %288 : vector<32x1xf32> to vector<32x128xf32>
    %290 = arith.mulf %286, %289 : vector<32x128xf32>
    %291 = arith.truncf %290 : vector<32x128xf32> to vector<32x128xbf16>
    %c8_160 = arith.constant 8 : index
    %c0_161 = arith.constant 0 : index
    %c0_162 = arith.constant 0 : index
    %292 = vector.load %arg13[%c8_160, %c0_161, %c0_162] : memref<9x128x128xbf16, #tpu.memory_space<vmem>>, vector<1x128x128xbf16>
    %293 = vector.shape_cast %292 : vector<1x128x128xbf16> to vector<128x128xbf16>
    %cst_163 = arith.constant dense<0.000000e+00> : vector<32x128xf32>
    %294 = tpu.matmul %291, %293, %cst_163 {dimension_numbers = #tpu.dot_dimension_numbers<[1], [0], [0], [1], [0, 0, 1, 1], [], []>} : vector<32x128xbf16>, vector<128x128xbf16>, vector<32x128xf32> -> vector<32x128xf32>
    %295 = arith.addf %285, %294 : vector<32x128xf32>
    %c0_164 = arith.constant 0 : index
    %c0_165 = arith.constant 0 : index
    %296 = vector.load %arg15[%c0_164, %c0_165] : memref<1x128xf32, #tpu.memory_space<vmem>>, vector<1x128xf32>
    %c0_166 = arith.constant 0 : index
    %c0_167 = arith.constant 0 : index
    %297 = vector.load %arg16[%c0_166, %c0_167] : memref<1x128xf32, #tpu.memory_space<vmem>>, vector<1x128xf32>
    %298 = vector.extract_strided_slice %295 {offsets = [0, 0], sizes = [16, 128], strides = [1, 1]} : vector<32x128xf32> to vector<16x128xf32>
    %cst_168 = arith.constant dense<0.000000e+00> : vector<128xf32>
    %299 = vector.multi_reduction <add>, %298, %cst_168 [0] : vector<16x128xf32> to vector<128xf32>
    %300 = vector.shape_cast %299 : vector<128xf32> to vector<1x128xf32>
    %301 = arith.mulf %298, %298 : vector<16x128xf32>
    %cst_169 = arith.constant dense<0.000000e+00> : vector<128xf32>
    %302 = vector.multi_reduction <add>, %301, %cst_169 [0] : vector<16x128xf32> to vector<128xf32>
    %303 = vector.shape_cast %302 : vector<128xf32> to vector<1x128xf32>
    %cst_170 = arith.constant 6.250000e-02 : f32
    %304 = vector.broadcast %cst_170 : f32 to vector<1x128xf32>
    %305 = arith.mulf %300, %304 : vector<1x128xf32>
    %cst_171 = arith.constant 6.250000e-02 : f32
    %306 = vector.broadcast %cst_171 : f32 to vector<1x128xf32>
    %307 = arith.mulf %303, %306 : vector<1x128xf32>
    %308 = arith.mulf %305, %305 : vector<1x128xf32>
    %309 = arith.subf %307, %308 : vector<1x128xf32>
    %cst_172 = arith.constant 0.000000e+00 : f32
    %310 = vector.broadcast %cst_172 : f32 to vector<1x128xf32>
    %311 = arith.maximumf %309, %310 : vector<1x128xf32>
    %cst_173 = arith.constant 9.99999974E-6 : f32
    %312 = vector.broadcast %cst_173 : f32 to vector<1x128xf32>
    %313 = arith.addf %311, %312 : vector<1x128xf32>
    %314 = math.rsqrt %313 : vector<1x128xf32>
    %315 = arith.mulf %296, %314 : vector<1x128xf32>
    %316 = arith.mulf %305, %315 : vector<1x128xf32>
    %317 = arith.subf %297, %316 : vector<1x128xf32>
    %318 = vector.broadcast %315 : vector<1x128xf32> to vector<16x128xf32>
    %319 = arith.mulf %298, %318 : vector<16x128xf32>
    %320 = vector.broadcast %317 : vector<1x128xf32> to vector<16x128xf32>
    %321 = arith.addf %319, %320 : vector<16x128xf32>
    %cst_174 = arith.constant 0.000000e+00 : f32
    %322 = vector.broadcast %cst_174 : f32 to vector<16x128xf32>
    %323 = arith.maximumf %321, %322 : vector<16x128xf32>
    %324 = vector.extract_strided_slice %295 {offsets = [16, 0], sizes = [16, 128], strides = [1, 1]} : vector<32x128xf32> to vector<16x128xf32>
    %cst_175 = arith.constant dense<0.000000e+00> : vector<128xf32>
    %325 = vector.multi_reduction <add>, %324, %cst_175 [0] : vector<16x128xf32> to vector<128xf32>
    %326 = vector.shape_cast %325 : vector<128xf32> to vector<1x128xf32>
    %327 = arith.mulf %324, %324 : vector<16x128xf32>
    %cst_176 = arith.constant dense<0.000000e+00> : vector<128xf32>
    %328 = vector.multi_reduction <add>, %327, %cst_176 [0] : vector<16x128xf32> to vector<128xf32>
    %329 = vector.shape_cast %328 : vector<128xf32> to vector<1x128xf32>
    %cst_177 = arith.constant 6.250000e-02 : f32
    %330 = vector.broadcast %cst_177 : f32 to vector<1x128xf32>
    %331 = arith.mulf %326, %330 : vector<1x128xf32>
    %cst_178 = arith.constant 6.250000e-02 : f32
    %332 = vector.broadcast %cst_178 : f32 to vector<1x128xf32>
    %333 = arith.mulf %329, %332 : vector<1x128xf32>
    %334 = arith.mulf %331, %331 : vector<1x128xf32>
    %335 = arith.subf %333, %334 : vector<1x128xf32>
    %cst_179 = arith.constant 0.000000e+00 : f32
    %336 = vector.broadcast %cst_179 : f32 to vector<1x128xf32>
    %337 = arith.maximumf %335, %336 : vector<1x128xf32>
    %cst_180 = arith.constant 9.99999974E-6 : f32
    %338 = vector.broadcast %cst_180 : f32 to vector<1x128xf32>
    %339 = arith.addf %337, %338 : vector<1x128xf32>
    %340 = math.rsqrt %339 : vector<1x128xf32>
    %341 = arith.mulf %296, %340 : vector<1x128xf32>
    %342 = arith.mulf %331, %341 : vector<1x128xf32>
    %343 = arith.subf %297, %342 : vector<1x128xf32>
    %344 = vector.broadcast %341 : vector<1x128xf32> to vector<16x128xf32>
    %345 = arith.mulf %324, %344 : vector<16x128xf32>
    %346 = vector.broadcast %343 : vector<1x128xf32> to vector<16x128xf32>
    %347 = arith.addf %345, %346 : vector<16x128xf32>
    %cst_181 = arith.constant 0.000000e+00 : f32
    %348 = vector.broadcast %cst_181 : f32 to vector<16x128xf32>
    %349 = arith.maximumf %347, %348 : vector<16x128xf32>
    %350 = tpu.concatenate %323, %349 in 0 : vector<16x128xf32>, vector<16x128xf32> -> vector<32x128xf32>
    %c0_182 = arith.constant 0 : index
    %c0_183 = arith.constant 0 : index
    %351 = vector.load %arg18[%c0_182, %c0_183] : memref<8x32xbf16, #tpu.memory_space<vmem>>, vector<8x32xbf16>
    %352 = arith.truncf %350 : vector<32x128xf32> to vector<32x128xbf16>
    %cst_184 = arith.constant dense<0.000000e+00> : vector<8x128xf32>
    %353 = tpu.matmul %351, %352, %cst_184 {dimension_numbers = #tpu.dot_dimension_numbers<[1], [0], [0], [1], [0, 0, 1, 1], [], []>} : vector<8x32xbf16>, vector<32x128xbf16>, vector<8x128xf32> -> vector<8x128xf32>
    %c0_185 = arith.constant 0 : index
    %c0_186 = arith.constant 0 : index
    %354 = vector.load %arg21[%c0_185, %c0_186] : memref<8x128xf32, #tpu.memory_space<vmem>>, vector<8x128xf32>
    tpu.vector_store %arg21[%c0_185, %c0_186], %353 {strides = array<i32>} : memref<8x128xf32, #tpu.memory_space<vmem>>, vector<8x128xf32>,
    %355 = vector.extract_strided_slice %353 {offsets = [0, 0], sizes = [2, 128], strides = [1, 1]} : vector<8x128xf32> to vector<2x128xf32>
    %356 = vector.extract_strided_slice %353 {offsets = [2, 0], sizes = [2, 128], strides = [1, 1]} : vector<8x128xf32> to vector<2x128xf32>
    %357 = vector.extract_strided_slice %353 {offsets = [4, 0], sizes = [2, 128], strides = [1, 1]} : vector<8x128xf32> to vector<2x128xf32>
    %358 = vector.extract_strided_slice %353 {offsets = [6, 0], sizes = [2, 128], strides = [1, 1]} : vector<8x128xf32> to vector<2x128xf32>
    %359 = tpu.concatenate %355, %356, %357, %358 in 1 : vector<2x128xf32>, vector<2x128xf32>, vector<2x128xf32>, vector<2x128xf32> -> vector<2x512xf32>
    %360 = arith.truncf %359 : vector<2x512xf32> to vector<2x512xbf16>
    %c0_187 = arith.constant 0 : index
    %c0_188 = arith.constant 0 : index
    %361 = vector.load %arg19[%c0_187, %c0_188] : memref<512x128xbf16, #tpu.memory_space<vmem>>, vector<512x128xbf16>
    %cst_189 = arith.constant dense<0.000000e+00> : vector<2x128xf32>
    %362 = tpu.matmul %360, %361, %cst_189 {dimension_numbers = #tpu.dot_dimension_numbers<[1], [0], [0], [1], [0, 0, 1, 1], [], []>} : vector<2x512xbf16>, vector<512x128xbf16>, vector<2x128xf32> -> vector<2x128xf32>
    %c0_190 = arith.constant 0 : index
    %c0_191 = arith.constant 0 : index
    %363 = vector.load %arg20[%c0_190, %c0_191] : memref<1x128xf32, #tpu.memory_space<vmem>>, vector<1x128xf32>
    %364 = vector.broadcast %363 : vector<1x128xf32> to vector<2x128xf32>
    %365 = arith.addf %362, %364 : vector<2x128xf32>
    %c0_192 = arith.constant 0 : index
    %c0_193 = arith.constant 0 : index
    %366 = vector.load %arg22[%c0_192, %c0_193] : memref<2x128xf32, #tpu.memory_space<vmem>>, vector<2x128xf32>
    tpu.vector_store %arg22[%c0_192, %c0_193], %365 {strides = array<i32>} : memref<2x128xf32, #tpu.memory_space<vmem>>, vector<2x128xf32>,
    return
  }
  func.func @transform_0(%arg0: i32) -> (i32, i32) {
    %c0_i32 = arith.constant 0 : i32
    %c0_i32_0 = arith.constant 0 : i32
    return %arg0, %c0_i32 : i32, i32
  }
  func.func @transform_1(%arg0: i32) -> (i32, i32) {
    %c0_i32 = arith.constant 0 : i32
    %c0_i32_0 = arith.constant 0 : i32
    %c0_i32_1 = arith.constant 0 : i32
    return %c0_i32, %c0_i32_0 : i32, i32
  }
  func.func @transform_2(%arg0: i32) -> (i32, i32) {
    %c0_i32 = arith.constant 0 : i32
    %c0_i32_0 = arith.constant 0 : i32
    %c0_i32_1 = arith.constant 0 : i32
    return %c0_i32, %c0_i32_0 : i32, i32
  }
  func.func @transform_3(%arg0: i32) -> (i32, i32) {
    %c0_i32 = arith.constant 0 : i32
    %c0_i32_0 = arith.constant 0 : i32
    %c0_i32_1 = arith.constant 0 : i32
    return %c0_i32, %c0_i32_0 : i32, i32
  }
  func.func @transform_4(%arg0: i32) -> (i32, i32) {
    %c0_i32 = arith.constant 0 : i32
    %c0_i32_0 = arith.constant 0 : i32
    %c0_i32_1 = arith.constant 0 : i32
    return %c0_i32, %c0_i32_0 : i32, i32
  }
  func.func @transform_5(%arg0: i32) -> (i32, i32) {
    %c0_i32 = arith.constant 0 : i32
    %c0_i32_0 = arith.constant 0 : i32
    %c0_i32_1 = arith.constant 0 : i32
    return %c0_i32, %c0_i32_0 : i32, i32
  }
  func.func @transform_6(%arg0: i32) -> (i32, i32, i32) {
    %c0_i32 = arith.constant 0 : i32
    %c0_i32_0 = arith.constant 0 : i32
    %c0_i32_1 = arith.constant 0 : i32
    %c0_i32_2 = arith.constant 0 : i32
    return %c0_i32, %c0_i32_0, %c0_i32_1 : i32, i32, i32
  }
  func.func @transform_7(%arg0: i32) -> (i32, i32) {
    %c0_i32 = arith.constant 0 : i32
    %c0_i32_0 = arith.constant 0 : i32
    %c0_i32_1 = arith.constant 0 : i32
    return %c0_i32, %c0_i32_0 : i32, i32
  }
  func.func @transform_8(%arg0: i32) -> (i32, i32) {
    %c0_i32 = arith.constant 0 : i32
    %c0_i32_0 = arith.constant 0 : i32
    %c0_i32_1 = arith.constant 0 : i32
    return %c0_i32, %c0_i32_0 : i32, i32
  }
  func.func @transform_9(%arg0: i32) -> (i32, i32) {
    %c0_i32 = arith.constant 0 : i32
    %c0_i32_0 = arith.constant 0 : i32
    %c0_i32_1 = arith.constant 0 : i32
    return %c0_i32, %c0_i32_0 : i32, i32
  }
  func.func @transform_10(%arg0: i32) -> (i32, i32, i32) {
    %c0_i32 = arith.constant 0 : i32
    %c0_i32_0 = arith.constant 0 : i32
    %c0_i32_1 = arith.constant 0 : i32
    %c0_i32_2 = arith.constant 0 : i32
    return %c0_i32, %c0_i32_0, %c0_i32_1 : i32, i32, i32
  }
  func.func @transform_11(%arg0: i32) -> (i32, i32) {
    %c0_i32 = arith.constant 0 : i32
    %c0_i32_0 = arith.constant 0 : i32
    %c0_i32_1 = arith.constant 0 : i32
    return %c0_i32, %c0_i32_0 : i32, i32
  }
  func.func @transform_12(%arg0: i32) -> (i32, i32, i32) {
    %c0_i32 = arith.constant 0 : i32
    %c0_i32_0 = arith.constant 0 : i32
    %c0_i32_1 = arith.constant 0 : i32
    %c0_i32_2 = arith.constant 0 : i32
    return %c0_i32, %c0_i32_0, %c0_i32_1 : i32, i32, i32
  }
  func.func @transform_13(%arg0: i32) -> (i32, i32) {
    %c0_i32 = arith.constant 0 : i32
    %c0_i32_0 = arith.constant 0 : i32
    %c0_i32_1 = arith.constant 0 : i32
    return %c0_i32, %c0_i32_0 : i32, i32
  }
  func.func @transform_14(%arg0: i32) -> (i32, i32) {
    %c0_i32 = arith.constant 0 : i32
    %c0_i32_0 = arith.constant 0 : i32
    %c0_i32_1 = arith.constant 0 : i32
    return %c0_i32, %c0_i32_0 : i32, i32
  }
  func.func @transform_15(%arg0: i32) -> (i32, i32) {
    %c0_i32 = arith.constant 0 : i32
    %c0_i32_0 = arith.constant 0 : i32
    %c0_i32_1 = arith.constant 0 : i32
    return %c0_i32, %c0_i32_0 : i32, i32
  }
  func.func @transform_16(%arg0: i32) -> (i32, i32, i32) {
    %c0_i32 = arith.constant 0 : i32
    %c0_i32_0 = arith.constant 0 : i32
    %c0_i32_1 = arith.constant 0 : i32
    %c0_i32_2 = arith.constant 0 : i32
    return %c0_i32, %c0_i32_0, %c0_i32_1 : i32, i32, i32
  }
  func.func @transform_17(%arg0: i32) -> (i32, i32) {
    %c0_i32 = arith.constant 0 : i32
    %c0_i32_0 = arith.constant 0 : i32
    %c0_i32_1 = arith.constant 0 : i32
    return %c0_i32, %c0_i32_0 : i32, i32
  }
  func.func @transform_18(%arg0: i32) -> (i32, i32) {
    %c0_i32 = arith.constant 0 : i32
    %c0_i32_0 = arith.constant 0 : i32
    %c0_i32_1 = arith.constant 0 : i32
    return %c0_i32, %c0_i32_0 : i32, i32
  }
  func.func @transform_19(%arg0: i32) -> (i32, i32) {
    %c0_i32 = arith.constant 0 : i32
    %c0_i32_0 = arith.constant 0 : i32
    %c0_i32_1 = arith.constant 0 : i32
    return %c0_i32, %c0_i32_0 : i32, i32
  }
  func.func @transform_20(%arg0: i32) -> (i32, i32) {
    %c0_i32 = arith.constant 0 : i32
    %c0_i32_0 = arith.constant 0 : i32
    return %arg0, %c0_i32 : i32, i32
  }
  func.func @transform_21(%arg0: i32) -> (i32, i32) {
    %c0_i32 = arith.constant 0 : i32
    %c0_i32_0 = arith.constant 0 : i32
    return %arg0, %c0_i32 : i32, i32
  }
}

</mosaic_0001>

<llo_original>
// kernel: summarizing_model_forward.1
$region0: #{summarizing_model_forward.1}
  #allocation0 [shape = 'u32[]', space=smem, size = 0x4, offset = 0x4, fixed_abs, tag = 'smem constant byte address 0x4 - core index']
  #allocation1 [shape = 'u32[144,128]{1,0:T(1,128)}', space=vmem, size = 0x12000, scoped, tag = 'internal scratch']
  %s0 = inlined_call_operand.vmem [shape: bf16[512,32], index: 0, kind: input, shape index: {}]
  %s1 = inlined_call_operand.vmem [shape: bf16[32,128], index: 1, kind: input, shape index: {}]
  %s2 = inlined_call_operand.vmem [shape: f32[1,128], index: 2, kind: input, shape index: {}]
  %s3 = inlined_call_operand.vmem [shape: f32[1,128], index: 3, kind: input, shape index: {}]
  %s4 = inlined_call_operand.vmem [shape: f32[1,128], index: 4, kind: input, shape index: {}]
  %s5 = inlined_call_operand.vmem [shape: bf16[128,512], index: 5, kind: input, shape index: {}]
  %s6 = inlined_call_operand.vmem [shape: bf16[9,128,128], index: 6, kind: input, shape index: {}]
  %s7 = inlined_call_operand.vmem [shape: f32[1,128], index: 7, kind: input, shape index: {}]
  %s8 = inlined_call_operand.vmem [shape: f32[1,128], index: 8, kind: input, shape index: {}]
  %s9 = inlined_call_operand.vmem [shape: f32[1,128], index: 9, kind: input, shape index: {}]
  %s10 = inlined_call_operand.vmem [shape: f32[9,128,1], index: 10, kind: input, shape index: {}]
  %s11 = inlined_call_operand.vmem [shape: bf16[32,128], index: 11, kind: input, shape index: {}]
  %s12 = inlined_call_operand.vmem [shape: bf16[9,128,128], index: 12, kind: input, shape index: {}]
  %s13 = inlined_call_operand.vmem [shape: f32[1,128], index: 13, kind: input, shape index: {}]
  %s14 = inlined_call_operand.vmem [shape: f32[1,128], index: 14, kind: input, shape index: {}]
  %s15 = inlined_call_operand.vmem [shape: f32[1,128], index: 15, kind: input, shape index: {}]
  %s16 = inlined_call_operand.vmem [shape: f32[9,32,1], index: 16, kind: input, shape index: {}]
  %s17 = inlined_call_operand.vmem [shape: bf16[8,32], index: 17, kind: input, shape index: {}]
  %s18 = inlined_call_operand.vmem [shape: bf16[512,128], index: 18, kind: input, shape index: {}]
  %s19 = inlined_call_operand.vmem [shape: f32[1,128], index: 19, kind: input, shape index: {}]
  %s20 = inlined_call_operand.vmem [shape: f32[8,128], index: 20, kind: output, shape index: {0}]
  %s21 = inlined_call_operand.hbm [shape: f32[2,128], index: 21, kind: output, shape index: {1}]
  %22 = xla_tuple %s20, %s21
  %s23 = sld [smem:[#allocation0]]
  $region98: #{summarizing_model_forward.1} parent=0
    _
  %s25 = ssub.s32 1, %s23
  %s26 = scalar_select 0, %s25, %s23
  $region1: #{summarizing_model_forward.1} parent=0
    #allocation2 [shape = 'u8[1024]{0}', space=vmem, size = 0x400, scoped, tag = 'output window, operand 1, single buffered']
    #allocation3 [shape = 's32[1]{0}', space=sflag, size = 0x4, scoped, tag = 'scoped memory for summarizing_model_forward.1']
    %27 = vsyncpa [#allocation3], 0
    // Predicated region
    $region2: #{summarizing_model_forward.1} parent=1 // pred_check
      _
    $region3: #{summarizing_model_forward.1} parent=1 // pred_check_branch
      %29 = sbr.rel (0) target = $region5
    $region4: #{summarizing_model_forward.1} parent=1 // pred_region
      _
    $region5: #{summarizing_model_forward.1} parent=1 // pred_fallthru
      _
    // Predicated region
    $region6: #{summarizing_model_forward.1} parent=1 // pred_check
      _
    $region7: #{summarizing_model_forward.1} parent=1 // pred_check_branch
      %31 = sbr.rel (0) target = $region9
    $region8: #{summarizing_model_forward.1} parent=1 // pred_region
      _
    $region9: #{summarizing_model_forward.1} parent=1 // pred_fallthru
      _
    // Predicated region
    $region10: #{summarizing_model_forward.1} parent=1 // pred_check
      _
    $region11: #{summarizing_model_forward.1} parent=1 // pred_check_branch
      %33 = sbr.rel (0) target = $region13
    $region12: #{summarizing_model_forward.1} parent=1 // pred_region
      _
    $region13: #{summarizing_model_forward.1} parent=1 // pred_fallthru
      _
    // Predicated region
    $region14: #{summarizing_model_forward.1} parent=1 // pred_check
      _
    $region15: #{summarizing_model_forward.1} parent=1 // pred_check_branch
      %35 = sbr.rel (0) target = $region17
    $region16: #{summarizing_model_forward.1} parent=1 // pred_region
      _
    $region17: #{summarizing_model_forward.1} parent=1 // pred_fallthru
      _
    // Predicated region
    $region18: #{summarizing_model_forward.1} parent=1 // pred_check
      _
    $region19: #{summarizing_model_forward.1} parent=1 // pred_check_branch
      %37 = sbr.rel (0) target = $region21
    $region20: #{summarizing_model_forward.1} parent=1 // pred_region
      _
    $region21: #{summarizing_model_forward.1} parent=1 // pred_fallthru
      _
    // Predicated region
    $region22: #{summarizing_model_forward.1} parent=1 // pred_check
      _
    $region23: #{summarizing_model_forward.1} parent=1 // pred_check_branch
      %39 = sbr.rel (0) target = $region25
    $region24: #{summarizing_model_forward.1} parent=1 // pred_region
      _
    $region25: #{summarizing_model_forward.1} parent=1 // pred_fallthru
      _
    // Predicated region
    $region26: #{summarizing_model_forward.1} parent=1 // pred_check
      _
    $region27: #{summarizing_model_forward.1} parent=1 // pred_check_branch
      %41 = sbr.rel (0) target = $region29
    $region28: #{summarizing_model_forward.1} parent=1 // pred_region
      _
    $region29: #{summarizing_model_forward.1} parent=1 // pred_fallthru
      _
    // Predicated region
    $region30: #{summarizing_model_forward.1} parent=1 // pred_check
      _
    $region31: #{summarizing_model_forward.1} parent=1 // pred_check_branch
      %43 = sbr.rel (0) target = $region33
    $region32: #{summarizing_model_forward.1} parent=1 // pred_region
      _
    $region33: #{summarizing_model_forward.1} parent=1 // pred_fallthru
      _
    // Predicated region
    $region34: #{summarizing_model_forward.1} parent=1 // pred_check
      _
    $region35: #{summarizing_model_forward.1} parent=1 // pred_check_branch
      %45 = sbr.rel (0) target = $region37
    $region36: #{summarizing_model_forward.1} parent=1 // pred_region
      _
    $region37: #{summarizing_model_forward.1} parent=1 // pred_fallthru
      _
    // Predicated region
    $region38: #{summarizing_model_forward.1} parent=1 // pred_check
      _
    $region39: #{summarizing_model_forward.1} parent=1 // pred_check_branch
      %47 = sbr.rel (0) target = $region41
    $region40: #{summarizing_model_forward.1} parent=1 // pred_region
      _
    $region41: #{summarizing_model_forward.1} parent=1 // pred_fallthru
      _
    // Predicated region
    $region42: #{summarizing_model_forward.1} parent=1 // pred_check
      _
    $region43: #{summarizing_model_forward.1} parent=1 // pred_check_branch
      %49 = sbr.rel (0) target = $region45
    $region44: #{summarizing_model_forward.1} parent=1 // pred_region
      _
    $region45: #{summarizing_model_forward.1} parent=1 // pred_fallthru
      _
    // Predicated region
    $region46: #{summarizing_model_forward.1} parent=1 // pred_check
      _
    $region47: #{summarizing_model_forward.1} parent=1 // pred_check_branch
      %51 = sbr.rel (0) target = $region49
    $region48: #{summarizing_model_forward.1} parent=1 // pred_region
      _
    $region49: #{summarizing_model_forward.1} parent=1 // pred_fallthru
      _
    // Predicated region
    $region50: #{summarizing_model_forward.1} parent=1 // pred_check
      _
    $region51: #{summarizing_model_forward.1} parent=1 // pred_check_branch
      %53 = sbr.rel (0) target = $region53
    $region52: #{summarizing_model_forward.1} parent=1 // pred_region
      _
    $region53: #{summarizing_model_forward.1} parent=1 // pred_fallthru
      _
    // Predicated region
    $region54: #{summarizing_model_forward.1} parent=1 // pred_check
      _
    $region55: #{summarizing_model_forward.1} parent=1 // pred_check_branch
      %55 = sbr.rel (0) target = $region57
    $region56: #{summarizing_model_forward.1} parent=1 // pred_region
      _
    $region57: #{summarizing_model_forward.1} parent=1 // pred_fallthru
      _
    // Predicated region
    $region58: #{summarizing_model_forward.1} parent=1 // pred_check
      _
    $region59: #{summarizing_model_forward.1} parent=1 // pred_check_branch
      %57 = sbr.rel (0) target = $region61
    $region60: #{summarizing_model_forward.1} parent=1 // pred_region
      _
    $region61: #{summarizing_model_forward.1} parent=1 // pred_fallthru
      _
    // Predicated region
    $region62: #{summarizing_model_forward.1} parent=1 // pred_check
      _
    $region63: #{summarizing_model_forward.1} parent=1 // pred_check_branch
      %59 = sbr.rel (0) target = $region65
    $region64: #{summarizing_model_forward.1} parent=1 // pred_region
      _
    $region65: #{summarizing_model_forward.1} parent=1 // pred_fallthru
      _
    // Predicated region
    $region66: #{summarizing_model_forward.1} parent=1 // pred_check
      _
    $region67: #{summarizing_model_forward.1} parent=1 // pred_check_branch
      %61 = sbr.rel (0) target = $region69
    $region68: #{summarizing_model_forward.1} parent=1 // pred_region
      _
    $region69: #{summarizing_model_forward.1} parent=1 // pred_fallthru
      _
    // Predicated region
    $region70: #{summarizing_model_forward.1} parent=1 // pred_check
      _
    $region71: #{summarizing_model_forward.1} parent=1 // pred_check_branch
      %63 = sbr.rel (0) target = $region73
    $region72: #{summarizing_model_forward.1} parent=1 // pred_region
      _
    $region73: #{summarizing_model_forward.1} parent=1 // pred_fallthru
      _
    // Predicated region
    $region74: #{summarizing_model_forward.1} parent=1 // pred_check
      _
    $region75: #{summarizing_model_forward.1} parent=1 // pred_check_branch
      %65 = sbr.rel (0) target = $region77
    $region76: #{summarizing_model_forward.1} parent=1 // pred_region
      _
    $region77: #{summarizing_model_forward.1} parent=1 // pred_fallthru
      _
    // Predicated region
    $region78: #{summarizing_model_forward.1} parent=1 // pred_check
      _
    $region79: #{summarizing_model_forward.1} parent=1 // pred_check_branch
      %67 = sbr.rel (0) target = $region81
    $region80: #{summarizing_model_forward.1} parent=1 // pred_region
      _
    $region81: #{summarizing_model_forward.1} parent=1 // pred_fallthru
      _
    %v69 = vld [vmem:[%s0] sm:$0xf]
    %v70 = vld [vmem:[%s0 + $0x4] sm:$0xf]
    %v71 = vld [vmem:[%s0 + $0x8] sm:$0xf]
    %v72 = vld [vmem:[%s0 + $0xc] sm:$0xf]
    %v73 = vld [vmem:[%s0 + $0x10] sm:$0xf]
    %v74 = vld [vmem:[%s0 + $0x14] sm:$0xf]
    %v75 = vld [vmem:[%s0 + $0x18] sm:$0xf]
    %v76 = vld [vmem:[%s0 + $0x1c] sm:$0xf]
    %v77 = vld [vmem:[%s0 + $0x20] sm:$0xf]
    %v78 = vld [vmem:[%s0 + $0x24] sm:$0xf]
    %v79 = vld [vmem:[%s0 + $0x28] sm:$0xf]
    %v80 = vld [vmem:[%s0 + $0x2c] sm:$0xf]
    %v81 = vld [vmem:[%s0 + $0x30] sm:$0xf]
    %v82 = vld [vmem:[%s0 + $0x34] sm:$0xf]
    %v83 = vld [vmem:[%s0 + $0x38] sm:$0xf]
    %v84 = vld [vmem:[%s0 + $0x3c] sm:$0xf]
    %v85 = vld [vmem:[%s0 + $0x40] sm:$0xf]
    %v86 = vld [vmem:[%s0 + $0x44] sm:$0xf]
    %v87 = vld [vmem:[%s0 + $0x48] sm:$0xf]
    %v88 = vld [vmem:[%s0 + $0x4c] sm:$0xf]
    %v89 = vld [vmem:[%s0 + $0x50] sm:$0xf]
    %v90 = vld [vmem:[%s0 + $0x54] sm:$0xf]
    %v91 = vld [vmem:[%s0 + $0x58] sm:$0xf]
    %v92 = vld [vmem:[%s0 + $0x5c] sm:$0xf]
    %v93 = vld [vmem:[%s0 + $0x60] sm:$0xf]
    %v94 = vld [vmem:[%s0 + $0x64] sm:$0xf]
    %v95 = vld [vmem:[%s0 + $0x68] sm:$0xf]
    %v96 = vld [vmem:[%s0 + $0x6c] sm:$0xf]
    %v97 = vld [vmem:[%s0 + $0x70] sm:$0xf]
    %v98 = vld [vmem:[%s0 + $0x74] sm:$0xf]
    %v99 = vld [vmem:[%s0 + $0x78] sm:$0xf]
    %v100 = vld [vmem:[%s0 + $0x7c] sm:$0xf]
    %v101 = vld [vmem:[%s0 + $0x80] sm:$0xf]
    %v102 = vld [vmem:[%s0 + $0x84] sm:$0xf]
    %v103 = vld [vmem:[%s0 + $0x88] sm:$0xf]
    %v104 = vld [vmem:[%s0 + $0x8c] sm:$0xf]
    %v105 = vld [vmem:[%s0 + $0x90] sm:$0xf]
    %v106 = vld [vmem:[%s0 + $0x94] sm:$0xf]
    %v107 = vld [vmem:[%s0 + $0x98] sm:$0xf]
    %v108 = vld [vmem:[%s0 + $0x9c] sm:$0xf]
    %v109 = vld [vmem:[%s0 + $0xa0] sm:$0xf]
    %v110 = vld [vmem:[%s0 + $0xa4] sm:$0xf]
    %v111 = vld [vmem:[%s0 + $0xa8] sm:$0xf]
    %v112 = vld [vmem:[%s0 + $0xac] sm:$0xf]
    %v113 = vld [vmem:[%s0 + $0xb0] sm:$0xf]
    %v114 = vld [vmem:[%s0 + $0xb4] sm:$0xf]
    %v115 = vld [vmem:[%s0 + $0xb8] sm:$0xf]
    %v116 = vld [vmem:[%s0 + $0xbc] sm:$0xf]
    %v117 = vld [vmem:[%s0 + $0xc0] sm:$0xf]
    %v118 = vld [vmem:[%s0 + $0xc4] sm:$0xf]
    %v119 = vld [vmem:[%s0 + $0xc8] sm:$0xf]
    %v120 = vld [vmem:[%s0 + $0xcc] sm:$0xf]
    %v121 = vld [vmem:[%s0 + $0xd0] sm:$0xf]
    %v122 = vld [vmem:[%s0 + $0xd4] sm:$0xf]
    %v123 = vld [vmem:[%s0 + $0xd8] sm:$0xf]
    %v124 = vld [vmem:[%s0 + $0xdc] sm:$0xf]
    %v125 = vld [vmem:[%s0 + $0xe0] sm:$0xf]
    %v126 = vld [vmem:[%s0 + $0xe4] sm:$0xf]
    %v127 = vld [vmem:[%s0 + $0xe8] sm:$0xf]
    %v128 = vld [vmem:[%s0 + $0xec] sm:$0xf]
    %v129 = vld [vmem:[%s0 + $0xf0] sm:$0xf]
    %v130 = vld [vmem:[%s0 + $0xf4] sm:$0xf]
    %v131 = vld [vmem:[%s0 + $0xf8] sm:$0xf]
    %v132 = vld [vmem:[%s0 + $0xfc] sm:$0xf]
    %v133 = vld [vmem:[%s1] sm:$0xf]
    %v134 = vld [vmem:[%s1 + $0x4] sm:$0xf]
    %v135 = vld [vmem:[%s1 + $0x8] sm:$0xf]
    %v136 = vld [vmem:[%s1 + $0xc] sm:$0xf]
    %v137 = vld [vmem:[%s2] sm:$0x1]
    %v139 = vlaneseq
    %v140 = vshrl.u32 %v139, 7
    %v141 = vsub.s32 0, %v140
    %v142 = vrot.slane %v137, %v141
    %v208 = vunpack.c.l.b16 %v69
    %v209 = vunpack.c.l.b16 %v70
    %v210 = vunpack.c.l.b16 %v71
    %v211 = vunpack.c.l.b16 %v72
    %v212 = vunpack.c.l.b16 %v73
    %v213 = vunpack.c.l.b16 %v74
    %v214 = vunpack.c.l.b16 %v75
    %v215 = vunpack.c.l.b16 %v76
    %v216 = vunpack.c.l.b16 %v77
    %v217 = vunpack.c.l.b16 %v78
    %v218 = vunpack.c.l.b16 %v79
    %v219 = vunpack.c.l.b16 %v80
    %v220 = vunpack.c.l.b16 %v81
    %v221 = vunpack.c.l.b16 %v82
    %v222 = vunpack.c.l.b16 %v83
    %v223 = vunpack.c.l.b16 %v84
    %v224 = vunpack.c.l.b16 %v85
    %v225 = vunpack.c.l.b16 %v86
    %v226 = vunpack.c.l.b16 %v87
    %v227 = vunpack.c.l.b16 %v88
    %v228 = vunpack.c.l.b16 %v89
    %v229 = vunpack.c.l.b16 %v90
    %v230 = vunpack.c.l.b16 %v91
    %v231 = vunpack.c.l.b16 %v92
    %v232 = vunpack.c.l.b16 %v93
    %v233 = vunpack.c.l.b16 %v94
    %v234 = vunpack.c.l.b16 %v95
    %v235 = vunpack.c.l.b16 %v96
    %v236 = vunpack.c.l.b16 %v97
    %v237 = vunpack.c.l.b16 %v98
    %v238 = vunpack.c.l.b16 %v99
    %v239 = vunpack.c.l.b16 %v100
    %v240 = vunpack.c.l.b16 %v101
    %v241 = vunpack.c.l.b16 %v102
    %v242 = vunpack.c.l.b16 %v103
    %v243 = vunpack.c.l.b16 %v104
    %v244 = vunpack.c.l.b16 %v105
    %v245 = vunpack.c.l.b16 %v106
    %v246 = vunpack.c.l.b16 %v107
    %v247 = vunpack.c.l.b16 %v108
    %v248 = vunpack.c.l.b16 %v109
    %v249 = vunpack.c.l.b16 %v110
    %v250 = vunpack.c.l.b16 %v111
    %v251 = vunpack.c.l.b16 %v112
    %v252 = vunpack.c.l.b16 %v113
    %v253 = vunpack.c.l.b16 %v114
    %v254 = vunpack.c.l.b16 %v115
    %v255 = vunpack.c.l.b16 %v116
    %v256 = vunpack.c.l.b16 %v117
    %v257 = vunpack.c.l.b16 %v118
    %v258 = vunpack.c.l.b16 %v119
    %v259 = vunpack.c.l.b16 %v120
    %v260 = vunpack.c.l.b16 %v121
    %v261 = vunpack.c.l.b16 %v122
    %v262 = vunpack.c.l.b16 %v123
    %v263 = vunpack.c.l.b16 %v124
    %v264 = vunpack.c.l.b16 %v125
    %v265 = vunpack.c.l.b16 %v126
    %v266 = vunpack.c.l.b16 %v127
    %v267 = vunpack.c.l.b16 %v128
    %v268 = vunpack.c.l.b16 %v129
    %v269 = vunpack.c.l.b16 %v130
    %v270 = vunpack.c.l.b16 %v131
    %v271 = vunpack.c.l.b16 %v132
    %v272 = vpack.c.b16 %v209, %v208
    %v273 = vpack.c.b16 %v211, %v210
    %v274 = vpack.c.b16 %v213, %v212
    %v275 = vpack.c.b16 %v215, %v214
    %v276 = vpack.c.b16 %v217, %v216
    %v277 = vpack.c.b16 %v219, %v218
    %v278 = vpack.c.b16 %v221, %v220
    %v279 = vpack.c.b16 %v223, %v222
    %v280 = vpack.c.b16 %v225, %v224
    %v281 = vpack.c.b16 %v227, %v226
    %v282 = vpack.c.b16 %v229, %v228
    %v283 = vpack.c.b16 %v231, %v230
    %v284 = vpack.c.b16 %v233, %v232
    %v285 = vpack.c.b16 %v235, %v234
    %v286 = vpack.c.b16 %v237, %v236
    %v287 = vpack.c.b16 %v239, %v238
    %v288 = vpack.c.b16 %v241, %v240
    %v289 = vpack.c.b16 %v243, %v242
    %v290 = vpack.c.b16 %v245, %v244
    %v291 = vpack.c.b16 %v247, %v246
    %v292 = vpack.c.b16 %v249, %v248
    %v293 = vpack.c.b16 %v251, %v250
    %v294 = vpack.c.b16 %v253, %v252
    %v295 = vpack.c.b16 %v255, %v254
    %v296 = vpack.c.b16 %v257, %v256
    %v297 = vpack.c.b16 %v259, %v258
    %v298 = vpack.c.b16 %v261, %v260
    %v299 = vpack.c.b16 %v263, %v262
    %v300 = vpack.c.b16 %v265, %v264
    %v301 = vpack.c.b16 %v267, %v266
    %v302 = vpack.c.b16 %v269, %v268
    %v303 = vpack.c.b16 %v271, %v270
    %v308 = vunpack.c.l.b16 %v133
    %v309 = vunpack.c.l.b16 %v134
    %v310 = vunpack.c.l.b16 %v135
    %v311 = vunpack.c.l.b16 %v136
    %v312 = vpack.c.b16 %v309, %v308
    %v313 = vpack.c.b16 %v311, %v310
    %vm316 = vcmask 261120
    %v318 = vsel %vm316, %v272, 0
    %v321 = vsel %vm316, %v273, 0
    %v324 = vsel %vm316, %v274, 0
    %v327 = vsel %vm316, %v275, 0
    %v330 = vsel %vm316, %v276, 0
    %v333 = vsel %vm316, %v277, 0
    %v336 = vsel %vm316, %v278, 0
    %v339 = vsel %vm316, %v279, 0
    %v342 = vsel %vm316, %v280, 0
    %v345 = vsel %vm316, %v281, 0
    %v348 = vsel %vm316, %v282, 0
    %v351 = vsel %vm316, %v283, 0
    %v354 = vsel %vm316, %v284, 0
    %v357 = vsel %vm316, %v285, 0
    %v360 = vsel %vm316, %v286, 0
    %v363 = vsel %vm316, %v287, 0
    %v366 = vsel %vm316, %v288, 0
    %v369 = vsel %vm316, %v289, 0
    %v372 = vsel %vm316, %v290, 0
    %v375 = vsel %vm316, %v291, 0
    %v378 = vsel %vm316, %v292, 0
    %v381 = vsel %vm316, %v293, 0
    %v384 = vsel %vm316, %v294, 0
    %v387 = vsel %vm316, %v295, 0
    %v390 = vsel %vm316, %v296, 0
    %v393 = vsel %vm316, %v297, 0
    %v396 = vsel %vm316, %v298, 0
    %v399 = vsel %vm316, %v299, 0
    %v402 = vsel %vm316, %v300, 0
    %v405 = vsel %vm316, %v301, 0
    %v408 = vsel %vm316, %v302, 0
    %v411 = vsel %vm316, %v303, 0
    %413 = vmatprep.subr.bf16.mxu0 0
    %414 = vmatpush1.bf16.msra.mxu0 %v312
    %415 = vmatprep.subr.bf16.mxu0 0
    %416 = vmatpush1.bf16.msra.mxu0 %v313
    %417 = vmatprep.subr.bf16.mxu0 0
    %418 = vmatpush1.bf16.msra.mxu0 0
    %419 = vmatprep.subr.bf16.mxu0 0
    %420 = vmatpush1.bf16.msra.mxu0 0
    %421 = vmatprep.subr.bf16.mxu0 0
    %422 = vmatpush1.bf16.msra.mxu0 0
    %423 = vmatprep.subr.bf16.mxu0 0
    %424 = vmatpush1.bf16.msra.mxu0 0
    %425 = vmatprep.subr.bf16.mxu0 0
    %426 = vmatpush1.bf16.msra.mxu0 0
    %427 = vmatprep.subr.bf16.mxu0 0
    %428 = vmatpush1.bf16.msra.mxu0 0
    %429 = vmatprep.subr.bf16.mxu0 0
    %430 = vmatpush1.bf16.msra.mxu0 0
    %431 = vmatprep.subr.bf16.mxu0 0
    %432 = vmatpush1.bf16.msra.mxu0 0
    %433 = vmatprep.subr.bf16.mxu0 0
    %434 = vmatpush1.bf16.msra.mxu0 0
    %435 = vmatprep.subr.bf16.mxu0 0
    %436 = vmatpush1.bf16.msra.mxu0 0
    %437 = vmatprep.subr.bf16.mxu0 0
    %438 = vmatpush1.bf16.msra.mxu0 0
    %439 = vmatprep.subr.bf16.mxu0 0
    %440 = vmatpush1.bf16.msra.mxu0 0
    %441 = vmatprep.subr.bf16.mxu0 0
    %442 = vmatpush1.bf16.msra.mxu0 0
    %443 = vmatprep.subr.bf16.mxu0 0
    %444 = vmatpush1.bf16.msra.mxu0 0
    %445 = vmatprep.mubr.bf16.mxu0 0
    %446 = vmatmul.mubr.bf16.gmra.mrb[0].mxu0 %v318
    %v447 = vpop.f32.mrb[0].mxu0
    %v448 = vadd.f32 %v142, %v447
    %v449 = vpop.f32.mrb[0].mxu0
    %v450 = vpop.f32.mrb[0].mxu0
    %v451 = vadd.f32 %v142, %v450
    %v452 = vpop.f32.mrb[0].mxu0
    %453 = vmatprep.mubr.bf16.mxu0 0
    %454 = vmatmul.mubr.bf16.gmra.mrb[0].mxu0 %v321
    %v455 = vpop.f32.mrb[0].mxu0
    %v456 = vadd.f32 %v142, %v455
    %v457 = vpop.f32.mrb[0].mxu0
    %v458 = vpop.f32.mrb[0].mxu0
    %v459 = vadd.f32 %v142, %v458
    %v460 = vpop.f32.mrb[0].mxu0
    %461 = vmatprep.mubr.bf16.mxu0 0
    %462 = vmatmul.mubr.bf16.gmra.mrb[0].mxu0 %v324
    %v463 = vpop.f32.mrb[0].mxu0
    %v464 = vadd.f32 %v142, %v463
    %v465 = vpop.f32.mrb[0].mxu0
    %v466 = vpop.f32.mrb[0].mxu0
    %v467 = vadd.f32 %v142, %v466
    %v468 = vpop.f32.mrb[0].mxu0
    %469 = vmatprep.mubr.bf16.mxu0 0
    %470 = vmatmul.mubr.bf16.gmra.mrb[0].mxu0 %v327
    %v471 = vpop.f32.mrb[0].mxu0
    %v472 = vadd.f32 %v142, %v471
    %v473 = vpop.f32.mrb[0].mxu0
    %v474 = vpop.f32.mrb[0].mxu0
    %v475 = vadd.f32 %v142, %v474
    %v476 = vpop.f32.mrb[0].mxu0
    %477 = vmatprep.mubr.bf16.mxu0 0
    %478 = vmatmul.mubr.bf16.gmra.mrb[0].mxu0 %v330
    %v479 = vpop.f32.mrb[0].mxu0
    %v480 = vadd.f32 %v142, %v479
    %v481 = vpop.f32.mrb[0].mxu0
    %v482 = vpop.f32.mrb[0].mxu0
    %v483 = vadd.f32 %v142, %v482
    %v484 = vpop.f32.mrb[0].mxu0
    %485 = vmatprep.mubr.bf16.mxu0 0
    %486 = vmatmul.mubr.bf16.gmra.mrb[0].mxu0 %v333
    %v487 = vpop.f32.mrb[0].mxu0
    %v488 = vadd.f32 %v142, %v487
    %v489 = vpop.f32.mrb[0].mxu0
    %v490 = vpop.f32.mrb[0].mxu0
    %v491 = vadd.f32 %v142, %v490
    %v492 = vpop.f32.mrb[0].mxu0
    %493 = vmatprep.mubr.bf16.mxu0 0
    %494 = vmatmul.mubr.bf16.gmra.mrb[0].mxu0 %v336
    %v495 = vpop.f32.mrb[0].mxu0
    %v496 = vadd.f32 %v142, %v495
    %v497 = vpop.f32.mrb[0].mxu0
    %v498 = vpop.f32.mrb[0].mxu0
    %v499 = vadd.f32 %v142, %v498
    %v500 = vpop.f32.mrb[0].mxu0
    %501 = vmatprep.mubr.bf16.mxu0 0
    %502 = vmatmul.mubr.bf16.gmra.mrb[0].mxu0 %v339
    %v503 = vpop.f32.mrb[0].mxu0
    %v504 = vadd.f32 %v142, %v503
    %v505 = vpop.f32.mrb[0].mxu0
    %v506 = vpop.f32.mrb[0].mxu0
    %v507 = vadd.f32 %v142, %v506
    %v508 = vpop.f32.mrb[0].mxu0
    %509 = vmatprep.mubr.bf16.mxu0 0
    %510 = vmatmul.mubr.bf16.gmra.mrb[0].mxu0 %v342
    %v511 = vpop.f32.mrb[0].mxu0
    %v512 = vadd.f32 %v142, %v511
    %v513 = vpop.f32.mrb[0].mxu0
    %v514 = vpop.f32.mrb[0].mxu0
    %v515 = vadd.f32 %v142, %v514
    %v516 = vpop.f32.mrb[0].mxu0
    %517 = vmatprep.mubr.bf16.mxu0 0
    %518 = vmatmul.mubr.bf16.gmra.mrb[0].mxu0 %v345
    %v519 = vpop.f32.mrb[0].mxu0
    %v520 = vadd.f32 %v142, %v519
    %v521 = vpop.f32.mrb[0].mxu0
    %v522 = vpop.f32.mrb[0].mxu0
    %v523 = vadd.f32 %v142, %v522
    %v524 = vpop.f32.mrb[0].mxu0
    %525 = vmatprep.mubr.bf16.mxu0 0
    %526 = vmatmul.mubr.bf16.gmra.mrb[0].mxu0 %v348
    %v527 = vpop.f32.mrb[0].mxu0
    %v528 = vadd.f32 %v142, %v527
    %v529 = vpop.f32.mrb[0].mxu0
    %v530 = vpop.f32.mrb[0].mxu0
    %v531 = vadd.f32 %v142, %v530
    %v532 = vpop.f32.mrb[0].mxu0
    %533 = vmatprep.mubr.bf16.mxu0 0
    %534 = vmatmul.mubr.bf16.gmra.mrb[0].mxu0 %v351
    %v535 = vpop.f32.mrb[0].mxu0
    %v536 = vadd.f32 %v142, %v535
    %v537 = vpop.f32.mrb[0].mxu0
    %v538 = vpop.f32.mrb[0].mxu0
    %v539 = vadd.f32 %v142, %v538
    %v540 = vpop.f32.mrb[0].mxu0
    %541 = vmatprep.mubr.bf16.mxu0 0
    %542 = vmatmul.mubr.bf16.gmra.mrb[0].mxu0 %v354
    %v543 = vpop.f32.mrb[0].mxu0
    %v544 = vadd.f32 %v142, %v543
    %v545 = vpop.f32.mrb[0].mxu0
    %v546 = vpop.f32.mrb[0].mxu0
    %v547 = vadd.f32 %v142, %v546
    %v548 = vpop.f32.mrb[0].mxu0
    %549 = vmatprep.mubr.bf16.mxu0 0
    %550 = vmatmul.mubr.bf16.gmra.mrb[0].mxu0 %v357
    %v551 = vpop.f32.mrb[0].mxu0
    %v552 = vadd.f32 %v142, %v551
    %v553 = vpop.f32.mrb[0].mxu0
    %v554 = vpop.f32.mrb[0].mxu0
    %v555 = vadd.f32 %v142, %v554
    %v556 = vpop.f32.mrb[0].mxu0
    %557 = vmatprep.mubr.bf16.mxu0 0
    %558 = vmatmul.mubr.bf16.gmra.mrb[0].mxu0 %v360
    %v559 = vpop.f32.mrb[0].mxu0
    %v560 = vadd.f32 %v142, %v559
    %v561 = vpop.f32.mrb[0].mxu0
    %v562 = vpop.f32.mrb[0].mxu0
    %v563 = vadd.f32 %v142, %v562
    %v564 = vpop.f32.mrb[0].mxu0
    %565 = vmatprep.mubr.bf16.mxu0 0
    %566 = vmatmul.mubr.bf16.gmra.mrb[0].mxu0 %v363
    %v567 = vpop.f32.mrb[0].mxu0
    %v568 = vadd.f32 %v142, %v567
    %v569 = vpop.f32.mrb[0].mxu0
    %v570 = vpop.f32.mrb[0].mxu0
    %v571 = vadd.f32 %v142, %v570
    %v572 = vpop.f32.mrb[0].mxu0
    %573 = vmatprep.mubr.bf16.mxu0 0
    %574 = vmatmul.mubr.bf16.gmra.mrb[0].mxu0 %v366
    %v575 = vpop.f32.mrb[0].mxu0
    %v576 = vadd.f32 %v142, %v575
    %v577 = vpop.f32.mrb[0].mxu0
    %v578 = vpop.f32.mrb[0].mxu0
    %v579 = vadd.f32 %v142, %v578
    %v580 = vpop.f32.mrb[0].mxu0
    %581 = vmatprep.mubr.bf16.mxu0 0
    %582 = vmatmul.mubr.bf16.gmra.mrb[0].mxu0 %v369
    %v583 = vpop.f32.mrb[0].mxu0
    %v584 = vadd.f32 %v142, %v583
    %v585 = vpop.f32.mrb[0].mxu0
    %v586 = vpop.f32.mrb[0].mxu0
    %v587 = vadd.f32 %v142, %v586
    %v588 = vpop.f32.mrb[0].mxu0
    %589 = vmatprep.mubr.bf16.mxu0 0
    %590 = vmatmul.mubr.bf16.gmra.mrb[0].mxu0 %v372
    %v591 = vpop.f32.mrb[0].mxu0
    %v592 = vadd.f32 %v142, %v591
    %v593 = vpop.f32.mrb[0].mxu0
    %v594 = vpop.f32.mrb[0].mxu0
    %v595 = vadd.f32 %v142, %v594
    %v596 = vpop.f32.mrb[0].mxu0
    %597 = vmatprep.mubr.bf16.mxu0 0
    %598 = vmatmul.mubr.bf16.gmra.mrb[0].mxu0 %v375
    %v599 = vpop.f32.mrb[0].mxu0
    %v600 = vadd.f32 %v142, %v599
    %v601 = vpop.f32.mrb[0].mxu0
    %v602 = vpop.f32.mrb[0].mxu0
    %v603 = vadd.f32 %v142, %v602
    %v604 = vpop.f32.mrb[0].mxu0
    %605 = vmatprep.mubr.bf16.mxu0 0
    %606 = vmatmul.mubr.bf16.gmra.mrb[0].mxu0 %v378
    %v607 = vpop.f32.mrb[0].mxu0
    %v608 = vadd.f32 %v142, %v607
    %v609 = vpop.f32.mrb[0].mxu0
    %v610 = vpop.f32.mrb[0].mxu0
    %v611 = vadd.f32 %v142, %v610
    %v612 = vpop.f32.mrb[0].mxu0
    %613 = vmatprep.mubr.bf16.mxu0 0
    %614 = vmatmul.mubr.bf16.gmra.mrb[0].mxu0 %v381
    %v615 = vpop.f32.mrb[0].mxu0
    %v616 = vadd.f32 %v142, %v615
    %v617 = vpop.f32.mrb[0].mxu0
    %v618 = vpop.f32.mrb[0].mxu0
    %v619 = vadd.f32 %v142, %v618
    %v620 = vpop.f32.mrb[0].mxu0
    %621 = vmatprep.mubr.bf16.mxu0 0
    %622 = vmatmul.mubr.bf16.gmra.mrb[0].mxu0 %v384
    %v623 = vpop.f32.mrb[0].mxu0
    %v624 = vadd.f32 %v142, %v623
    %v625 = vpop.f32.mrb[0].mxu0
    %v626 = vpop.f32.mrb[0].mxu0
    %v627 = vadd.f32 %v142, %v626
    %v628 = vpop.f32.mrb[0].mxu0
    %629 = vmatprep.mubr.bf16.mxu0 0
    %630 = vmatmul.mubr.bf16.gmra.mrb[0].mxu0 %v387
    %v631 = vpop.f32.mrb[0].mxu0
    %v632 = vadd.f32 %v142, %v631
    %v633 = vpop.f32.mrb[0].mxu0
    %v634 = vpop.f32.mrb[0].mxu0
    %v635 = vadd.f32 %v142, %v634
    %v636 = vpop.f32.mrb[0].mxu0
    %637 = vmatprep.mubr.bf16.mxu0 0
    %638 = vmatmul.mubr.bf16.gmra.mrb[0].mxu0 %v390
    %v639 = vpop.f32.mrb[0].mxu0
    %v640 = vadd.f32 %v142, %v639
    %v641 = vpop.f32.mrb[0].mxu0
    %v642 = vpop.f32.mrb[0].mxu0
    %v643 = vadd.f32 %v142, %v642
    %v644 = vpop.f32.mrb[0].mxu0
    %645 = vmatprep.mubr.bf16.mxu0 0
    %646 = vmatmul.mubr.bf16.gmra.mrb[0].mxu0 %v393
    %v647 = vpop.f32.mrb[0].mxu0
    %v648 = vadd.f32 %v142, %v647
    %v649 = vpop.f32.mrb[0].mxu0
    %v650 = vpop.f32.mrb[0].mxu0
    %v651 = vadd.f32 %v142, %v650
    %v652 = vpop.f32.mrb[0].mxu0
    %653 = vmatprep.mubr.bf16.mxu0 0
    %654 = vmatmul.mubr.bf16.gmra.mrb[0].mxu0 %v396
    %v655 = vpop.f32.mrb[0].mxu0
    %v656 = vadd.f32 %v142, %v655
    %v657 = vpop.f32.mrb[0].mxu0
    %v658 = vpop.f32.mrb[0].mxu0
    %v659 = vadd.f32 %v142, %v658
    %v660 = vpop.f32.mrb[0].mxu0
    %661 = vmatprep.mubr.bf16.mxu0 0
    %662 = vmatmul.mubr.bf16.gmra.mrb[0].mxu0 %v399
    %v663 = vpop.f32.mrb[0].mxu0
    %v664 = vadd.f32 %v142, %v663
    %v665 = vpop.f32.mrb[0].mxu0
    %v666 = vpop.f32.mrb[0].mxu0
    %v667 = vadd.f32 %v142, %v666
    %v668 = vpop.f32.mrb[0].mxu0
    %669 = vmatprep.mubr.bf16.mxu0 0
    %670 = vmatmul.mubr.bf16.gmra.mrb[0].mxu0 %v402
    %v671 = vpop.f32.mrb[0].mxu0
    %v672 = vadd.f32 %v142, %v671
    %v673 = vpop.f32.mrb[0].mxu0
    %v674 = vpop.f32.mrb[0].mxu0
    %v675 = vadd.f32 %v142, %v674
    %v676 = vpop.f32.mrb[0].mxu0
    %677 = vmatprep.mubr.bf16.mxu0 0
    %678 = vmatmul.mubr.bf16.gmra.mrb[0].mxu0 %v405
    %v679 = vpop.f32.mrb[0].mxu0
    %v680 = vadd.f32 %v142, %v679
    %v681 = vpop.f32.mrb[0].mxu0
    %v682 = vpop.f32.mrb[0].mxu0
    %v683 = vadd.f32 %v142, %v682
    %v684 = vpop.f32.mrb[0].mxu0
    %685 = vmatprep.mubr.bf16.mxu0 0
    %686 = vmatmul.mubr.bf16.gmra.mrb[0].mxu0 %v408
    %v687 = vpop.f32.mrb[0].mxu0
    %v688 = vadd.f32 %v142, %v687
    %v689 = vpop.f32.mrb[0].mxu0
    %v690 = vpop.f32.mrb[0].mxu0
    %v691 = vadd.f32 %v142, %v690
    %v692 = vpop.f32.mrb[0].mxu0
    %693 = vmatprep.mubr.bf16.mxu0 0
    %694 = vmatmul.mubr.bf16.gmra.mrb[0].mxu0 %v411
    %v695 = vpop.f32.mrb[0].mxu0
    %v696 = vadd.f32 %v142, %v695
    %v697 = vpop.f32.mrb[0].mxu0
    %v698 = vpop.f32.mrb[0].mxu0
    %v699 = vadd.f32 %v142, %v698
    %v700 = vpop.f32.mrb[0].mxu0
    %701 = vdwg.mxu0
    %v702 = vld [vmem:[%s3] sm:$0x1]
    %v703 = vld [vmem:[%s4] sm:$0x1]
    %v704 = vadd.f32 %v448, %v451
    %v705 = vadd.f32 %v704, %v456
    %v706 = vadd.f32 %v705, %v459
    %v707 = vadd.f32 %v706, %v464
    %v708 = vadd.f32 %v707, %v467
    %v709 = vadd.f32 %v708, %v472
    %v710 = vadd.f32 %v709, %v475
    %v711 = vadd.f32 %v710, %v480
    %v712 = vadd.f32 %v711, %v483
    %v713 = vadd.f32 %v712, %v488
    %v714 = vadd.f32 %v713, %v491
    %v715 = vadd.f32 %v714, %v496
    %v716 = vadd.f32 %v715, %v499
    %v717 = vadd.f32 %v716, %v504
    %v718 = vadd.f32 %v717, %v507
    %v719 = vadd.f32 %v718, %v512
    %v720 = vadd.f32 %v719, %v515
    %v721 = vadd.f32 %v720, %v520
    %v722 = vadd.f32 %v721, %v523
    %v723 = vadd.f32 %v722, %v528
    %v724 = vadd.f32 %v723, %v531
    %v725 = vadd.f32 %v724, %v536
    %v726 = vadd.f32 %v725, %v539
    %v727 = vadd.f32 %v726, %v544
    %v728 = vadd.f32 %v727, %v547
    %v729 = vadd.f32 %v728, %v552
    %v730 = vadd.f32 %v729, %v555
    %v731 = vadd.f32 %v730, %v560
    %v732 = vadd.f32 %v731, %v563
    %v733 = vadd.f32 %v732, %v568
    %v734 = vadd.f32 %v733, %v571
    %v735 = vrot.slane %v734, 4
    %v736 = vadd.f32 %v734, %v735
    %v737 = vrot.slane %v736, 2
    %v738 = vadd.f32 %v736, %v737
    %v739 = vrot.slane %v738, 1
    %v740 = vadd.f32 %v738, %v739
    %v741 = vmul.f32 %v448, %v448
    %v742 = vmul.f32 %v451, %v451
    %v743 = vmul.f32 %v456, %v456
    %v744 = vmul.f32 %v459, %v459
    %v745 = vmul.f32 %v464, %v464
    %v746 = vmul.f32 %v467, %v467
    %v747 = vmul.f32 %v472, %v472
    %v748 = vmul.f32 %v475, %v475
    %v749 = vmul.f32 %v480, %v480
    %v750 = vmul.f32 %v483, %v483
    %v751 = vmul.f32 %v488, %v488
    %v752 = vmul.f32 %v491, %v491
    %v753 = vmul.f32 %v496, %v496
    %v754 = vmul.f32 %v499, %v499
    %v755 = vmul.f32 %v504, %v504
    %v756 = vmul.f32 %v507, %v507
    %v757 = vmul.f32 %v512, %v512
    %v758 = vmul.f32 %v515, %v515
    %v759 = vmul.f32 %v520, %v520
    %v760 = vmul.f32 %v523, %v523
    %v761 = vmul.f32 %v528, %v528
    %v762 = vmul.f32 %v531, %v531
    %v763 = vmul.f32 %v536, %v536
    %v764 = vmul.f32 %v539, %v539
    %v765 = vmul.f32 %v544, %v544
    %v766 = vmul.f32 %v547, %v547
    %v767 = vmul.f32 %v552, %v552
    %v768 = vmul.f32 %v555, %v555
    %v769 = vmul.f32 %v560, %v560
    %v770 = vmul.f32 %v563, %v563
    %v771 = vmul.f32 %v568, %v568
    %v772 = vmul.f32 %v571, %v571
    %v773 = vadd.f32 %v741, %v742
    %v774 = vadd.f32 %v773, %v743
    %v775 = vadd.f32 %v774, %v744
    %v776 = vadd.f32 %v775, %v745
    %v777 = vadd.f32 %v776, %v746
    %v778 = vadd.f32 %v777, %v747
    %v779 = vadd.f32 %v778, %v748
    %v780 = vadd.f32 %v779, %v749
    %v781 = vadd.f32 %v780, %v750
    %v782 = vadd.f32 %v781, %v751
    %v783 = vadd.f32 %v782, %v752
    %v784 = vadd.f32 %v783, %v753
    %v785 = vadd.f32 %v784, %v754
    %v786 = vadd.f32 %v785, %v755
    %v787 = vadd.f32 %v786, %v756
    %v788 = vadd.f32 %v787, %v757
    %v789 = vadd.f32 %v788, %v758
    %v790 = vadd.f32 %v789, %v759
    %v791 = vadd.f32 %v790, %v760
    %v792 = vadd.f32 %v791, %v761
    %v793 = vadd.f32 %v792, %v762
    %v794 = vadd.f32 %v793, %v763
    %v795 = vadd.f32 %v794, %v764
    %v796 = vadd.f32 %v795, %v765
    %v797 = vadd.f32 %v796, %v766
    %v798 = vadd.f32 %v797, %v767
    %v799 = vadd.f32 %v798, %v768
    %v800 = vadd.f32 %v799, %v769
    %v801 = vadd.f32 %v800, %v770
    %v802 = vadd.f32 %v801, %v771
    %v803 = vadd.f32 %v802, %v772
    %v804 = vrot.slane %v803, 4
    %v805 = vadd.f32 %v803, %v804
    %v806 = vrot.slane %v805, 2
    %v807 = vadd.f32 %v805, %v806
    %v808 = vrot.slane %v807, 1
    %v809 = vadd.f32 %v807, %v808
    %v810 = vmul.f32 %v740, 0.00390625
    %v811 = vmul.f32 %v809, 0.00390625
    %v812 = vmul.f32 %v810, %v810
    %v813 = vsub.f32 %v811, %v812
    %v814 = vmax.f32 %v813, 0.0
    %v815 = vadd.f32 %v814, 1e-05
    %v816 = vrsqrt.pop %v815
    %v817 = vmul.f32 %v702, %v816
    %v818 = vmul.f32 %v810, %v817
    %v819 = vsub.f32 %v703, %v818
    %v821 = vlaneseq
    %v822 = vshrl.u32 %v821, 7
    %v823 = vsub.s32 0, %v822
    %v824 = vrot.slane %v817, %v823
    %v826 = vmul.f32 %v448, %v824
    %v827 = vmul.f32 %v451, %v824
    %v828 = vmul.f32 %v456, %v824
    %v829 = vmul.f32 %v459, %v824
    %v830 = vmul.f32 %v464, %v824
    %v831 = vmul.f32 %v467, %v824
    %v832 = vmul.f32 %v472, %v824
    %v833 = vmul.f32 %v475, %v824
    %v834 = vmul.f32 %v480, %v824
    %v835 = vmul.f32 %v483, %v824
    %v836 = vmul.f32 %v488, %v824
    %v837 = vmul.f32 %v491, %v824
    %v838 = vmul.f32 %v496, %v824
    %v839 = vmul.f32 %v499, %v824
    %v840 = vmul.f32 %v504, %v824
    %v841 = vmul.f32 %v507, %v824
    %v842 = vmul.f32 %v512, %v824
    %v843 = vmul.f32 %v515, %v824
    %v844 = vmul.f32 %v520, %v824
    %v845 = vmul.f32 %v523, %v824
    %v846 = vmul.f32 %v528, %v824
    %v847 = vmul.f32 %v531, %v824
    %v848 = vmul.f32 %v536, %v824
    %v849 = vmul.f32 %v539, %v824
    %v850 = vmul.f32 %v544, %v824
    %v851 = vmul.f32 %v547, %v824
    %v852 = vmul.f32 %v552, %v824
    %v853 = vmul.f32 %v555, %v824
    %v854 = vmul.f32 %v560, %v824
    %v855 = vmul.f32 %v563, %v824
    %v856 = vmul.f32 %v568, %v824
    %v857 = vmul.f32 %v571, %v824
    %v859 = vlaneseq
    %v860 = vshrl.u32 %v859, 7
    %v861 = vsub.s32 0, %v860
    %v862 = vrot.slane %v819, %v861
    %v864 = vadd.f32 %v826, %v862
    %v865 = vadd.f32 %v827, %v862
    %v866 = vadd.f32 %v828, %v862
    %v867 = vadd.f32 %v829, %v862
    %v868 = vadd.f32 %v830, %v862
    %v869 = vadd.f32 %v831, %v862
    %v870 = vadd.f32 %v832, %v862
    %v871 = vadd.f32 %v833, %v862
    %v872 = vadd.f32 %v834, %v862
    %v873 = vadd.f32 %v835, %v862
    %v874 = vadd.f32 %v836, %v862
    %v875 = vadd.f32 %v837, %v862
    %v876 = vadd.f32 %v838, %v862
    %v877 = vadd.f32 %v839, %v862
    %v878 = vadd.f32 %v840, %v862
    %v879 = vadd.f32 %v841, %v862
    %v880 = vadd.f32 %v842, %v862
    %v881 = vadd.f32 %v843, %v862
    %v882 = vadd.f32 %v844, %v862
    %v883 = vadd.f32 %v845, %v862
    %v884 = vadd.f32 %v846, %v862
    %v885 = vadd.f32 %v847, %v862
    %v886 = vadd.f32 %v848, %v862
    %v887 = vadd.f32 %v849, %v862
    %v888 = vadd.f32 %v850, %v862
    %v889 = vadd.f32 %v851, %v862
    %v890 = vadd.f32 %v852, %v862
    %v891 = vadd.f32 %v853, %v862
    %v892 = vadd.f32 %v854, %v862
    %v893 = vadd.f32 %v855, %v862
    %v894 = vadd.f32 %v856, %v862
    %v895 = vadd.f32 %v857, %v862
    %v896 = vmax.f32 %v864, 0.0
    %v897 = vmax.f32 %v865, 0.0
    %v898 = vmax.f32 %v866, 0.0
    %v899 = vmax.f32 %v867, 0.0
    %v900 = vmax.f32 %v868, 0.0
    %v901 = vmax.f32 %v869, 0.0
    %v902 = vmax.f32 %v870, 0.0
    %v903 = vmax.f32 %v871, 0.0
    %v904 = vmax.f32 %v872, 0.0
    %v905 = vmax.f32 %v873, 0.0
    %v906 = vmax.f32 %v874, 0.0
    %v907 = vmax.f32 %v875, 0.0
    %v908 = vmax.f32 %v876, 0.0
    %v909 = vmax.f32 %v877, 0.0
    %v910 = vmax.f32 %v878, 0.0
    %v911 = vmax.f32 %v879, 0.0
    %v912 = vmax.f32 %v880, 0.0
    %v913 = vmax.f32 %v881, 0.0
    %v914 = vmax.f32 %v882, 0.0
    %v915 = vmax.f32 %v883, 0.0
    %v916 = vmax.f32 %v884, 0.0
    %v917 = vmax.f32 %v885, 0.0
    %v918 = vmax.f32 %v886, 0.0
    %v919 = vmax.f32 %v887, 0.0
    %v920 = vmax.f32 %v888, 0.0
    %v921 = vmax.f32 %v889, 0.0
    %v922 = vmax.f32 %v890, 0.0
    %v923 = vmax.f32 %v891, 0.0
    %v924 = vmax.f32 %v892, 0.0
    %v925 = vmax.f32 %v893, 0.0
    %v926 = vmax.f32 %v894, 0.0
    %v927 = vmax.f32 %v895, 0.0
    %v928 = vadd.f32 %v576, %v579
    %v929 = vadd.f32 %v928, %v584
    %v930 = vadd.f32 %v929, %v587
    %v931 = vadd.f32 %v930, %v592
    %v932 = vadd.f32 %v931, %v595
    %v933 = vadd.f32 %v932, %v600
    %v934 = vadd.f32 %v933, %v603
    %v935 = vadd.f32 %v934, %v608
    %v936 = vadd.f32 %v935, %v611
    %v937 = vadd.f32 %v936, %v616
    %v938 = vadd.f32 %v937, %v619
    %v939 = vadd.f32 %v938, %v624
    %v940 = vadd.f32 %v939, %v627
    %v941 = vadd.f32 %v940, %v632
    %v942 = vadd.f32 %v941, %v635
    %v943 = vadd.f32 %v942, %v640
    %v944 = vadd.f32 %v943, %v643
    %v945 = vadd.f32 %v944, %v648
    %v946 = vadd.f32 %v945, %v651
    %v947 = vadd.f32 %v946, %v656
    %v948 = vadd.f32 %v947, %v659
    %v949 = vadd.f32 %v948, %v664
    %v950 = vadd.f32 %v949, %v667
    %v951 = vadd.f32 %v950, %v672
    %v952 = vadd.f32 %v951, %v675
    %v953 = vadd.f32 %v952, %v680
    %v954 = vadd.f32 %v953, %v683
    %v955 = vadd.f32 %v954, %v688
    %v956 = vadd.f32 %v955, %v691
    %v957 = vadd.f32 %v956, %v696
    %v958 = vadd.f32 %v957, %v699
    %v959 = vrot.slane %v958, 4
    %v960 = vadd.f32 %v958, %v959
    %v961 = vrot.slane %v960, 2
    %v962 = vadd.f32 %v960, %v961
    %v963 = vrot.slane %v962, 1
    %v964 = vadd.f32 %v962, %v963
    %v965 = vmul.f32 %v576, %v576
    %v966 = vmul.f32 %v579, %v579
    %v967 = vmul.f32 %v584, %v584
    %v968 = vmul.f32 %v587, %v587
    %v969 = vmul.f32 %v592, %v592
    %v970 = vmul.f32 %v595, %v595
    %v971 = vmul.f32 %v600, %v600
    %v972 = vmul.f32 %v603, %v603
    %v973 = vmul.f32 %v608, %v608
    %v974 = vmul.f32 %v611, %v611
    %v975 = vmul.f32 %v616, %v616
    %v976 = vmul.f32 %v619, %v619
    %v977 = vmul.f32 %v624, %v624
    %v978 = vmul.f32 %v627, %v627
    %v979 = vmul.f32 %v632, %v632
    %v980 = vmul.f32 %v635, %v635
    %v981 = vmul.f32 %v640, %v640
    %v982 = vmul.f32 %v643, %v643
    %v983 = vmul.f32 %v648, %v648
    %v984 = vmul.f32 %v651, %v651
    %v985 = vmul.f32 %v656, %v656
    %v986 = vmul.f32 %v659, %v659
    %v987 = vmul.f32 %v664, %v664
    %v988 = vmul.f32 %v667, %v667
    %v989 = vmul.f32 %v672, %v672
    %v990 = vmul.f32 %v675, %v675
    %v991 = vmul.f32 %v680, %v680
    %v992 = vmul.f32 %v683, %v683
    %v993 = vmul.f32 %v688, %v688
    %v994 = vmul.f32 %v691, %v691
    %v995 = vmul.f32 %v696, %v696
    %v996 = vmul.f32 %v699, %v699
    %v997 = vadd.f32 %v965, %v966
    %v998 = vadd.f32 %v997, %v967
    %v999 = vadd.f32 %v998, %v968
    %v1000 = vadd.f32 %v999, %v969
    %v1001 = vadd.f32 %v1000, %v970
    %v1002 = vadd.f32 %v1001, %v971
    %v1003 = vadd.f32 %v1002, %v972
    %v1004 = vadd.f32 %v1003, %v973
    %v1005 = vadd.f32 %v1004, %v974
    %v1006 = vadd.f32 %v1005, %v975
    %v1007 = vadd.f32 %v1006, %v976
    %v1008 = vadd.f32 %v1007, %v977
    %v1009 = vadd.f32 %v1008, %v978
    %v1010 = vadd.f32 %v1009, %v979
    %v1011 = vadd.f32 %v1010, %v980
    %v1012 = vadd.f32 %v1011, %v981
    %v1013 = vadd.f32 %v1012, %v982
    %v1014 = vadd.f32 %v1013, %v983
    %v1015 = vadd.f32 %v1014, %v984
    %v1016 = vadd.f32 %v1015, %v985
    %v1017 = vadd.f32 %v1016, %v986
    %v1018 = vadd.f32 %v1017, %v987
    %v1019 = vadd.f32 %v1018, %v988
    %v1020 = vadd.f32 %v1019, %v989
    %v1021 = vadd.f32 %v1020, %v990
    %v1022 = vadd.f32 %v1021, %v991
    %v1023 = vadd.f32 %v1022, %v992
    %v1024 = vadd.f32 %v1023, %v993
    %v1025 = vadd.f32 %v1024, %v994
    %v1026 = vadd.f32 %v1025, %v995
    %v1027 = vadd.f32 %v1026, %v996
    %v1028 = vrot.slane %v1027, 4
    %v1029 = vadd.f32 %v1027, %v1028
    %v1030 = vrot.slane %v1029, 2
    %v1031 = vadd.f32 %v1029, %v1030
    %v1032 = vrot.slane %v1031, 1
    %v1033 = vadd.f32 %v1031, %v1032
    %v1034 = vmul.f32 %v964, 0.00390625
    %v1035 = vmul.f32 %v1033, 0.00390625
    %v1036 = vmul.f32 %v1034, %v1034
    %v1037 = vsub.f32 %v1035, %v1036
    %v1038 = vmax.f32 %v1037, 0.0
    %v1039 = vadd.f32 %v1038, 1e-05
    %v1040 = vrsqrt.pop %v1039
    %v1041 = vmul.f32 %v702, %v1040
    %v1042 = vmul.f32 %v1034, %v1041
    %v1043 = vsub.f32 %v703, %v1042
    %v1045 = vlaneseq
    %v1046 = vshrl.u32 %v1045, 7
    %v1047 = vsub.s32 0, %v1046
    %v1048 = vrot.slane %v1041, %v1047
    %v1050 = vmul.f32 %v576, %v1048
    %v1051 = vmul.f32 %v579, %v1048
    %v1052 = vmul.f32 %v584, %v1048
    %v1053 = vmul.f32 %v587, %v1048
    %v1054 = vmul.f32 %v592, %v1048
    %v1055 = vmul.f32 %v595, %v1048
    %v1056 = vmul.f32 %v600, %v1048
    %v1057 = vmul.f32 %v603, %v1048
    %v1058 = vmul.f32 %v608, %v1048
    %v1059 = vmul.f32 %v611, %v1048
    %v1060 = vmul.f32 %v616, %v1048
    %v1061 = vmul.f32 %v619, %v1048
    %v1062 = vmul.f32 %v624, %v1048
    %v1063 = vmul.f32 %v627, %v1048
    %v1064 = vmul.f32 %v632, %v1048
    %v1065 = vmul.f32 %v635, %v1048
    %v1066 = vmul.f32 %v640, %v1048
    %v1067 = vmul.f32 %v643, %v1048
    %v1068 = vmul.f32 %v648, %v1048
    %v1069 = vmul.f32 %v651, %v1048
    %v1070 = vmul.f32 %v656, %v1048
    %v1071 = vmul.f32 %v659, %v1048
    %v1072 = vmul.f32 %v664, %v1048
    %v1073 = vmul.f32 %v667, %v1048
    %v1074 = vmul.f32 %v672, %v1048
    %v1075 = vmul.f32 %v675, %v1048
    %v1076 = vmul.f32 %v680, %v1048
    %v1077 = vmul.f32 %v683, %v1048
    %v1078 = vmul.f32 %v688, %v1048
    %v1079 = vmul.f32 %v691, %v1048
    %v1080 = vmul.f32 %v696, %v1048
    %v1081 = vmul.f32 %v699, %v1048
    %v1083 = vlaneseq
    %v1084 = vshrl.u32 %v1083, 7
    %v1085 = vsub.s32 0, %v1084
    %v1086 = vrot.slane %v1043, %v1085
    %v1088 = vadd.f32 %v1050, %v1086
    %v1089 = vadd.f32 %v1051, %v1086
    %v1090 = vadd.f32 %v1052, %v1086
    %v1091 = vadd.f32 %v1053, %v1086
    %v1092 = vadd.f32 %v1054, %v1086
    %v1093 = vadd.f32 %v1055, %v1086
    %v1094 = vadd.f32 %v1056, %v1086
    %v1095 = vadd.f32 %v1057, %v1086
    %v1096 = vadd.f32 %v1058, %v1086
    %v1097 = vadd.f32 %v1059, %v1086
    %v1098 = vadd.f32 %v1060, %v1086
    %v1099 = vadd.f32 %v1061, %v1086
    %v1100 = vadd.f32 %v1062, %v1086
    %v1101 = vadd.f32 %v1063, %v1086
    %v1102 = vadd.f32 %v1064, %v1086
    %v1103 = vadd.f32 %v1065, %v1086
    %v1104 = vadd.f32 %v1066, %v1086
    %v1105 = vadd.f32 %v1067, %v1086
    %v1106 = vadd.f32 %v1068, %v1086
    %v1107 = vadd.f32 %v1069, %v1086
    %v1108 = vadd.f32 %v1070, %v1086
    %v1109 = vadd.f32 %v1071, %v1086
    %v1110 = vadd.f32 %v1072, %v1086
    %v1111 = vadd.f32 %v1073, %v1086
    %v1112 = vadd.f32 %v1074, %v1086
    %v1113 = vadd.f32 %v1075, %v1086
    %v1114 = vadd.f32 %v1076, %v1086
    %v1115 = vadd.f32 %v1077, %v1086
    %v1116 = vadd.f32 %v1078, %v1086
    %v1117 = vadd.f32 %v1079, %v1086
    %v1118 = vadd.f32 %v1080, %v1086
    %v1119 = vadd.f32 %v1081, %v1086
    %v1120 = vmax.f32 %v1088, 0.0
    %v1121 = vmax.f32 %v1089, 0.0
    %v1122 = vmax.f32 %v1090, 0.0
    %v1123 = vmax.f32 %v1091, 0.0
    %v1124 = vmax.f32 %v1092, 0.0
    %v1125 = vmax.f32 %v1093, 0.0
    %v1126 = vmax.f32 %v1094, 0.0
    %v1127 = vmax.f32 %v1095, 0.0
    %v1128 = vmax.f32 %v1096, 0.0
    %v1129 = vmax.f32 %v1097, 0.0
    %v1130 = vmax.f32 %v1098, 0.0
    %v1131 = vmax.f32 %v1099, 0.0
    %v1132 = vmax.f32 %v1100, 0.0
    %v1133 = vmax.f32 %v1101, 0.0
    %v1134 = vmax.f32 %v1102, 0.0
    %v1135 = vmax.f32 %v1103, 0.0
    %v1136 = vmax.f32 %v1104, 0.0
    %v1137 = vmax.f32 %v1105, 0.0
    %v1138 = vmax.f32 %v1106, 0.0
    %v1139 = vmax.f32 %v1107, 0.0
    %v1140 = vmax.f32 %v1108, 0.0
    %v1141 = vmax.f32 %v1109, 0.0
    %v1142 = vmax.f32 %v1110, 0.0
    %v1143 = vmax.f32 %v1111, 0.0
    %v1144 = vmax.f32 %v1112, 0.0
    %v1145 = vmax.f32 %v1113, 0.0
    %v1146 = vmax.f32 %v1114, 0.0
    %v1147 = vmax.f32 %v1115, 0.0
    %v1148 = vmax.f32 %v1116, 0.0
    %v1149 = vmax.f32 %v1117, 0.0
    %v1150 = vmax.f32 %v1118, 0.0
    %v1151 = vmax.f32 %v1119, 0.0
    %v1152 = vld [vmem:[%s5] sm:$0xff]
    %v1153 = vld [vmem:[%s5 + $0x8] sm:$0xff]
    %v1154 = vld [vmem:[%s5 + $0x10] sm:$0xff]
    %v1155 = vld [vmem:[%s5 + $0x18] sm:$0xff]
    %v1156 = vld [vmem:[%s5 + $0x20] sm:$0xff]
    %v1157 = vld [vmem:[%s5 + $0x28] sm:$0xff]
    %v1158 = vld [vmem:[%s5 + $0x30] sm:$0xff]
    %v1159 = vld [vmem:[%s5 + $0x38] sm:$0xff]
    %v1160 = vld [vmem:[%s5 + $0x40] sm:$0xff]
    %v1161 = vld [vmem:[%s5 + $0x48] sm:$0xff]
    %v1162 = vld [vmem:[%s5 + $0x50] sm:$0xff]
    %v1163 = vld [vmem:[%s5 + $0x58] sm:$0xff]
    %v1164 = vld [vmem:[%s5 + $0x60] sm:$0xff]
    %v1165 = vld [vmem:[%s5 + $0x68] sm:$0xff]
    %v1166 = vld [vmem:[%s5 + $0x70] sm:$0xff]
    %v1167 = vld [vmem:[%s5 + $0x78] sm:$0xff]
    %v1168 = vld [vmem:[%s5 + $0x80] sm:$0xff]
    %v1169 = vld [vmem:[%s5 + $0x88] sm:$0xff]
    %v1170 = vld [vmem:[%s5 + $0x90] sm:$0xff]
    %v1171 = vld [vmem:[%s5 + $0x98] sm:$0xff]
    %v1172 = vld [vmem:[%s5 + $0xa0] sm:$0xff]
    %v1173 = vld [vmem:[%s5 + $0xa8] sm:$0xff]
    %v1174 = vld [vmem:[%s5 + $0xb0] sm:$0xff]
    %v1175 = vld [vmem:[%s5 + $0xb8] sm:$0xff]
    %v1176 = vld [vmem:[%s5 + $0xc0] sm:$0xff]
    %v1177 = vld [vmem:[%s5 + $0xc8] sm:$0xff]
    %v1178 = vld [vmem:[%s5 + $0xd0] sm:$0xff]
    %v1179 = vld [vmem:[%s5 + $0xd8] sm:$0xff]
    %v1180 = vld [vmem:[%s5 + $0xe0] sm:$0xff]
    %v1181 = vld [vmem:[%s5 + $0xe8] sm:$0xff]
    %v1182 = vld [vmem:[%s5 + $0xf0] sm:$0xff]
    %v1183 = vld [vmem:[%s5 + $0xf8] sm:$0xff]
    %v1184 = vpack.c.bf16 %v897, %v896
    %v1185 = vpack.c.bf16 %v899, %v898
    %v1186 = vpack.c.bf16 %v901, %v900
    %v1187 = vpack.c.bf16 %v903, %v902
    %v1188 = vpack.c.bf16 %v905, %v904
    %v1189 = vpack.c.bf16 %v907, %v906
    %v1190 = vpack.c.bf16 %v909, %v908
    %v1191 = vpack.c.bf16 %v911, %v910
    %v1192 = vpack.c.bf16 %v913, %v912
    %v1193 = vpack.c.bf16 %v915, %v914
    %v1194 = vpack.c.bf16 %v917, %v916
    %v1195 = vpack.c.bf16 %v919, %v918
    %v1196 = vpack.c.bf16 %v921, %v920
    %v1197 = vpack.c.bf16 %v923, %v922
    %v1198 = vpack.c.bf16 %v925, %v924
    %v1199 = vpack.c.bf16 %v927, %v926
    %v1200 = vpack.c.bf16 %v1121, %v1120
    %v1201 = vpack.c.bf16 %v1123, %v1122
    %v1202 = vpack.c.bf16 %v1125, %v1124
    %v1203 = vpack.c.bf16 %v1127, %v1126
    %v1204 = vpack.c.bf16 %v1129, %v1128
    %v1205 = vpack.c.bf16 %v1131, %v1130
    %v1206 = vpack.c.bf16 %v1133, %v1132
    %v1207 = vpack.c.bf16 %v1135, %v1134
    %v1208 = vpack.c.bf16 %v1137, %v1136
    %v1209 = vpack.c.bf16 %v1139, %v1138
    %v1210 = vpack.c.bf16 %v1141, %v1140
    %v1211 = vpack.c.bf16 %v1143, %v1142
    %v1212 = vpack.c.bf16 %v1145, %v1144
    %v1213 = vpack.c.bf16 %v1147, %v1146
    %v1214 = vpack.c.bf16 %v1149, %v1148
    %v1215 = vpack.c.bf16 %v1151, %v1150
    %v1248 = vunpack.c.l.b16 %v1152
    %v1249 = vunpack.c.h.b16 %v1152
    %v1250 = vunpack.c.l.b16 %v1153
    %v1251 = vunpack.c.h.b16 %v1153
    %v1252 = vunpack.c.l.b16 %v1154
    %v1253 = vunpack.c.h.b16 %v1154
    %v1254 = vunpack.c.l.b16 %v1155
    %v1255 = vunpack.c.h.b16 %v1155
    %v1256 = vunpack.c.l.b16 %v1156
    %v1257 = vunpack.c.h.b16 %v1156
    %v1258 = vunpack.c.l.b16 %v1157
    %v1259 = vunpack.c.h.b16 %v1157
    %v1260 = vunpack.c.l.b16 %v1158
    %v1261 = vunpack.c.h.b16 %v1158
    %v1262 = vunpack.c.l.b16 %v1159
    %v1263 = vunpack.c.h.b16 %v1159
    %v1264 = vunpack.c.l.b16 %v1160
    %v1265 = vunpack.c.h.b16 %v1160
    %v1266 = vunpack.c.l.b16 %v1161
    %v1267 = vunpack.c.h.b16 %v1161
    %v1268 = vunpack.c.l.b16 %v1162
    %v1269 = vunpack.c.h.b16 %v1162
    %v1270 = vunpack.c.l.b16 %v1163
    %v1271 = vunpack.c.h.b16 %v1163
    %v1272 = vunpack.c.l.b16 %v1164
    %v1273 = vunpack.c.h.b16 %v1164
    %v1274 = vunpack.c.l.b16 %v1165
    %v1275 = vunpack.c.h.b16 %v1165
    %v1276 = vunpack.c.l.b16 %v1166
    %v1277 = vunpack.c.h.b16 %v1166
    %v1278 = vunpack.c.l.b16 %v1167
    %v1279 = vunpack.c.h.b16 %v1167
    %v1280 = vunpack.c.l.b16 %v1168
    %v1281 = vunpack.c.h.b16 %v1168
    %v1282 = vunpack.c.l.b16 %v1169
    %v1283 = vunpack.c.h.b16 %v1169
    %v1284 = vunpack.c.l.b16 %v1170
    %v1285 = vunpack.c.h.b16 %v1170
    %v1286 = vunpack.c.l.b16 %v1171
    %v1287 = vunpack.c.h.b16 %v1171
    %v1288 = vunpack.c.l.b16 %v1172
    %v1289 = vunpack.c.h.b16 %v1172
    %v1290 = vunpack.c.l.b16 %v1173
    %v1291 = vunpack.c.h.b16 %v1173
    %v1292 = vunpack.c.l.b16 %v1174
    %v1293 = vunpack.c.h.b16 %v1174
    %v1294 = vunpack.c.l.b16 %v1175
    %v1295 = vunpack.c.h.b16 %v1175
    %v1296 = vunpack.c.l.b16 %v1176
    %v1297 = vunpack.c.h.b16 %v1176
    %v1298 = vunpack.c.l.b16 %v1177
    %v1299 = vunpack.c.h.b16 %v1177
    %v1300 = vunpack.c.l.b16 %v1178
    %v1301 = vunpack.c.h.b16 %v1178
    %v1302 = vunpack.c.l.b16 %v1179
    %v1303 = vunpack.c.h.b16 %v1179
    %v1304 = vunpack.c.l.b16 %v1180
    %v1305 = vunpack.c.h.b16 %v1180
    %v1306 = vunpack.c.l.b16 %v1181
    %v1307 = vunpack.c.h.b16 %v1181
    %v1308 = vunpack.c.l.b16 %v1182
    %v1309 = vunpack.c.h.b16 %v1182
    %v1310 = vunpack.c.l.b16 %v1183
    %v1311 = vunpack.c.h.b16 %v1183
    %v1312 = vpack.c.b16 %v1252, %v1248
    %v1313 = vpack.c.b16 %v1253, %v1249
    %v1314 = vpack.c.b16 %v1254, %v1250
    %v1315 = vpack.c.b16 %v1255, %v1251
    %v1316 = vpack.c.b16 %v1260, %v1256
    %v1317 = vpack.c.b16 %v1261, %v1257
    %v1318 = vpack.c.b16 %v1262, %v1258
    %v1319 = vpack.c.b16 %v1263, %v1259
    %v1320 = vpack.c.b16 %v1268, %v1264
    %v1321 = vpack.c.b16 %v1269, %v1265
    %v1322 = vpack.c.b16 %v1270, %v1266
    %v1323 = vpack.c.b16 %v1271, %v1267
    %v1324 = vpack.c.b16 %v1276, %v1272
    %v1325 = vpack.c.b16 %v1277, %v1273
    %v1326 = vpack.c.b16 %v1278, %v1274
    %v1327 = vpack.c.b16 %v1279, %v1275
    %v1328 = vpack.c.b16 %v1284, %v1280
    %v1329 = vpack.c.b16 %v1285, %v1281
    %v1330 = vpack.c.b16 %v1286, %v1282
    %v1331 = vpack.c.b16 %v1287, %v1283
    %v1332 = vpack.c.b16 %v1292, %v1288
    %v1333 = vpack.c.b16 %v1293, %v1289
    %v1334 = vpack.c.b16 %v1294, %v1290
    %v1335 = vpack.c.b16 %v1295, %v1291
    %v1336 = vpack.c.b16 %v1300, %v1296
    %v1337 = vpack.c.b16 %v1301, %v1297
    %v1338 = vpack.c.b16 %v1302, %v1298
    %v1339 = vpack.c.b16 %v1303, %v1299
    %v1340 = vpack.c.b16 %v1308, %v1304
    %v1341 = vpack.c.b16 %v1309, %v1305
    %v1342 = vpack.c.b16 %v1310, %v1306
    %v1343 = vpack.c.b16 %v1311, %v1307
    %1376 = vmatprep.subr.bf16.mxu0 0
    %1377 = vmatpush1.bf16.msra.mxu0 %v1184
    %1378 = vmatprep.subr.bf16.mxu0 0
    %1379 = vmatpush1.bf16.msra.mxu0 %v1185
    %1380 = vmatprep.subr.bf16.mxu0 0
    %1381 = vmatpush1.bf16.msra.mxu0 %v1186
    %1382 = vmatprep.subr.bf16.mxu0 0
    %1383 = vmatpush1.bf16.msra.mxu0 %v1187
    %1384 = vmatprep.subr.bf16.mxu0 0
    %1385 = vmatpush1.bf16.msra.mxu0 %v1188
    %1386 = vmatprep.subr.bf16.mxu0 0
    %1387 = vmatpush1.bf16.msra.mxu0 %v1189
    %1388 = vmatprep.subr.bf16.mxu0 0
    %1389 = vmatpush1.bf16.msra.mxu0 %v1190
    %1390 = vmatprep.subr.bf16.mxu0 0
    %1391 = vmatpush1.bf16.msra.mxu0 %v1191
    %1392 = vmatprep.subr.bf16.mxu0 0
    %1393 = vmatpush1.bf16.msra.mxu0 %v1192
    %1394 = vmatprep.subr.bf16.mxu0 0
    %1395 = vmatpush1.bf16.msra.mxu0 %v1193
    %1396 = vmatprep.subr.bf16.mxu0 0
    %1397 = vmatpush1.bf16.msra.mxu0 %v1194
    %1398 = vmatprep.subr.bf16.mxu0 0
    %1399 = vmatpush1.bf16.msra.mxu0 %v1195
    %1400 = vmatprep.subr.bf16.mxu0 0
    %1401 = vmatpush1.bf16.msra.mxu0 %v1196
    %1402 = vmatprep.subr.bf16.mxu0 0
    %1403 = vmatpush1.bf16.msra.mxu0 %v1197
    %1404 = vmatprep.subr.bf16.mxu0 0
    %1405 = vmatpush1.bf16.msra.mxu0 %v1198
    %1406 = vmatprep.subr.bf16.mxu0 0
    %1407 = vmatpush1.bf16.msra.mxu0 %v1199
    %1408 = vmatprep.mubr.bf16.mxu0 %v1313
    %1409 = vmatmul.mubr.bf16.gmra.mrb[0].mxu0 %v1312
    %v1410 = vpop.f32.mrb[0].mxu0
    %v1411 = vadd.f32 0.0, %v1410
    %v1412 = vpop.f32.mrb[0].mxu0
    %v1413 = vpop.f32.mrb[0].mxu0
    %v1414 = vadd.f32 0.0, %v1413
    %v1415 = vpop.f32.mrb[0].mxu0
    %1416 = vmatprep.mubr.bf16.mxu0 %v1317
    %1417 = vmatmul.mubr.bf16.gmra.mrb[0].mxu0 %v1316
    %v1418 = vpop.f32.mrb[0].mxu0
    %v1419 = vadd.f32 0.0, %v1418
    %v1420 = vpop.f32.mrb[0].mxu0
    %v1421 = vpop.f32.mrb[0].mxu0
    %v1422 = vadd.f32 0.0, %v1421
    %v1423 = vpop.f32.mrb[0].mxu0
    %1424 = vmatprep.mubr.bf16.mxu0 %v1321
    %1425 = vmatmul.mubr.bf16.gmra.mrb[0].mxu0 %v1320
    %v1426 = vpop.f32.mrb[0].mxu0
    %v1427 = vadd.f32 0.0, %v1426
    %v1428 = vpop.f32.mrb[0].mxu0
    %v1429 = vpop.f32.mrb[0].mxu0
    %v1430 = vadd.f32 0.0, %v1429
    %v1431 = vpop.f32.mrb[0].mxu0
    %1432 = vmatprep.mubr.bf16.mxu0 %v1325
    %1433 = vmatmul.mubr.bf16.gmra.mrb[0].mxu0 %v1324
    %v1434 = vpop.f32.mrb[0].mxu0
    %v1435 = vadd.f32 0.0, %v1434
    %v1436 = vpop.f32.mrb[0].mxu0
    %v1437 = vpop.f32.mrb[0].mxu0
    %v1438 = vadd.f32 0.0, %v1437
    %v1439 = vpop.f32.mrb[0].mxu0
    %1440 = vmatprep.mubr.bf16.mxu0 %v1329
    %1441 = vmatmul.mubr.bf16.gmra.mrb[0].mxu0 %v1328
    %v1442 = vpop.f32.mrb[0].mxu0
    %v1443 = vadd.f32 0.0, %v1442
    %v1444 = vpop.f32.mrb[0].mxu0
    %v1445 = vpop.f32.mrb[0].mxu0
    %v1446 = vadd.f32 0.0, %v1445
    %v1447 = vpop.f32.mrb[0].mxu0
    %1448 = vmatprep.mubr.bf16.mxu0 %v1333
    %1449 = vmatmul.mubr.bf16.gmra.mrb[0].mxu0 %v1332
    %v1450 = vpop.f32.mrb[0].mxu0
    %v1451 = vadd.f32 0.0, %v1450
    %v1452 = vpop.f32.mrb[0].mxu0
    %v1453 = vpop.f32.mrb[0].mxu0
    %v1454 = vadd.f32 0.0, %v1453
    %v1455 = vpop.f32.mrb[0].mxu0
    %1456 = vmatprep.mubr.bf16.mxu0 %v1337
    %1457 = vmatmul.mubr.bf16.gmra.mrb[0].mxu0 %v1336
    %v1458 = vpop.f32.mrb[0].mxu0
    %v1459 = vadd.f32 0.0, %v1458
    %v1460 = vpop.f32.mrb[0].mxu0
    %v1461 = vpop.f32.mrb[0].mxu0
    %v1462 = vadd.f32 0.0, %v1461
    %v1463 = vpop.f32.mrb[0].mxu0
    %1464 = vmatprep.mubr.bf16.mxu0 %v1341
    %1465 = vmatmul.mubr.bf16.gmra.mrb[0].mxu0 %v1340
    %v1466 = vpop.f32.mrb[0].mxu0
    %v1467 = vadd.f32 0.0, %v1466
    %v1468 = vpop.f32.mrb[0].mxu0
    %v1469 = vpop.f32.mrb[0].mxu0
    %v1470 = vadd.f32 0.0, %v1469
    %v1471 = vpop.f32.mrb[0].mxu0
    %1472 = vdwg.mxu0
    %1473 = vmatprep.subr.bf16.mxu0 0
    %1474 = vmatpush1.bf16.msra.mxu0 %v1200
    %1475 = vmatprep.subr.bf16.mxu0 0
    %1476 = vmatpush1.bf16.msra.mxu0 %v1201
    %1477 = vmatprep.subr.bf16.mxu0 0
    %1478 = vmatpush1.bf16.msra.mxu0 %v1202
    %1479 = vmatprep.subr.bf16.mxu0 0
    %1480 = vmatpush1.bf16.msra.mxu0 %v1203
    %1481 = vmatprep.subr.bf16.mxu0 0
    %1482 = vmatpush1.bf16.msra.mxu0 %v1204
    %1483 = vmatprep.subr.bf16.mxu0 0
    %1484 = vmatpush1.bf16.msra.mxu0 %v1205
    %1485 = vmatprep.subr.bf16.mxu0 0
    %1486 = vmatpush1.bf16.msra.mxu0 %v1206
    %1487 = vmatprep.subr.bf16.mxu0 0
    %1488 = vmatpush1.bf16.msra.mxu0 %v1207
    %1489 = vmatprep.subr.bf16.mxu0 0
    %1490 = vmatpush1.bf16.msra.mxu0 %v1208
    %1491 = vmatprep.subr.bf16.mxu0 0
    %1492 = vmatpush1.bf16.msra.mxu0 %v1209
    %1493 = vmatprep.subr.bf16.mxu0 0
    %1494 = vmatpush1.bf16.msra.mxu0 %v1210
    %1495 = vmatprep.subr.bf16.mxu0 0
    %1496 = vmatpush1.bf16.msra.mxu0 %v1211
    %1497 = vmatprep.subr.bf16.mxu0 0
    %1498 = vmatpush1.bf16.msra.mxu0 %v1212
    %1499 = vmatprep.subr.bf16.mxu0 0
    %1500 = vmatpush1.bf16.msra.mxu0 %v1213
    %1501 = vmatprep.subr.bf16.mxu0 0
    %1502 = vmatpush1.bf16.msra.mxu0 %v1214
    %1503 = vmatprep.subr.bf16.mxu0 0
    %1504 = vmatpush1.bf16.msra.mxu0 %v1215
    %1505 = vmatprep.mubr.bf16.mxu0 %v1315
    %1506 = vmatmul.mubr.bf16.gmra.mrb[0].mxu0 %v1314
    %v1507 = vpop.f32.mrb[0].mxu0
    %v1508 = vadd.f32 %v1411, %v1507
    %v1509 = vpop.f32.mrb[0].mxu0
    %v1510 = vpop.f32.mrb[0].mxu0
    %v1511 = vadd.f32 %v1414, %v1510
    %v1512 = vpop.f32.mrb[0].mxu0
    %1513 = vmatprep.mubr.bf16.mxu0 %v1319
    %1514 = vmatmul.mubr.bf16.gmra.mrb[0].mxu0 %v1318
    %v1515 = vpop.f32.mrb[0].mxu0
    %v1516 = vadd.f32 %v1419, %v1515
    %v1517 = vpop.f32.mrb[0].mxu0
    %v1518 = vpop.f32.mrb[0].mxu0
    %v1519 = vadd.f32 %v1422, %v1518
    %v1520 = vpop.f32.mrb[0].mxu0
    %1521 = vmatprep.mubr.bf16.mxu0 %v1323
    %1522 = vmatmul.mubr.bf16.gmra.mrb[0].mxu0 %v1322
    %v1523 = vpop.f32.mrb[0].mxu0
    %v1524 = vadd.f32 %v1427, %v1523
    %v1525 = vpop.f32.mrb[0].mxu0
    %v1526 = vpop.f32.mrb[0].mxu0
    %v1527 = vadd.f32 %v1430, %v1526
    %v1528 = vpop.f32.mrb[0].mxu0
    %1529 = vmatprep.mubr.bf16.mxu0 %v1327
    %1530 = vmatmul.mubr.bf16.gmra.mrb[0].mxu0 %v1326
    %v1531 = vpop.f32.mrb[0].mxu0
    %v1532 = vadd.f32 %v1435, %v1531
    %v1533 = vpop.f32.mrb[0].mxu0
    %v1534 = vpop.f32.mrb[0].mxu0
    %v1535 = vadd.f32 %v1438, %v1534
    %v1536 = vpop.f32.mrb[0].mxu0
    %1537 = vmatprep.mubr.bf16.mxu0 %v1331
    %1538 = vmatmul.mubr.bf16.gmra.mrb[0].mxu0 %v1330
    %v1539 = vpop.f32.mrb[0].mxu0
    %v1540 = vadd.f32 %v1443, %v1539
    %v1541 = vpop.f32.mrb[0].mxu0
    %v1542 = vpop.f32.mrb[0].mxu0
    %v1543 = vadd.f32 %v1446, %v1542
    %v1544 = vpop.f32.mrb[0].mxu0
    %1545 = vmatprep.mubr.bf16.mxu0 %v1335
    %1546 = vmatmul.mubr.bf16.gmra.mrb[0].mxu0 %v1334
    %v1547 = vpop.f32.mrb[0].mxu0
    %v1548 = vadd.f32 %v1451, %v1547
    %v1549 = vpop.f32.mrb[0].mxu0
    %v1550 = vpop.f32.mrb[0].mxu0
    %v1551 = vadd.f32 %v1454, %v1550
    %v1552 = vpop.f32.mrb[0].mxu0
    %1553 = vmatprep.mubr.bf16.mxu0 %v1339
    %1554 = vmatmul.mubr.bf16.gmra.mrb[0].mxu0 %v1338
    %v1555 = vpop.f32.mrb[0].mxu0
    %v1556 = vadd.f32 %v1459, %v1555
    %v1557 = vpop.f32.mrb[0].mxu0
    %v1558 = vpop.f32.mrb[0].mxu0
    %v1559 = vadd.f32 %v1462, %v1558
    %v1560 = vpop.f32.mrb[0].mxu0
    %1561 = vmatprep.mubr.bf16.mxu0 %v1343
    %1562 = vmatmul.mubr.bf16.gmra.mrb[0].mxu0 %v1342
    %v1563 = vpop.f32.mrb[0].mxu0
    %v1564 = vadd.f32 %v1467, %v1563
    %v1565 = vpop.f32.mrb[0].mxu0
    %v1566 = vpop.f32.mrb[0].mxu0
    %v1567 = vadd.f32 %v1470, %v1566
    %v1568 = vpop.f32.mrb[0].mxu0
    %1569 = vdwg.mxu0
    %v1570 = vld [vmem:[%s7] sm:$0x1]
    %v1571 = vpack.c.bf16 %v1511, %v1508
    %v1572 = vpack.c.bf16 %v1519, %v1516
    %v1573 = vpack.c.bf16 %v1527, %v1524
    %v1574 = vpack.c.bf16 %v1535, %v1532
    %v1575 = vpack.c.bf16 %v1543, %v1540
    %v1576 = vpack.c.bf16 %v1551, %v1548
    %v1577 = vpack.c.bf16 %v1559, %v1556
    %v1578 = vpack.c.bf16 %v1567, %v1564
    %s1579 = scalar_lea.vmem %s6, 256
    %v1580 = vld [vmem:[%s1579] sm:$0xf]
    %v1581 = vld [vmem:[%s1579 + $0x4] sm:$0xf]
    %v1582 = vld [vmem:[%s1579 + $0x8] sm:$0xf]
    %v1583 = vld [vmem:[%s1579 + $0xc] sm:$0xf]
    %v1584 = vld [vmem:[%s1579 + $0x10] sm:$0xf]
    %v1585 = vld [vmem:[%s1579 + $0x14] sm:$0xf]
    %v1586 = vld [vmem:[%s1579 + $0x18] sm:$0xf]
    %v1587 = vld [vmem:[%s1579 + $0x1c] sm:$0xf]
    %v1588 = vld [vmem:[%s1579 + $0x20] sm:$0xf]
    %v1589 = vld [vmem:[%s1579 + $0x24] sm:$0xf]
    %v1590 = vld [vmem:[%s1579 + $0x28] sm:$0xf]
    %v1591 = vld [vmem:[%s1579 + $0x2c] sm:$0xf]
    %v1592 = vld [vmem:[%s1579 + $0x30] sm:$0xf]
    %v1593 = vld [vmem:[%s1579 + $0x34] sm:$0xf]
    %v1594 = vld [vmem:[%s1579 + $0x38] sm:$0xf]
    %v1595 = vld [vmem:[%s1579 + $0x3c] sm:$0xf]
    %v1597 = vlaneseq
    %v1598 = vshrl.u32 %v1597, 7
    %v1599 = vsub.s32 0, %v1598
    %v1600 = vrot.slane %v1570, %v1599
    %v1618 = vunpack.c.l.b16 %v1580
    %v1619 = vunpack.c.l.b16 %v1581
    %v1620 = vunpack.c.l.b16 %v1582
    %v1621 = vunpack.c.l.b16 %v1583
    %v1622 = vunpack.c.l.b16 %v1584
    %v1623 = vunpack.c.l.b16 %v1585
    %v1624 = vunpack.c.l.b16 %v1586
    %v1625 = vunpack.c.l.b16 %v1587
    %v1626 = vunpack.c.l.b16 %v1588
    %v1627 = vunpack.c.l.b16 %v1589
    %v1628 = vunpack.c.l.b16 %v1590
    %v1629 = vunpack.c.l.b16 %v1591
    %v1630 = vunpack.c.l.b16 %v1592
    %v1631 = vunpack.c.l.b16 %v1593
    %v1632 = vunpack.c.l.b16 %v1594
    %v1633 = vunpack.c.l.b16 %v1595
    %v1634 = vpack.c.b16 %v1619, %v1618
    %v1635 = vpack.c.b16 %v1621, %v1620
    %v1636 = vpack.c.b16 %v1623, %v1622
    %v1637 = vpack.c.b16 %v1625, %v1624
    %v1638 = vpack.c.b16 %v1627, %v1626
    %v1639 = vpack.c.b16 %v1629, %v1628
    %v1640 = vpack.c.b16 %v1631, %v1630
    %v1641 = vpack.c.b16 %v1633, %v1632
    %1650 = vmatprep.subr.bf16.mxu0 0
    %1651 = vmatpush1.bf16.msra.mxu0 %v1634
    %1652 = vmatprep.subr.bf16.mxu0 0
    %1653 = vmatpush1.bf16.msra.mxu0 %v1635
    %1654 = vmatprep.subr.bf16.mxu0 0
    %1655 = vmatpush1.bf16.msra.mxu0 %v1636
    %1656 = vmatprep.subr.bf16.mxu0 0
    %1657 = vmatpush1.bf16.msra.mxu0 %v1637
    %1658 = vmatprep.subr.bf16.mxu0 0
    %1659 = vmatpush1.bf16.msra.mxu0 %v1638
    %1660 = vmatprep.subr.bf16.mxu0 0
    %1661 = vmatpush1.bf16.msra.mxu0 %v1639
    %1662 = vmatprep.subr.bf16.mxu0 0
    %1663 = vmatpush1.bf16.msra.mxu0 %v1640
    %1664 = vmatprep.subr.bf16.mxu0 0
    %1665 = vmatpush1.bf16.msra.mxu0 %v1641
    %1666 = vmatprep.subr.bf16.mxu0 0
    %1667 = vmatpush1.bf16.msra.mxu0 0
    %1668 = vmatprep.subr.bf16.mxu0 0
    %1669 = vmatpush1.bf16.msra.mxu0 0
    %1670 = vmatprep.subr.bf16.mxu0 0
    %1671 = vmatpush1.bf16.msra.mxu0 0
    %1672 = vmatprep.subr.bf16.mxu0 0
    %1673 = vmatpush1.bf16.msra.mxu0 0
    %1674 = vmatprep.subr.bf16.mxu0 0
    %1675 = vmatpush1.bf16.msra.mxu0 0
    %1676 = vmatprep.subr.bf16.mxu0 0
    %1677 = vmatpush1.bf16.msra.mxu0 0
    %1678 = vmatprep.subr.bf16.mxu0 0
    %1679 = vmatpush1.bf16.msra.mxu0 0
    %1680 = vmatprep.subr.bf16.mxu0 0
    %1681 = vmatpush1.bf16.msra.mxu0 0
    %1682 = vmatprep.mubr.bf16.mxu0 0
    %1683 = vmatmul.mubr.bf16.gmra.mrb[0].mxu0 %v1571
    %v1684 = vpop.f32.mrb[0].mxu0
    %v1685 = vadd.f32 %v1600, %v1684
    %v1686 = vpop.f32.mrb[0].mxu0
    %v1687 = vpop.f32.mrb[0].mxu0
    %v1688 = vadd.f32 %v1600, %v1687
    %v1689 = vpop.f32.mrb[0].mxu0
    %1690 = vmatprep.mubr.bf16.mxu0 0
    %1691 = vmatmul.mubr.bf16.gmra.mrb[0].mxu0 %v1572
    %v1692 = vpop.f32.mrb[0].mxu0
    %v1693 = vadd.f32 %v1600, %v1692
    %v1694 = vpop.f32.mrb[0].mxu0
    %v1695 = vpop.f32.mrb[0].mxu0
    %v1696 = vadd.f32 %v1600, %v1695
    %v1697 = vpop.f32.mrb[0].mxu0
    %1698 = vmatprep.mubr.bf16.mxu0 0
    %1699 = vmatmul.mubr.bf16.gmra.mrb[0].mxu0 %v1573
    %v1700 = vpop.f32.mrb[0].mxu0
    %v1701 = vadd.f32 %v1600, %v1700
    %v1702 = vpop.f32.mrb[0].mxu0
    %v1703 = vpop.f32.mrb[0].mxu0
    %v1704 = vadd.f32 %v1600, %v1703
    %v1705 = vpop.f32.mrb[0].mxu0
    %1706 = vmatprep.mubr.bf16.mxu0 0
    %1707 = vmatmul.mubr.bf16.gmra.mrb[0].mxu0 %v1574
    %v1708 = vpop.f32.mrb[0].mxu0
    %v1709 = vadd.f32 %v1600, %v1708
    %v1710 = vpop.f32.mrb[0].mxu0
    %v1711 = vpop.f32.mrb[0].mxu0
    %v1712 = vadd.f32 %v1600, %v1711
    %v1713 = vpop.f32.mrb[0].mxu0
    %1714 = vmatprep.mubr.bf16.mxu0 0
    %1715 = vmatmul.mubr.bf16.gmra.mrb[0].mxu0 %v1575
    %v1716 = vpop.f32.mrb[0].mxu0
    %v1717 = vadd.f32 %v1600, %v1716
    %v1718 = vpop.f32.mrb[0].mxu0
    %v1719 = vpop.f32.mrb[0].mxu0
    %v1720 = vadd.f32 %v1600, %v1719
    %v1721 = vpop.f32.mrb[0].mxu0
    %1722 = vmatprep.mubr.bf16.mxu0 0
    %1723 = vmatmul.mubr.bf16.gmra.mrb[0].mxu0 %v1576
    %v1724 = vpop.f32.mrb[0].mxu0
    %v1725 = vadd.f32 %v1600, %v1724
    %v1726 = vpop.f32.mrb[0].mxu0
    %v1727 = vpop.f32.mrb[0].mxu0
    %v1728 = vadd.f32 %v1600, %v1727
    %v1729 = vpop.f32.mrb[0].mxu0
    %1730 = vmatprep.mubr.bf16.mxu0 0
    %1731 = vmatmul.mubr.bf16.gmra.mrb[0].mxu0 %v1577
    %v1732 = vpop.f32.mrb[0].mxu0
    %v1733 = vadd.f32 %v1600, %v1732
    %v1734 = vpop.f32.mrb[0].mxu0
    %v1735 = vpop.f32.mrb[0].mxu0
    %v1736 = vadd.f32 %v1600, %v1735
    %v1737 = vpop.f32.mrb[0].mxu0
    %1738 = vmatprep.mubr.bf16.mxu0 0
    %1739 = vmatmul.mubr.bf16.gmra.mrb[0].mxu0 %v1578
    %v1740 = vpop.f32.mrb[0].mxu0
    %v1741 = vadd.f32 %v1600, %v1740
    %v1742 = vpop.f32.mrb[0].mxu0
    %v1743 = vpop.f32.mrb[0].mxu0
    %v1744 = vadd.f32 %v1600, %v1743
    %v1745 = vpop.f32.mrb[0].mxu0
    %1746 = vdwg.mxu0
    %v1747 = vrot.slane %v1508, 7
    %v1748 = vrot.slane %v1511, 7
    %v1749 = vrot.slane %v1516, 7
    %v1750 = vrot.slane %v1519, 7
    %v1751 = vrot.slane %v1524, 7
    %v1752 = vrot.slane %v1527, 7
    %v1753 = vrot.slane %v1532, 7
    %v1754 = vrot.slane %v1535, 7
    %v1755 = vrot.slane %v1540, 7
    %v1756 = vrot.slane %v1543, 7
    %v1757 = vrot.slane %v1548, 7
    %v1758 = vrot.slane %v1551, 7
    %v1759 = vrot.slane %v1556, 7
    %v1760 = vrot.slane %v1559, 7
    %v1761 = vrot.slane %v1564, 7
    %v1762 = vrot.slane %v1567, 7
    %v1763 = vlaneseq
    %v1764 = vshrl.u32 %v1763, 7
    %vm1765 = vcmp.lt.s32.totalorder %v1764, 1
    %v1766 = vsel %vm1765, %v1761, %v1762
    %v1767 = vsel %vm1765, %v1760, %v1761
    %v1768 = vsel %vm1765, %v1759, %v1760
    %v1769 = vsel %vm1765, %v1758, %v1759
    %v1770 = vsel %vm1765, %v1757, %v1758
    %v1771 = vsel %vm1765, %v1756, %v1757
    %v1772 = vsel %vm1765, %v1755, %v1756
    %v1773 = vsel %vm1765, %v1754, %v1755
    %v1774 = vsel %vm1765, %v1753, %v1754
    %v1775 = vsel %vm1765, %v1752, %v1753
    %v1776 = vsel %vm1765, %v1751, %v1752
    %v1777 = vsel %vm1765, %v1750, %v1751
    %v1778 = vsel %vm1765, %v1749, %v1750
    %v1779 = vsel %vm1765, %v1748, %v1749
    %v1780 = vsel %vm1765, %v1747, %v1748
    %v1781 = vsel %vm1765, %v1762, %v1747
    %v1782 = vld [vmem:[%s10] sm:$0xff]
    %v1783 = vld [vmem:[%s10 + $0x8] sm:$0xff]
    %v1784 = vld [vmem:[%s10 + $0x10] sm:$0xff]
    %v1785 = vld [vmem:[%s10 + $0x18] sm:$0xff]
    %v1786 = vld [vmem:[%s10 + $0x20] sm:$0xff]
    %v1787 = vld [vmem:[%s10 + $0x28] sm:$0xff]
    %v1788 = vld [vmem:[%s10 + $0x30] sm:$0xff]
    %v1789 = vld [vmem:[%s10 + $0x38] sm:$0xff]
    %v1790 = vld [vmem:[%s10 + $0x40] sm:$0xff]
    %v1791 = vld [vmem:[%s10 + $0x48] sm:$0xff]
    %v1792 = vld [vmem:[%s10 + $0x50] sm:$0xff]
    %v1793 = vld [vmem:[%s10 + $0x58] sm:$0xff]
    %v1794 = vld [vmem:[%s10 + $0x60] sm:$0xff]
    %v1795 = vld [vmem:[%s10 + $0x68] sm:$0xff]
    %v1796 = vld [vmem:[%s10 + $0x70] sm:$0xff]
    %v1797 = vld [vmem:[%s10 + $0x78] sm:$0xff]
    %1799 = vset.pattern.permute.xlu0 0
    %1800 = vperm.xlu0 %1799, %v1782
    %v1801 = vpop.permute.xlu0 %1800
    %1804 = vset.pattern.permute.xlu0 0
    %1805 = vperm.xlu0 %1804, %v1783
    %v1806 = vpop.permute.xlu0 %1805
    %1809 = vset.pattern.permute.xlu0 0
    %1810 = vperm.xlu0 %1809, %v1784
    %v1811 = vpop.permute.xlu0 %1810
    %1814 = vset.pattern.permute.xlu0 0
    %1815 = vperm.xlu0 %1814, %v1785
    %v1816 = vpop.permute.xlu0 %1815
    %1819 = vset.pattern.permute.xlu0 0
    %1820 = vperm.xlu0 %1819, %v1786
    %v1821 = vpop.permute.xlu0 %1820
    %1824 = vset.pattern.permute.xlu0 0
    %1825 = vperm.xlu0 %1824, %v1787
    %v1826 = vpop.permute.xlu0 %1825
    %1829 = vset.pattern.permute.xlu0 0
    %1830 = vperm.xlu0 %1829, %v1788
    %v1831 = vpop.permute.xlu0 %1830
    %1834 = vset.pattern.permute.xlu0 0
    %1835 = vperm.xlu0 %1834, %v1789
    %v1836 = vpop.permute.xlu0 %1835
    %1839 = vset.pattern.permute.xlu0 0
    %1840 = vperm.xlu0 %1839, %v1790
    %v1841 = vpop.permute.xlu0 %1840
    %1844 = vset.pattern.permute.xlu0 0
    %1845 = vperm.xlu0 %1844, %v1791
    %v1846 = vpop.permute.xlu0 %1845
    %1849 = vset.pattern.permute.xlu0 0
    %1850 = vperm.xlu0 %1849, %v1792
    %v1851 = vpop.permute.xlu0 %1850
    %1854 = vset.pattern.permute.xlu0 0
    %1855 = vperm.xlu0 %1854, %v1793
    %v1856 = vpop.permute.xlu0 %1855
    %1859 = vset.pattern.permute.xlu0 0
    %1860 = vperm.xlu0 %1859, %v1794
    %v1861 = vpop.permute.xlu0 %1860
    %1864 = vset.pattern.permute.xlu0 0
    %1865 = vperm.xlu0 %1864, %v1795
    %v1866 = vpop.permute.xlu0 %1865
    %1869 = vset.pattern.permute.xlu0 0
    %1870 = vperm.xlu0 %1869, %v1796
    %v1871 = vpop.permute.xlu0 %1870
    %1874 = vset.pattern.permute.xlu0 0
    %1875 = vperm.xlu0 %1874, %v1797
    %v1876 = vpop.permute.xlu0 %1875
    %v1878 = vmul.f32 %v1766, %v1801
    %v1879 = vmul.f32 %v1781, %v1806
    %v1880 = vmul.f32 %v1780, %v1811
    %v1881 = vmul.f32 %v1779, %v1816
    %v1882 = vmul.f32 %v1778, %v1821
    %v1883 = vmul.f32 %v1777, %v1826
    %v1884 = vmul.f32 %v1776, %v1831
    %v1885 = vmul.f32 %v1775, %v1836
    %v1886 = vmul.f32 %v1774, %v1841
    %v1887 = vmul.f32 %v1773, %v1846
    %v1888 = vmul.f32 %v1772, %v1851
    %v1889 = vmul.f32 %v1771, %v1856
    %v1890 = vmul.f32 %v1770, %v1861
    %v1891 = vmul.f32 %v1769, %v1866
    %v1892 = vmul.f32 %v1768, %v1871
    %v1893 = vmul.f32 %v1767, %v1876
    %v1894 = vpack.c.bf16 %v1879, %v1878
    %v1895 = vpack.c.bf16 %v1881, %v1880
    %v1896 = vpack.c.bf16 %v1883, %v1882
    %v1897 = vpack.c.bf16 %v1885, %v1884
    %v1898 = vpack.c.bf16 %v1887, %v1886
    %v1899 = vpack.c.bf16 %v1889, %v1888
    %v1900 = vpack.c.bf16 %v1891, %v1890
    %v1901 = vpack.c.bf16 %v1893, %v1892
    %v1902 = vld [vmem:[%s6] sm:$0xf]
    %v1903 = vld [vmem:[%s6 + $0x4] sm:$0xf]
    %v1904 = vld [vmem:[%s6 + $0x8] sm:$0xf]
    %v1905 = vld [vmem:[%s6 + $0xc] sm:$0xf]
    %v1906 = vld [vmem:[%s6 + $0x10] sm:$0xf]
    %v1907 = vld [vmem:[%s6 + $0x14] sm:$0xf]
    %v1908 = vld [vmem:[%s6 + $0x18] sm:$0xf]
    %v1909 = vld [vmem:[%s6 + $0x1c] sm:$0xf]
    %v1910 = vld [vmem:[%s6 + $0x20] sm:$0xf]
    %v1911 = vld [vmem:[%s6 + $0x24] sm:$0xf]
    %v1912 = vld [vmem:[%s6 + $0x28] sm:$0xf]
    %v1913 = vld [vmem:[%s6 + $0x2c] sm:$0xf]
    %v1914 = vld [vmem:[%s6 + $0x30] sm:$0xf]
    %v1915 = vld [vmem:[%s6 + $0x34] sm:$0xf]
    %v1916 = vld [vmem:[%s6 + $0x38] sm:$0xf]
    %v1917 = vld [vmem:[%s6 + $0x3c] sm:$0xf]
    %v1934 = vunpack.c.l.b16 %v1902
    %v1935 = vunpack.c.l.b16 %v1903
    %v1936 = vunpack.c.l.b16 %v1904
    %v1937 = vunpack.c.l.b16 %v1905
    %v1938 = vunpack.c.l.b16 %v1906
    %v1939 = vunpack.c.l.b16 %v1907
    %v1940 = vunpack.c.l.b16 %v1908
    %v1941 = vunpack.c.l.b16 %v1909
    %v1942 = vunpack.c.l.b16 %v1910
    %v1943 = vunpack.c.l.b16 %v1911
    %v1944 = vunpack.c.l.b16 %v1912
    %v1945 = vunpack.c.l.b16 %v1913
    %v1946 = vunpack.c.l.b16 %v1914
    %v1947 = vunpack.c.l.b16 %v1915
    %v1948 = vunpack.c.l.b16 %v1916
    %v1949 = vunpack.c.l.b16 %v1917
    %v1950 = vpack.c.b16 %v1935, %v1934
    %v1951 = vpack.c.b16 %v1937, %v1936
    %v1952 = vpack.c.b16 %v1939, %v1938
    %v1953 = vpack.c.b16 %v1941, %v1940
    %v1954 = vpack.c.b16 %v1943, %v1942
    %v1955 = vpack.c.b16 %v1945, %v1944
    %v1956 = vpack.c.b16 %v1947, %v1946
    %v1957 = vpack.c.b16 %v1949, %v1948
    %1966 = vmatprep.subr.bf16.mxu0 0
    %1967 = vmatpush1.bf16.msra.mxu0 %v1950
    %1968 = vmatprep.subr.bf16.mxu0 0
    %1969 = vmatpush1.bf16.msra.mxu0 %v1951
    %1970 = vmatprep.subr.bf16.mxu0 0
    %1971 = vmatpush1.bf16.msra.mxu0 %v1952
    %1972 = vmatprep.subr.bf16.mxu0 0
    %1973 = vmatpush1.bf16.msra.mxu0 %v1953
    %1974 = vmatprep.subr.bf16.mxu0 0
    %1975 = vmatpush1.bf16.msra.mxu0 %v1954
    %1976 = vmatprep.subr.bf16.mxu0 0
    %1977 = vmatpush1.bf16.msra.mxu0 %v1955
    %1978 = vmatprep.subr.bf16.mxu0 0
    %1979 = vmatpush1.bf16.msra.mxu0 %v1956
    %1980 = vmatprep.subr.bf16.mxu0 0
    %1981 = vmatpush1.bf16.msra.mxu0 %v1957
    %1982 = vmatprep.subr.bf16.mxu0 0
    %1983 = vmatpush1.bf16.msra.mxu0 0
    %1984 = vmatprep.subr.bf16.mxu0 0
    %1985 = vmatpush1.bf16.msra.mxu0 0
    %1986 = vmatprep.subr.bf16.mxu0 0
    %1987 = vmatpush1.bf16.msra.mxu0 0
    %1988 = vmatprep.subr.bf16.mxu0 0
    %1989 = vmatpush1.bf16.msra.mxu0 0
    %1990 = vmatprep.subr.bf16.mxu0 0
    %1991 = vmatpush1.bf16.msra.mxu0 0
    %1992 = vmatprep.subr.bf16.mxu0 0
    %1993 = vmatpush1.bf16.msra.mxu0 0
    %1994 = vmatprep.subr.bf16.mxu0 0
    %1995 = vmatpush1.bf16.msra.mxu0 0
    %1996 = vmatprep.subr.bf16.mxu0 0
    %1997 = vmatpush1.bf16.msra.mxu0 0
    %1998 = vmatprep.mubr.bf16.mxu0 0
    %1999 = vmatmul.mubr.bf16.gmra.mrb[0].mxu0 %v1894
    %v2000 = vpop.f32.mrb[0].mxu0
    %v2001 = vadd.f32 0.0, %v2000
    %v2002 = vpop.f32.mrb[0].mxu0
    %v2003 = vpop.f32.mrb[0].mxu0
    %v2004 = vadd.f32 0.0, %v2003
    %v2005 = vpop.f32.mrb[0].mxu0
    %2006 = vmatprep.mubr.bf16.mxu0 0
    %2007 = vmatmul.mubr.bf16.gmra.mrb[0].mxu0 %v1895
    %v2008 = vpop.f32.mrb[0].mxu0
    %v2009 = vadd.f32 0.0, %v2008
    %v2010 = vpop.f32.mrb[0].mxu0
    %v2011 = vpop.f32.mrb[0].mxu0
    %v2012 = vadd.f32 0.0, %v2011
    %v2013 = vpop.f32.mrb[0].mxu0
    %2014 = vmatprep.mubr.bf16.mxu0 0
    %2015 = vmatmul.mubr.bf16.gmra.mrb[0].mxu0 %v1896
    %v2016 = vpop.f32.mrb[0].mxu0
    %v2017 = vadd.f32 0.0, %v2016
    %v2018 = vpop.f32.mrb[0].mxu0
    %v2019 = vpop.f32.mrb[0].mxu0
    %v2020 = vadd.f32 0.0, %v2019
    %v2021 = vpop.f32.mrb[0].mxu0
    %2022 = vmatprep.mubr.bf16.mxu0 0
    %2023 = vmatmul.mubr.bf16.gmra.mrb[0].mxu0 %v1897
    %v2024 = vpop.f32.mrb[0].mxu0
    %v2025 = vadd.f32 0.0, %v2024
    %v2026 = vpop.f32.mrb[0].mxu0
    %v2027 = vpop.f32.mrb[0].mxu0
    %v2028 = vadd.f32 0.0, %v2027
    %v2029 = vpop.f32.mrb[0].mxu0
    %2030 = vmatprep.mubr.bf16.mxu0 0
    %2031 = vmatmul.mubr.bf16.gmra.mrb[0].mxu0 %v1898
    %v2032 = vpop.f32.mrb[0].mxu0
    %v2033 = vadd.f32 0.0, %v2032
    %v2034 = vpop.f32.mrb[0].mxu0
    %v2035 = vpop.f32.mrb[0].mxu0
    %v2036 = vadd.f32 0.0, %v2035
    %v2037 = vpop.f32.mrb[0].mxu0
    %2038 = vmatprep.mubr.bf16.mxu0 0
    %2039 = vmatmul.mubr.bf16.gmra.mrb[0].mxu0 %v1899
    %v2040 = vpop.f32.mrb[0].mxu0
    %v2041 = vadd.f32 0.0, %v2040
    %v2042 = vpop.f32.mrb[0].mxu0
    %v2043 = vpop.f32.mrb[0].mxu0
    %v2044 = vadd.f32 0.0, %v2043
    %v2045 = vpop.f32.mrb[0].mxu0
    %2046 = vmatprep.mubr.bf16.mxu0 0
    %2047 = vmatmul.mubr.bf16.gmra.mrb[0].mxu0 %v1900
    %v2048 = vpop.f32.mrb[0].mxu0
    %v2049 = vadd.f32 0.0, %v2048
    %v2050 = vpop.f32.mrb[0].mxu0
    %v2051 = vpop.f32.mrb[0].mxu0
    %v2052 = vadd.f32 0.0, %v2051
    %v2053 = vpop.f32.mrb[0].mxu0
    %2054 = vmatprep.mubr.bf16.mxu0 0
    %2055 = vmatmul.mubr.bf16.gmra.mrb[0].mxu0 %v1901
    %v2056 = vpop.f32.mrb[0].mxu0
    %v2057 = vadd.f32 0.0, %v2056
    %v2058 = vpop.f32.mrb[0].mxu0
    %v2059 = vpop.f32.mrb[0].mxu0
    %v2060 = vadd.f32 0.0, %v2059
    %v2061 = vpop.f32.mrb[0].mxu0
    %2062 = vdwg.mxu0
    %v2063 = vadd.f32 %v1685, %v2001
    %v2064 = vadd.f32 %v1688, %v2004
    %v2065 = vadd.f32 %v1693, %v2009
    %v2066 = vadd.f32 %v1696, %v2012
    %v2067 = vadd.f32 %v1701, %v2017
    %v2068 = vadd.f32 %v1704, %v2020
    %v2069 = vadd.f32 %v1709, %v2025
    %v2070 = vadd.f32 %v1712, %v2028
    %v2071 = vadd.f32 %v1717, %v2033
    %v2072 = vadd.f32 %v1720, %v2036
    %v2073 = vadd.f32 %v1725, %v2041
    %v2074 = vadd.f32 %v1728, %v2044
    %v2075 = vadd.f32 %v1733, %v2049
    %v2076 = vadd.f32 %v1736, %v2052
    %v2077 = vadd.f32 %v1741, %v2057
    %v2078 = vadd.f32 %v1744, %v2060
    %s2079 = scalar_lea.vmem %s10, 128
    %v2080 = vld [vmem:[%s2079] sm:$0xff]
    %v2081 = vld [vmem:[%s2079 + $0x8] sm:$0xff]
    %v2082 = vld [vmem:[%s2079 + $0x10] sm:$0xff]
    %v2083 = vld [vmem:[%s2079 + $0x18] sm:$0xff]
    %v2084 = vld [vmem:[%s2079 + $0x20] sm:$0xff]
    %v2085 = vld [vmem:[%s2079 + $0x28] sm:$0xff]
    %v2086 = vld [vmem:[%s2079 + $0x30] sm:$0xff]
    %v2087 = vld [vmem:[%s2079 + $0x38] sm:$0xff]
    %v2088 = vld [vmem:[%s2079 + $0x40] sm:$0xff]
    %v2089 = vld [vmem:[%s2079 + $0x48] sm:$0xff]
    %v2090 = vld [vmem:[%s2079 + $0x50] sm:$0xff]
    %v2091 = vld [vmem:[%s2079 + $0x58] sm:$0xff]
    %v2092 = vld [vmem:[%s2079 + $0x60] sm:$0xff]
    %v2093 = vld [vmem:[%s2079 + $0x68] sm:$0xff]
    %v2094 = vld [vmem:[%s2079 + $0x70] sm:$0xff]
    %v2095 = vld [vmem:[%s2079 + $0x78] sm:$0xff]
    %2097 = vset.pattern.permute.xlu0 0
    %2098 = vperm.xlu0 %2097, %v2080
    %v2099 = vpop.permute.xlu0 %2098
    %2102 = vset.pattern.permute.xlu0 0
    %2103 = vperm.xlu0 %2102, %v2081
    %v2104 = vpop.permute.xlu0 %2103
    %2107 = vset.pattern.permute.xlu0 0
    %2108 = vperm.xlu0 %2107, %v2082
    %v2109 = vpop.permute.xlu0 %2108
    %2112 = vset.pattern.permute.xlu0 0
    %2113 = vperm.xlu0 %2112, %v2083
    %v2114 = vpop.permute.xlu0 %2113
    %2117 = vset.pattern.permute.xlu0 0
    %2118 = vperm.xlu0 %2117, %v2084
    %v2119 = vpop.permute.xlu0 %2118
    %2122 = vset.pattern.permute.xlu0 0
    %2123 = vperm.xlu0 %2122, %v2085
    %v2124 = vpop.permute.xlu0 %2123
    %2127 = vset.pattern.permute.xlu0 0
    %2128 = vperm.xlu0 %2127, %v2086
    %v2129 = vpop.permute.xlu0 %2128
    %2132 = vset.pattern.permute.xlu0 0
    %2133 = vperm.xlu0 %2132, %v2087
    %v2134 = vpop.permute.xlu0 %2133
    %2137 = vset.pattern.permute.xlu0 0
    %2138 = vperm.xlu0 %2137, %v2088
    %v2139 = vpop.permute.xlu0 %2138
    %2142 = vset.pattern.permute.xlu0 0
    %2143 = vperm.xlu0 %2142, %v2089
    %v2144 = vpop.permute.xlu0 %2143
    %2147 = vset.pattern.permute.xlu0 0
    %2148 = vperm.xlu0 %2147, %v2090
    %v2149 = vpop.permute.xlu0 %2148
    %2152 = vset.pattern.permute.xlu0 0
    %2153 = vperm.xlu0 %2152, %v2091
    %v2154 = vpop.permute.xlu0 %2153
    %2157 = vset.pattern.permute.xlu0 0
    %2158 = vperm.xlu0 %2157, %v2092
    %v2159 = vpop.permute.xlu0 %2158
    %2162 = vset.pattern.permute.xlu0 0
    %2163 = vperm.xlu0 %2162, %v2093
    %v2164 = vpop.permute.xlu0 %2163
    %2167 = vset.pattern.permute.xlu0 0
    %2168 = vperm.xlu0 %2167, %v2094
    %v2169 = vpop.permute.xlu0 %2168
    %2172 = vset.pattern.permute.xlu0 0
    %2173 = vperm.xlu0 %2172, %v2095
    %v2174 = vpop.permute.xlu0 %2173
    %v2176 = vmul.f32 %v1567, %v2099
    %v2177 = vmul.f32 %v1508, %v2104
    %v2178 = vmul.f32 %v1511, %v2109
    %v2179 = vmul.f32 %v1516, %v2114
    %v2180 = vmul.f32 %v1519, %v2119
    %v2181 = vmul.f32 %v1524, %v2124
    %v2182 = vmul.f32 %v1527, %v2129
    %v2183 = vmul.f32 %v1532, %v2134
    %v2184 = vmul.f32 %v1535, %v2139
    %v2185 = vmul.f32 %v1540, %v2144
    %v2186 = vmul.f32 %v1543, %v2149
    %v2187 = vmul.f32 %v1548, %v2154
    %v2188 = vmul.f32 %v1551, %v2159
    %v2189 = vmul.f32 %v1556, %v2164
    %v2190 = vmul.f32 %v1559, %v2169
    %v2191 = vmul.f32 %v1564, %v2174
    %v2192 = vpack.c.bf16 %v2177, %v2176
    %v2193 = vpack.c.bf16 %v2179, %v2178
    %v2194 = vpack.c.bf16 %v2181, %v2180
    %v2195 = vpack.c.bf16 %v2183, %v2182
    %v2196 = vpack.c.bf16 %v2185, %v2184
    %v2197 = vpack.c.bf16 %v2187, %v2186
    %v2198 = vpack.c.bf16 %v2189, %v2188
    %v2199 = vpack.c.bf16 %v2191, %v2190
    %s2200 = scalar_lea.vmem %s6, 64
    %v2201 = vld [vmem:[%s2200] sm:$0xf]
    %v2202 = vld [vmem:[%s2200 + $0x4] sm:$0xf]
    %v2203 = vld [vmem:[%s2200 + $0x8] sm:$0xf]
    %v2204 = vld [vmem:[%s2200 + $0xc] sm:$0xf]
    %v2205 = vld [vmem:[%s2200 + $0x10] sm:$0xf]
    %v2206 = vld [vmem:[%s2200 + $0x14] sm:$0xf]
    %v2207 = vld [vmem:[%s2200 + $0x18] sm:$0xf]
    %v2208 = vld [vmem:[%s2200 + $0x1c] sm:$0xf]
    %v2209 = vld [vmem:[%s2200 + $0x20] sm:$0xf]
    %v2210 = vld [vmem:[%s2200 + $0x24] sm:$0xf]
    %v2211 = vld [vmem:[%s2200 + $0x28] sm:$0xf]
    %v2212 = vld [vmem:[%s2200 + $0x2c] sm:$0xf]
    %v2213 = vld [vmem:[%s2200 + $0x30] sm:$0xf]
    %v2214 = vld [vmem:[%s2200 + $0x34] sm:$0xf]
    %v2215 = vld [vmem:[%s2200 + $0x38] sm:$0xf]
    %v2216 = vld [vmem:[%s2200 + $0x3c] sm:$0xf]
    %v2233 = vunpack.c.l.b16 %v2201
    %v2234 = vunpack.c.l.b16 %v2202
    %v2235 = vunpack.c.l.b16 %v2203
    %v2236 = vunpack.c.l.b16 %v2204
    %v2237 = vunpack.c.l.b16 %v2205
    %v2238 = vunpack.c.l.b16 %v2206
    %v2239 = vunpack.c.l.b16 %v2207
    %v2240 = vunpack.c.l.b16 %v2208
    %v2241 = vunpack.c.l.b16 %v2209
    %v2242 = vunpack.c.l.b16 %v2210
    %v2243 = vunpack.c.l.b16 %v2211
    %v2244 = vunpack.c.l.b16 %v2212
    %v2245 = vunpack.c.l.b16 %v2213
    %v2246 = vunpack.c.l.b16 %v2214
    %v2247 = vunpack.c.l.b16 %v2215
    %v2248 = vunpack.c.l.b16 %v2216
    %v2249 = vpack.c.b16 %v2234, %v2233
    %v2250 = vpack.c.b16 %v2236, %v2235
    %v2251 = vpack.c.b16 %v2238, %v2237
    %v2252 = vpack.c.b16 %v2240, %v2239
    %v2253 = vpack.c.b16 %v2242, %v2241
    %v2254 = vpack.c.b16 %v2244, %v2243
    %v2255 = vpack.c.b16 %v2246, %v2245
    %v2256 = vpack.c.b16 %v2248, %v2247
    %2265 = vmatprep.subr.bf16.mxu0 0
    %2266 = vmatpush1.bf16.msra.mxu0 %v2249
    %2267 = vmatprep.subr.bf16.mxu0 0
    %2268 = vmatpush1.bf16.msra.mxu0 %v2250
    %2269 = vmatprep.subr.bf16.mxu0 0
    %2270 = vmatpush1.bf16.msra.mxu0 %v2251
    %2271 = vmatprep.subr.bf16.mxu0 0
    %2272 = vmatpush1.bf16.msra.mxu0 %v2252
    %2273 = vmatprep.subr.bf16.mxu0 0
    %2274 = vmatpush1.bf16.msra.mxu0 %v2253
    %2275 = vmatprep.subr.bf16.mxu0 0
    %2276 = vmatpush1.bf16.msra.mxu0 %v2254
    %2277 = vmatprep.subr.bf16.mxu0 0
    %2278 = vmatpush1.bf16.msra.mxu0 %v2255
    %2279 = vmatprep.subr.bf16.mxu0 0
    %2280 = vmatpush1.bf16.msra.mxu0 %v2256
    %2281 = vmatprep.subr.bf16.mxu0 0
    %2282 = vmatpush1.bf16.msra.mxu0 0
    %2283 = vmatprep.subr.bf16.mxu0 0
    %2284 = vmatpush1.bf16.msra.mxu0 0
    %2285 = vmatprep.subr.bf16.mxu0 0
    %2286 = vmatpush1.bf16.msra.mxu0 0
    %2287 = vmatprep.subr.bf16.mxu0 0
    %2288 = vmatpush1.bf16.msra.mxu0 0
    %2289 = vmatprep.subr.bf16.mxu0 0
    %2290 = vmatpush1.bf16.msra.mxu0 0
    %2291 = vmatprep.subr.bf16.mxu0 0
    %2292 = vmatpush1.bf16.msra.mxu0 0
    %2293 = vmatprep.subr.bf16.mxu0 0
    %2294 = vmatpush1.bf16.msra.mxu0 0
    %2295 = vmatprep.subr.bf16.mxu0 0
    %2296 = vmatpush1.bf16.msra.mxu0 0
    %2297 = vmatprep.mubr.bf16.mxu0 0
    %2298 = vmatmul.mubr.bf16.gmra.mrb[0].mxu0 %v2192
    %v2299 = vpop.f32.mrb[0].mxu0
    %v2300 = vadd.f32 0.0, %v2299
    %v2301 = vpop.f32.mrb[0].mxu0
    %v2302 = vpop.f32.mrb[0].mxu0
    %v2303 = vadd.f32 0.0, %v2302
    %v2304 = vpop.f32.mrb[0].mxu0
    %2305 = vmatprep.mubr.bf16.mxu0 0
    %2306 = vmatmul.mubr.bf16.gmra.mrb[0].mxu0 %v2193
    %v2307 = vpop.f32.mrb[0].mxu0
    %v2308 = vadd.f32 0.0, %v2307
    %v2309 = vpop.f32.mrb[0].mxu0
    %v2310 = vpop.f32.mrb[0].mxu0
    %v2311 = vadd.f32 0.0, %v2310
    %v2312 = vpop.f32.mrb[0].mxu0
    %2313 = vmatprep.mubr.bf16.mxu0 0
    %2314 = vmatmul.mubr.bf16.gmra.mrb[0].mxu0 %v2194
    %v2315 = vpop.f32.mrb[0].mxu0
    %v2316 = vadd.f32 0.0, %v2315
    %v2317 = vpop.f32.mrb[0].mxu0
    %v2318 = vpop.f32.mrb[0].mxu0
    %v2319 = vadd.f32 0.0, %v2318
    %v2320 = vpop.f32.mrb[0].mxu0
    %2321 = vmatprep.mubr.bf16.mxu0 0
    %2322 = vmatmul.mubr.bf16.gmra.mrb[0].mxu0 %v2195
    %v2323 = vpop.f32.mrb[0].mxu0
    %v2324 = vadd.f32 0.0, %v2323
    %v2325 = vpop.f32.mrb[0].mxu0
    %v2326 = vpop.f32.mrb[0].mxu0
    %v2327 = vadd.f32 0.0, %v2326
    %v2328 = vpop.f32.mrb[0].mxu0
    %2329 = vmatprep.mubr.bf16.mxu0 0
    %2330 = vmatmul.mubr.bf16.gmra.mrb[0].mxu0 %v2196
    %v2331 = vpop.f32.mrb[0].mxu0
    %v2332 = vadd.f32 0.0, %v2331
    %v2333 = vpop.f32.mrb[0].mxu0
    %v2334 = vpop.f32.mrb[0].mxu0
    %v2335 = vadd.f32 0.0, %v2334
    %v2336 = vpop.f32.mrb[0].mxu0
    %2337 = vmatprep.mubr.bf16.mxu0 0
    %2338 = vmatmul.mubr.bf16.gmra.mrb[0].mxu0 %v2197
    %v2339 = vpop.f32.mrb[0].mxu0
    %v2340 = vadd.f32 0.0, %v2339
    %v2341 = vpop.f32.mrb[0].mxu0
    %v2342 = vpop.f32.mrb[0].mxu0
    %v2343 = vadd.f32 0.0, %v2342
    %v2344 = vpop.f32.mrb[0].mxu0
    %2345 = vmatprep.mubr.bf16.mxu0 0
    %2346 = vmatmul.mubr.bf16.gmra.mrb[0].mxu0 %v2198
    %v2347 = vpop.f32.mrb[0].mxu0
    %v2348 = vadd.f32 0.0, %v2347
    %v2349 = vpop.f32.mrb[0].mxu0
    %v2350 = vpop.f32.mrb[0].mxu0
    %v2351 = vadd.f32 0.0, %v2350
    %v2352 = vpop.f32.mrb[0].mxu0
    %2353 = vmatprep.mubr.bf16.mxu0 0
    %2354 = vmatmul.mubr.bf16.gmra.mrb[0].mxu0 %v2199
    %v2355 = vpop.f32.mrb[0].mxu0
    %v2356 = vadd.f32 0.0, %v2355
    %v2357 = vpop.f32.mrb[0].mxu0
    %v2358 = vpop.f32.mrb[0].mxu0
    %v2359 = vadd.f32 0.0, %v2358
    %v2360 = vpop.f32.mrb[0].mxu0
    %2361 = vdwg.mxu0
    %v2362 = vadd.f32 %v2063, %v2300
    %v2363 = vadd.f32 %v2064, %v2303
    %v2364 = vadd.f32 %v2065, %v2308
    %v2365 = vadd.f32 %v2066, %v2311
    %v2366 = vadd.f32 %v2067, %v2316
    %v2367 = vadd.f32 %v2068, %v2319
    %v2368 = vadd.f32 %v2069, %v2324
    %v2369 = vadd.f32 %v2070, %v2327
    %v2370 = vadd.f32 %v2071, %v2332
    %v2371 = vadd.f32 %v2072, %v2335
    %v2372 = vadd.f32 %v2073, %v2340
    %v2373 = vadd.f32 %v2074, %v2343
    %v2374 = vadd.f32 %v2075, %v2348
    %v2375 = vadd.f32 %v2076, %v2351
    %v2376 = vadd.f32 %v2077, %v2356
    %v2377 = vadd.f32 %v2078, %v2359
    %v2378 = vrot.slane %v1508, 1
    %v2379 = vrot.slane %v1511, 1
    %v2380 = vrot.slane %v1516, 1
    %v2381 = vrot.slane %v1519, 1
    %v2382 = vrot.slane %v1524, 1
    %v2383 = vrot.slane %v1527, 1
    %v2384 = vrot.slane %v1532, 1
    %v2385 = vrot.slane %v1535, 1
    %v2386 = vrot.slane %v1540, 1
    %v2387 = vrot.slane %v1543, 1
    %v2388 = vrot.slane %v1548, 1
    %v2389 = vrot.slane %v1551, 1
    %v2390 = vrot.slane %v1556, 1
    %v2391 = vrot.slane %v1559, 1
    %v2392 = vrot.slane %v1564, 1
    %v2393 = vrot.slane %v1567, 1
    %vm2394 = vcmp.lt.s32.totalorder %v1764, 7
    %v2395 = vsel %vm2394, %v2392, %v2393
    %v2396 = vsel %vm2394, %v2391, %v2392
    %v2397 = vsel %vm2394, %v2390, %v2391
    %v2398 = vsel %vm2394, %v2389, %v2390
    %v2399 = vsel %vm2394, %v2388, %v2389
    %v2400 = vsel %vm2394, %v2387, %v2388
    %v2401 = vsel %vm2394, %v2386, %v2387
    %v2402 = vsel %vm2394, %v2385, %v2386
    %v2403 = vsel %vm2394, %v2384, %v2385
    %v2404 = vsel %vm2394, %v2383, %v2384
    %v2405 = vsel %vm2394, %v2382, %v2383
    %v2406 = vsel %vm2394, %v2381, %v2382
    %v2407 = vsel %vm2394, %v2380, %v2381
    %v2408 = vsel %vm2394, %v2379, %v2380
    %v2409 = vsel %vm2394, %v2378, %v2379
    %v2410 = vsel %vm2394, %v2393, %v2378
    %s2411 = scalar_lea.vmem %s10, 256
    %v2412 = vld [vmem:[%s2411] sm:$0xff]
    %v2413 = vld [vmem:[%s2411 + $0x8] sm:$0xff]
    %v2414 = vld [vmem:[%s2411 + $0x10] sm:$0xff]
    %v2415 = vld [vmem:[%s2411 + $0x18] sm:$0xff]
    %v2416 = vld [vmem:[%s2411 + $0x20] sm:$0xff]
    %v2417 = vld [vmem:[%s2411 + $0x28] sm:$0xff]
    %v2418 = vld [vmem:[%s2411 + $0x30] sm:$0xff]
    %v2419 = vld [vmem:[%s2411 + $0x38] sm:$0xff]
    %v2420 = vld [vmem:[%s2411 + $0x40] sm:$0xff]
    %v2421 = vld [vmem:[%s2411 + $0x48] sm:$0xff]
    %v2422 = vld [vmem:[%s2411 + $0x50] sm:$0xff]
    %v2423 = vld [vmem:[%s2411 + $0x58] sm:$0xff]
    %v2424 = vld [vmem:[%s2411 + $0x60] sm:$0xff]
    %v2425 = vld [vmem:[%s2411 + $0x68] sm:$0xff]
    %v2426 = vld [vmem:[%s2411 + $0x70] sm:$0xff]
    %v2427 = vld [vmem:[%s2411 + $0x78] sm:$0xff]
    %2429 = vset.pattern.permute.xlu0 0
    %2430 = vperm.xlu0 %2429, %v2412
    %v2431 = vpop.permute.xlu0 %2430
    %2434 = vset.pattern.permute.xlu0 0
    %2435 = vperm.xlu0 %2434, %v2413
    %v2436 = vpop.permute.xlu0 %2435
    %2439 = vset.pattern.permute.xlu0 0
    %2440 = vperm.xlu0 %2439, %v2414
    %v2441 = vpop.permute.xlu0 %2440
    %2444 = vset.pattern.permute.xlu0 0
    %2445 = vperm.xlu0 %2444, %v2415
    %v2446 = vpop.permute.xlu0 %2445
    %2449 = vset.pattern.permute.xlu0 0
    %2450 = vperm.xlu0 %2449, %v2416
    %v2451 = vpop.permute.xlu0 %2450
    %2454 = vset.pattern.permute.xlu0 0
    %2455 = vperm.xlu0 %2454, %v2417
    %v2456 = vpop.permute.xlu0 %2455
    %2459 = vset.pattern.permute.xlu0 0
    %2460 = vperm.xlu0 %2459, %v2418
    %v2461 = vpop.permute.xlu0 %2460
    %2464 = vset.pattern.permute.xlu0 0
    %2465 = vperm.xlu0 %2464, %v2419
    %v2466 = vpop.permute.xlu0 %2465
    %2469 = vset.pattern.permute.xlu0 0
    %2470 = vperm.xlu0 %2469, %v2420
    %v2471 = vpop.permute.xlu0 %2470
    %2474 = vset.pattern.permute.xlu0 0
    %2475 = vperm.xlu0 %2474, %v2421
    %v2476 = vpop.permute.xlu0 %2475
    %2479 = vset.pattern.permute.xlu0 0
    %2480 = vperm.xlu0 %2479, %v2422
    %v2481 = vpop.permute.xlu0 %2480
    %2484 = vset.pattern.permute.xlu0 0
    %2485 = vperm.xlu0 %2484, %v2423
    %v2486 = vpop.permute.xlu0 %2485
    %2489 = vset.pattern.permute.xlu0 0
    %2490 = vperm.xlu0 %2489, %v2424
    %v2491 = vpop.permute.xlu0 %2490
    %2494 = vset.pattern.permute.xlu0 0
    %2495 = vperm.xlu0 %2494, %v2425
    %v2496 = vpop.permute.xlu0 %2495
    %2499 = vset.pattern.permute.xlu0 0
    %2500 = vperm.xlu0 %2499, %v2426
    %v2501 = vpop.permute.xlu0 %2500
    %2504 = vset.pattern.permute.xlu0 0
    %2505 = vperm.xlu0 %2504, %v2427
    %v2506 = vpop.permute.xlu0 %2505
    %v2508 = vmul.f32 %v2410, %v2431
    %v2509 = vmul.f32 %v2409, %v2436
    %v2510 = vmul.f32 %v2408, %v2441
    %v2511 = vmul.f32 %v2407, %v2446
    %v2512 = vmul.f32 %v2406, %v2451
    %v2513 = vmul.f32 %v2405, %v2456
    %v2514 = vmul.f32 %v2404, %v2461
    %v2515 = vmul.f32 %v2403, %v2466
    %v2516 = vmul.f32 %v2402, %v2471
    %v2517 = vmul.f32 %v2401, %v2476
    %v2518 = vmul.f32 %v2400, %v2481
    %v2519 = vmul.f32 %v2399, %v2486
    %v2520 = vmul.f32 %v2398, %v2491
    %v2521 = vmul.f32 %v2397, %v2496
    %v2522 = vmul.f32 %v2396, %v2501
    %v2523 = vmul.f32 %v2395, %v2506
    %v2524 = vpack.c.bf16 %v2509, %v2508
    %v2525 = vpack.c.bf16 %v2511, %v2510
    %v2526 = vpack.c.bf16 %v2513, %v2512
    %v2527 = vpack.c.bf16 %v2515, %v2514
    %v2528 = vpack.c.bf16 %v2517, %v2516
    %v2529 = vpack.c.bf16 %v2519, %v2518
    %v2530 = vpack.c.bf16 %v2521, %v2520
    %v2531 = vpack.c.bf16 %v2523, %v2522
    %s2532 = scalar_lea.vmem %s6, 128
    %v2533 = vld [vmem:[%s2532] sm:$0xf]
    %v2534 = vld [vmem:[%s2532 + $0x4] sm:$0xf]
    %v2535 = vld [vmem:[%s2532 + $0x8] sm:$0xf]
    %v2536 = vld [vmem:[%s2532 + $0xc] sm:$0xf]
    %v2537 = vld [vmem:[%s2532 + $0x10] sm:$0xf]
    %v2538 = vld [vmem:[%s2532 + $0x14] sm:$0xf]
    %v2539 = vld [vmem:[%s2532 + $0x18] sm:$0xf]
    %v2540 = vld [vmem:[%s2532 + $0x1c] sm:$0xf]
    %v2541 = vld [vmem:[%s2532 + $0x20] sm:$0xf]
    %v2542 = vld [vmem:[%s2532 + $0x24] sm:$0xf]
    %v2543 = vld [vmem:[%s2532 + $0x28] sm:$0xf]
    %v2544 = vld [vmem:[%s2532 + $0x2c] sm:$0xf]
    %v2545 = vld [vmem:[%s2532 + $0x30] sm:$0xf]
    %v2546 = vld [vmem:[%s2532 + $0x34] sm:$0xf]
    %v2547 = vld [vmem:[%s2532 + $0x38] sm:$0xf]
    %v2548 = vld [vmem:[%s2532 + $0x3c] sm:$0xf]
    %v2565 = vunpack.c.l.b16 %v2533
    %v2566 = vunpack.c.l.b16 %v2534
    %v2567 = vunpack.c.l.b16 %v2535
    %v2568 = vunpack.c.l.b16 %v2536
    %v2569 = vunpack.c.l.b16 %v2537
    %v2570 = vunpack.c.l.b16 %v2538
    %v2571 = vunpack.c.l.b16 %v2539
    %v2572 = vunpack.c.l.b16 %v2540
    %v2573 = vunpack.c.l.b16 %v2541
    %v2574 = vunpack.c.l.b16 %v2542
    %v2575 = vunpack.c.l.b16 %v2543
    %v2576 = vunpack.c.l.b16 %v2544
    %v2577 = vunpack.c.l.b16 %v2545
    %v2578 = vunpack.c.l.b16 %v2546
    %v2579 = vunpack.c.l.b16 %v2547
    %v2580 = vunpack.c.l.b16 %v2548
    %v2581 = vpack.c.b16 %v2566, %v2565
    %v2582 = vpack.c.b16 %v2568, %v2567
    %v2583 = vpack.c.b16 %v2570, %v2569
    %v2584 = vpack.c.b16 %v2572, %v2571
    %v2585 = vpack.c.b16 %v2574, %v2573
    %v2586 = vpack.c.b16 %v2576, %v2575
    %v2587 = vpack.c.b16 %v2578, %v2577
    %v2588 = vpack.c.b16 %v2580, %v2579
    %2597 = vmatprep.subr.bf16.mxu0 0
    %2598 = vmatpush1.bf16.msra.mxu0 %v2581
    %2599 = vmatprep.subr.bf16.mxu0 0
    %2600 = vmatpush1.bf16.msra.mxu0 %v2582
    %2601 = vmatprep.subr.bf16.mxu0 0
    %2602 = vmatpush1.bf16.msra.mxu0 %v2583
    %2603 = vmatprep.subr.bf16.mxu0 0
    %2604 = vmatpush1.bf16.msra.mxu0 %v2584
    %2605 = vmatprep.subr.bf16.mxu0 0
    %2606 = vmatpush1.bf16.msra.mxu0 %v2585
    %2607 = vmatprep.subr.bf16.mxu0 0
    %2608 = vmatpush1.bf16.msra.mxu0 %v2586
    %2609 = vmatprep.subr.bf16.mxu0 0
    %2610 = vmatpush1.bf16.msra.mxu0 %v2587
    %2611 = vmatprep.subr.bf16.mxu0 0
    %2612 = vmatpush1.bf16.msra.mxu0 %v2588
    %2613 = vmatprep.subr.bf16.mxu0 0
    %2614 = vmatpush1.bf16.msra.mxu0 0
    %2615 = vmatprep.subr.bf16.mxu0 0
    %2616 = vmatpush1.bf16.msra.mxu0 0
    %2617 = vmatprep.subr.bf16.mxu0 0
    %2618 = vmatpush1.bf16.msra.mxu0 0
    %2619 = vmatprep.subr.bf16.mxu0 0
    %2620 = vmatpush1.bf16.msra.mxu0 0
    %2621 = vmatprep.subr.bf16.mxu0 0
    %2622 = vmatpush1.bf16.msra.mxu0 0
    %2623 = vmatprep.subr.bf16.mxu0 0
    %2624 = vmatpush1.bf16.msra.mxu0 0
    %2625 = vmatprep.subr.bf16.mxu0 0
    %2626 = vmatpush1.bf16.msra.mxu0 0
    %2627 = vmatprep.subr.bf16.mxu0 0
    %2628 = vmatpush1.bf16.msra.mxu0 0
    %2629 = vmatprep.mubr.bf16.mxu0 0
    %2630 = vmatmul.mubr.bf16.gmra.mrb[0].mxu0 %v2524
    %v2631 = vpop.f32.mrb[0].mxu0
    %v2632 = vadd.f32 0.0, %v2631
    %v2633 = vpop.f32.mrb[0].mxu0
    %v2634 = vpop.f32.mrb[0].mxu0
    %v2635 = vadd.f32 0.0, %v2634
    %v2636 = vpop.f32.mrb[0].mxu0
    %2637 = vmatprep.mubr.bf16.mxu0 0
    %2638 = vmatmul.mubr.bf16.gmra.mrb[0].mxu0 %v2525
    %v2639 = vpop.f32.mrb[0].mxu0
    %v2640 = vadd.f32 0.0, %v2639
    %v2641 = vpop.f32.mrb[0].mxu0
    %v2642 = vpop.f32.mrb[0].mxu0
    %v2643 = vadd.f32 0.0, %v2642
    %v2644 = vpop.f32.mrb[0].mxu0
    %2645 = vmatprep.mubr.bf16.mxu0 0
    %2646 = vmatmul.mubr.bf16.gmra.mrb[0].mxu0 %v2526
    %v2647 = vpop.f32.mrb[0].mxu0
    %v2648 = vadd.f32 0.0, %v2647
    %v2649 = vpop.f32.mrb[0].mxu0
    %v2650 = vpop.f32.mrb[0].mxu0
    %v2651 = vadd.f32 0.0, %v2650
    %v2652 = vpop.f32.mrb[0].mxu0
    %2653 = vmatprep.mubr.bf16.mxu0 0
    %2654 = vmatmul.mubr.bf16.gmra.mrb[0].mxu0 %v2527
    %v2655 = vpop.f32.mrb[0].mxu0
    %v2656 = vadd.f32 0.0, %v2655
    %v2657 = vpop.f32.mrb[0].mxu0
    %v2658 = vpop.f32.mrb[0].mxu0
    %v2659 = vadd.f32 0.0, %v2658
    %v2660 = vpop.f32.mrb[0].mxu0
    %2661 = vmatprep.mubr.bf16.mxu0 0
    %2662 = vmatmul.mubr.bf16.gmra.mrb[0].mxu0 %v2528
    %v2663 = vpop.f32.mrb[0].mxu0
    %v2664 = vadd.f32 0.0, %v2663
    %v2665 = vpop.f32.mrb[0].mxu0
    %v2666 = vpop.f32.mrb[0].mxu0
    %v2667 = vadd.f32 0.0, %v2666
    %v2668 = vpop.f32.mrb[0].mxu0
    %2669 = vmatprep.mubr.bf16.mxu0 0
    %2670 = vmatmul.mubr.bf16.gmra.mrb[0].mxu0 %v2529
    %v2671 = vpop.f32.mrb[0].mxu0
    %v2672 = vadd.f32 0.0, %v2671
    %v2673 = vpop.f32.mrb[0].mxu0
    %v2674 = vpop.f32.mrb[0].mxu0
    %v2675 = vadd.f32 0.0, %v2674
    %v2676 = vpop.f32.mrb[0].mxu0
    %2677 = vmatprep.mubr.bf16.mxu0 0
    %2678 = vmatmul.mubr.bf16.gmra.mrb[0].mxu0 %v2530
    %v2679 = vpop.f32.mrb[0].mxu0
    %v2680 = vadd.f32 0.0, %v2679
    %v2681 = vpop.f32.mrb[0].mxu0
    %v2682 = vpop.f32.mrb[0].mxu0
    %v2683 = vadd.f32 0.0, %v2682
    %v2684 = vpop.f32.mrb[0].mxu0
    %2685 = vmatprep.mubr.bf16.mxu0 0
    %2686 = vmatmul.mubr.bf16.gmra.mrb[0].mxu0 %v2531
    %v2687 = vpop.f32.mrb[0].mxu0
    %v2688 = vadd.f32 0.0, %v2687
    %v2689 = vpop.f32.mrb[0].mxu0
    %v2690 = vpop.f32.mrb[0].mxu0
    %v2691 = vadd.f32 0.0, %v2690
    %v2692 = vpop.f32.mrb[0].mxu0
    %2693 = vdwg.mxu0
    %v2694 = vadd.f32 %v2362, %v2632
    %v2695 = vadd.f32 %v2363, %v2635
    %v2696 = vadd.f32 %v2364, %v2640
    %v2697 = vadd.f32 %v2365, %v2643
    %v2698 = vadd.f32 %v2366, %v2648
    %v2699 = vadd.f32 %v2367, %v2651
    %v2700 = vadd.f32 %v2368, %v2656
    %v2701 = vadd.f32 %v2369, %v2659
    %v2702 = vadd.f32 %v2370, %v2664
    %v2703 = vadd.f32 %v2371, %v2667
    %v2704 = vadd.f32 %v2372, %v2672
    %v2705 = vadd.f32 %v2373, %v2675
    %v2706 = vadd.f32 %v2374, %v2680
    %v2707 = vadd.f32 %v2375, %v2683
    %v2708 = vadd.f32 %v2376, %v2688
    %v2709 = vadd.f32 %v2377, %v2691
    %s2710 = scalar_lea.vmem %s10, 384
    %v2711 = vld [vmem:[%s2710] sm:$0xff]
    %v2712 = vld [vmem:[%s2710 + $0x8] sm:$0xff]
    %v2713 = vld [vmem:[%s2710 + $0x10] sm:$0xff]
    %v2714 = vld [vmem:[%s2710 + $0x18] sm:$0xff]
    %v2715 = vld [vmem:[%s2710 + $0x20] sm:$0xff]
    %v2716 = vld [vmem:[%s2710 + $0x28] sm:$0xff]
    %v2717 = vld [vmem:[%s2710 + $0x30] sm:$0xff]
    %v2718 = vld [vmem:[%s2710 + $0x38] sm:$0xff]
    %v2719 = vld [vmem:[%s2710 + $0x40] sm:$0xff]
    %v2720 = vld [vmem:[%s2710 + $0x48] sm:$0xff]
    %v2721 = vld [vmem:[%s2710 + $0x50] sm:$0xff]
    %v2722 = vld [vmem:[%s2710 + $0x58] sm:$0xff]
    %v2723 = vld [vmem:[%s2710 + $0x60] sm:$0xff]
    %v2724 = vld [vmem:[%s2710 + $0x68] sm:$0xff]
    %v2725 = vld [vmem:[%s2710 + $0x70] sm:$0xff]
    %v2726 = vld [vmem:[%s2710 + $0x78] sm:$0xff]
    %2728 = vset.pattern.permute.xlu0 0
    %2729 = vperm.xlu0 %2728, %v2711
    %v2730 = vpop.permute.xlu0 %2729
    %2733 = vset.pattern.permute.xlu0 0
    %2734 = vperm.xlu0 %2733, %v2712
    %v2735 = vpop.permute.xlu0 %2734
    %2738 = vset.pattern.permute.xlu0 0
    %2739 = vperm.xlu0 %2738, %v2713
    %v2740 = vpop.permute.xlu0 %2739
    %2743 = vset.pattern.permute.xlu0 0
    %2744 = vperm.xlu0 %2743, %v2714
    %v2745 = vpop.permute.xlu0 %2744
    %2748 = vset.pattern.permute.xlu0 0
    %2749 = vperm.xlu0 %2748, %v2715
    %v2750 = vpop.permute.xlu0 %2749
    %2753 = vset.pattern.permute.xlu0 0
    %2754 = vperm.xlu0 %2753, %v2716
    %v2755 = vpop.permute.xlu0 %2754
    %2758 = vset.pattern.permute.xlu0 0
    %2759 = vperm.xlu0 %2758, %v2717
    %v2760 = vpop.permute.xlu0 %2759
    %2763 = vset.pattern.permute.xlu0 0
    %2764 = vperm.xlu0 %2763, %v2718
    %v2765 = vpop.permute.xlu0 %2764
    %2768 = vset.pattern.permute.xlu0 0
    %2769 = vperm.xlu0 %2768, %v2719
    %v2770 = vpop.permute.xlu0 %2769
    %2773 = vset.pattern.permute.xlu0 0
    %2774 = vperm.xlu0 %2773, %v2720
    %v2775 = vpop.permute.xlu0 %2774
    %2778 = vset.pattern.permute.xlu0 0
    %2779 = vperm.xlu0 %2778, %v2721
    %v2780 = vpop.permute.xlu0 %2779
    %2783 = vset.pattern.permute.xlu0 0
    %2784 = vperm.xlu0 %2783, %v2722
    %v2785 = vpop.permute.xlu0 %2784
    %2788 = vset.pattern.permute.xlu0 0
    %2789 = vperm.xlu0 %2788, %v2723
    %v2790 = vpop.permute.xlu0 %2789
    %2793 = vset.pattern.permute.xlu0 0
    %2794 = vperm.xlu0 %2793, %v2724
    %v2795 = vpop.permute.xlu0 %2794
    %2798 = vset.pattern.permute.xlu0 0
    %2799 = vperm.xlu0 %2798, %v2725
    %v2800 = vpop.permute.xlu0 %2799
    %2803 = vset.pattern.permute.xlu0 0
    %2804 = vperm.xlu0 %2803, %v2726
    %v2805 = vpop.permute.xlu0 %2804
    %v2807 = vmul.f32 %v1781, %v2730
    %v2808 = vmul.f32 %v1780, %v2735
    %v2809 = vmul.f32 %v1779, %v2740
    %v2810 = vmul.f32 %v1778, %v2745
    %v2811 = vmul.f32 %v1777, %v2750
    %v2812 = vmul.f32 %v1776, %v2755
    %v2813 = vmul.f32 %v1775, %v2760
    %v2814 = vmul.f32 %v1774, %v2765
    %v2815 = vmul.f32 %v1773, %v2770
    %v2816 = vmul.f32 %v1772, %v2775
    %v2817 = vmul.f32 %v1771, %v2780
    %v2818 = vmul.f32 %v1770, %v2785
    %v2819 = vmul.f32 %v1769, %v2790
    %v2820 = vmul.f32 %v1768, %v2795
    %v2821 = vmul.f32 %v1767, %v2800
    %v2822 = vmul.f32 %v1766, %v2805
    %v2823 = vpack.c.bf16 %v2808, %v2807
    %v2824 = vpack.c.bf16 %v2810, %v2809
    %v2825 = vpack.c.bf16 %v2812, %v2811
    %v2826 = vpack.c.bf16 %v2814, %v2813
    %v2827 = vpack.c.bf16 %v2816, %v2815
    %v2828 = vpack.c.bf16 %v2818, %v2817
    %v2829 = vpack.c.bf16 %v2820, %v2819
    %v2830 = vpack.c.bf16 %v2822, %v2821
    %s2831 = scalar_lea.vmem %s6, 192
    %v2832 = vld [vmem:[%s2831] sm:$0xf]
    %v2833 = vld [vmem:[%s2831 + $0x4] sm:$0xf]
    %v2834 = vld [vmem:[%s2831 + $0x8] sm:$0xf]
    %v2835 = vld [vmem:[%s2831 + $0xc] sm:$0xf]
    %v2836 = vld [vmem:[%s2831 + $0x10] sm:$0xf]
    %v2837 = vld [vmem:[%s2831 + $0x14] sm:$0xf]
    %v2838 = vld [vmem:[%s2831 + $0x18] sm:$0xf]
    %v2839 = vld [vmem:[%s2831 + $0x1c] sm:$0xf]
    %v2840 = vld [vmem:[%s2831 + $0x20] sm:$0xf]
    %v2841 = vld [vmem:[%s2831 + $0x24] sm:$0xf]
    %v2842 = vld [vmem:[%s2831 + $0x28] sm:$0xf]
    %v2843 = vld [vmem:[%s2831 + $0x2c] sm:$0xf]
    %v2844 = vld [vmem:[%s2831 + $0x30] sm:$0xf]
    %v2845 = vld [vmem:[%s2831 + $0x34] sm:$0xf]
    %v2846 = vld [vmem:[%s2831 + $0x38] sm:$0xf]
    %v2847 = vld [vmem:[%s2831 + $0x3c] sm:$0xf]
    %v2864 = vunpack.c.l.b16 %v2832
    %v2865 = vunpack.c.l.b16 %v2833
    %v2866 = vunpack.c.l.b16 %v2834
    %v2867 = vunpack.c.l.b16 %v2835
    %v2868 = vunpack.c.l.b16 %v2836
    %v2869 = vunpack.c.l.b16 %v2837
    %v2870 = vunpack.c.l.b16 %v2838
    %v2871 = vunpack.c.l.b16 %v2839
    %v2872 = vunpack.c.l.b16 %v2840
    %v2873 = vunpack.c.l.b16 %v2841
    %v2874 = vunpack.c.l.b16 %v2842
    %v2875 = vunpack.c.l.b16 %v2843
    %v2876 = vunpack.c.l.b16 %v2844
    %v2877 = vunpack.c.l.b16 %v2845
    %v2878 = vunpack.c.l.b16 %v2846
    %v2879 = vunpack.c.l.b16 %v2847
    %v2880 = vpack.c.b16 %v2865, %v2864
    %v2881 = vpack.c.b16 %v2867, %v2866
    %v2882 = vpack.c.b16 %v2869, %v2868
    %v2883 = vpack.c.b16 %v2871, %v2870
    %v2884 = vpack.c.b16 %v2873, %v2872
    %v2885 = vpack.c.b16 %v2875, %v2874
    %v2886 = vpack.c.b16 %v2877, %v2876
    %v2887 = vpack.c.b16 %v2879, %v2878
    %2896 = vmatprep.subr.bf16.mxu0 0
    %2897 = vmatpush1.bf16.msra.mxu0 %v2880
    %2898 = vmatprep.subr.bf16.mxu0 0
    %2899 = vmatpush1.bf16.msra.mxu0 %v2881
    %2900 = vmatprep.subr.bf16.mxu0 0
    %2901 = vmatpush1.bf16.msra.mxu0 %v2882
    %2902 = vmatprep.subr.bf16.mxu0 0
    %2903 = vmatpush1.bf16.msra.mxu0 %v2883
    %2904 = vmatprep.subr.bf16.mxu0 0
    %2905 = vmatpush1.bf16.msra.mxu0 %v2884
    %2906 = vmatprep.subr.bf16.mxu0 0
    %2907 = vmatpush1.bf16.msra.mxu0 %v2885
    %2908 = vmatprep.subr.bf16.mxu0 0
    %2909 = vmatpush1.bf16.msra.mxu0 %v2886
    %2910 = vmatprep.subr.bf16.mxu0 0
    %2911 = vmatpush1.bf16.msra.mxu0 %v2887
    %2912 = vmatprep.subr.bf16.mxu0 0
    %2913 = vmatpush1.bf16.msra.mxu0 0
    %2914 = vmatprep.subr.bf16.mxu0 0
    %2915 = vmatpush1.bf16.msra.mxu0 0
    %2916 = vmatprep.subr.bf16.mxu0 0
    %2917 = vmatpush1.bf16.msra.mxu0 0
    %2918 = vmatprep.subr.bf16.mxu0 0
    %2919 = vmatpush1.bf16.msra.mxu0 0
    %2920 = vmatprep.subr.bf16.mxu0 0
    %2921 = vmatpush1.bf16.msra.mxu0 0
    %2922 = vmatprep.subr.bf16.mxu0 0
    %2923 = vmatpush1.bf16.msra.mxu0 0
    %2924 = vmatprep.subr.bf16.mxu0 0
    %2925 = vmatpush1.bf16.msra.mxu0 0
    %2926 = vmatprep.subr.bf16.mxu0 0
    %2927 = vmatpush1.bf16.msra.mxu0 0
    %2928 = vmatprep.mubr.bf16.mxu0 0
    %2929 = vmatmul.mubr.bf16.gmra.mrb[0].mxu0 %v2823
    %v2930 = vpop.f32.mrb[0].mxu0
    %v2931 = vadd.f32 0.0, %v2930
    %v2932 = vpop.f32.mrb[0].mxu0
    %v2933 = vpop.f32.mrb[0].mxu0
    %v2934 = vadd.f32 0.0, %v2933
    %v2935 = vpop.f32.mrb[0].mxu0
    %2936 = vmatprep.mubr.bf16.mxu0 0
    %2937 = vmatmul.mubr.bf16.gmra.mrb[0].mxu0 %v2824
    %v2938 = vpop.f32.mrb[0].mxu0
    %v2939 = vadd.f32 0.0, %v2938
    %v2940 = vpop.f32.mrb[0].mxu0
    %v2941 = vpop.f32.mrb[0].mxu0
    %v2942 = vadd.f32 0.0, %v2941
    %v2943 = vpop.f32.mrb[0].mxu0
    %2944 = vmatprep.mubr.bf16.mxu0 0
    %2945 = vmatmul.mubr.bf16.gmra.mrb[0].mxu0 %v2825
    %v2946 = vpop.f32.mrb[0].mxu0
    %v2947 = vadd.f32 0.0, %v2946
    %v2948 = vpop.f32.mrb[0].mxu0
    %v2949 = vpop.f32.mrb[0].mxu0
    %v2950 = vadd.f32 0.0, %v2949
    %v2951 = vpop.f32.mrb[0].mxu0
    %2952 = vmatprep.mubr.bf16.mxu0 0
    %2953 = vmatmul.mubr.bf16.gmra.mrb[0].mxu0 %v2826
    %v2954 = vpop.f32.mrb[0].mxu0
    %v2955 = vadd.f32 0.0, %v2954
    %v2956 = vpop.f32.mrb[0].mxu0
    %v2957 = vpop.f32.mrb[0].mxu0
    %v2958 = vadd.f32 0.0, %v2957
    %v2959 = vpop.f32.mrb[0].mxu0
    %2960 = vmatprep.mubr.bf16.mxu0 0
    %2961 = vmatmul.mubr.bf16.gmra.mrb[0].mxu0 %v2827
    %v2962 = vpop.f32.mrb[0].mxu0
    %v2963 = vadd.f32 0.0, %v2962
    %v2964 = vpop.f32.mrb[0].mxu0
    %v2965 = vpop.f32.mrb[0].mxu0
    %v2966 = vadd.f32 0.0, %v2965
    %v2967 = vpop.f32.mrb[0].mxu0
    %2968 = vmatprep.mubr.bf16.mxu0 0
    %2969 = vmatmul.mubr.bf16.gmra.mrb[0].mxu0 %v2828
    %v2970 = vpop.f32.mrb[0].mxu0
    %v2971 = vadd.f32 0.0, %v2970
    %v2972 = vpop.f32.mrb[0].mxu0
    %v2973 = vpop.f32.mrb[0].mxu0
    %v2974 = vadd.f32 0.0, %v2973
    %v2975 = vpop.f32.mrb[0].mxu0
    %2976 = vmatprep.mubr.bf16.mxu0 0
    %2977 = vmatmul.mubr.bf16.gmra.mrb[0].mxu0 %v2829
    %v2978 = vpop.f32.mrb[0].mxu0
    %v2979 = vadd.f32 0.0, %v2978
    %v2980 = vpop.f32.mrb[0].mxu0
    %v2981 = vpop.f32.mrb[0].mxu0
    %v2982 = vadd.f32 0.0, %v2981
    %v2983 = vpop.f32.mrb[0].mxu0
    %2984 = vmatprep.mubr.bf16.mxu0 0
    %2985 = vmatmul.mubr.bf16.gmra.mrb[0].mxu0 %v2830
    %v2986 = vpop.f32.mrb[0].mxu0
    %v2987 = vadd.f32 0.0, %v2986
    %v2988 = vpop.f32.mrb[0].mxu0
    %v2989 = vpop.f32.mrb[0].mxu0
    %v2990 = vadd.f32 0.0, %v2989
    %v2991 = vpop.f32.mrb[0].mxu0
    %2992 = vdwg.mxu0
    %v2993 = vadd.f32 %v2694, %v2931
    %v2994 = vadd.f32 %v2695, %v2934
    %v2995 = vadd.f32 %v2696, %v2939
    %v2996 = vadd.f32 %v2697, %v2942
    %v2997 = vadd.f32 %v2698, %v2947
    %v2998 = vadd.f32 %v2699, %v2950
    %v2999 = vadd.f32 %v2700, %v2955
    %v3000 = vadd.f32 %v2701, %v2958
    %v3001 = vadd.f32 %v2702, %v2963
    %v3002 = vadd.f32 %v2703, %v2966
    %v3003 = vadd.f32 %v2704, %v2971
    %v3004 = vadd.f32 %v2705, %v2974
    %v3005 = vadd.f32 %v2706, %v2979
    %v3006 = vadd.f32 %v2707, %v2982
    %v3007 = vadd.f32 %v2708, %v2987
    %v3008 = vadd.f32 %v2709, %v2990
    %s3009 = scalar_lea.vmem %s10, 640
    %v3010 = vld [vmem:[%s3009] sm:$0xff]
    %v3011 = vld [vmem:[%s3009 + $0x8] sm:$0xff]
    %v3012 = vld [vmem:[%s3009 + $0x10] sm:$0xff]
    %v3013 = vld [vmem:[%s3009 + $0x18] sm:$0xff]
    %v3014 = vld [vmem:[%s3009 + $0x20] sm:$0xff]
    %v3015 = vld [vmem:[%s3009 + $0x28] sm:$0xff]
    %v3016 = vld [vmem:[%s3009 + $0x30] sm:$0xff]
    %v3017 = vld [vmem:[%s3009 + $0x38] sm:$0xff]
    %v3018 = vld [vmem:[%s3009 + $0x40] sm:$0xff]
    %v3019 = vld [vmem:[%s3009 + $0x48] sm:$0xff]
    %v3020 = vld [vmem:[%s3009 + $0x50] sm:$0xff]
    %v3021 = vld [vmem:[%s3009 + $0x58] sm:$0xff]
    %v3022 = vld [vmem:[%s3009 + $0x60] sm:$0xff]
    %v3023 = vld [vmem:[%s3009 + $0x68] sm:$0xff]
    %v3024 = vld [vmem:[%s3009 + $0x70] sm:$0xff]
    %v3025 = vld [vmem:[%s3009 + $0x78] sm:$0xff]
    %3027 = vset.pattern.permute.xlu0 0
    %3028 = vperm.xlu0 %3027, %v3010
    %v3029 = vpop.permute.xlu0 %3028
    %3032 = vset.pattern.permute.xlu0 0
    %3033 = vperm.xlu0 %3032, %v3011
    %v3034 = vpop.permute.xlu0 %3033
    %3037 = vset.pattern.permute.xlu0 0
    %3038 = vperm.xlu0 %3037, %v3012
    %v3039 = vpop.permute.xlu0 %3038
    %3042 = vset.pattern.permute.xlu0 0
    %3043 = vperm.xlu0 %3042, %v3013
    %v3044 = vpop.permute.xlu0 %3043
    %3047 = vset.pattern.permute.xlu0 0
    %3048 = vperm.xlu0 %3047, %v3014
    %v3049 = vpop.permute.xlu0 %3048
    %3052 = vset.pattern.permute.xlu0 0
    %3053 = vperm.xlu0 %3052, %v3015
    %v3054 = vpop.permute.xlu0 %3053
    %3057 = vset.pattern.permute.xlu0 0
    %3058 = vperm.xlu0 %3057, %v3016
    %v3059 = vpop.permute.xlu0 %3058
    %3062 = vset.pattern.permute.xlu0 0
    %3063 = vperm.xlu0 %3062, %v3017
    %v3064 = vpop.permute.xlu0 %3063
    %3067 = vset.pattern.permute.xlu0 0
    %3068 = vperm.xlu0 %3067, %v3018
    %v3069 = vpop.permute.xlu0 %3068
    %3072 = vset.pattern.permute.xlu0 0
    %3073 = vperm.xlu0 %3072, %v3019
    %v3074 = vpop.permute.xlu0 %3073
    %3077 = vset.pattern.permute.xlu0 0
    %3078 = vperm.xlu0 %3077, %v3020
    %v3079 = vpop.permute.xlu0 %3078
    %3082 = vset.pattern.permute.xlu0 0
    %3083 = vperm.xlu0 %3082, %v3021
    %v3084 = vpop.permute.xlu0 %3083
    %3087 = vset.pattern.permute.xlu0 0
    %3088 = vperm.xlu0 %3087, %v3022
    %v3089 = vpop.permute.xlu0 %3088
    %3092 = vset.pattern.permute.xlu0 0
    %3093 = vperm.xlu0 %3092, %v3023
    %v3094 = vpop.permute.xlu0 %3093
    %3097 = vset.pattern.permute.xlu0 0
    %3098 = vperm.xlu0 %3097, %v3024
    %v3099 = vpop.permute.xlu0 %3098
    %3102 = vset.pattern.permute.xlu0 0
    %3103 = vperm.xlu0 %3102, %v3025
    %v3104 = vpop.permute.xlu0 %3103
    %v3106 = vmul.f32 %v2409, %v3029
    %v3107 = vmul.f32 %v2408, %v3034
    %v3108 = vmul.f32 %v2407, %v3039
    %v3109 = vmul.f32 %v2406, %v3044
    %v3110 = vmul.f32 %v2405, %v3049
    %v3111 = vmul.f32 %v2404, %v3054
    %v3112 = vmul.f32 %v2403, %v3059
    %v3113 = vmul.f32 %v2402, %v3064
    %v3114 = vmul.f32 %v2401, %v3069
    %v3115 = vmul.f32 %v2400, %v3074
    %v3116 = vmul.f32 %v2399, %v3079
    %v3117 = vmul.f32 %v2398, %v3084
    %v3118 = vmul.f32 %v2397, %v3089
    %v3119 = vmul.f32 %v2396, %v3094
    %v3120 = vmul.f32 %v2395, %v3099
    %v3121 = vmul.f32 %v2410, %v3104
    %v3122 = vpack.c.bf16 %v3107, %v3106
    %v3123 = vpack.c.bf16 %v3109, %v3108
    %v3124 = vpack.c.bf16 %v3111, %v3110
    %v3125 = vpack.c.bf16 %v3113, %v3112
    %v3126 = vpack.c.bf16 %v3115, %v3114
    %v3127 = vpack.c.bf16 %v3117, %v3116
    %v3128 = vpack.c.bf16 %v3119, %v3118
    %v3129 = vpack.c.bf16 %v3121, %v3120
    %s3130 = scalar_lea.vmem %s6, 320
    %v3131 = vld [vmem:[%s3130] sm:$0xf]
    %v3132 = vld [vmem:[%s3130 + $0x4] sm:$0xf]
    %v3133 = vld [vmem:[%s3130 + $0x8] sm:$0xf]
    %v3134 = vld [vmem:[%s3130 + $0xc] sm:$0xf]
    %v3135 = vld [vmem:[%s3130 + $0x10] sm:$0xf]
    %v3136 = vld [vmem:[%s3130 + $0x14] sm:$0xf]
    %v3137 = vld [vmem:[%s3130 + $0x18] sm:$0xf]
    %v3138 = vld [vmem:[%s3130 + $0x1c] sm:$0xf]
    %v3139 = vld [vmem:[%s3130 + $0x20] sm:$0xf]
    %v3140 = vld [vmem:[%s3130 + $0x24] sm:$0xf]
    %v3141 = vld [vmem:[%s3130 + $0x28] sm:$0xf]
    %v3142 = vld [vmem:[%s3130 + $0x2c] sm:$0xf]
    %v3143 = vld [vmem:[%s3130 + $0x30] sm:$0xf]
    %v3144 = vld [vmem:[%s3130 + $0x34] sm:$0xf]
    %v3145 = vld [vmem:[%s3130 + $0x38] sm:$0xf]
    %v3146 = vld [vmem:[%s3130 + $0x3c] sm:$0xf]
    %v3163 = vunpack.c.l.b16 %v3131
    %v3164 = vunpack.c.l.b16 %v3132
    %v3165 = vunpack.c.l.b16 %v3133
    %v3166 = vunpack.c.l.b16 %v3134
    %v3167 = vunpack.c.l.b16 %v3135
    %v3168 = vunpack.c.l.b16 %v3136
    %v3169 = vunpack.c.l.b16 %v3137
    %v3170 = vunpack.c.l.b16 %v3138
    %v3171 = vunpack.c.l.b16 %v3139
    %v3172 = vunpack.c.l.b16 %v3140
    %v3173 = vunpack.c.l.b16 %v3141
    %v3174 = vunpack.c.l.b16 %v3142
    %v3175 = vunpack.c.l.b16 %v3143
    %v3176 = vunpack.c.l.b16 %v3144
    %v3177 = vunpack.c.l.b16 %v3145
    %v3178 = vunpack.c.l.b16 %v3146
    %v3179 = vpack.c.b16 %v3164, %v3163
    %v3180 = vpack.c.b16 %v3166, %v3165
    %v3181 = vpack.c.b16 %v3168, %v3167
    %v3182 = vpack.c.b16 %v3170, %v3169
    %v3183 = vpack.c.b16 %v3172, %v3171
    %v3184 = vpack.c.b16 %v3174, %v3173
    %v3185 = vpack.c.b16 %v3176, %v3175
    %v3186 = vpack.c.b16 %v3178, %v3177
    %3195 = vmatprep.subr.bf16.mxu0 0
    %3196 = vmatpush1.bf16.msra.mxu0 %v3179
    %3197 = vmatprep.subr.bf16.mxu0 0
    %3198 = vmatpush1.bf16.msra.mxu0 %v3180
    %3199 = vmatprep.subr.bf16.mxu0 0
    %3200 = vmatpush1.bf16.msra.mxu0 %v3181
    %3201 = vmatprep.subr.bf16.mxu0 0
    %3202 = vmatpush1.bf16.msra.mxu0 %v3182
    %3203 = vmatprep.subr.bf16.mxu0 0
    %3204 = vmatpush1.bf16.msra.mxu0 %v3183
    %3205 = vmatprep.subr.bf16.mxu0 0
    %3206 = vmatpush1.bf16.msra.mxu0 %v3184
    %3207 = vmatprep.subr.bf16.mxu0 0
    %3208 = vmatpush1.bf16.msra.mxu0 %v3185
    %3209 = vmatprep.subr.bf16.mxu0 0
    %3210 = vmatpush1.bf16.msra.mxu0 %v3186
    %3211 = vmatprep.subr.bf16.mxu0 0
    %3212 = vmatpush1.bf16.msra.mxu0 0
    %3213 = vmatprep.subr.bf16.mxu0 0
    %3214 = vmatpush1.bf16.msra.mxu0 0
    %3215 = vmatprep.subr.bf16.mxu0 0
    %3216 = vmatpush1.bf16.msra.mxu0 0
    %3217 = vmatprep.subr.bf16.mxu0 0
    %3218 = vmatpush1.bf16.msra.mxu0 0
    %3219 = vmatprep.subr.bf16.mxu0 0
    %3220 = vmatpush1.bf16.msra.mxu0 0
    %3221 = vmatprep.subr.bf16.mxu0 0
    %3222 = vmatpush1.bf16.msra.mxu0 0
    %3223 = vmatprep.subr.bf16.mxu0 0
    %3224 = vmatpush1.bf16.msra.mxu0 0
    %3225 = vmatprep.subr.bf16.mxu0 0
    %3226 = vmatpush1.bf16.msra.mxu0 0
    %3227 = vmatprep.mubr.bf16.mxu0 0
    %3228 = vmatmul.mubr.bf16.gmra.mrb[0].mxu0 %v3122
    %v3229 = vpop.f32.mrb[0].mxu0
    %v3230 = vadd.f32 0.0, %v3229
    %v3231 = vpop.f32.mrb[0].mxu0
    %v3232 = vpop.f32.mrb[0].mxu0
    %v3233 = vadd.f32 0.0, %v3232
    %v3234 = vpop.f32.mrb[0].mxu0
    %3235 = vmatprep.mubr.bf16.mxu0 0
    %3236 = vmatmul.mubr.bf16.gmra.mrb[0].mxu0 %v3123
    %v3237 = vpop.f32.mrb[0].mxu0
    %v3238 = vadd.f32 0.0, %v3237
    %v3239 = vpop.f32.mrb[0].mxu0
    %v3240 = vpop.f32.mrb[0].mxu0
    %v3241 = vadd.f32 0.0, %v3240
    %v3242 = vpop.f32.mrb[0].mxu0
    %3243 = vmatprep.mubr.bf16.mxu0 0
    %3244 = vmatmul.mubr.bf16.gmra.mrb[0].mxu0 %v3124
    %v3245 = vpop.f32.mrb[0].mxu0
    %v3246 = vadd.f32 0.0, %v3245
    %v3247 = vpop.f32.mrb[0].mxu0
    %v3248 = vpop.f32.mrb[0].mxu0
    %v3249 = vadd.f32 0.0, %v3248
    %v3250 = vpop.f32.mrb[0].mxu0
    %3251 = vmatprep.mubr.bf16.mxu0 0
    %3252 = vmatmul.mubr.bf16.gmra.mrb[0].mxu0 %v3125
    %v3253 = vpop.f32.mrb[0].mxu0
    %v3254 = vadd.f32 0.0, %v3253
    %v3255 = vpop.f32.mrb[0].mxu0
    %v3256 = vpop.f32.mrb[0].mxu0
    %v3257 = vadd.f32 0.0, %v3256
    %v3258 = vpop.f32.mrb[0].mxu0
    %3259 = vmatprep.mubr.bf16.mxu0 0
    %3260 = vmatmul.mubr.bf16.gmra.mrb[0].mxu0 %v3126
    %v3261 = vpop.f32.mrb[0].mxu0
    %v3262 = vadd.f32 0.0, %v3261
    %v3263 = vpop.f32.mrb[0].mxu0
    %v3264 = vpop.f32.mrb[0].mxu0
    %v3265 = vadd.f32 0.0, %v3264
    %v3266 = vpop.f32.mrb[0].mxu0
    %3267 = vmatprep.mubr.bf16.mxu0 0
    %3268 = vmatmul.mubr.bf16.gmra.mrb[0].mxu0 %v3127
    %v3269 = vpop.f32.mrb[0].mxu0
    %v3270 = vadd.f32 0.0, %v3269
    %v3271 = vpop.f32.mrb[0].mxu0
    %v3272 = vpop.f32.mrb[0].mxu0
    %v3273 = vadd.f32 0.0, %v3272
    %v3274 = vpop.f32.mrb[0].mxu0
    %3275 = vmatprep.mubr.bf16.mxu0 0
    %3276 = vmatmul.mubr.bf16.gmra.mrb[0].mxu0 %v3128
    %v3277 = vpop.f32.mrb[0].mxu0
    %v3278 = vadd.f32 0.0, %v3277
    %v3279 = vpop.f32.mrb[0].mxu0
    %v3280 = vpop.f32.mrb[0].mxu0
    %v3281 = vadd.f32 0.0, %v3280
    %v3282 = vpop.f32.mrb[0].mxu0
    %3283 = vmatprep.mubr.bf16.mxu0 0
    %3284 = vmatmul.mubr.bf16.gmra.mrb[0].mxu0 %v3129
    %v3285 = vpop.f32.mrb[0].mxu0
    %v3286 = vadd.f32 0.0, %v3285
    %v3287 = vpop.f32.mrb[0].mxu0
    %v3288 = vpop.f32.mrb[0].mxu0
    %v3289 = vadd.f32 0.0, %v3288
    %v3290 = vpop.f32.mrb[0].mxu0
    %3291 = vdwg.mxu0
    %v3292 = vadd.f32 %v2993, %v3230
    %v3293 = vadd.f32 %v2994, %v3233
    %v3294 = vadd.f32 %v2995, %v3238
    %v3295 = vadd.f32 %v2996, %v3241
    %v3296 = vadd.f32 %v2997, %v3246
    %v3297 = vadd.f32 %v2998, %v3249
    %v3298 = vadd.f32 %v2999, %v3254
    %v3299 = vadd.f32 %v3000, %v3257
    %v3300 = vadd.f32 %v3001, %v3262
    %v3301 = vadd.f32 %v3002, %v3265
    %v3302 = vadd.f32 %v3003, %v3270
    %v3303 = vadd.f32 %v3004, %v3273
    %v3304 = vadd.f32 %v3005, %v3278
    %v3305 = vadd.f32 %v3006, %v3281
    %v3306 = vadd.f32 %v3007, %v3286
    %v3307 = vadd.f32 %v3008, %v3289
    %s3308 = scalar_lea.vmem %s10, 768
    %v3309 = vld [vmem:[%s3308] sm:$0xff]
    %v3310 = vld [vmem:[%s3308 + $0x8] sm:$0xff]
    %v3311 = vld [vmem:[%s3308 + $0x10] sm:$0xff]
    %v3312 = vld [vmem:[%s3308 + $0x18] sm:$0xff]
    %v3313 = vld [vmem:[%s3308 + $0x20] sm:$0xff]
    %v3314 = vld [vmem:[%s3308 + $0x28] sm:$0xff]
    %v3315 = vld [vmem:[%s3308 + $0x30] sm:$0xff]
    %v3316 = vld [vmem:[%s3308 + $0x38] sm:$0xff]
    %v3317 = vld [vmem:[%s3308 + $0x40] sm:$0xff]
    %v3318 = vld [vmem:[%s3308 + $0x48] sm:$0xff]
    %v3319 = vld [vmem:[%s3308 + $0x50] sm:$0xff]
    %v3320 = vld [vmem:[%s3308 + $0x58] sm:$0xff]
    %v3321 = vld [vmem:[%s3308 + $0x60] sm:$0xff]
    %v3322 = vld [vmem:[%s3308 + $0x68] sm:$0xff]
    %v3323 = vld [vmem:[%s3308 + $0x70] sm:$0xff]
    %v3324 = vld [vmem:[%s3308 + $0x78] sm:$0xff]
    %3326 = vset.pattern.permute.xlu0 0
    %3327 = vperm.xlu0 %3326, %v3309
    %v3328 = vpop.permute.xlu0 %3327
    %3331 = vset.pattern.permute.xlu0 0
    %3332 = vperm.xlu0 %3331, %v3310
    %v3333 = vpop.permute.xlu0 %3332
    %3336 = vset.pattern.permute.xlu0 0
    %3337 = vperm.xlu0 %3336, %v3311
    %v3338 = vpop.permute.xlu0 %3337
    %3341 = vset.pattern.permute.xlu0 0
    %3342 = vperm.xlu0 %3341, %v3312
    %v3343 = vpop.permute.xlu0 %3342
    %3346 = vset.pattern.permute.xlu0 0
    %3347 = vperm.xlu0 %3346, %v3313
    %v3348 = vpop.permute.xlu0 %3347
    %3351 = vset.pattern.permute.xlu0 0
    %3352 = vperm.xlu0 %3351, %v3314
    %v3353 = vpop.permute.xlu0 %3352
    %3356 = vset.pattern.permute.xlu0 0
    %3357 = vperm.xlu0 %3356, %v3315
    %v3358 = vpop.permute.xlu0 %3357
    %3361 = vset.pattern.permute.xlu0 0
    %3362 = vperm.xlu0 %3361, %v3316
    %v3363 = vpop.permute.xlu0 %3362
    %3366 = vset.pattern.permute.xlu0 0
    %3367 = vperm.xlu0 %3366, %v3317
    %v3368 = vpop.permute.xlu0 %3367
    %3371 = vset.pattern.permute.xlu0 0
    %3372 = vperm.xlu0 %3371, %v3318
    %v3373 = vpop.permute.xlu0 %3372
    %3376 = vset.pattern.permute.xlu0 0
    %3377 = vperm.xlu0 %3376, %v3319
    %v3378 = vpop.permute.xlu0 %3377
    %3381 = vset.pattern.permute.xlu0 0
    %3382 = vperm.xlu0 %3381, %v3320
    %v3383 = vpop.permute.xlu0 %3382
    %3386 = vset.pattern.permute.xlu0 0
    %3387 = vperm.xlu0 %3386, %v3321
    %v3388 = vpop.permute.xlu0 %3387
    %3391 = vset.pattern.permute.xlu0 0
    %3392 = vperm.xlu0 %3391, %v3322
    %v3393 = vpop.permute.xlu0 %3392
    %3396 = vset.pattern.permute.xlu0 0
    %3397 = vperm.xlu0 %3396, %v3323
    %v3398 = vpop.permute.xlu0 %3397
    %3401 = vset.pattern.permute.xlu0 0
    %3402 = vperm.xlu0 %3401, %v3324
    %v3403 = vpop.permute.xlu0 %3402
    %v3405 = vmul.f32 %v1780, %v3328
    %v3406 = vmul.f32 %v1779, %v3333
    %v3407 = vmul.f32 %v1778, %v3338
    %v3408 = vmul.f32 %v1777, %v3343
    %v3409 = vmul.f32 %v1776, %v3348
    %v3410 = vmul.f32 %v1775, %v3353
    %v3411 = vmul.f32 %v1774, %v3358
    %v3412 = vmul.f32 %v1773, %v3363
    %v3413 = vmul.f32 %v1772, %v3368
    %v3414 = vmul.f32 %v1771, %v3373
    %v3415 = vmul.f32 %v1770, %v3378
    %v3416 = vmul.f32 %v1769, %v3383
    %v3417 = vmul.f32 %v1768, %v3388
    %v3418 = vmul.f32 %v1767, %v3393
    %v3419 = vmul.f32 %v1766, %v3398
    %v3420 = vmul.f32 %v1781, %v3403
    %v3421 = vpack.c.bf16 %v3406, %v3405
    %v3422 = vpack.c.bf16 %v3408, %v3407
    %v3423 = vpack.c.bf16 %v3410, %v3409
    %v3424 = vpack.c.bf16 %v3412, %v3411
    %v3425 = vpack.c.bf16 %v3414, %v3413
    %v3426 = vpack.c.bf16 %v3416, %v3415
    %v3427 = vpack.c.bf16 %v3418, %v3417
    %v3428 = vpack.c.bf16 %v3420, %v3419
    %s3429 = scalar_lea.vmem %s6, 384
    %v3430 = vld [vmem:[%s3429] sm:$0xf]
    %v3431 = vld [vmem:[%s3429 + $0x4] sm:$0xf]
    %v3432 = vld [vmem:[%s3429 + $0x8] sm:$0xf]
    %v3433 = vld [vmem:[%s3429 + $0xc] sm:$0xf]
    %v3434 = vld [vmem:[%s3429 + $0x10] sm:$0xf]
    %v3435 = vld [vmem:[%s3429 + $0x14] sm:$0xf]
    %v3436 = vld [vmem:[%s3429 + $0x18] sm:$0xf]
    %v3437 = vld [vmem:[%s3429 + $0x1c] sm:$0xf]
    %v3438 = vld [vmem:[%s3429 + $0x20] sm:$0xf]
    %v3439 = vld [vmem:[%s3429 + $0x24] sm:$0xf]
    %v3440 = vld [vmem:[%s3429 + $0x28] sm:$0xf]
    %v3441 = vld [vmem:[%s3429 + $0x2c] sm:$0xf]
    %v3442 = vld [vmem:[%s3429 + $0x30] sm:$0xf]
    %v3443 = vld [vmem:[%s3429 + $0x34] sm:$0xf]
    %v3444 = vld [vmem:[%s3429 + $0x38] sm:$0xf]
    %v3445 = vld [vmem:[%s3429 + $0x3c] sm:$0xf]
    %v3462 = vunpack.c.l.b16 %v3430
    %v3463 = vunpack.c.l.b16 %v3431
    %v3464 = vunpack.c.l.b16 %v3432
    %v3465 = vunpack.c.l.b16 %v3433
    %v3466 = vunpack.c.l.b16 %v3434
    %v3467 = vunpack.c.l.b16 %v3435
    %v3468 = vunpack.c.l.b16 %v3436
    %v3469 = vunpack.c.l.b16 %v3437
    %v3470 = vunpack.c.l.b16 %v3438
    %v3471 = vunpack.c.l.b16 %v3439
    %v3472 = vunpack.c.l.b16 %v3440
    %v3473 = vunpack.c.l.b16 %v3441
    %v3474 = vunpack.c.l.b16 %v3442
    %v3475 = vunpack.c.l.b16 %v3443
    %v3476 = vunpack.c.l.b16 %v3444
    %v3477 = vunpack.c.l.b16 %v3445
    %v3478 = vpack.c.b16 %v3463, %v3462
    %v3479 = vpack.c.b16 %v3465, %v3464
    %v3480 = vpack.c.b16 %v3467, %v3466
    %v3481 = vpack.c.b16 %v3469, %v3468
    %v3482 = vpack.c.b16 %v3471, %v3470
    %v3483 = vpack.c.b16 %v3473, %v3472
    %v3484 = vpack.c.b16 %v3475, %v3474
    %v3485 = vpack.c.b16 %v3477, %v3476
    %3494 = vmatprep.subr.bf16.mxu0 0
    %3495 = vmatpush1.bf16.msra.mxu0 %v3478
    %3496 = vmatprep.subr.bf16.mxu0 0
    %3497 = vmatpush1.bf16.msra.mxu0 %v3479
    %3498 = vmatprep.subr.bf16.mxu0 0
    %3499 = vmatpush1.bf16.msra.mxu0 %v3480
    %3500 = vmatprep.subr.bf16.mxu0 0
    %3501 = vmatpush1.bf16.msra.mxu0 %v3481
    %3502 = vmatprep.subr.bf16.mxu0 0
    %3503 = vmatpush1.bf16.msra.mxu0 %v3482
    %3504 = vmatprep.subr.bf16.mxu0 0
    %3505 = vmatpush1.bf16.msra.mxu0 %v3483
    %3506 = vmatprep.subr.bf16.mxu0 0
    %3507 = vmatpush1.bf16.msra.mxu0 %v3484
    %3508 = vmatprep.subr.bf16.mxu0 0
    %3509 = vmatpush1.bf16.msra.mxu0 %v3485
    %3510 = vmatprep.subr.bf16.mxu0 0
    %3511 = vmatpush1.bf16.msra.mxu0 0
    %3512 = vmatprep.subr.bf16.mxu0 0
    %3513 = vmatpush1.bf16.msra.mxu0 0
    %3514 = vmatprep.subr.bf16.mxu0 0
    %3515 = vmatpush1.bf16.msra.mxu0 0
    %3516 = vmatprep.subr.bf16.mxu0 0
    %3517 = vmatpush1.bf16.msra.mxu0 0
    %3518 = vmatprep.subr.bf16.mxu0 0
    %3519 = vmatpush1.bf16.msra.mxu0 0
    %3520 = vmatprep.subr.bf16.mxu0 0
    %3521 = vmatpush1.bf16.msra.mxu0 0
    %3522 = vmatprep.subr.bf16.mxu0 0
    %3523 = vmatpush1.bf16.msra.mxu0 0
    %3524 = vmatprep.subr.bf16.mxu0 0
    %3525 = vmatpush1.bf16.msra.mxu0 0
    %3526 = vmatprep.mubr.bf16.mxu0 0
    %3527 = vmatmul.mubr.bf16.gmra.mrb[0].mxu0 %v3421
    %v3528 = vpop.f32.mrb[0].mxu0
    %v3529 = vadd.f32 0.0, %v3528
    %v3530 = vpop.f32.mrb[0].mxu0
    %v3531 = vpop.f32.mrb[0].mxu0
    %v3532 = vadd.f32 0.0, %v3531
    %v3533 = vpop.f32.mrb[0].mxu0
    %3534 = vmatprep.mubr.bf16.mxu0 0
    %3535 = vmatmul.mubr.bf16.gmra.mrb[0].mxu0 %v3422
    %v3536 = vpop.f32.mrb[0].mxu0
    %v3537 = vadd.f32 0.0, %v3536
    %v3538 = vpop.f32.mrb[0].mxu0
    %v3539 = vpop.f32.mrb[0].mxu0
    %v3540 = vadd.f32 0.0, %v3539
    %v3541 = vpop.f32.mrb[0].mxu0
    %3542 = vmatprep.mubr.bf16.mxu0 0
    %3543 = vmatmul.mubr.bf16.gmra.mrb[0].mxu0 %v3423
    %v3544 = vpop.f32.mrb[0].mxu0
    %v3545 = vadd.f32 0.0, %v3544
    %v3546 = vpop.f32.mrb[0].mxu0
    %v3547 = vpop.f32.mrb[0].mxu0
    %v3548 = vadd.f32 0.0, %v3547
    %v3549 = vpop.f32.mrb[0].mxu0
    %3550 = vmatprep.mubr.bf16.mxu0 0
    %3551 = vmatmul.mubr.bf16.gmra.mrb[0].mxu0 %v3424
    %v3552 = vpop.f32.mrb[0].mxu0
    %v3553 = vadd.f32 0.0, %v3552
    %v3554 = vpop.f32.mrb[0].mxu0
    %v3555 = vpop.f32.mrb[0].mxu0
    %v3556 = vadd.f32 0.0, %v3555
    %v3557 = vpop.f32.mrb[0].mxu0
    %3558 = vmatprep.mubr.bf16.mxu0 0
    %3559 = vmatmul.mubr.bf16.gmra.mrb[0].mxu0 %v3425
    %v3560 = vpop.f32.mrb[0].mxu0
    %v3561 = vadd.f32 0.0, %v3560
    %v3562 = vpop.f32.mrb[0].mxu0
    %v3563 = vpop.f32.mrb[0].mxu0
    %v3564 = vadd.f32 0.0, %v3563
    %v3565 = vpop.f32.mrb[0].mxu0
    %3566 = vmatprep.mubr.bf16.mxu0 0
    %3567 = vmatmul.mubr.bf16.gmra.mrb[0].mxu0 %v3426
    %v3568 = vpop.f32.mrb[0].mxu0
    %v3569 = vadd.f32 0.0, %v3568
    %v3570 = vpop.f32.mrb[0].mxu0
    %v3571 = vpop.f32.mrb[0].mxu0
    %v3572 = vadd.f32 0.0, %v3571
    %v3573 = vpop.f32.mrb[0].mxu0
    %3574 = vmatprep.mubr.bf16.mxu0 0
    %3575 = vmatmul.mubr.bf16.gmra.mrb[0].mxu0 %v3427
    %v3576 = vpop.f32.mrb[0].mxu0
    %v3577 = vadd.f32 0.0, %v3576
    %v3578 = vpop.f32.mrb[0].mxu0
    %v3579 = vpop.f32.mrb[0].mxu0
    %v3580 = vadd.f32 0.0, %v3579
    %v3581 = vpop.f32.mrb[0].mxu0
    %3582 = vmatprep.mubr.bf16.mxu0 0
    %3583 = vmatmul.mubr.bf16.gmra.mrb[0].mxu0 %v3428
    %v3584 = vpop.f32.mrb[0].mxu0
    %v3585 = vadd.f32 0.0, %v3584
    %v3586 = vpop.f32.mrb[0].mxu0
    %v3587 = vpop.f32.mrb[0].mxu0
    %v3588 = vadd.f32 0.0, %v3587
    %v3589 = vpop.f32.mrb[0].mxu0
    %3590 = vdwg.mxu0
    %v3591 = vadd.f32 %v3292, %v3529
    %v3592 = vadd.f32 %v3293, %v3532
    %v3593 = vadd.f32 %v3294, %v3537
    %v3594 = vadd.f32 %v3295, %v3540
    %v3595 = vadd.f32 %v3296, %v3545
    %v3596 = vadd.f32 %v3297, %v3548
    %v3597 = vadd.f32 %v3298, %v3553
    %v3598 = vadd.f32 %v3299, %v3556
    %v3599 = vadd.f32 %v3300, %v3561
    %v3600 = vadd.f32 %v3301, %v3564
    %v3601 = vadd.f32 %v3302, %v3569
    %v3602 = vadd.f32 %v3303, %v3572
    %v3603 = vadd.f32 %v3304, %v3577
    %v3604 = vadd.f32 %v3305, %v3580
    %v3605 = vadd.f32 %v3306, %v3585
    %v3606 = vadd.f32 %v3307, %v3588
    %s3607 = scalar_lea.vmem %s10, 896
    %v3608 = vld [vmem:[%s3607] sm:$0xff]
    %v3609 = vld [vmem:[%s3607 + $0x8] sm:$0xff]
    %v3610 = vld [vmem:[%s3607 + $0x10] sm:$0xff]
    %v3611 = vld [vmem:[%s3607 + $0x18] sm:$0xff]
    %v3612 = vld [vmem:[%s3607 + $0x20] sm:$0xff]
    %v3613 = vld [vmem:[%s3607 + $0x28] sm:$0xff]
    %v3614 = vld [vmem:[%s3607 + $0x30] sm:$0xff]
    %v3615 = vld [vmem:[%s3607 + $0x38] sm:$0xff]
    %v3616 = vld [vmem:[%s3607 + $0x40] sm:$0xff]
    %v3617 = vld [vmem:[%s3607 + $0x48] sm:$0xff]
    %v3618 = vld [vmem:[%s3607 + $0x50] sm:$0xff]
    %v3619 = vld [vmem:[%s3607 + $0x58] sm:$0xff]
    %v3620 = vld [vmem:[%s3607 + $0x60] sm:$0xff]
    %v3621 = vld [vmem:[%s3607 + $0x68] sm:$0xff]
    %v3622 = vld [vmem:[%s3607 + $0x70] sm:$0xff]
    %v3623 = vld [vmem:[%s3607 + $0x78] sm:$0xff]
    %3625 = vset.pattern.permute.xlu0 0
    %3626 = vperm.xlu0 %3625, %v3608
    %v3627 = vpop.permute.xlu0 %3626
    %3630 = vset.pattern.permute.xlu0 0
    %3631 = vperm.xlu0 %3630, %v3609
    %v3632 = vpop.permute.xlu0 %3631
    %3635 = vset.pattern.permute.xlu0 0
    %3636 = vperm.xlu0 %3635, %v3610
    %v3637 = vpop.permute.xlu0 %3636
    %3640 = vset.pattern.permute.xlu0 0
    %3641 = vperm.xlu0 %3640, %v3611
    %v3642 = vpop.permute.xlu0 %3641
    %3645 = vset.pattern.permute.xlu0 0
    %3646 = vperm.xlu0 %3645, %v3612
    %v3647 = vpop.permute.xlu0 %3646
    %3650 = vset.pattern.permute.xlu0 0
    %3651 = vperm.xlu0 %3650, %v3613
    %v3652 = vpop.permute.xlu0 %3651
    %3655 = vset.pattern.permute.xlu0 0
    %3656 = vperm.xlu0 %3655, %v3614
    %v3657 = vpop.permute.xlu0 %3656
    %3660 = vset.pattern.permute.xlu0 0
    %3661 = vperm.xlu0 %3660, %v3615
    %v3662 = vpop.permute.xlu0 %3661
    %3665 = vset.pattern.permute.xlu0 0
    %3666 = vperm.xlu0 %3665, %v3616
    %v3667 = vpop.permute.xlu0 %3666
    %3670 = vset.pattern.permute.xlu0 0
    %3671 = vperm.xlu0 %3670, %v3617
    %v3672 = vpop.permute.xlu0 %3671
    %3675 = vset.pattern.permute.xlu0 0
    %3676 = vperm.xlu0 %3675, %v3618
    %v3677 = vpop.permute.xlu0 %3676
    %3680 = vset.pattern.permute.xlu0 0
    %3681 = vperm.xlu0 %3680, %v3619
    %v3682 = vpop.permute.xlu0 %3681
    %3685 = vset.pattern.permute.xlu0 0
    %3686 = vperm.xlu0 %3685, %v3620
    %v3687 = vpop.permute.xlu0 %3686
    %3690 = vset.pattern.permute.xlu0 0
    %3691 = vperm.xlu0 %3690, %v3621
    %v3692 = vpop.permute.xlu0 %3691
    %3695 = vset.pattern.permute.xlu0 0
    %3696 = vperm.xlu0 %3695, %v3622
    %v3697 = vpop.permute.xlu0 %3696
    %3700 = vset.pattern.permute.xlu0 0
    %3701 = vperm.xlu0 %3700, %v3623
    %v3702 = vpop.permute.xlu0 %3701
    %v3704 = vmul.f32 %v1511, %v3627
    %v3705 = vmul.f32 %v1516, %v3632
    %v3706 = vmul.f32 %v1519, %v3637
    %v3707 = vmul.f32 %v1524, %v3642
    %v3708 = vmul.f32 %v1527, %v3647
    %v3709 = vmul.f32 %v1532, %v3652
    %v3710 = vmul.f32 %v1535, %v3657
    %v3711 = vmul.f32 %v1540, %v3662
    %v3712 = vmul.f32 %v1543, %v3667
    %v3713 = vmul.f32 %v1548, %v3672
    %v3714 = vmul.f32 %v1551, %v3677
    %v3715 = vmul.f32 %v1556, %v3682
    %v3716 = vmul.f32 %v1559, %v3687
    %v3717 = vmul.f32 %v1564, %v3692
    %v3718 = vmul.f32 %v1567, %v3697
    %v3719 = vmul.f32 %v1508, %v3702
    %v3720 = vpack.c.bf16 %v3705, %v3704
    %v3721 = vpack.c.bf16 %v3707, %v3706
    %v3722 = vpack.c.bf16 %v3709, %v3708
    %v3723 = vpack.c.bf16 %v3711, %v3710
    %v3724 = vpack.c.bf16 %v3713, %v3712
    %v3725 = vpack.c.bf16 %v3715, %v3714
    %v3726 = vpack.c.bf16 %v3717, %v3716
    %v3727 = vpack.c.bf16 %v3719, %v3718
    %s3728 = scalar_lea.vmem %s6, 448
    %v3729 = vld [vmem:[%s3728] sm:$0xf]
    %v3730 = vld [vmem:[%s3728 + $0x4] sm:$0xf]
    %v3731 = vld [vmem:[%s3728 + $0x8] sm:$0xf]
    %v3732 = vld [vmem:[%s3728 + $0xc] sm:$0xf]
    %v3733 = vld [vmem:[%s3728 + $0x10] sm:$0xf]
    %v3734 = vld [vmem:[%s3728 + $0x14] sm:$0xf]
    %v3735 = vld [vmem:[%s3728 + $0x18] sm:$0xf]
    %v3736 = vld [vmem:[%s3728 + $0x1c] sm:$0xf]
    %v3737 = vld [vmem:[%s3728 + $0x20] sm:$0xf]
    %v3738 = vld [vmem:[%s3728 + $0x24] sm:$0xf]
    %v3739 = vld [vmem:[%s3728 + $0x28] sm:$0xf]
    %v3740 = vld [vmem:[%s3728 + $0x2c] sm:$0xf]
    %v3741 = vld [vmem:[%s3728 + $0x30] sm:$0xf]
    %v3742 = vld [vmem:[%s3728 + $0x34] sm:$0xf]
    %v3743 = vld [vmem:[%s3728 + $0x38] sm:$0xf]
    %v3744 = vld [vmem:[%s3728 + $0x3c] sm:$0xf]
    %v3761 = vunpack.c.l.b16 %v3729
    %v3762 = vunpack.c.l.b16 %v3730
    %v3763 = vunpack.c.l.b16 %v3731
    %v3764 = vunpack.c.l.b16 %v3732
    %v3765 = vunpack.c.l.b16 %v3733
    %v3766 = vunpack.c.l.b16 %v3734
    %v3767 = vunpack.c.l.b16 %v3735
    %v3768 = vunpack.c.l.b16 %v3736
    %v3769 = vunpack.c.l.b16 %v3737
    %v3770 = vunpack.c.l.b16 %v3738
    %v3771 = vunpack.c.l.b16 %v3739
    %v3772 = vunpack.c.l.b16 %v3740
    %v3773 = vunpack.c.l.b16 %v3741
    %v3774 = vunpack.c.l.b16 %v3742
    %v3775 = vunpack.c.l.b16 %v3743
    %v3776 = vunpack.c.l.b16 %v3744
    %v3777 = vpack.c.b16 %v3762, %v3761
    %v3778 = vpack.c.b16 %v3764, %v3763
    %v3779 = vpack.c.b16 %v3766, %v3765
    %v3780 = vpack.c.b16 %v3768, %v3767
    %v3781 = vpack.c.b16 %v3770, %v3769
    %v3782 = vpack.c.b16 %v3772, %v3771
    %v3783 = vpack.c.b16 %v3774, %v3773
    %v3784 = vpack.c.b16 %v3776, %v3775
    %3793 = vmatprep.subr.bf16.mxu0 0
    %3794 = vmatpush1.bf16.msra.mxu0 %v3777
    %3795 = vmatprep.subr.bf16.mxu0 0
    %3796 = vmatpush1.bf16.msra.mxu0 %v3778
    %3797 = vmatprep.subr.bf16.mxu0 0
    %3798 = vmatpush1.bf16.msra.mxu0 %v3779
    %3799 = vmatprep.subr.bf16.mxu0 0
    %3800 = vmatpush1.bf16.msra.mxu0 %v3780
    %3801 = vmatprep.subr.bf16.mxu0 0
    %3802 = vmatpush1.bf16.msra.mxu0 %v3781
    %3803 = vmatprep.subr.bf16.mxu0 0
    %3804 = vmatpush1.bf16.msra.mxu0 %v3782
    %3805 = vmatprep.subr.bf16.mxu0 0
    %3806 = vmatpush1.bf16.msra.mxu0 %v3783
    %3807 = vmatprep.subr.bf16.mxu0 0
    %3808 = vmatpush1.bf16.msra.mxu0 %v3784
    %3809 = vmatprep.subr.bf16.mxu0 0
    %3810 = vmatpush1.bf16.msra.mxu0 0
    %3811 = vmatprep.subr.bf16.mxu0 0
    %3812 = vmatpush1.bf16.msra.mxu0 0
    %3813 = vmatprep.subr.bf16.mxu0 0
    %3814 = vmatpush1.bf16.msra.mxu0 0
    %3815 = vmatprep.subr.bf16.mxu0 0
    %3816 = vmatpush1.bf16.msra.mxu0 0
    %3817 = vmatprep.subr.bf16.mxu0 0
    %3818 = vmatpush1.bf16.msra.mxu0 0
    %3819 = vmatprep.subr.bf16.mxu0 0
    %3820 = vmatpush1.bf16.msra.mxu0 0
    %3821 = vmatprep.subr.bf16.mxu0 0
    %3822 = vmatpush1.bf16.msra.mxu0 0
    %3823 = vmatprep.subr.bf16.mxu0 0
    %3824 = vmatpush1.bf16.msra.mxu0 0
    %3825 = vmatprep.mubr.bf16.mxu0 0
    %3826 = vmatmul.mubr.bf16.gmra.mrb[0].mxu0 %v3720
    %v3827 = vpop.f32.mrb[0].mxu0
    %v3828 = vadd.f32 0.0, %v3827
    %v3829 = vpop.f32.mrb[0].mxu0
    %v3830 = vpop.f32.mrb[0].mxu0
    %v3831 = vadd.f32 0.0, %v3830
    %v3832 = vpop.f32.mrb[0].mxu0
    %3833 = vmatprep.mubr.bf16.mxu0 0
    %3834 = vmatmul.mubr.bf16.gmra.mrb[0].mxu0 %v3721
    %v3835 = vpop.f32.mrb[0].mxu0
    %v3836 = vadd.f32 0.0, %v3835
    %v3837 = vpop.f32.mrb[0].mxu0
    %v3838 = vpop.f32.mrb[0].mxu0
    %v3839 = vadd.f32 0.0, %v3838
    %v3840 = vpop.f32.mrb[0].mxu0
    %3841 = vmatprep.mubr.bf16.mxu0 0
    %3842 = vmatmul.mubr.bf16.gmra.mrb[0].mxu0 %v3722
    %v3843 = vpop.f32.mrb[0].mxu0
    %v3844 = vadd.f32 0.0, %v3843
    %v3845 = vpop.f32.mrb[0].mxu0
    %v3846 = vpop.f32.mrb[0].mxu0
    %v3847 = vadd.f32 0.0, %v3846
    %v3848 = vpop.f32.mrb[0].mxu0
    %3849 = vmatprep.mubr.bf16.mxu0 0
    %3850 = vmatmul.mubr.bf16.gmra.mrb[0].mxu0 %v3723
    %v3851 = vpop.f32.mrb[0].mxu0
    %v3852 = vadd.f32 0.0, %v3851
    %v3853 = vpop.f32.mrb[0].mxu0
    %v3854 = vpop.f32.mrb[0].mxu0
    %v3855 = vadd.f32 0.0, %v3854
    %v3856 = vpop.f32.mrb[0].mxu0
    %3857 = vmatprep.mubr.bf16.mxu0 0
    %3858 = vmatmul.mubr.bf16.gmra.mrb[0].mxu0 %v3724
    %v3859 = vpop.f32.mrb[0].mxu0
    %v3860 = vadd.f32 0.0, %v3859
    %v3861 = vpop.f32.mrb[0].mxu0
    %v3862 = vpop.f32.mrb[0].mxu0
    %v3863 = vadd.f32 0.0, %v3862
    %v3864 = vpop.f32.mrb[0].mxu0
    %3865 = vmatprep.mubr.bf16.mxu0 0
    %3866 = vmatmul.mubr.bf16.gmra.mrb[0].mxu0 %v3725
    %v3867 = vpop.f32.mrb[0].mxu0
    %v3868 = vadd.f32 0.0, %v3867
    %v3869 = vpop.f32.mrb[0].mxu0
    %v3870 = vpop.f32.mrb[0].mxu0
    %v3871 = vadd.f32 0.0, %v3870
    %v3872 = vpop.f32.mrb[0].mxu0
    %3873 = vmatprep.mubr.bf16.mxu0 0
    %3874 = vmatmul.mubr.bf16.gmra.mrb[0].mxu0 %v3726
    %v3875 = vpop.f32.mrb[0].mxu0
    %v3876 = vadd.f32 0.0, %v3875
    %v3877 = vpop.f32.mrb[0].mxu0
    %v3878 = vpop.f32.mrb[0].mxu0
    %v3879 = vadd.f32 0.0, %v3878
    %v3880 = vpop.f32.mrb[0].mxu0
    %3881 = vmatprep.mubr.bf16.mxu0 0
    %3882 = vmatmul.mubr.bf16.gmra.mrb[0].mxu0 %v3727
    %v3883 = vpop.f32.mrb[0].mxu0
    %v3884 = vadd.f32 0.0, %v3883
    %v3885 = vpop.f32.mrb[0].mxu0
    %v3886 = vpop.f32.mrb[0].mxu0
    %v3887 = vadd.f32 0.0, %v3886
    %v3888 = vpop.f32.mrb[0].mxu0
    %3889 = vdwg.mxu0
    %v3890 = vadd.f32 %v3591, %v3828
    %v3891 = vadd.f32 %v3592, %v3831
    %v3892 = vadd.f32 %v3593, %v3836
    %v3893 = vadd.f32 %v3594, %v3839
    %v3894 = vadd.f32 %v3595, %v3844
    %v3895 = vadd.f32 %v3596, %v3847
    %v3896 = vadd.f32 %v3597, %v3852
    %v3897 = vadd.f32 %v3598, %v3855
    %v3898 = vadd.f32 %v3599, %v3860
    %v3899 = vadd.f32 %v3600, %v3863
    %v3900 = vadd.f32 %v3601, %v3868
    %v3901 = vadd.f32 %v3602, %v3871
    %v3902 = vadd.f32 %v3603, %v3876
    %v3903 = vadd.f32 %v3604, %v3879
    %v3904 = vadd.f32 %v3605, %v3884
    %v3905 = vadd.f32 %v3606, %v3887
    %s3906 = scalar_lea.vmem %s10, 1024
    %v3907 = vld [vmem:[%s3906] sm:$0xff]
    %v3908 = vld [vmem:[%s3906 + $0x8] sm:$0xff]
    %v3909 = vld [vmem:[%s3906 + $0x10] sm:$0xff]
    %v3910 = vld [vmem:[%s3906 + $0x18] sm:$0xff]
    %v3911 = vld [vmem:[%s3906 + $0x20] sm:$0xff]
    %v3912 = vld [vmem:[%s3906 + $0x28] sm:$0xff]
    %v3913 = vld [vmem:[%s3906 + $0x30] sm:$0xff]
    %v3914 = vld [vmem:[%s3906 + $0x38] sm:$0xff]
    %v3915 = vld [vmem:[%s3906 + $0x40] sm:$0xff]
    %v3916 = vld [vmem:[%s3906 + $0x48] sm:$0xff]
    %v3917 = vld [vmem:[%s3906 + $0x50] sm:$0xff]
    %v3918 = vld [vmem:[%s3906 + $0x58] sm:$0xff]
    %v3919 = vld [vmem:[%s3906 + $0x60] sm:$0xff]
    %v3920 = vld [vmem:[%s3906 + $0x68] sm:$0xff]
    %v3921 = vld [vmem:[%s3906 + $0x70] sm:$0xff]
    %v3922 = vld [vmem:[%s3906 + $0x78] sm:$0xff]
    %3924 = vset.pattern.permute.xlu0 0
    %3925 = vperm.xlu0 %3924, %v3907
    %v3926 = vpop.permute.xlu0 %3925
    %3929 = vset.pattern.permute.xlu0 0
    %3930 = vperm.xlu0 %3929, %v3908
    %v3931 = vpop.permute.xlu0 %3930
    %3934 = vset.pattern.permute.xlu0 0
    %3935 = vperm.xlu0 %3934, %v3909
    %v3936 = vpop.permute.xlu0 %3935
    %3939 = vset.pattern.permute.xlu0 0
    %3940 = vperm.xlu0 %3939, %v3910
    %v3941 = vpop.permute.xlu0 %3940
    %3944 = vset.pattern.permute.xlu0 0
    %3945 = vperm.xlu0 %3944, %v3911
    %v3946 = vpop.permute.xlu0 %3945
    %3949 = vset.pattern.permute.xlu0 0
    %3950 = vperm.xlu0 %3949, %v3912
    %v3951 = vpop.permute.xlu0 %3950
    %3954 = vset.pattern.permute.xlu0 0
    %3955 = vperm.xlu0 %3954, %v3913
    %v3956 = vpop.permute.xlu0 %3955
    %3959 = vset.pattern.permute.xlu0 0
    %3960 = vperm.xlu0 %3959, %v3914
    %v3961 = vpop.permute.xlu0 %3960
    %3964 = vset.pattern.permute.xlu0 0
    %3965 = vperm.xlu0 %3964, %v3915
    %v3966 = vpop.permute.xlu0 %3965
    %3969 = vset.pattern.permute.xlu0 0
    %3970 = vperm.xlu0 %3969, %v3916
    %v3971 = vpop.permute.xlu0 %3970
    %3974 = vset.pattern.permute.xlu0 0
    %3975 = vperm.xlu0 %3974, %v3917
    %v3976 = vpop.permute.xlu0 %3975
    %3979 = vset.pattern.permute.xlu0 0
    %3980 = vperm.xlu0 %3979, %v3918
    %v3981 = vpop.permute.xlu0 %3980
    %3984 = vset.pattern.permute.xlu0 0
    %3985 = vperm.xlu0 %3984, %v3919
    %v3986 = vpop.permute.xlu0 %3985
    %3989 = vset.pattern.permute.xlu0 0
    %3990 = vperm.xlu0 %3989, %v3920
    %v3991 = vpop.permute.xlu0 %3990
    %3994 = vset.pattern.permute.xlu0 0
    %3995 = vperm.xlu0 %3994, %v3921
    %v3996 = vpop.permute.xlu0 %3995
    %3999 = vset.pattern.permute.xlu0 0
    %4000 = vperm.xlu0 %3999, %v3922
    %v4001 = vpop.permute.xlu0 %4000
    %v4003 = vmul.f32 %v2408, %v3926
    %v4004 = vmul.f32 %v2407, %v3931
    %v4005 = vmul.f32 %v2406, %v3936
    %v4006 = vmul.f32 %v2405, %v3941
    %v4007 = vmul.f32 %v2404, %v3946
    %v4008 = vmul.f32 %v2403, %v3951
    %v4009 = vmul.f32 %v2402, %v3956
    %v4010 = vmul.f32 %v2401, %v3961
    %v4011 = vmul.f32 %v2400, %v3966
    %v4012 = vmul.f32 %v2399, %v3971
    %v4013 = vmul.f32 %v2398, %v3976
    %v4014 = vmul.f32 %v2397, %v3981
    %v4015 = vmul.f32 %v2396, %v3986
    %v4016 = vmul.f32 %v2395, %v3991
    %v4017 = vmul.f32 %v2410, %v3996
    %v4018 = vmul.f32 %v2409, %v4001
    %v4019 = vpack.c.bf16 %v4004, %v4003
    %v4020 = vpack.c.bf16 %v4006, %v4005
    %v4021 = vpack.c.bf16 %v4008, %v4007
    %v4022 = vpack.c.bf16 %v4010, %v4009
    %v4023 = vpack.c.bf16 %v4012, %v4011
    %v4024 = vpack.c.bf16 %v4014, %v4013
    %v4025 = vpack.c.bf16 %v4016, %v4015
    %v4026 = vpack.c.bf16 %v4018, %v4017
    %s4027 = scalar_lea.vmem %s6, 512
    %v4028 = vld [vmem:[%s4027] sm:$0xf]
    %v4029 = vld [vmem:[%s4027 + $0x4] sm:$0xf]
    %v4030 = vld [vmem:[%s4027 + $0x8] sm:$0xf]
    %v4031 = vld [vmem:[%s4027 + $0xc] sm:$0xf]
    %v4032 = vld [vmem:[%s4027 + $0x10] sm:$0xf]
    %v4033 = vld [vmem:[%s4027 + $0x14] sm:$0xf]
    %v4034 = vld [vmem:[%s4027 + $0x18] sm:$0xf]
    %v4035 = vld [vmem:[%s4027 + $0x1c] sm:$0xf]
    %v4036 = vld [vmem:[%s4027 + $0x20] sm:$0xf]
    %v4037 = vld [vmem:[%s4027 + $0x24] sm:$0xf]
    %v4038 = vld [vmem:[%s4027 + $0x28] sm:$0xf]
    %v4039 = vld [vmem:[%s4027 + $0x2c] sm:$0xf]
    %v4040 = vld [vmem:[%s4027 + $0x30] sm:$0xf]
    %v4041 = vld [vmem:[%s4027 + $0x34] sm:$0xf]
    %v4042 = vld [vmem:[%s4027 + $0x38] sm:$0xf]
    %v4043 = vld [vmem:[%s4027 + $0x3c] sm:$0xf]
    %v4060 = vunpack.c.l.b16 %v4028
    %v4061 = vunpack.c.l.b16 %v4029
    %v4062 = vunpack.c.l.b16 %v4030
    %v4063 = vunpack.c.l.b16 %v4031
    %v4064 = vunpack.c.l.b16 %v4032
    %v4065 = vunpack.c.l.b16 %v4033
    %v4066 = vunpack.c.l.b16 %v4034
    %v4067 = vunpack.c.l.b16 %v4035
    %v4068 = vunpack.c.l.b16 %v4036
    %v4069 = vunpack.c.l.b16 %v4037
    %v4070 = vunpack.c.l.b16 %v4038
    %v4071 = vunpack.c.l.b16 %v4039
    %v4072 = vunpack.c.l.b16 %v4040
    %v4073 = vunpack.c.l.b16 %v4041
    %v4074 = vunpack.c.l.b16 %v4042
    %v4075 = vunpack.c.l.b16 %v4043
    %v4076 = vpack.c.b16 %v4061, %v4060
    %v4077 = vpack.c.b16 %v4063, %v4062
    %v4078 = vpack.c.b16 %v4065, %v4064
    %v4079 = vpack.c.b16 %v4067, %v4066
    %v4080 = vpack.c.b16 %v4069, %v4068
    %v4081 = vpack.c.b16 %v4071, %v4070
    %v4082 = vpack.c.b16 %v4073, %v4072
    %v4083 = vpack.c.b16 %v4075, %v4074
    %4092 = vmatprep.subr.bf16.mxu0 0
    %4093 = vmatpush1.bf16.msra.mxu0 %v4076
    %4094 = vmatprep.subr.bf16.mxu0 0
    %4095 = vmatpush1.bf16.msra.mxu0 %v4077
    %4096 = vmatprep.subr.bf16.mxu0 0
    %4097 = vmatpush1.bf16.msra.mxu0 %v4078
    %4098 = vmatprep.subr.bf16.mxu0 0
    %4099 = vmatpush1.bf16.msra.mxu0 %v4079
    %4100 = vmatprep.subr.bf16.mxu0 0
    %4101 = vmatpush1.bf16.msra.mxu0 %v4080
    %4102 = vmatprep.subr.bf16.mxu0 0
    %4103 = vmatpush1.bf16.msra.mxu0 %v4081
    %4104 = vmatprep.subr.bf16.mxu0 0
    %4105 = vmatpush1.bf16.msra.mxu0 %v4082
    %4106 = vmatprep.subr.bf16.mxu0 0
    %4107 = vmatpush1.bf16.msra.mxu0 %v4083
    %4108 = vmatprep.subr.bf16.mxu0 0
    %4109 = vmatpush1.bf16.msra.mxu0 0
    %4110 = vmatprep.subr.bf16.mxu0 0
    %4111 = vmatpush1.bf16.msra.mxu0 0
    %4112 = vmatprep.subr.bf16.mxu0 0
    %4113 = vmatpush1.bf16.msra.mxu0 0
    %4114 = vmatprep.subr.bf16.mxu0 0
    %4115 = vmatpush1.bf16.msra.mxu0 0
    %4116 = vmatprep.subr.bf16.mxu0 0
    %4117 = vmatpush1.bf16.msra.mxu0 0
    %4118 = vmatprep.subr.bf16.mxu0 0
    %4119 = vmatpush1.bf16.msra.mxu0 0
    %4120 = vmatprep.subr.bf16.mxu0 0
    %4121 = vmatpush1.bf16.msra.mxu0 0
    %4122 = vmatprep.subr.bf16.mxu0 0
    %4123 = vmatpush1.bf16.msra.mxu0 0
    %4124 = vmatprep.mubr.bf16.mxu0 0
    %4125 = vmatmul.mubr.bf16.gmra.mrb[0].mxu0 %v4019
    %v4126 = vpop.f32.mrb[0].mxu0
    %v4127 = vadd.f32 0.0, %v4126
    %v4128 = vpop.f32.mrb[0].mxu0
    %v4129 = vpop.f32.mrb[0].mxu0
    %v4130 = vadd.f32 0.0, %v4129
    %v4131 = vpop.f32.mrb[0].mxu0
    %4132 = vmatprep.mubr.bf16.mxu0 0
    %4133 = vmatmul.mubr.bf16.gmra.mrb[0].mxu0 %v4020
    %v4134 = vpop.f32.mrb[0].mxu0
    %v4135 = vadd.f32 0.0, %v4134
    %v4136 = vpop.f32.mrb[0].mxu0
    %v4137 = vpop.f32.mrb[0].mxu0
    %v4138 = vadd.f32 0.0, %v4137
    %v4139 = vpop.f32.mrb[0].mxu0
    %4140 = vmatprep.mubr.bf16.mxu0 0
    %4141 = vmatmul.mubr.bf16.gmra.mrb[0].mxu0 %v4021
    %v4142 = vpop.f32.mrb[0].mxu0
    %v4143 = vadd.f32 0.0, %v4142
    %v4144 = vpop.f32.mrb[0].mxu0
    %v4145 = vpop.f32.mrb[0].mxu0
    %v4146 = vadd.f32 0.0, %v4145
    %v4147 = vpop.f32.mrb[0].mxu0
    %4148 = vmatprep.mubr.bf16.mxu0 0
    %4149 = vmatmul.mubr.bf16.gmra.mrb[0].mxu0 %v4022
    %v4150 = vpop.f32.mrb[0].mxu0
    %v4151 = vadd.f32 0.0, %v4150
    %v4152 = vpop.f32.mrb[0].mxu0
    %v4153 = vpop.f32.mrb[0].mxu0
    %v4154 = vadd.f32 0.0, %v4153
    %v4155 = vpop.f32.mrb[0].mxu0
    %4156 = vmatprep.mubr.bf16.mxu0 0
    %4157 = vmatmul.mubr.bf16.gmra.mrb[0].mxu0 %v4023
    %v4158 = vpop.f32.mrb[0].mxu0
    %v4159 = vadd.f32 0.0, %v4158
    %v4160 = vpop.f32.mrb[0].mxu0
    %v4161 = vpop.f32.mrb[0].mxu0
    %v4162 = vadd.f32 0.0, %v4161
    %v4163 = vpop.f32.mrb[0].mxu0
    %4164 = vmatprep.mubr.bf16.mxu0 0
    %4165 = vmatmul.mubr.bf16.gmra.mrb[0].mxu0 %v4024
    %v4166 = vpop.f32.mrb[0].mxu0
    %v4167 = vadd.f32 0.0, %v4166
    %v4168 = vpop.f32.mrb[0].mxu0
    %v4169 = vpop.f32.mrb[0].mxu0
    %v4170 = vadd.f32 0.0, %v4169
    %v4171 = vpop.f32.mrb[0].mxu0
    %4172 = vmatprep.mubr.bf16.mxu0 0
    %4173 = vmatmul.mubr.bf16.gmra.mrb[0].mxu0 %v4025
    %v4174 = vpop.f32.mrb[0].mxu0
    %v4175 = vadd.f32 0.0, %v4174
    %v4176 = vpop.f32.mrb[0].mxu0
    %v4177 = vpop.f32.mrb[0].mxu0
    %v4178 = vadd.f32 0.0, %v4177
    %v4179 = vpop.f32.mrb[0].mxu0
    %4180 = vmatprep.mubr.bf16.mxu0 0
    %4181 = vmatmul.mubr.bf16.gmra.mrb[0].mxu0 %v4026
    %v4182 = vpop.f32.mrb[0].mxu0
    %v4183 = vadd.f32 0.0, %v4182
    %v4184 = vpop.f32.mrb[0].mxu0
    %v4185 = vpop.f32.mrb[0].mxu0
    %v4186 = vadd.f32 0.0, %v4185
    %v4187 = vpop.f32.mrb[0].mxu0
    %4188 = vdwg.mxu0
    %v4189 = vadd.f32 %v3890, %v4127
    %v4190 = vadd.f32 %v3891, %v4130
    %v4191 = vadd.f32 %v3892, %v4135
    %v4192 = vadd.f32 %v3893, %v4138
    %v4193 = vadd.f32 %v3894, %v4143
    %v4194 = vadd.f32 %v3895, %v4146
    %v4195 = vadd.f32 %v3896, %v4151
    %v4196 = vadd.f32 %v3897, %v4154
    %v4197 = vadd.f32 %v3898, %v4159
    %v4198 = vadd.f32 %v3899, %v4162
    %v4199 = vadd.f32 %v3900, %v4167
    %v4200 = vadd.f32 %v3901, %v4170
    %v4201 = vadd.f32 %v3902, %v4175
    %v4202 = vadd.f32 %v3903, %v4178
    %v4203 = vadd.f32 %v3904, %v4183
    %v4204 = vadd.f32 %v3905, %v4186
    %v4205 = vld [vmem:[%s8] sm:$0x1]
    %v4206 = vld [vmem:[%s9] sm:$0x1]
    %v4207 = vadd.f32 %v4189, %v4190
    %v4208 = vadd.f32 %v4207, %v4191
    %v4209 = vadd.f32 %v4208, %v4192
    %v4210 = vadd.f32 %v4209, %v4193
    %v4211 = vadd.f32 %v4210, %v4194
    %v4212 = vadd.f32 %v4211, %v4195
    %v4213 = vadd.f32 %v4212, %v4196
    %v4214 = vrot.slane %v4213, 4
    %v4215 = vadd.f32 %v4213, %v4214
    %v4216 = vrot.slane %v4215, 2
    %v4217 = vadd.f32 %v4215, %v4216
    %v4218 = vrot.slane %v4217, 1
    %v4219 = vadd.f32 %v4217, %v4218
    %v4220 = vmul.f32 %v4189, %v4189
    %v4221 = vmul.f32 %v4190, %v4190
    %v4222 = vmul.f32 %v4191, %v4191
    %v4223 = vmul.f32 %v4192, %v4192
    %v4224 = vmul.f32 %v4193, %v4193
    %v4225 = vmul.f32 %v4194, %v4194
    %v4226 = vmul.f32 %v4195, %v4195
    %v4227 = vmul.f32 %v4196, %v4196
    %v4228 = vadd.f32 %v4220, %v4221
    %v4229 = vadd.f32 %v4228, %v4222
    %v4230 = vadd.f32 %v4229, %v4223
    %v4231 = vadd.f32 %v4230, %v4224
    %v4232 = vadd.f32 %v4231, %v4225
    %v4233 = vadd.f32 %v4232, %v4226
    %v4234 = vadd.f32 %v4233, %v4227
    %v4235 = vrot.slane %v4234, 4
    %v4236 = vadd.f32 %v4234, %v4235
    %v4237 = vrot.slane %v4236, 2
    %v4238 = vadd.f32 %v4236, %v4237
    %v4239 = vrot.slane %v4238, 1
    %v4240 = vadd.f32 %v4238, %v4239
    %v4241 = vmul.f32 %v4219, 0.015625
    %v4242 = vmul.f32 %v4240, 0.015625
    %v4243 = vmul.f32 %v4241, %v4241
    %v4244 = vsub.f32 %v4242, %v4243
    %v4245 = vmax.f32 %v4244, 0.0
    %v4246 = vadd.f32 %v4245, 1e-05
    %v4247 = vrsqrt.pop %v4246
    %v4248 = vmul.f32 %v4205, %v4247
    %v4249 = vmul.f32 %v4241, %v4248
    %v4250 = vsub.f32 %v4206, %v4249
    %v4252 = vlaneseq
    %v4253 = vshrl.u32 %v4252, 7
    %v4254 = vsub.s32 0, %v4253
    %v4255 = vrot.slane %v4248, %v4254
    %v4257 = vmul.f32 %v4189, %v4255
    %v4258 = vmul.f32 %v4190, %v4255
    %v4259 = vmul.f32 %v4191, %v4255
    %v4260 = vmul.f32 %v4192, %v4255
    %v4261 = vmul.f32 %v4193, %v4255
    %v4262 = vmul.f32 %v4194, %v4255
    %v4263 = vmul.f32 %v4195, %v4255
    %v4264 = vmul.f32 %v4196, %v4255
    %v4266 = vlaneseq
    %v4267 = vshrl.u32 %v4266, 7
    %v4268 = vsub.s32 0, %v4267
    %v4269 = vrot.slane %v4250, %v4268
    %v4271 = vadd.f32 %v4257, %v4269
    %v4272 = vadd.f32 %v4258, %v4269
    %v4273 = vadd.f32 %v4259, %v4269
    %v4274 = vadd.f32 %v4260, %v4269
    %v4275 = vadd.f32 %v4261, %v4269
    %v4276 = vadd.f32 %v4262, %v4269
    %v4277 = vadd.f32 %v4263, %v4269
    %v4278 = vadd.f32 %v4264, %v4269
    %v4279 = vmax.f32 %v4271, 0.0
    %v4280 = vmax.f32 %v4272, 0.0
    %v4281 = vmax.f32 %v4273, 0.0
    %v4282 = vmax.f32 %v4274, 0.0
    %v4283 = vmax.f32 %v4275, 0.0
    %v4284 = vmax.f32 %v4276, 0.0
    %v4285 = vmax.f32 %v4277, 0.0
    %v4286 = vmax.f32 %v4278, 0.0
    %v4287 = vadd.f32 %v4197, %v4198
    %v4288 = vadd.f32 %v4287, %v4199
    %v4289 = vadd.f32 %v4288, %v4200
    %v4290 = vadd.f32 %v4289, %v4201
    %v4291 = vadd.f32 %v4290, %v4202
    %v4292 = vadd.f32 %v4291, %v4203
    %v4293 = vadd.f32 %v4292, %v4204
    %v4294 = vrot.slane %v4293, 4
    %v4295 = vadd.f32 %v4293, %v4294
    %v4296 = vrot.slane %v4295, 2
    %v4297 = vadd.f32 %v4295, %v4296
    %v4298 = vrot.slane %v4297, 1
    %v4299 = vadd.f32 %v4297, %v4298
    %v4300 = vmul.f32 %v4197, %v4197
    %v4301 = vmul.f32 %v4198, %v4198
    %v4302 = vmul.f32 %v4199, %v4199
    %v4303 = vmul.f32 %v4200, %v4200
    %v4304 = vmul.f32 %v4201, %v4201
    %v4305 = vmul.f32 %v4202, %v4202
    %v4306 = vmul.f32 %v4203, %v4203
    %v4307 = vmul.f32 %v4204, %v4204
    %v4308 = vadd.f32 %v4300, %v4301
    %v4309 = vadd.f32 %v4308, %v4302
    %v4310 = vadd.f32 %v4309, %v4303
    %v4311 = vadd.f32 %v4310, %v4304
    %v4312 = vadd.f32 %v4311, %v4305
    %v4313 = vadd.f32 %v4312, %v4306
    %v4314 = vadd.f32 %v4313, %v4307
    %v4315 = vrot.slane %v4314, 4
    %v4316 = vadd.f32 %v4314, %v4315
    %v4317 = vrot.slane %v4316, 2
    %v4318 = vadd.f32 %v4316, %v4317
    %v4319 = vrot.slane %v4318, 1
    %v4320 = vadd.f32 %v4318, %v4319
    %v4321 = vmul.f32 %v4299, 0.015625
    %v4322 = vmul.f32 %v4320, 0.015625
    %v4323 = vmul.f32 %v4321, %v4321
    %v4324 = vsub.f32 %v4322, %v4323
    %v4325 = vmax.f32 %v4324, 0.0
    %v4326 = vadd.f32 %v4325, 1e-05
    %v4327 = vrsqrt.pop %v4326
    %v4328 = vmul.f32 %v4205, %v4327
    %v4329 = vmul.f32 %v4321, %v4328
    %v4330 = vsub.f32 %v4206, %v4329
    %v4332 = vlaneseq
    %v4333 = vshrl.u32 %v4332, 7
    %v4334 = vsub.s32 0, %v4333
    %v4335 = vrot.slane %v4328, %v4334
    %v4337 = vmul.f32 %v4197, %v4335
    %v4338 = vmul.f32 %v4198, %v4335
    %v4339 = vmul.f32 %v4199, %v4335
    %v4340 = vmul.f32 %v4200, %v4335
    %v4341 = vmul.f32 %v4201, %v4335
    %v4342 = vmul.f32 %v4202, %v4335
    %v4343 = vmul.f32 %v4203, %v4335
    %v4344 = vmul.f32 %v4204, %v4335
    %v4346 = vlaneseq
    %v4347 = vshrl.u32 %v4346, 7
    %v4348 = vsub.s32 0, %v4347
    %v4349 = vrot.slane %v4330, %v4348
    %v4351 = vadd.f32 %v4337, %v4349
    %v4352 = vadd.f32 %v4338, %v4349
    %v4353 = vadd.f32 %v4339, %v4349
    %v4354 = vadd.f32 %v4340, %v4349
    %v4355 = vadd.f32 %v4341, %v4349
    %v4356 = vadd.f32 %v4342, %v4349
    %v4357 = vadd.f32 %v4343, %v4349
    %v4358 = vadd.f32 %v4344, %v4349
    %v4359 = vmax.f32 %v4351, 0.0
    %v4360 = vmax.f32 %v4352, 0.0
    %v4361 = vmax.f32 %v4353, 0.0
    %v4362 = vmax.f32 %v4354, 0.0
    %v4363 = vmax.f32 %v4355, 0.0
    %v4364 = vmax.f32 %v4356, 0.0
    %v4365 = vmax.f32 %v4357, 0.0
    %v4366 = vmax.f32 %v4358, 0.0
    %v4367 = vld [vmem:[%s11] sm:$0xf]
    %v4368 = vld [vmem:[%s11 + $0x4] sm:$0xf]
    %v4369 = vld [vmem:[%s11 + $0x8] sm:$0xf]
    %v4370 = vld [vmem:[%s11 + $0xc] sm:$0xf]
    %v4371 = vpack.c.bf16 %v4280, %v4279
    %v4372 = vpack.c.bf16 %v4282, %v4281
    %v4373 = vpack.c.bf16 %v4284, %v4283
    %v4374 = vpack.c.bf16 %v4286, %v4285
    %v4375 = vpack.c.bf16 %v4360, %v4359
    %v4376 = vpack.c.bf16 %v4362, %v4361
    %v4377 = vpack.c.bf16 %v4364, %v4363
    %v4378 = vpack.c.bf16 %v4366, %v4365
    %v4383 = vunpack.c.l.b16 %v4367
    %v4384 = vunpack.c.l.b16 %v4368
    %v4385 = vunpack.c.l.b16 %v4369
    %v4386 = vunpack.c.l.b16 %v4370
    %v4387 = vpack.c.b16 %v4384, %v4383
    %v4388 = vpack.c.b16 %v4386, %v4385
    %4391 = vmatprep.subr.bf16.mxu0 0
    %4392 = vmatpush1.bf16.msra.mxu0 %v4371
    %4393 = vmatprep.subr.bf16.mxu0 0
    %4394 = vmatpush1.bf16.msra.mxu0 %v4372
    %4395 = vmatprep.subr.bf16.mxu0 0
    %4396 = vmatpush1.bf16.msra.mxu0 %v4373
    %4397 = vmatprep.subr.bf16.mxu0 0
    %4398 = vmatpush1.bf16.msra.mxu0 %v4374
    %4399 = vmatprep.subr.bf16.mxu0 0
    %4400 = vmatpush1.bf16.msra.mxu0 %v4375
    %4401 = vmatprep.subr.bf16.mxu0 0
    %4402 = vmatpush1.bf16.msra.mxu0 %v4376
    %4403 = vmatprep.subr.bf16.mxu0 0
    %4404 = vmatpush1.bf16.msra.mxu0 %v4377
    %4405 = vmatprep.subr.bf16.mxu0 0
    %4406 = vmatpush1.bf16.msra.mxu0 %v4378
    %4407 = vmatprep.subr.bf16.mxu0 0
    %4408 = vmatpush1.bf16.msra.mxu0 0
    %4409 = vmatprep.subr.bf16.mxu0 0
    %4410 = vmatpush1.bf16.msra.mxu0 0
    %4411 = vmatprep.subr.bf16.mxu0 0
    %4412 = vmatpush1.bf16.msra.mxu0 0
    %4413 = vmatprep.subr.bf16.mxu0 0
    %4414 = vmatpush1.bf16.msra.mxu0 0
    %4415 = vmatprep.subr.bf16.mxu0 0
    %4416 = vmatpush1.bf16.msra.mxu0 0
    %4417 = vmatprep.subr.bf16.mxu0 0
    %4418 = vmatpush1.bf16.msra.mxu0 0
    %4419 = vmatprep.subr.bf16.mxu0 0
    %4420 = vmatpush1.bf16.msra.mxu0 0
    %4421 = vmatprep.subr.bf16.mxu0 0
    %4422 = vmatpush1.bf16.msra.mxu0 0
    %4423 = vmatprep.mubr.bf16.mxu0 0
    %4424 = vmatmul.mubr.bf16.gmra.mrb[0].mxu0 %v4387
    %v4425 = vpop.f32.mrb[0].mxu0
    %v4426 = vadd.f32 0.0, %v4425
    %v4427 = vpop.f32.mrb[0].mxu0
    %v4428 = vpop.f32.mrb[0].mxu0
    %v4429 = vadd.f32 0.0, %v4428
    %v4430 = vpop.f32.mrb[0].mxu0
    %4431 = vmatprep.mubr.bf16.mxu0 0
    %4432 = vmatmul.mubr.bf16.gmra.mrb[0].mxu0 %v4388
    %v4433 = vpop.f32.mrb[0].mxu0
    %v4434 = vadd.f32 0.0, %v4433
    %v4435 = vpop.f32.mrb[0].mxu0
    %v4436 = vpop.f32.mrb[0].mxu0
    %v4437 = vadd.f32 0.0, %v4436
    %v4438 = vpop.f32.mrb[0].mxu0
    %4439 = vdwg.mxu0
    %v4440 = vld [vmem:[%s13] sm:$0x1]
    %v4441 = vpack.c.bf16 %v4429, %v4426
    %v4442 = vpack.c.bf16 %v4437, %v4434
    %s4443 = scalar_lea.vmem %s12, 256
    %v4444 = vld [vmem:[%s4443] sm:$0xf]
    %v4445 = vld [vmem:[%s4443 + $0x4] sm:$0xf]
    %v4446 = vld [vmem:[%s4443 + $0x8] sm:$0xf]
    %v4447 = vld [vmem:[%s4443 + $0xc] sm:$0xf]
    %v4448 = vld [vmem:[%s4443 + $0x10] sm:$0xf]
    %v4449 = vld [vmem:[%s4443 + $0x14] sm:$0xf]
    %v4450 = vld [vmem:[%s4443 + $0x18] sm:$0xf]
    %v4451 = vld [vmem:[%s4443 + $0x1c] sm:$0xf]
    %v4452 = vld [vmem:[%s4443 + $0x20] sm:$0xf]
    %v4453 = vld [vmem:[%s4443 + $0x24] sm:$0xf]
    %v4454 = vld [vmem:[%s4443 + $0x28] sm:$0xf]
    %v4455 = vld [vmem:[%s4443 + $0x2c] sm:$0xf]
    %v4456 = vld [vmem:[%s4443 + $0x30] sm:$0xf]
    %v4457 = vld [vmem:[%s4443 + $0x34] sm:$0xf]
    %v4458 = vld [vmem:[%s4443 + $0x38] sm:$0xf]
    %v4459 = vld [vmem:[%s4443 + $0x3c] sm:$0xf]
    %v4461 = vlaneseq
    %v4462 = vshrl.u32 %v4461, 7
    %v4463 = vsub.s32 0, %v4462
    %v4464 = vrot.slane %v4440, %v4463
    %v4482 = vunpack.c.l.b16 %v4444
    %v4483 = vunpack.c.l.b16 %v4445
    %v4484 = vunpack.c.l.b16 %v4446
    %v4485 = vunpack.c.l.b16 %v4447
    %v4486 = vunpack.c.l.b16 %v4448
    %v4487 = vunpack.c.l.b16 %v4449
    %v4488 = vunpack.c.l.b16 %v4450
    %v4489 = vunpack.c.l.b16 %v4451
    %v4490 = vunpack.c.l.b16 %v4452
    %v4491 = vunpack.c.l.b16 %v4453
    %v4492 = vunpack.c.l.b16 %v4454
    %v4493 = vunpack.c.l.b16 %v4455
    %v4494 = vunpack.c.l.b16 %v4456
    %v4495 = vunpack.c.l.b16 %v4457
    %v4496 = vunpack.c.l.b16 %v4458
    %v4497 = vunpack.c.l.b16 %v4459
    %v4498 = vpack.c.b16 %v4483, %v4482
    %v4499 = vpack.c.b16 %v4485, %v4484
    %v4500 = vpack.c.b16 %v4487, %v4486
    %v4501 = vpack.c.b16 %v4489, %v4488
    %v4502 = vpack.c.b16 %v4491, %v4490
    %v4503 = vpack.c.b16 %v4493, %v4492
    %v4504 = vpack.c.b16 %v4495, %v4494
    %v4505 = vpack.c.b16 %v4497, %v4496
    %4514 = vmatprep.subr.bf16.mxu0 0
    %4515 = vmatpush1.bf16.msra.mxu0 %v4498
    %4516 = vmatprep.subr.bf16.mxu0 0
    %4517 = vmatpush1.bf16.msra.mxu0 %v4499
    %4518 = vmatprep.subr.bf16.mxu0 0
    %4519 = vmatpush1.bf16.msra.mxu0 %v4500
    %4520 = vmatprep.subr.bf16.mxu0 0
    %4521 = vmatpush1.bf16.msra.mxu0 %v4501
    %4522 = vmatprep.subr.bf16.mxu0 0
    %4523 = vmatpush1.bf16.msra.mxu0 %v4502
    %4524 = vmatprep.subr.bf16.mxu0 0
    %4525 = vmatpush1.bf16.msra.mxu0 %v4503
    %4526 = vmatprep.subr.bf16.mxu0 0
    %4527 = vmatpush1.bf16.msra.mxu0 %v4504
    %4528 = vmatprep.subr.bf16.mxu0 0
    %4529 = vmatpush1.bf16.msra.mxu0 %v4505
    %4530 = vmatprep.subr.bf16.mxu0 0
    %4531 = vmatpush1.bf16.msra.mxu0 0
    %4532 = vmatprep.subr.bf16.mxu0 0
    %4533 = vmatpush1.bf16.msra.mxu0 0
    %4534 = vmatprep.subr.bf16.mxu0 0
    %4535 = vmatpush1.bf16.msra.mxu0 0
    %4536 = vmatprep.subr.bf16.mxu0 0
    %4537 = vmatpush1.bf16.msra.mxu0 0
    %4538 = vmatprep.subr.bf16.mxu0 0
    %4539 = vmatpush1.bf16.msra.mxu0 0
    %4540 = vmatprep.subr.bf16.mxu0 0
    %4541 = vmatpush1.bf16.msra.mxu0 0
    %4542 = vmatprep.subr.bf16.mxu0 0
    %4543 = vmatpush1.bf16.msra.mxu0 0
    %4544 = vmatprep.subr.bf16.mxu0 0
    %4545 = vmatpush1.bf16.msra.mxu0 0
    %4546 = vmatprep.mubr.bf16.mxu0 0
    %4547 = vmatmul.mubr.bf16.gmra.mrb[0].mxu0 %v4441
    %v4548 = vpop.f32.mrb[0].mxu0
    %v4549 = vadd.f32 %v4464, %v4548
    %v4550 = vpop.f32.mrb[0].mxu0
    %v4551 = vpop.f32.mrb[0].mxu0
    %v4552 = vadd.f32 %v4464, %v4551
    %v4553 = vpop.f32.mrb[0].mxu0
    %4554 = vmatprep.mubr.bf16.mxu0 0
    %4555 = vmatmul.mubr.bf16.gmra.mrb[0].mxu0 %v4442
    %v4556 = vpop.f32.mrb[0].mxu0
    %v4557 = vadd.f32 %v4464, %v4556
    %v4558 = vpop.f32.mrb[0].mxu0
    %v4559 = vpop.f32.mrb[0].mxu0
    %v4560 = vadd.f32 %v4464, %v4559
    %v4561 = vpop.f32.mrb[0].mxu0
    %4562 = vdwg.mxu0
    %v4563 = vrot.slane %v4426, 3
    %v4564 = vrot.slane %v4429, 3
    %v4565 = vrot.slane %v4434, 3
    %v4566 = vrot.slane %v4437, 3
    %vm4567 = vcmp.lt.s32.totalorder %v1764, 5
    %v4568 = vsel %vm4567, %v4565, %v4566
    %v4569 = vsel %vm4567, %v4564, %v4565
    %v4570 = vsel %vm4567, %v4563, %v4564
    %v4571 = vsel %vm4567, %v4566, %v4563
    %v4572 = vld [vmem:[%s16] sm:$0xff]
    %v4573 = vld [vmem:[%s16 + $0x8] sm:$0xff]
    %v4574 = vld [vmem:[%s16 + $0x10] sm:$0xff]
    %v4575 = vld [vmem:[%s16 + $0x18] sm:$0xff]
    %4577 = vset.pattern.permute.xlu0 0
    %4578 = vperm.xlu0 %4577, %v4572
    %v4579 = vpop.permute.xlu0 %4578
    %4582 = vset.pattern.permute.xlu0 0
    %4583 = vperm.xlu0 %4582, %v4573
    %v4584 = vpop.permute.xlu0 %4583
    %4587 = vset.pattern.permute.xlu0 0
    %4588 = vperm.xlu0 %4587, %v4574
    %v4589 = vpop.permute.xlu0 %4588
    %4592 = vset.pattern.permute.xlu0 0
    %4593 = vperm.xlu0 %4592, %v4575
    %v4594 = vpop.permute.xlu0 %4593
    %v4596 = vmul.f32 %v4571, %v4579
    %v4597 = vmul.f32 %v4570, %v4584
    %v4598 = vmul.f32 %v4569, %v4589
    %v4599 = vmul.f32 %v4568, %v4594
    %v4600 = vpack.c.bf16 %v4597, %v4596
    %v4601 = vpack.c.bf16 %v4599, %v4598
    %v4602 = vld [vmem:[%s12] sm:$0xf]
    %v4603 = vld [vmem:[%s12 + $0x4] sm:$0xf]
    %v4604 = vld [vmem:[%s12 + $0x8] sm:$0xf]
    %v4605 = vld [vmem:[%s12 + $0xc] sm:$0xf]
    %v4606 = vld [vmem:[%s12 + $0x10] sm:$0xf]
    %v4607 = vld [vmem:[%s12 + $0x14] sm:$0xf]
    %v4608 = vld [vmem:[%s12 + $0x18] sm:$0xf]
    %v4609 = vld [vmem:[%s12 + $0x1c] sm:$0xf]
    %v4610 = vld [vmem:[%s12 + $0x20] sm:$0xf]
    %v4611 = vld [vmem:[%s12 + $0x24] sm:$0xf]
    %v4612 = vld [vmem:[%s12 + $0x28] sm:$0xf]
    %v4613 = vld [vmem:[%s12 + $0x2c] sm:$0xf]
    %v4614 = vld [vmem:[%s12 + $0x30] sm:$0xf]
    %v4615 = vld [vmem:[%s12 + $0x34] sm:$0xf]
    %v4616 = vld [vmem:[%s12 + $0x38] sm:$0xf]
    %v4617 = vld [vmem:[%s12 + $0x3c] sm:$0xf]
    %v4634 = vunpack.c.l.b16 %v4602
    %v4635 = vunpack.c.l.b16 %v4603
    %v4636 = vunpack.c.l.b16 %v4604
    %v4637 = vunpack.c.l.b16 %v4605
    %v4638 = vunpack.c.l.b16 %v4606
    %v4639 = vunpack.c.l.b16 %v4607
    %v4640 = vunpack.c.l.b16 %v4608
    %v4641 = vunpack.c.l.b16 %v4609
    %v4642 = vunpack.c.l.b16 %v4610
    %v4643 = vunpack.c.l.b16 %v4611
    %v4644 = vunpack.c.l.b16 %v4612
    %v4645 = vunpack.c.l.b16 %v4613
    %v4646 = vunpack.c.l.b16 %v4614
    %v4647 = vunpack.c.l.b16 %v4615
    %v4648 = vunpack.c.l.b16 %v4616
    %v4649 = vunpack.c.l.b16 %v4617
    %v4650 = vpack.c.b16 %v4635, %v4634
    %v4651 = vpack.c.b16 %v4637, %v4636
    %v4652 = vpack.c.b16 %v4639, %v4638
    %v4653 = vpack.c.b16 %v4641, %v4640
    %v4654 = vpack.c.b16 %v4643, %v4642
    %v4655 = vpack.c.b16 %v4645, %v4644
    %v4656 = vpack.c.b16 %v4647, %v4646
    %v4657 = vpack.c.b16 %v4649, %v4648
    %4666 = vmatprep.subr.bf16.mxu0 0
    %4667 = vmatpush1.bf16.msra.mxu0 %v4650
    %4668 = vmatprep.subr.bf16.mxu0 0
    %4669 = vmatpush1.bf16.msra.mxu0 %v4651
    %4670 = vmatprep.subr.bf16.mxu0 0
    %4671 = vmatpush1.bf16.msra.mxu0 %v4652
    %4672 = vmatprep.subr.bf16.mxu0 0
    %4673 = vmatpush1.bf16.msra.mxu0 %v4653
    %4674 = vmatprep.subr.bf16.mxu0 0
    %4675 = vmatpush1.bf16.msra.mxu0 %v4654
    %4676 = vmatprep.subr.bf16.mxu0 0
    %4677 = vmatpush1.bf16.msra.mxu0 %v4655
    %4678 = vmatprep.subr.bf16.mxu0 0
    %4679 = vmatpush1.bf16.msra.mxu0 %v4656
    %4680 = vmatprep.subr.bf16.mxu0 0
    %4681 = vmatpush1.bf16.msra.mxu0 %v4657
    %4682 = vmatprep.subr.bf16.mxu0 0
    %4683 = vmatpush1.bf16.msra.mxu0 0
    %4684 = vmatprep.subr.bf16.mxu0 0
    %4685 = vmatpush1.bf16.msra.mxu0 0
    %4686 = vmatprep.subr.bf16.mxu0 0
    %4687 = vmatpush1.bf16.msra.mxu0 0
    %4688 = vmatprep.subr.bf16.mxu0 0
    %4689 = vmatpush1.bf16.msra.mxu0 0
    %4690 = vmatprep.subr.bf16.mxu0 0
    %4691 = vmatpush1.bf16.msra.mxu0 0
    %4692 = vmatprep.subr.bf16.mxu0 0
    %4693 = vmatpush1.bf16.msra.mxu0 0
    %4694 = vmatprep.subr.bf16.mxu0 0
    %4695 = vmatpush1.bf16.msra.mxu0 0
    %4696 = vmatprep.subr.bf16.mxu0 0
    %4697 = vmatpush1.bf16.msra.mxu0 0
    %4698 = vmatprep.mubr.bf16.mxu0 0
    %4699 = vmatmul.mubr.bf16.gmra.mrb[0].mxu0 %v4600
    %v4700 = vpop.f32.mrb[0].mxu0
    %v4701 = vadd.f32 0.0, %v4700
    %v4702 = vpop.f32.mrb[0].mxu0
    %v4703 = vpop.f32.mrb[0].mxu0
    %v4704 = vadd.f32 0.0, %v4703
    %v4705 = vpop.f32.mrb[0].mxu0
    %4706 = vmatprep.mubr.bf16.mxu0 0
    %4707 = vmatmul.mubr.bf16.gmra.mrb[0].mxu0 %v4601
    %v4708 = vpop.f32.mrb[0].mxu0
    %v4709 = vadd.f32 0.0, %v4708
    %v4710 = vpop.f32.mrb[0].mxu0
    %v4711 = vpop.f32.mrb[0].mxu0
    %v4712 = vadd.f32 0.0, %v4711
    %v4713 = vpop.f32.mrb[0].mxu0
    %4714 = vdwg.mxu0
    %v4715 = vadd.f32 %v4549, %v4701
    %v4716 = vadd.f32 %v4552, %v4704
    %v4717 = vadd.f32 %v4557, %v4709
    %v4718 = vadd.f32 %v4560, %v4712
    %v4719 = vrot.slane %v4426, 4
    %v4720 = vrot.slane %v4429, 4
    %v4721 = vrot.slane %v4434, 4
    %v4722 = vrot.slane %v4437, 4
    %vm4723 = vcmp.lt.s32.totalorder %v1764, 4
    %v4724 = vsel %vm4723, %v4721, %v4722
    %v4725 = vsel %vm4723, %v4720, %v4721
    %v4726 = vsel %vm4723, %v4719, %v4720
    %v4727 = vsel %vm4723, %v4722, %v4719
    %s4728 = scalar_lea.vmem %s16, 32
    %v4729 = vld [vmem:[%s4728] sm:$0xff]
    %v4730 = vld [vmem:[%s4728 + $0x8] sm:$0xff]
    %v4731 = vld [vmem:[%s4728 + $0x10] sm:$0xff]
    %v4732 = vld [vmem:[%s4728 + $0x18] sm:$0xff]
    %4734 = vset.pattern.permute.xlu0 0
    %4735 = vperm.xlu0 %4734, %v4729
    %v4736 = vpop.permute.xlu0 %4735
    %4739 = vset.pattern.permute.xlu0 0
    %4740 = vperm.xlu0 %4739, %v4730
    %v4741 = vpop.permute.xlu0 %4740
    %4744 = vset.pattern.permute.xlu0 0
    %4745 = vperm.xlu0 %4744, %v4731
    %v4746 = vpop.permute.xlu0 %4745
    %4749 = vset.pattern.permute.xlu0 0
    %4750 = vperm.xlu0 %4749, %v4732
    %v4751 = vpop.permute.xlu0 %4750
    %v4753 = vmul.f32 %v4727, %v4736
    %v4754 = vmul.f32 %v4726, %v4741
    %v4755 = vmul.f32 %v4725, %v4746
    %v4756 = vmul.f32 %v4724, %v4751
    %v4757 = vpack.c.bf16 %v4754, %v4753
    %v4758 = vpack.c.bf16 %v4756, %v4755
    %s4759 = scalar_lea.vmem %s12, 64
    %v4760 = vld [vmem:[%s4759] sm:$0xf]
    %v4761 = vld [vmem:[%s4759 + $0x4] sm:$0xf]
    %v4762 = vld [vmem:[%s4759 + $0x8] sm:$0xf]
    %v4763 = vld [vmem:[%s4759 + $0xc] sm:$0xf]
    %v4764 = vld [vmem:[%s4759 + $0x10] sm:$0xf]
    %v4765 = vld [vmem:[%s4759 + $0x14] sm:$0xf]
    %v4766 = vld [vmem:[%s4759 + $0x18] sm:$0xf]
    %v4767 = vld [vmem:[%s4759 + $0x1c] sm:$0xf]
    %v4768 = vld [vmem:[%s4759 + $0x20] sm:$0xf]
    %v4769 = vld [vmem:[%s4759 + $0x24] sm:$0xf]
    %v4770 = vld [vmem:[%s4759 + $0x28] sm:$0xf]
    %v4771 = vld [vmem:[%s4759 + $0x2c] sm:$0xf]
    %v4772 = vld [vmem:[%s4759 + $0x30] sm:$0xf]
    %v4773 = vld [vmem:[%s4759 + $0x34] sm:$0xf]
    %v4774 = vld [vmem:[%s4759 + $0x38] sm:$0xf]
    %v4775 = vld [vmem:[%s4759 + $0x3c] sm:$0xf]
    %v4792 = vunpack.c.l.b16 %v4760
    %v4793 = vunpack.c.l.b16 %v4761
    %v4794 = vunpack.c.l.b16 %v4762
    %v4795 = vunpack.c.l.b16 %v4763
    %v4796 = vunpack.c.l.b16 %v4764
    %v4797 = vunpack.c.l.b16 %v4765
    %v4798 = vunpack.c.l.b16 %v4766
    %v4799 = vunpack.c.l.b16 %v4767
    %v4800 = vunpack.c.l.b16 %v4768
    %v4801 = vunpack.c.l.b16 %v4769
    %v4802 = vunpack.c.l.b16 %v4770
    %v4803 = vunpack.c.l.b16 %v4771
    %v4804 = vunpack.c.l.b16 %v4772
    %v4805 = vunpack.c.l.b16 %v4773
    %v4806 = vunpack.c.l.b16 %v4774
    %v4807 = vunpack.c.l.b16 %v4775
    %v4808 = vpack.c.b16 %v4793, %v4792
    %v4809 = vpack.c.b16 %v4795, %v4794
    %v4810 = vpack.c.b16 %v4797, %v4796
    %v4811 = vpack.c.b16 %v4799, %v4798
    %v4812 = vpack.c.b16 %v4801, %v4800
    %v4813 = vpack.c.b16 %v4803, %v4802
    %v4814 = vpack.c.b16 %v4805, %v4804
    %v4815 = vpack.c.b16 %v4807, %v4806
    %4824 = vmatprep.subr.bf16.mxu0 0
    %4825 = vmatpush1.bf16.msra.mxu0 %v4808
    %4826 = vmatprep.subr.bf16.mxu0 0
    %4827 = vmatpush1.bf16.msra.mxu0 %v4809
    %4828 = vmatprep.subr.bf16.mxu0 0
    %4829 = vmatpush1.bf16.msra.mxu0 %v4810
    %4830 = vmatprep.subr.bf16.mxu0 0
    %4831 = vmatpush1.bf16.msra.mxu0 %v4811
    %4832 = vmatprep.subr.bf16.mxu0 0
    %4833 = vmatpush1.bf16.msra.mxu0 %v4812
    %4834 = vmatprep.subr.bf16.mxu0 0
    %4835 = vmatpush1.bf16.msra.mxu0 %v4813
    %4836 = vmatprep.subr.bf16.mxu0 0
    %4837 = vmatpush1.bf16.msra.mxu0 %v4814
    %4838 = vmatprep.subr.bf16.mxu0 0
    %4839 = vmatpush1.bf16.msra.mxu0 %v4815
    %4840 = vmatprep.subr.bf16.mxu0 0
    %4841 = vmatpush1.bf16.msra.mxu0 0
    %4842 = vmatprep.subr.bf16.mxu0 0
    %4843 = vmatpush1.bf16.msra.mxu0 0
    %4844 = vmatprep.subr.bf16.mxu0 0
    %4845 = vmatpush1.bf16.msra.mxu0 0
    %4846 = vmatprep.subr.bf16.mxu0 0
    %4847 = vmatpush1.bf16.msra.mxu0 0
    %4848 = vmatprep.subr.bf16.mxu0 0
    %4849 = vmatpush1.bf16.msra.mxu0 0
    %4850 = vmatprep.subr.bf16.mxu0 0
    %4851 = vmatpush1.bf16.msra.mxu0 0
    %4852 = vmatprep.subr.bf16.mxu0 0
    %4853 = vmatpush1.bf16.msra.mxu0 0
    %4854 = vmatprep.subr.bf16.mxu0 0
    %4855 = vmatpush1.bf16.msra.mxu0 0
    %4856 = vmatprep.mubr.bf16.mxu0 0
    %4857 = vmatmul.mubr.bf16.gmra.mrb[0].mxu0 %v4757
    %v4858 = vpop.f32.mrb[0].mxu0
    %v4859 = vadd.f32 0.0, %v4858
    %v4860 = vpop.f32.mrb[0].mxu0
    %v4861 = vpop.f32.mrb[0].mxu0
    %v4862 = vadd.f32 0.0, %v4861
    %v4863 = vpop.f32.mrb[0].mxu0
    %4864 = vmatprep.mubr.bf16.mxu0 0
    %4865 = vmatmul.mubr.bf16.gmra.mrb[0].mxu0 %v4758
    %v4866 = vpop.f32.mrb[0].mxu0
    %v4867 = vadd.f32 0.0, %v4866
    %v4868 = vpop.f32.mrb[0].mxu0
    %v4869 = vpop.f32.mrb[0].mxu0
    %v4870 = vadd.f32 0.0, %v4869
    %v4871 = vpop.f32.mrb[0].mxu0
    %4872 = vdwg.mxu0
    %v4873 = vadd.f32 %v4715, %v4859
    %v4874 = vadd.f32 %v4716, %v4862
    %v4875 = vadd.f32 %v4717, %v4867
    %v4876 = vadd.f32 %v4718, %v4870
    %v4877 = vrot.slane %v4426, 5
    %v4878 = vrot.slane %v4429, 5
    %v4879 = vrot.slane %v4434, 5
    %v4880 = vrot.slane %v4437, 5
    %vm4881 = vcmp.lt.s32.totalorder %v1764, 3
    %v4882 = vsel %vm4881, %v4879, %v4880
    %v4883 = vsel %vm4881, %v4878, %v4879
    %v4884 = vsel %vm4881, %v4877, %v4878
    %v4885 = vsel %vm4881, %v4880, %v4877
    %s4886 = scalar_lea.vmem %s16, 64
    %v4887 = vld [vmem:[%s4886] sm:$0xff]
    %v4888 = vld [vmem:[%s4886 + $0x8] sm:$0xff]
    %v4889 = vld [vmem:[%s4886 + $0x10] sm:$0xff]
    %v4890 = vld [vmem:[%s4886 + $0x18] sm:$0xff]
    %4892 = vset.pattern.permute.xlu0 0
    %4893 = vperm.xlu0 %4892, %v4887
    %v4894 = vpop.permute.xlu0 %4893
    %4897 = vset.pattern.permute.xlu0 0
    %4898 = vperm.xlu0 %4897, %v4888
    %v4899 = vpop.permute.xlu0 %4898
    %4902 = vset.pattern.permute.xlu0 0
    %4903 = vperm.xlu0 %4902, %v4889
    %v4904 = vpop.permute.xlu0 %4903
    %4907 = vset.pattern.permute.xlu0 0
    %4908 = vperm.xlu0 %4907, %v4890
    %v4909 = vpop.permute.xlu0 %4908
    %v4911 = vmul.f32 %v4885, %v4894
    %v4912 = vmul.f32 %v4884, %v4899
    %v4913 = vmul.f32 %v4883, %v4904
    %v4914 = vmul.f32 %v4882, %v4909
    %v4915 = vpack.c.bf16 %v4912, %v4911
    %v4916 = vpack.c.bf16 %v4914, %v4913
    %s4917 = scalar_lea.vmem %s12, 128
    %v4918 = vld [vmem:[%s4917] sm:$0xf]
    %v4919 = vld [vmem:[%s4917 + $0x4] sm:$0xf]
    %v4920 = vld [vmem:[%s4917 + $0x8] sm:$0xf]
    %v4921 = vld [vmem:[%s4917 + $0xc] sm:$0xf]
    %v4922 = vld [vmem:[%s4917 + $0x10] sm:$0xf]
    %v4923 = vld [vmem:[%s4917 + $0x14] sm:$0xf]
    %v4924 = vld [vmem:[%s4917 + $0x18] sm:$0xf]
    %v4925 = vld [vmem:[%s4917 + $0x1c] sm:$0xf]
    %v4926 = vld [vmem:[%s4917 + $0x20] sm:$0xf]
    %v4927 = vld [vmem:[%s4917 + $0x24] sm:$0xf]
    %v4928 = vld [vmem:[%s4917 + $0x28] sm:$0xf]
    %v4929 = vld [vmem:[%s4917 + $0x2c] sm:$0xf]
    %v4930 = vld [vmem:[%s4917 + $0x30] sm:$0xf]
    %v4931 = vld [vmem:[%s4917 + $0x34] sm:$0xf]
    %v4932 = vld [vmem:[%s4917 + $0x38] sm:$0xf]
    %v4933 = vld [vmem:[%s4917 + $0x3c] sm:$0xf]
    %v4950 = vunpack.c.l.b16 %v4918
    %v4951 = vunpack.c.l.b16 %v4919
    %v4952 = vunpack.c.l.b16 %v4920
    %v4953 = vunpack.c.l.b16 %v4921
    %v4954 = vunpack.c.l.b16 %v4922
    %v4955 = vunpack.c.l.b16 %v4923
    %v4956 = vunpack.c.l.b16 %v4924
    %v4957 = vunpack.c.l.b16 %v4925
    %v4958 = vunpack.c.l.b16 %v4926
    %v4959 = vunpack.c.l.b16 %v4927
    %v4960 = vunpack.c.l.b16 %v4928
    %v4961 = vunpack.c.l.b16 %v4929
    %v4962 = vunpack.c.l.b16 %v4930
    %v4963 = vunpack.c.l.b16 %v4931
    %v4964 = vunpack.c.l.b16 %v4932
    %v4965 = vunpack.c.l.b16 %v4933
    %v4966 = vpack.c.b16 %v4951, %v4950
    %v4967 = vpack.c.b16 %v4953, %v4952
    %v4968 = vpack.c.b16 %v4955, %v4954
    %v4969 = vpack.c.b16 %v4957, %v4956
    %v4970 = vpack.c.b16 %v4959, %v4958
    %v4971 = vpack.c.b16 %v4961, %v4960
    %v4972 = vpack.c.b16 %v4963, %v4962
    %v4973 = vpack.c.b16 %v4965, %v4964
    %4982 = vmatprep.subr.bf16.mxu0 0
    %4983 = vmatpush1.bf16.msra.mxu0 %v4966
    %4984 = vmatprep.subr.bf16.mxu0 0
    %4985 = vmatpush1.bf16.msra.mxu0 %v4967
    %4986 = vmatprep.subr.bf16.mxu0 0
    %4987 = vmatpush1.bf16.msra.mxu0 %v4968
    %4988 = vmatprep.subr.bf16.mxu0 0
    %4989 = vmatpush1.bf16.msra.mxu0 %v4969
    %4990 = vmatprep.subr.bf16.mxu0 0
    %4991 = vmatpush1.bf16.msra.mxu0 %v4970
    %4992 = vmatprep.subr.bf16.mxu0 0
    %4993 = vmatpush1.bf16.msra.mxu0 %v4971
    %4994 = vmatprep.subr.bf16.mxu0 0
    %4995 = vmatpush1.bf16.msra.mxu0 %v4972
    %4996 = vmatprep.subr.bf16.mxu0 0
    %4997 = vmatpush1.bf16.msra.mxu0 %v4973
    %4998 = vmatprep.subr.bf16.mxu0 0
    %4999 = vmatpush1.bf16.msra.mxu0 0
    %5000 = vmatprep.subr.bf16.mxu0 0
    %5001 = vmatpush1.bf16.msra.mxu0 0
    %5002 = vmatprep.subr.bf16.mxu0 0
    %5003 = vmatpush1.bf16.msra.mxu0 0
    %5004 = vmatprep.subr.bf16.mxu0 0
    %5005 = vmatpush1.bf16.msra.mxu0 0
    %5006 = vmatprep.subr.bf16.mxu0 0
    %5007 = vmatpush1.bf16.msra.mxu0 0
    %5008 = vmatprep.subr.bf16.mxu0 0
    %5009 = vmatpush1.bf16.msra.mxu0 0
    %5010 = vmatprep.subr.bf16.mxu0 0
    %5011 = vmatpush1.bf16.msra.mxu0 0
    %5012 = vmatprep.subr.bf16.mxu0 0
    %5013 = vmatpush1.bf16.msra.mxu0 0
    %5014 = vmatprep.mubr.bf16.mxu0 0
    %5015 = vmatmul.mubr.bf16.gmra.mrb[0].mxu0 %v4915
    %v5016 = vpop.f32.mrb[0].mxu0
    %v5017 = vadd.f32 0.0, %v5016
    %v5018 = vpop.f32.mrb[0].mxu0
    %v5019 = vpop.f32.mrb[0].mxu0
    %v5020 = vadd.f32 0.0, %v5019
    %v5021 = vpop.f32.mrb[0].mxu0
    %5022 = vmatprep.mubr.bf16.mxu0 0
    %5023 = vmatmul.mubr.bf16.gmra.mrb[0].mxu0 %v4916
    %v5024 = vpop.f32.mrb[0].mxu0
    %v5025 = vadd.f32 0.0, %v5024
    %v5026 = vpop.f32.mrb[0].mxu0
    %v5027 = vpop.f32.mrb[0].mxu0
    %v5028 = vadd.f32 0.0, %v5027
    %v5029 = vpop.f32.mrb[0].mxu0
    %5030 = vdwg.mxu0
    %v5031 = vadd.f32 %v4873, %v5017
    %v5032 = vadd.f32 %v4874, %v5020
    %v5033 = vadd.f32 %v4875, %v5025
    %v5034 = vadd.f32 %v4876, %v5028
    %v5035 = vrot.slane %v4426, 7
    %v5036 = vrot.slane %v4429, 7
    %v5037 = vrot.slane %v4434, 7
    %v5038 = vrot.slane %v4437, 7
    %v5039 = vsel %vm1765, %v5037, %v5038
    %v5040 = vsel %vm1765, %v5036, %v5037
    %v5041 = vsel %vm1765, %v5035, %v5036
    %v5042 = vsel %vm1765, %v5038, %v5035
    %s5043 = scalar_lea.vmem %s16, 96
    %v5044 = vld [vmem:[%s5043] sm:$0xff]
    %v5045 = vld [vmem:[%s5043 + $0x8] sm:$0xff]
    %v5046 = vld [vmem:[%s5043 + $0x10] sm:$0xff]
    %v5047 = vld [vmem:[%s5043 + $0x18] sm:$0xff]
    %5049 = vset.pattern.permute.xlu0 0
    %5050 = vperm.xlu0 %5049, %v5044
    %v5051 = vpop.permute.xlu0 %5050
    %5054 = vset.pattern.permute.xlu0 0
    %5055 = vperm.xlu0 %5054, %v5045
    %v5056 = vpop.permute.xlu0 %5055
    %5059 = vset.pattern.permute.xlu0 0
    %5060 = vperm.xlu0 %5059, %v5046
    %v5061 = vpop.permute.xlu0 %5060
    %5064 = vset.pattern.permute.xlu0 0
    %5065 = vperm.xlu0 %5064, %v5047
    %v5066 = vpop.permute.xlu0 %5065
    %v5068 = vmul.f32 %v5042, %v5051
    %v5069 = vmul.f32 %v5041, %v5056
    %v5070 = vmul.f32 %v5040, %v5061
    %v5071 = vmul.f32 %v5039, %v5066
    %v5072 = vpack.c.bf16 %v5069, %v5068
    %v5073 = vpack.c.bf16 %v5071, %v5070
    %s5074 = scalar_lea.vmem %s12, 192
    %v5075 = vld [vmem:[%s5074] sm:$0xf]
    %v5076 = vld [vmem:[%s5074 + $0x4] sm:$0xf]
    %v5077 = vld [vmem:[%s5074 + $0x8] sm:$0xf]
    %v5078 = vld [vmem:[%s5074 + $0xc] sm:$0xf]
    %v5079 = vld [vmem:[%s5074 + $0x10] sm:$0xf]
    %v5080 = vld [vmem:[%s5074 + $0x14] sm:$0xf]
    %v5081 = vld [vmem:[%s5074 + $0x18] sm:$0xf]
    %v5082 = vld [vmem:[%s5074 + $0x1c] sm:$0xf]
    %v5083 = vld [vmem:[%s5074 + $0x20] sm:$0xf]
    %v5084 = vld [vmem:[%s5074 + $0x24] sm:$0xf]
    %v5085 = vld [vmem:[%s5074 + $0x28] sm:$0xf]
    %v5086 = vld [vmem:[%s5074 + $0x2c] sm:$0xf]
    %v5087 = vld [vmem:[%s5074 + $0x30] sm:$0xf]
    %v5088 = vld [vmem:[%s5074 + $0x34] sm:$0xf]
    %v5089 = vld [vmem:[%s5074 + $0x38] sm:$0xf]
    %v5090 = vld [vmem:[%s5074 + $0x3c] sm:$0xf]
    %v5107 = vunpack.c.l.b16 %v5075
    %v5108 = vunpack.c.l.b16 %v5076
    %v5109 = vunpack.c.l.b16 %v5077
    %v5110 = vunpack.c.l.b16 %v5078
    %v5111 = vunpack.c.l.b16 %v5079
    %v5112 = vunpack.c.l.b16 %v5080
    %v5113 = vunpack.c.l.b16 %v5081
    %v5114 = vunpack.c.l.b16 %v5082
    %v5115 = vunpack.c.l.b16 %v5083
    %v5116 = vunpack.c.l.b16 %v5084
    %v5117 = vunpack.c.l.b16 %v5085
    %v5118 = vunpack.c.l.b16 %v5086
    %v5119 = vunpack.c.l.b16 %v5087
    %v5120 = vunpack.c.l.b16 %v5088
    %v5121 = vunpack.c.l.b16 %v5089
    %v5122 = vunpack.c.l.b16 %v5090
    %v5123 = vpack.c.b16 %v5108, %v5107
    %v5124 = vpack.c.b16 %v5110, %v5109
    %v5125 = vpack.c.b16 %v5112, %v5111
    %v5126 = vpack.c.b16 %v5114, %v5113
    %v5127 = vpack.c.b16 %v5116, %v5115
    %v5128 = vpack.c.b16 %v5118, %v5117
    %v5129 = vpack.c.b16 %v5120, %v5119
    %v5130 = vpack.c.b16 %v5122, %v5121
    %5139 = vmatprep.subr.bf16.mxu0 0
    %5140 = vmatpush1.bf16.msra.mxu0 %v5123
    %5141 = vmatprep.subr.bf16.mxu0 0
    %5142 = vmatpush1.bf16.msra.mxu0 %v5124
    %5143 = vmatprep.subr.bf16.mxu0 0
    %5144 = vmatpush1.bf16.msra.mxu0 %v5125
    %5145 = vmatprep.subr.bf16.mxu0 0
    %5146 = vmatpush1.bf16.msra.mxu0 %v5126
    %5147 = vmatprep.subr.bf16.mxu0 0
    %5148 = vmatpush1.bf16.msra.mxu0 %v5127
    %5149 = vmatprep.subr.bf16.mxu0 0
    %5150 = vmatpush1.bf16.msra.mxu0 %v5128
    %5151 = vmatprep.subr.bf16.mxu0 0
    %5152 = vmatpush1.bf16.msra.mxu0 %v5129
    %5153 = vmatprep.subr.bf16.mxu0 0
    %5154 = vmatpush1.bf16.msra.mxu0 %v5130
    %5155 = vmatprep.subr.bf16.mxu0 0
    %5156 = vmatpush1.bf16.msra.mxu0 0
    %5157 = vmatprep.subr.bf16.mxu0 0
    %5158 = vmatpush1.bf16.msra.mxu0 0
    %5159 = vmatprep.subr.bf16.mxu0 0
    %5160 = vmatpush1.bf16.msra.mxu0 0
    %5161 = vmatprep.subr.bf16.mxu0 0
    %5162 = vmatpush1.bf16.msra.mxu0 0
    %5163 = vmatprep.subr.bf16.mxu0 0
    %5164 = vmatpush1.bf16.msra.mxu0 0
    %5165 = vmatprep.subr.bf16.mxu0 0
    %5166 = vmatpush1.bf16.msra.mxu0 0
    %5167 = vmatprep.subr.bf16.mxu0 0
    %5168 = vmatpush1.bf16.msra.mxu0 0
    %5169 = vmatprep.subr.bf16.mxu0 0
    %5170 = vmatpush1.bf16.msra.mxu0 0
    %5171 = vmatprep.mubr.bf16.mxu0 0
    %5172 = vmatmul.mubr.bf16.gmra.mrb[0].mxu0 %v5072
    %v5173 = vpop.f32.mrb[0].mxu0
    %v5174 = vadd.f32 0.0, %v5173
    %v5175 = vpop.f32.mrb[0].mxu0
    %v5176 = vpop.f32.mrb[0].mxu0
    %v5177 = vadd.f32 0.0, %v5176
    %v5178 = vpop.f32.mrb[0].mxu0
    %5179 = vmatprep.mubr.bf16.mxu0 0
    %5180 = vmatmul.mubr.bf16.gmra.mrb[0].mxu0 %v5073
    %v5181 = vpop.f32.mrb[0].mxu0
    %v5182 = vadd.f32 0.0, %v5181
    %v5183 = vpop.f32.mrb[0].mxu0
    %v5184 = vpop.f32.mrb[0].mxu0
    %v5185 = vadd.f32 0.0, %v5184
    %v5186 = vpop.f32.mrb[0].mxu0
    %5187 = vdwg.mxu0
    %v5188 = vadd.f32 %v5031, %v5174
    %v5189 = vadd.f32 %v5032, %v5177
    %v5190 = vadd.f32 %v5033, %v5182
    %v5191 = vadd.f32 %v5034, %v5185
    %v5192 = vrot.slane %v4426, 1
    %v5193 = vrot.slane %v4429, 1
    %v5194 = vrot.slane %v4434, 1
    %v5195 = vrot.slane %v4437, 1
    %v5196 = vsel %vm2394, %v5194, %v5195
    %v5197 = vsel %vm2394, %v5193, %v5194
    %v5198 = vsel %vm2394, %v5192, %v5193
    %v5199 = vsel %vm2394, %v5195, %v5192
    %s5200 = scalar_lea.vmem %s16, 160
    %v5201 = vld [vmem:[%s5200] sm:$0xff]
    %v5202 = vld [vmem:[%s5200 + $0x8] sm:$0xff]
    %v5203 = vld [vmem:[%s5200 + $0x10] sm:$0xff]
    %v5204 = vld [vmem:[%s5200 + $0x18] sm:$0xff]
    %5206 = vset.pattern.permute.xlu0 0
    %5207 = vperm.xlu0 %5206, %v5201
    %v5208 = vpop.permute.xlu0 %5207
    %5211 = vset.pattern.permute.xlu0 0
    %5212 = vperm.xlu0 %5211, %v5202
    %v5213 = vpop.permute.xlu0 %5212
    %5216 = vset.pattern.permute.xlu0 0
    %5217 = vperm.xlu0 %5216, %v5203
    %v5218 = vpop.permute.xlu0 %5217
    %5221 = vset.pattern.permute.xlu0 0
    %5222 = vperm.xlu0 %5221, %v5204
    %v5223 = vpop.permute.xlu0 %5222
    %v5225 = vmul.f32 %v5198, %v5208
    %v5226 = vmul.f32 %v5197, %v5213
    %v5227 = vmul.f32 %v5196, %v5218
    %v5228 = vmul.f32 %v5199, %v5223
    %v5229 = vpack.c.bf16 %v5226, %v5225
    %v5230 = vpack.c.bf16 %v5228, %v5227
    %s5231 = scalar_lea.vmem %s12, 320
    %v5232 = vld [vmem:[%s5231] sm:$0xf]
    %v5233 = vld [vmem:[%s5231 + $0x4] sm:$0xf]
    %v5234 = vld [vmem:[%s5231 + $0x8] sm:$0xf]
    %v5235 = vld [vmem:[%s5231 + $0xc] sm:$0xf]
    %v5236 = vld [vmem:[%s5231 + $0x10] sm:$0xf]
    %v5237 = vld [vmem:[%s5231 + $0x14] sm:$0xf]
    %v5238 = vld [vmem:[%s5231 + $0x18] sm:$0xf]
    %v5239 = vld [vmem:[%s5231 + $0x1c] sm:$0xf]
    %v5240 = vld [vmem:[%s5231 + $0x20] sm:$0xf]
    %v5241 = vld [vmem:[%s5231 + $0x24] sm:$0xf]
    %v5242 = vld [vmem:[%s5231 + $0x28] sm:$0xf]
    %v5243 = vld [vmem:[%s5231 + $0x2c] sm:$0xf]
    %v5244 = vld [vmem:[%s5231 + $0x30] sm:$0xf]
    %v5245 = vld [vmem:[%s5231 + $0x34] sm:$0xf]
    %v5246 = vld [vmem:[%s5231 + $0x38] sm:$0xf]
    %v5247 = vld [vmem:[%s5231 + $0x3c] sm:$0xf]
    %v5264 = vunpack.c.l.b16 %v5232
    %v5265 = vunpack.c.l.b16 %v5233
    %v5266 = vunpack.c.l.b16 %v5234
    %v5267 = vunpack.c.l.b16 %v5235
    %v5268 = vunpack.c.l.b16 %v5236
    %v5269 = vunpack.c.l.b16 %v5237
    %v5270 = vunpack.c.l.b16 %v5238
    %v5271 = vunpack.c.l.b16 %v5239
    %v5272 = vunpack.c.l.b16 %v5240
    %v5273 = vunpack.c.l.b16 %v5241
    %v5274 = vunpack.c.l.b16 %v5242
    %v5275 = vunpack.c.l.b16 %v5243
    %v5276 = vunpack.c.l.b16 %v5244
    %v5277 = vunpack.c.l.b16 %v5245
    %v5278 = vunpack.c.l.b16 %v5246
    %v5279 = vunpack.c.l.b16 %v5247
    %v5280 = vpack.c.b16 %v5265, %v5264
    %v5281 = vpack.c.b16 %v5267, %v5266
    %v5282 = vpack.c.b16 %v5269, %v5268
    %v5283 = vpack.c.b16 %v5271, %v5270
    %v5284 = vpack.c.b16 %v5273, %v5272
    %v5285 = vpack.c.b16 %v5275, %v5274
    %v5286 = vpack.c.b16 %v5277, %v5276
    %v5287 = vpack.c.b16 %v5279, %v5278
    %5296 = vmatprep.subr.bf16.mxu0 0
    %5297 = vmatpush1.bf16.msra.mxu0 %v5280
    %5298 = vmatprep.subr.bf16.mxu0 0
    %5299 = vmatpush1.bf16.msra.mxu0 %v5281
    %5300 = vmatprep.subr.bf16.mxu0 0
    %5301 = vmatpush1.bf16.msra.mxu0 %v5282
    %5302 = vmatprep.subr.bf16.mxu0 0
    %5303 = vmatpush1.bf16.msra.mxu0 %v5283
    %5304 = vmatprep.subr.bf16.mxu0 0
    %5305 = vmatpush1.bf16.msra.mxu0 %v5284
    %5306 = vmatprep.subr.bf16.mxu0 0
    %5307 = vmatpush1.bf16.msra.mxu0 %v5285
    %5308 = vmatprep.subr.bf16.mxu0 0
    %5309 = vmatpush1.bf16.msra.mxu0 %v5286
    %5310 = vmatprep.subr.bf16.mxu0 0
    %5311 = vmatpush1.bf16.msra.mxu0 %v5287
    %5312 = vmatprep.subr.bf16.mxu0 0
    %5313 = vmatpush1.bf16.msra.mxu0 0
    %5314 = vmatprep.subr.bf16.mxu0 0
    %5315 = vmatpush1.bf16.msra.mxu0 0
    %5316 = vmatprep.subr.bf16.mxu0 0
    %5317 = vmatpush1.bf16.msra.mxu0 0
    %5318 = vmatprep.subr.bf16.mxu0 0
    %5319 = vmatpush1.bf16.msra.mxu0 0
    %5320 = vmatprep.subr.bf16.mxu0 0
    %5321 = vmatpush1.bf16.msra.mxu0 0
    %5322 = vmatprep.subr.bf16.mxu0 0
    %5323 = vmatpush1.bf16.msra.mxu0 0
    %5324 = vmatprep.subr.bf16.mxu0 0
    %5325 = vmatpush1.bf16.msra.mxu0 0
    %5326 = vmatprep.subr.bf16.mxu0 0
    %5327 = vmatpush1.bf16.msra.mxu0 0
    %5328 = vmatprep.mubr.bf16.mxu0 0
    %5329 = vmatmul.mubr.bf16.gmra.mrb[0].mxu0 %v5229
    %v5330 = vpop.f32.mrb[0].mxu0
    %v5331 = vadd.f32 0.0, %v5330
    %v5332 = vpop.f32.mrb[0].mxu0
    %v5333 = vpop.f32.mrb[0].mxu0
    %v5334 = vadd.f32 0.0, %v5333
    %v5335 = vpop.f32.mrb[0].mxu0
    %5336 = vmatprep.mubr.bf16.mxu0 0
    %5337 = vmatmul.mubr.bf16.gmra.mrb[0].mxu0 %v5230
    %v5338 = vpop.f32.mrb[0].mxu0
    %v5339 = vadd.f32 0.0, %v5338
    %v5340 = vpop.f32.mrb[0].mxu0
    %v5341 = vpop.f32.mrb[0].mxu0
    %v5342 = vadd.f32 0.0, %v5341
    %v5343 = vpop.f32.mrb[0].mxu0
    %5344 = vdwg.mxu0
    %v5345 = vadd.f32 %v5188, %v5331
    %v5346 = vadd.f32 %v5189, %v5334
    %v5347 = vadd.f32 %v5190, %v5339
    %v5348 = vadd.f32 %v5191, %v5342
    %s5349 = scalar_lea.vmem %s16, 192
    %v5350 = vld [vmem:[%s5349] sm:$0xff]
    %v5351 = vld [vmem:[%s5349 + $0x8] sm:$0xff]
    %v5352 = vld [vmem:[%s5349 + $0x10] sm:$0xff]
    %v5353 = vld [vmem:[%s5349 + $0x18] sm:$0xff]
    %5355 = vset.pattern.permute.xlu0 0
    %5356 = vperm.xlu0 %5355, %v5350
    %v5357 = vpop.permute.xlu0 %5356
    %5360 = vset.pattern.permute.xlu0 0
    %5361 = vperm.xlu0 %5360, %v5351
    %v5362 = vpop.permute.xlu0 %5361
    %5365 = vset.pattern.permute.xlu0 0
    %5366 = vperm.xlu0 %5365, %v5352
    %v5367 = vpop.permute.xlu0 %5366
    %5370 = vset.pattern.permute.xlu0 0
    %5371 = vperm.xlu0 %5370, %v5353
    %v5372 = vpop.permute.xlu0 %5371
    %v5374 = vmul.f32 %v4570, %v5357
    %v5375 = vmul.f32 %v4569, %v5362
    %v5376 = vmul.f32 %v4568, %v5367
    %v5377 = vmul.f32 %v4571, %v5372
    %v5378 = vpack.c.bf16 %v5375, %v5374
    %v5379 = vpack.c.bf16 %v5377, %v5376
    %s5380 = scalar_lea.vmem %s12, 384
    %v5381 = vld [vmem:[%s5380] sm:$0xf]
    %v5382 = vld [vmem:[%s5380 + $0x4] sm:$0xf]
    %v5383 = vld [vmem:[%s5380 + $0x8] sm:$0xf]
    %v5384 = vld [vmem:[%s5380 + $0xc] sm:$0xf]
    %v5385 = vld [vmem:[%s5380 + $0x10] sm:$0xf]
    %v5386 = vld [vmem:[%s5380 + $0x14] sm:$0xf]
    %v5387 = vld [vmem:[%s5380 + $0x18] sm:$0xf]
    %v5388 = vld [vmem:[%s5380 + $0x1c] sm:$0xf]
    %v5389 = vld [vmem:[%s5380 + $0x20] sm:$0xf]
    %v5390 = vld [vmem:[%s5380 + $0x24] sm:$0xf]
    %v5391 = vld [vmem:[%s5380 + $0x28] sm:$0xf]
    %v5392 = vld [vmem:[%s5380 + $0x2c] sm:$0xf]
    %v5393 = vld [vmem:[%s5380 + $0x30] sm:$0xf]
    %v5394 = vld [vmem:[%s5380 + $0x34] sm:$0xf]
    %v5395 = vld [vmem:[%s5380 + $0x38] sm:$0xf]
    %v5396 = vld [vmem:[%s5380 + $0x3c] sm:$0xf]
    %v5413 = vunpack.c.l.b16 %v5381
    %v5414 = vunpack.c.l.b16 %v5382
    %v5415 = vunpack.c.l.b16 %v5383
    %v5416 = vunpack.c.l.b16 %v5384
    %v5417 = vunpack.c.l.b16 %v5385
    %v5418 = vunpack.c.l.b16 %v5386
    %v5419 = vunpack.c.l.b16 %v5387
    %v5420 = vunpack.c.l.b16 %v5388
    %v5421 = vunpack.c.l.b16 %v5389
    %v5422 = vunpack.c.l.b16 %v5390
    %v5423 = vunpack.c.l.b16 %v5391
    %v5424 = vunpack.c.l.b16 %v5392
    %v5425 = vunpack.c.l.b16 %v5393
    %v5426 = vunpack.c.l.b16 %v5394
    %v5427 = vunpack.c.l.b16 %v5395
    %v5428 = vunpack.c.l.b16 %v5396
    %v5429 = vpack.c.b16 %v5414, %v5413
    %v5430 = vpack.c.b16 %v5416, %v5415
    %v5431 = vpack.c.b16 %v5418, %v5417
    %v5432 = vpack.c.b16 %v5420, %v5419
    %v5433 = vpack.c.b16 %v5422, %v5421
    %v5434 = vpack.c.b16 %v5424, %v5423
    %v5435 = vpack.c.b16 %v5426, %v5425
    %v5436 = vpack.c.b16 %v5428, %v5427
    %5445 = vmatprep.subr.bf16.mxu0 0
    %5446 = vmatpush1.bf16.msra.mxu0 %v5429
    %5447 = vmatprep.subr.bf16.mxu0 0
    %5448 = vmatpush1.bf16.msra.mxu0 %v5430
    %5449 = vmatprep.subr.bf16.mxu0 0
    %5450 = vmatpush1.bf16.msra.mxu0 %v5431
    %5451 = vmatprep.subr.bf16.mxu0 0
    %5452 = vmatpush1.bf16.msra.mxu0 %v5432
    %5453 = vmatprep.subr.bf16.mxu0 0
    %5454 = vmatpush1.bf16.msra.mxu0 %v5433
    %5455 = vmatprep.subr.bf16.mxu0 0
    %5456 = vmatpush1.bf16.msra.mxu0 %v5434
    %5457 = vmatprep.subr.bf16.mxu0 0
    %5458 = vmatpush1.bf16.msra.mxu0 %v5435
    %5459 = vmatprep.subr.bf16.mxu0 0
    %5460 = vmatpush1.bf16.msra.mxu0 %v5436
    %5461 = vmatprep.subr.bf16.mxu0 0
    %5462 = vmatpush1.bf16.msra.mxu0 0
    %5463 = vmatprep.subr.bf16.mxu0 0
    %5464 = vmatpush1.bf16.msra.mxu0 0
    %5465 = vmatprep.subr.bf16.mxu0 0
    %5466 = vmatpush1.bf16.msra.mxu0 0
    %5467 = vmatprep.subr.bf16.mxu0 0
    %5468 = vmatpush1.bf16.msra.mxu0 0
    %5469 = vmatprep.subr.bf16.mxu0 0
    %5470 = vmatpush1.bf16.msra.mxu0 0
    %5471 = vmatprep.subr.bf16.mxu0 0
    %5472 = vmatpush1.bf16.msra.mxu0 0
    %5473 = vmatprep.subr.bf16.mxu0 0
    %5474 = vmatpush1.bf16.msra.mxu0 0
    %5475 = vmatprep.subr.bf16.mxu0 0
    %5476 = vmatpush1.bf16.msra.mxu0 0
    %5477 = vmatprep.mubr.bf16.mxu0 0
    %5478 = vmatmul.mubr.bf16.gmra.mrb[0].mxu0 %v5378
    %v5479 = vpop.f32.mrb[0].mxu0
    %v5480 = vadd.f32 0.0, %v5479
    %v5481 = vpop.f32.mrb[0].mxu0
    %v5482 = vpop.f32.mrb[0].mxu0
    %v5483 = vadd.f32 0.0, %v5482
    %v5484 = vpop.f32.mrb[0].mxu0
    %5485 = vmatprep.mubr.bf16.mxu0 0
    %5486 = vmatmul.mubr.bf16.gmra.mrb[0].mxu0 %v5379
    %v5487 = vpop.f32.mrb[0].mxu0
    %v5488 = vadd.f32 0.0, %v5487
    %v5489 = vpop.f32.mrb[0].mxu0
    %v5490 = vpop.f32.mrb[0].mxu0
    %v5491 = vadd.f32 0.0, %v5490
    %v5492 = vpop.f32.mrb[0].mxu0
    %5493 = vdwg.mxu0
    %v5494 = vadd.f32 %v5345, %v5480
    %v5495 = vadd.f32 %v5346, %v5483
    %v5496 = vadd.f32 %v5347, %v5488
    %v5497 = vadd.f32 %v5348, %v5491
    %s5498 = scalar_lea.vmem %s16, 224
    %v5499 = vld [vmem:[%s5498] sm:$0xff]
    %v5500 = vld [vmem:[%s5498 + $0x8] sm:$0xff]
    %v5501 = vld [vmem:[%s5498 + $0x10] sm:$0xff]
    %v5502 = vld [vmem:[%s5498 + $0x18] sm:$0xff]
    %5504 = vset.pattern.permute.xlu0 0
    %5505 = vperm.xlu0 %5504, %v5499
    %v5506 = vpop.permute.xlu0 %5505
    %5509 = vset.pattern.permute.xlu0 0
    %5510 = vperm.xlu0 %5509, %v5500
    %v5511 = vpop.permute.xlu0 %5510
    %5514 = vset.pattern.permute.xlu0 0
    %5515 = vperm.xlu0 %5514, %v5501
    %v5516 = vpop.permute.xlu0 %5515
    %5519 = vset.pattern.permute.xlu0 0
    %5520 = vperm.xlu0 %5519, %v5502
    %v5521 = vpop.permute.xlu0 %5520
    %v5523 = vmul.f32 %v4726, %v5506
    %v5524 = vmul.f32 %v4725, %v5511
    %v5525 = vmul.f32 %v4724, %v5516
    %v5526 = vmul.f32 %v4727, %v5521
    %v5527 = vpack.c.bf16 %v5524, %v5523
    %v5528 = vpack.c.bf16 %v5526, %v5525
    %s5529 = scalar_lea.vmem %s12, 448
    %v5530 = vld [vmem:[%s5529] sm:$0xf]
    %v5531 = vld [vmem:[%s5529 + $0x4] sm:$0xf]
    %v5532 = vld [vmem:[%s5529 + $0x8] sm:$0xf]
    %v5533 = vld [vmem:[%s5529 + $0xc] sm:$0xf]
    %v5534 = vld [vmem:[%s5529 + $0x10] sm:$0xf]
    %v5535 = vld [vmem:[%s5529 + $0x14] sm:$0xf]
    %v5536 = vld [vmem:[%s5529 + $0x18] sm:$0xf]
    %v5537 = vld [vmem:[%s5529 + $0x1c] sm:$0xf]
    %v5538 = vld [vmem:[%s5529 + $0x20] sm:$0xf]
    %v5539 = vld [vmem:[%s5529 + $0x24] sm:$0xf]
    %v5540 = vld [vmem:[%s5529 + $0x28] sm:$0xf]
    %v5541 = vld [vmem:[%s5529 + $0x2c] sm:$0xf]
    %v5542 = vld [vmem:[%s5529 + $0x30] sm:$0xf]
    %v5543 = vld [vmem:[%s5529 + $0x34] sm:$0xf]
    %v5544 = vld [vmem:[%s5529 + $0x38] sm:$0xf]
    %v5545 = vld [vmem:[%s5529 + $0x3c] sm:$0xf]
    %v5562 = vunpack.c.l.b16 %v5530
    %v5563 = vunpack.c.l.b16 %v5531
    %v5564 = vunpack.c.l.b16 %v5532
    %v5565 = vunpack.c.l.b16 %v5533
    %v5566 = vunpack.c.l.b16 %v5534
    %v5567 = vunpack.c.l.b16 %v5535
    %v5568 = vunpack.c.l.b16 %v5536
    %v5569 = vunpack.c.l.b16 %v5537
    %v5570 = vunpack.c.l.b16 %v5538
    %v5571 = vunpack.c.l.b16 %v5539
    %v5572 = vunpack.c.l.b16 %v5540
    %v5573 = vunpack.c.l.b16 %v5541
    %v5574 = vunpack.c.l.b16 %v5542
    %v5575 = vunpack.c.l.b16 %v5543
    %v5576 = vunpack.c.l.b16 %v5544
    %v5577 = vunpack.c.l.b16 %v5545
    %v5578 = vpack.c.b16 %v5563, %v5562
    %v5579 = vpack.c.b16 %v5565, %v5564
    %v5580 = vpack.c.b16 %v5567, %v5566
    %v5581 = vpack.c.b16 %v5569, %v5568
    %v5582 = vpack.c.b16 %v5571, %v5570
    %v5583 = vpack.c.b16 %v5573, %v5572
    %v5584 = vpack.c.b16 %v5575, %v5574
    %v5585 = vpack.c.b16 %v5577, %v5576
    %5594 = vmatprep.subr.bf16.mxu0 0
    %5595 = vmatpush1.bf16.msra.mxu0 %v5578
    %5596 = vmatprep.subr.bf16.mxu0 0
    %5597 = vmatpush1.bf16.msra.mxu0 %v5579
    %5598 = vmatprep.subr.bf16.mxu0 0
    %5599 = vmatpush1.bf16.msra.mxu0 %v5580
    %5600 = vmatprep.subr.bf16.mxu0 0
    %5601 = vmatpush1.bf16.msra.mxu0 %v5581
    %5602 = vmatprep.subr.bf16.mxu0 0
    %5603 = vmatpush1.bf16.msra.mxu0 %v5582
    %5604 = vmatprep.subr.bf16.mxu0 0
    %5605 = vmatpush1.bf16.msra.mxu0 %v5583
    %5606 = vmatprep.subr.bf16.mxu0 0
    %5607 = vmatpush1.bf16.msra.mxu0 %v5584
    %5608 = vmatprep.subr.bf16.mxu0 0
    %5609 = vmatpush1.bf16.msra.mxu0 %v5585
    %5610 = vmatprep.subr.bf16.mxu0 0
    %5611 = vmatpush1.bf16.msra.mxu0 0
    %5612 = vmatprep.subr.bf16.mxu0 0
    %5613 = vmatpush1.bf16.msra.mxu0 0
    %5614 = vmatprep.subr.bf16.mxu0 0
    %5615 = vmatpush1.bf16.msra.mxu0 0
    %5616 = vmatprep.subr.bf16.mxu0 0
    %5617 = vmatpush1.bf16.msra.mxu0 0
    %5618 = vmatprep.subr.bf16.mxu0 0
    %5619 = vmatpush1.bf16.msra.mxu0 0
    %5620 = vmatprep.subr.bf16.mxu0 0
    %5621 = vmatpush1.bf16.msra.mxu0 0
    %5622 = vmatprep.subr.bf16.mxu0 0
    %5623 = vmatpush1.bf16.msra.mxu0 0
    %5624 = vmatprep.subr.bf16.mxu0 0
    %5625 = vmatpush1.bf16.msra.mxu0 0
    %5626 = vmatprep.mubr.bf16.mxu0 0
    %5627 = vmatmul.mubr.bf16.gmra.mrb[0].mxu0 %v5527
    %v5628 = vpop.f32.mrb[0].mxu0
    %v5629 = vadd.f32 0.0, %v5628
    %v5630 = vpop.f32.mrb[0].mxu0
    %v5631 = vpop.f32.mrb[0].mxu0
    %v5632 = vadd.f32 0.0, %v5631
    %v5633 = vpop.f32.mrb[0].mxu0
    %5634 = vmatprep.mubr.bf16.mxu0 0
    %5635 = vmatmul.mubr.bf16.gmra.mrb[0].mxu0 %v5528
    %v5636 = vpop.f32.mrb[0].mxu0
    %v5637 = vadd.f32 0.0, %v5636
    %v5638 = vpop.f32.mrb[0].mxu0
    %v5639 = vpop.f32.mrb[0].mxu0
    %v5640 = vadd.f32 0.0, %v5639
    %v5641 = vpop.f32.mrb[0].mxu0
    %5642 = vdwg.mxu0
    %v5643 = vadd.f32 %v5494, %v5629
    %v5644 = vadd.f32 %v5495, %v5632
    %v5645 = vadd.f32 %v5496, %v5637
    %v5646 = vadd.f32 %v5497, %v5640
    %s5647 = scalar_lea.vmem %s16, 256
    %v5648 = vld [vmem:[%s5647] sm:$0xff]
    %v5649 = vld [vmem:[%s5647 + $0x8] sm:$0xff]
    %v5650 = vld [vmem:[%s5647 + $0x10] sm:$0xff]
    %v5651 = vld [vmem:[%s5647 + $0x18] sm:$0xff]
    %5653 = vset.pattern.permute.xlu0 0
    %5654 = vperm.xlu0 %5653, %v5648
    %v5655 = vpop.permute.xlu0 %5654
    %5658 = vset.pattern.permute.xlu0 0
    %5659 = vperm.xlu0 %5658, %v5649
    %v5660 = vpop.permute.xlu0 %5659
    %5663 = vset.pattern.permute.xlu0 0
    %5664 = vperm.xlu0 %5663, %v5650
    %v5665 = vpop.permute.xlu0 %5664
    %5668 = vset.pattern.permute.xlu0 0
    %5669 = vperm.xlu0 %5668, %v5651
    %v5670 = vpop.permute.xlu0 %5669
    %v5672 = vmul.f32 %v4884, %v5655
    %v5673 = vmul.f32 %v4883, %v5660
    %v5674 = vmul.f32 %v4882, %v5665
    %v5675 = vmul.f32 %v4885, %v5670
    %v5676 = vpack.c.bf16 %v5673, %v5672
    %v5677 = vpack.c.bf16 %v5675, %v5674
    %s5678 = scalar_lea.vmem %s12, 512
    %v5679 = vld [vmem:[%s5678] sm:$0xf]
    %v5680 = vld [vmem:[%s5678 + $0x4] sm:$0xf]
    %v5681 = vld [vmem:[%s5678 + $0x8] sm:$0xf]
    %v5682 = vld [vmem:[%s5678 + $0xc] sm:$0xf]
    %v5683 = vld [vmem:[%s5678 + $0x10] sm:$0xf]
    %v5684 = vld [vmem:[%s5678 + $0x14] sm:$0xf]
    %v5685 = vld [vmem:[%s5678 + $0x18] sm:$0xf]
    %v5686 = vld [vmem:[%s5678 + $0x1c] sm:$0xf]
    %v5687 = vld [vmem:[%s5678 + $0x20] sm:$0xf]
    %v5688 = vld [vmem:[%s5678 + $0x24] sm:$0xf]
    %v5689 = vld [vmem:[%s5678 + $0x28] sm:$0xf]
    %v5690 = vld [vmem:[%s5678 + $0x2c] sm:$0xf]
    %v5691 = vld [vmem:[%s5678 + $0x30] sm:$0xf]
    %v5692 = vld [vmem:[%s5678 + $0x34] sm:$0xf]
    %v5693 = vld [vmem:[%s5678 + $0x38] sm:$0xf]
    %v5694 = vld [vmem:[%s5678 + $0x3c] sm:$0xf]
    %v5711 = vunpack.c.l.b16 %v5679
    %v5712 = vunpack.c.l.b16 %v5680
    %v5713 = vunpack.c.l.b16 %v5681
    %v5714 = vunpack.c.l.b16 %v5682
    %v5715 = vunpack.c.l.b16 %v5683
    %v5716 = vunpack.c.l.b16 %v5684
    %v5717 = vunpack.c.l.b16 %v5685
    %v5718 = vunpack.c.l.b16 %v5686
    %v5719 = vunpack.c.l.b16 %v5687
    %v5720 = vunpack.c.l.b16 %v5688
    %v5721 = vunpack.c.l.b16 %v5689
    %v5722 = vunpack.c.l.b16 %v5690
    %v5723 = vunpack.c.l.b16 %v5691
    %v5724 = vunpack.c.l.b16 %v5692
    %v5725 = vunpack.c.l.b16 %v5693
    %v5726 = vunpack.c.l.b16 %v5694
    %v5727 = vpack.c.b16 %v5712, %v5711
    %v5728 = vpack.c.b16 %v5714, %v5713
    %v5729 = vpack.c.b16 %v5716, %v5715
    %v5730 = vpack.c.b16 %v5718, %v5717
    %v5731 = vpack.c.b16 %v5720, %v5719
    %v5732 = vpack.c.b16 %v5722, %v5721
    %v5733 = vpack.c.b16 %v5724, %v5723
    %v5734 = vpack.c.b16 %v5726, %v5725
    %5743 = vmatprep.subr.bf16.mxu0 0
    %5744 = vmatpush1.bf16.msra.mxu0 %v5727
    %5745 = vmatprep.subr.bf16.mxu0 0
    %5746 = vmatpush1.bf16.msra.mxu0 %v5728
    %5747 = vmatprep.subr.bf16.mxu0 0
    %5748 = vmatpush1.bf16.msra.mxu0 %v5729
    %5749 = vmatprep.subr.bf16.mxu0 0
    %5750 = vmatpush1.bf16.msra.mxu0 %v5730
    %5751 = vmatprep.subr.bf16.mxu0 0
    %5752 = vmatpush1.bf16.msra.mxu0 %v5731
    %5753 = vmatprep.subr.bf16.mxu0 0
    %5754 = vmatpush1.bf16.msra.mxu0 %v5732
    %5755 = vmatprep.subr.bf16.mxu0 0
    %5756 = vmatpush1.bf16.msra.mxu0 %v5733
    %5757 = vmatprep.subr.bf16.mxu0 0
    %5758 = vmatpush1.bf16.msra.mxu0 %v5734
    %5759 = vmatprep.subr.bf16.mxu0 0
    %5760 = vmatpush1.bf16.msra.mxu0 0
    %5761 = vmatprep.subr.bf16.mxu0 0
    %5762 = vmatpush1.bf16.msra.mxu0 0
    %5763 = vmatprep.subr.bf16.mxu0 0
    %5764 = vmatpush1.bf16.msra.mxu0 0
    %5765 = vmatprep.subr.bf16.mxu0 0
    %5766 = vmatpush1.bf16.msra.mxu0 0
    %5767 = vmatprep.subr.bf16.mxu0 0
    %5768 = vmatpush1.bf16.msra.mxu0 0
    %5769 = vmatprep.subr.bf16.mxu0 0
    %5770 = vmatpush1.bf16.msra.mxu0 0
    %5771 = vmatprep.subr.bf16.mxu0 0
    %5772 = vmatpush1.bf16.msra.mxu0 0
    %5773 = vmatprep.subr.bf16.mxu0 0
    %5774 = vmatpush1.bf16.msra.mxu0 0
    %5775 = vmatprep.mubr.bf16.mxu0 0
    %5776 = vmatmul.mubr.bf16.gmra.mrb[0].mxu0 %v5676
    %v5777 = vpop.f32.mrb[0].mxu0
    %v5778 = vadd.f32 0.0, %v5777
    %v5779 = vpop.f32.mrb[0].mxu0
    %v5780 = vpop.f32.mrb[0].mxu0
    %v5781 = vadd.f32 0.0, %v5780
    %v5782 = vpop.f32.mrb[0].mxu0
    %5783 = vmatprep.mubr.bf16.mxu0 0
    %5784 = vmatmul.mubr.bf16.gmra.mrb[0].mxu0 %v5677
    %v5785 = vpop.f32.mrb[0].mxu0
    %v5786 = vadd.f32 0.0, %v5785
    %v5787 = vpop.f32.mrb[0].mxu0
    %v5788 = vpop.f32.mrb[0].mxu0
    %v5789 = vadd.f32 0.0, %v5788
    %v5790 = vpop.f32.mrb[0].mxu0
    %5791 = vdwg.mxu0
    %v5792 = vadd.f32 %v5643, %v5778
    %v5793 = vadd.f32 %v5644, %v5781
    %v5794 = vadd.f32 %v5645, %v5786
    %v5795 = vadd.f32 %v5646, %v5789
    %v5796 = vld [vmem:[%s14] sm:$0x1]
    %v5797 = vld [vmem:[%s15] sm:$0x1]
    %v5798 = vadd.f32 %v5792, %v5793
    %v5799 = vrot.slane %v5798, 4
    %v5800 = vadd.f32 %v5798, %v5799
    %v5801 = vrot.slane %v5800, 2
    %v5802 = vadd.f32 %v5800, %v5801
    %v5803 = vrot.slane %v5802, 1
    %v5804 = vadd.f32 %v5802, %v5803
    %v5805 = vmul.f32 %v5792, %v5792
    %v5806 = vmul.f32 %v5793, %v5793
    %v5807 = vadd.f32 %v5805, %v5806
    %v5808 = vrot.slane %v5807, 4
    %v5809 = vadd.f32 %v5807, %v5808
    %v5810 = vrot.slane %v5809, 2
    %v5811 = vadd.f32 %v5809, %v5810
    %v5812 = vrot.slane %v5811, 1
    %v5813 = vadd.f32 %v5811, %v5812
    %v5814 = vmul.f32 %v5804, 0.0625
    %v5815 = vmul.f32 %v5813, 0.0625
    %v5816 = vmul.f32 %v5814, %v5814
    %v5817 = vsub.f32 %v5815, %v5816
    %v5818 = vmax.f32 %v5817, 0.0
    %v5819 = vadd.f32 %v5818, 1e-05
    %v5820 = vrsqrt.pop %v5819
    %v5821 = vmul.f32 %v5796, %v5820
    %v5822 = vmul.f32 %v5814, %v5821
    %v5823 = vsub.f32 %v5797, %v5822
    %v5825 = vlaneseq
    %v5826 = vshrl.u32 %v5825, 7
    %v5827 = vsub.s32 0, %v5826
    %v5828 = vrot.slane %v5821, %v5827
    %v5830 = vmul.f32 %v5792, %v5828
    %v5831 = vmul.f32 %v5793, %v5828
    %v5833 = vlaneseq
    %v5834 = vshrl.u32 %v5833, 7
    %v5835 = vsub.s32 0, %v5834
    %v5836 = vrot.slane %v5823, %v5835
    %v5838 = vadd.f32 %v5830, %v5836
    %v5839 = vadd.f32 %v5831, %v5836
    %v5840 = vmax.f32 %v5838, 0.0
    %v5841 = vmax.f32 %v5839, 0.0
    %v5842 = vadd.f32 %v5794, %v5795
    %v5843 = vrot.slane %v5842, 4
    %v5844 = vadd.f32 %v5842, %v5843
    %v5845 = vrot.slane %v5844, 2
    %v5846 = vadd.f32 %v5844, %v5845
    %v5847 = vrot.slane %v5846, 1
    %v5848 = vadd.f32 %v5846, %v5847
    %v5849 = vmul.f32 %v5794, %v5794
    %v5850 = vmul.f32 %v5795, %v5795
    %v5851 = vadd.f32 %v5849, %v5850
    %v5852 = vrot.slane %v5851, 4
    %v5853 = vadd.f32 %v5851, %v5852
    %v5854 = vrot.slane %v5853, 2
    %v5855 = vadd.f32 %v5853, %v5854
    %v5856 = vrot.slane %v5855, 1
    %v5857 = vadd.f32 %v5855, %v5856
    %v5858 = vmul.f32 %v5848, 0.0625
    %v5859 = vmul.f32 %v5857, 0.0625
    %v5860 = vmul.f32 %v5858, %v5858
    %v5861 = vsub.f32 %v5859, %v5860
    %v5862 = vmax.f32 %v5861, 0.0
    %v5863 = vadd.f32 %v5862, 1e-05
    %v5864 = vrsqrt.pop %v5863
    %v5865 = vmul.f32 %v5796, %v5864
    %v5866 = vmul.f32 %v5858, %v5865
    %v5867 = vsub.f32 %v5797, %v5866
    %v5869 = vlaneseq
    %v5870 = vshrl.u32 %v5869, 7
    %v5871 = vsub.s32 0, %v5870
    %v5872 = vrot.slane %v5865, %v5871
    %v5874 = vmul.f32 %v5794, %v5872
    %v5875 = vmul.f32 %v5795, %v5872
    %v5877 = vlaneseq
    %v5878 = vshrl.u32 %v5877, 7
    %v5879 = vsub.s32 0, %v5878
    %v5880 = vrot.slane %v5867, %v5879
    %v5882 = vadd.f32 %v5874, %v5880
    %v5883 = vadd.f32 %v5875, %v5880
    %v5884 = vmax.f32 %v5882, 0.0
    %v5885 = vmax.f32 %v5883, 0.0
    %v5886 = vld [vmem:[%s17] sm:$0xf]
    %v5887 = vpack.c.bf16 %v5841, %v5840
    %v5888 = vpack.c.bf16 %v5885, %v5884
    %v5890 = vsel %vm316, %v5886, 0
    %5892 = vmatprep.subr.bf16.mxu0 0
    %5893 = vmatpush1.bf16.msra.mxu0 %v5887
    %5894 = vmatprep.subr.bf16.mxu0 0
    %5895 = vmatpush1.bf16.msra.mxu0 %v5888
    %5896 = vmatprep.subr.bf16.mxu0 0
    %5897 = vmatpush1.bf16.msra.mxu0 0
    %5898 = vmatprep.subr.bf16.mxu0 0
    %5899 = vmatpush1.bf16.msra.mxu0 0
    %5900 = vmatprep.subr.bf16.mxu0 0
    %5901 = vmatpush1.bf16.msra.mxu0 0
    %5902 = vmatprep.subr.bf16.mxu0 0
    %5903 = vmatpush1.bf16.msra.mxu0 0
    %5904 = vmatprep.subr.bf16.mxu0 0
    %5905 = vmatpush1.bf16.msra.mxu0 0
    %5906 = vmatprep.subr.bf16.mxu0 0
    %5907 = vmatpush1.bf16.msra.mxu0 0
    %5908 = vmatprep.subr.bf16.mxu0 0
    %5909 = vmatpush1.bf16.msra.mxu0 0
    %5910 = vmatprep.subr.bf16.mxu0 0
    %5911 = vmatpush1.bf16.msra.mxu0 0
    %5912 = vmatprep.subr.bf16.mxu0 0
    %5913 = vmatpush1.bf16.msra.mxu0 0
    %5914 = vmatprep.subr.bf16.mxu0 0
    %5915 = vmatpush1.bf16.msra.mxu0 0
    %5916 = vmatprep.subr.bf16.mxu0 0
    %5917 = vmatpush1.bf16.msra.mxu0 0
    %5918 = vmatprep.subr.bf16.mxu0 0
    %5919 = vmatpush1.bf16.msra.mxu0 0
    %5920 = vmatprep.subr.bf16.mxu0 0
    %5921 = vmatpush1.bf16.msra.mxu0 0
    %5922 = vmatprep.subr.bf16.mxu0 0
    %5923 = vmatpush1.bf16.msra.mxu0 0
    %5924 = vmatprep.mubr.bf16.mxu0 0
    %5925 = vmatmul.mubr.bf16.gmra.mrb[0].mxu0 %v5890
    %v5926 = vpop.f32.mrb[0].mxu0
    %v5927 = vadd.f32 0.0, %v5926
    %v5928 = vpop.f32.mrb[0].mxu0
    %v5929 = vpop.f32.mrb[0].mxu0
    %v5930 = vpop.f32.mrb[0].mxu0
    %5931 = vdwg.mxu0
    %5932 = vst [vmem:[%s20] sm:$0xff] %v5927
    %v5934 = vrot.slane %v5927, 2
    %v5936 = vrot.slane %v5927, 4
    %v5938 = vrot.slane %v5927, 6
    %v5940 = vpack.c.bf16 %v5927, %v5927
    %v5941 = vpack.c.bf16 %v5934, %v5934
    %v5942 = vpack.c.bf16 %v5936, %v5936
    %v5943 = vpack.c.bf16 %v5938, %v5938
    %v5944 = vld [vmem:[%s18] sm:$0xf]
    %v5945 = vld [vmem:[%s18 + $0x4] sm:$0xf]
    %v5946 = vld [vmem:[%s18 + $0x8] sm:$0xf]
    %v5947 = vld [vmem:[%s18 + $0xc] sm:$0xf]
    %v5948 = vld [vmem:[%s18 + $0x10] sm:$0xf]
    %v5949 = vld [vmem:[%s18 + $0x14] sm:$0xf]
    %v5950 = vld [vmem:[%s18 + $0x18] sm:$0xf]
    %v5951 = vld [vmem:[%s18 + $0x1c] sm:$0xf]
    %v5952 = vld [vmem:[%s18 + $0x20] sm:$0xf]
    %v5953 = vld [vmem:[%s18 + $0x24] sm:$0xf]
    %v5954 = vld [vmem:[%s18 + $0x28] sm:$0xf]
    %v5955 = vld [vmem:[%s18 + $0x2c] sm:$0xf]
    %v5956 = vld [vmem:[%s18 + $0x30] sm:$0xf]
    %v5957 = vld [vmem:[%s18 + $0x34] sm:$0xf]
    %v5958 = vld [vmem:[%s18 + $0x38] sm:$0xf]
    %v5959 = vld [vmem:[%s18 + $0x3c] sm:$0xf]
    %v5960 = vld [vmem:[%s18 + $0x40] sm:$0xf]
    %v5961 = vld [vmem:[%s18 + $0x44] sm:$0xf]
    %v5962 = vld [vmem:[%s18 + $0x48] sm:$0xf]
    %v5963 = vld [vmem:[%s18 + $0x4c] sm:$0xf]
    %v5964 = vld [vmem:[%s18 + $0x50] sm:$0xf]
    %v5965 = vld [vmem:[%s18 + $0x54] sm:$0xf]
    %v5966 = vld [vmem:[%s18 + $0x58] sm:$0xf]
    %v5967 = vld [vmem:[%s18 + $0x5c] sm:$0xf]
    %v5968 = vld [vmem:[%s18 + $0x60] sm:$0xf]
    %v5969 = vld [vmem:[%s18 + $0x64] sm:$0xf]
    %v5970 = vld [vmem:[%s18 + $0x68] sm:$0xf]
    %v5971 = vld [vmem:[%s18 + $0x6c] sm:$0xf]
    %v5972 = vld [vmem:[%s18 + $0x70] sm:$0xf]
    %v5973 = vld [vmem:[%s18 + $0x74] sm:$0xf]
    %v5974 = vld [vmem:[%s18 + $0x78] sm:$0xf]
    %v5975 = vld [vmem:[%s18 + $0x7c] sm:$0xf]
    %v5976 = vld [vmem:[%s18 + $0x80] sm:$0xf]
    %v5977 = vld [vmem:[%s18 + $0x84] sm:$0xf]
    %v5978 = vld [vmem:[%s18 + $0x88] sm:$0xf]
    %v5979 = vld [vmem:[%s18 + $0x8c] sm:$0xf]
    %v5980 = vld [vmem:[%s18 + $0x90] sm:$0xf]
    %v5981 = vld [vmem:[%s18 + $0x94] sm:$0xf]
    %v5982 = vld [vmem:[%s18 + $0x98] sm:$0xf]
    %v5983 = vld [vmem:[%s18 + $0x9c] sm:$0xf]
    %v5984 = vld [vmem:[%s18 + $0xa0] sm:$0xf]
    %v5985 = vld [vmem:[%s18 + $0xa4] sm:$0xf]
    %v5986 = vld [vmem:[%s18 + $0xa8] sm:$0xf]
    %v5987 = vld [vmem:[%s18 + $0xac] sm:$0xf]
    %v5988 = vld [vmem:[%s18 + $0xb0] sm:$0xf]
    %v5989 = vld [vmem:[%s18 + $0xb4] sm:$0xf]
    %v5990 = vld [vmem:[%s18 + $0xb8] sm:$0xf]
    %v5991 = vld [vmem:[%s18 + $0xbc] sm:$0xf]
    %v5992 = vld [vmem:[%s18 + $0xc0] sm:$0xf]
    %v5993 = vld [vmem:[%s18 + $0xc4] sm:$0xf]
    %v5994 = vld [vmem:[%s18 + $0xc8] sm:$0xf]
    %v5995 = vld [vmem:[%s18 + $0xcc] sm:$0xf]
    %v5996 = vld [vmem:[%s18 + $0xd0] sm:$0xf]
    %v5997 = vld [vmem:[%s18 + $0xd4] sm:$0xf]
    %v5998 = vld [vmem:[%s18 + $0xd8] sm:$0xf]
    %v5999 = vld [vmem:[%s18 + $0xdc] sm:$0xf]
    %v6000 = vld [vmem:[%s18 + $0xe0] sm:$0xf]
    %v6001 = vld [vmem:[%s18 + $0xe4] sm:$0xf]
    %v6002 = vld [vmem:[%s18 + $0xe8] sm:$0xf]
    %v6003 = vld [vmem:[%s18 + $0xec] sm:$0xf]
    %v6004 = vld [vmem:[%s18 + $0xf0] sm:$0xf]
    %v6005 = vld [vmem:[%s18 + $0xf4] sm:$0xf]
    %v6006 = vld [vmem:[%s18 + $0xf8] sm:$0xf]
    %v6007 = vld [vmem:[%s18 + $0xfc] sm:$0xf]
    %v6008 = vld [vmem:[%s19] sm:$0x1]
    %v6010 = vlaneseq
    %v6011 = vshrl.u32 %v6010, 7
    %v6012 = vsub.s32 0, %v6011
    %v6013 = vrot.slane %v6008, %v6012
    %v6079 = vunpack.c.l.b16 %v5944
    %v6080 = vunpack.c.l.b16 %v5945
    %v6081 = vunpack.c.l.b16 %v5946
    %v6082 = vunpack.c.l.b16 %v5947
    %v6083 = vunpack.c.l.b16 %v5948
    %v6084 = vunpack.c.l.b16 %v5949
    %v6085 = vunpack.c.l.b16 %v5950
    %v6086 = vunpack.c.l.b16 %v5951
    %v6087 = vunpack.c.l.b16 %v5952
    %v6088 = vunpack.c.l.b16 %v5953
    %v6089 = vunpack.c.l.b16 %v5954
    %v6090 = vunpack.c.l.b16 %v5955
    %v6091 = vunpack.c.l.b16 %v5956
    %v6092 = vunpack.c.l.b16 %v5957
    %v6093 = vunpack.c.l.b16 %v5958
    %v6094 = vunpack.c.l.b16 %v5959
    %v6095 = vunpack.c.l.b16 %v5960
    %v6096 = vunpack.c.l.b16 %v5961
    %v6097 = vunpack.c.l.b16 %v5962
    %v6098 = vunpack.c.l.b16 %v5963
    %v6099 = vunpack.c.l.b16 %v5964
    %v6100 = vunpack.c.l.b16 %v5965
    %v6101 = vunpack.c.l.b16 %v5966
    %v6102 = vunpack.c.l.b16 %v5967
    %v6103 = vunpack.c.l.b16 %v5968
    %v6104 = vunpack.c.l.b16 %v5969
    %v6105 = vunpack.c.l.b16 %v5970
    %v6106 = vunpack.c.l.b16 %v5971
    %v6107 = vunpack.c.l.b16 %v5972
    %v6108 = vunpack.c.l.b16 %v5973
    %v6109 = vunpack.c.l.b16 %v5974
    %v6110 = vunpack.c.l.b16 %v5975
    %v6111 = vunpack.c.l.b16 %v5976
    %v6112 = vunpack.c.l.b16 %v5977
    %v6113 = vunpack.c.l.b16 %v5978
    %v6114 = vunpack.c.l.b16 %v5979
    %v6115 = vunpack.c.l.b16 %v5980
    %v6116 = vunpack.c.l.b16 %v5981
    %v6117 = vunpack.c.l.b16 %v5982
    %v6118 = vunpack.c.l.b16 %v5983
    %v6119 = vunpack.c.l.b16 %v5984
    %v6120 = vunpack.c.l.b16 %v5985
    %v6121 = vunpack.c.l.b16 %v5986
    %v6122 = vunpack.c.l.b16 %v5987
    %v6123 = vunpack.c.l.b16 %v5988
    %v6124 = vunpack.c.l.b16 %v5989
    %v6125 = vunpack.c.l.b16 %v5990
    %v6126 = vunpack.c.l.b16 %v5991
    %v6127 = vunpack.c.l.b16 %v5992
    %v6128 = vunpack.c.l.b16 %v5993
    %v6129 = vunpack.c.l.b16 %v5994
    %v6130 = vunpack.c.l.b16 %v5995
    %v6131 = vunpack.c.l.b16 %v5996
    %v6132 = vunpack.c.l.b16 %v5997
    %v6133 = vunpack.c.l.b16 %v5998
    %v6134 = vunpack.c.l.b16 %v5999
    %v6135 = vunpack.c.l.b16 %v6000
    %v6136 = vunpack.c.l.b16 %v6001
    %v6137 = vunpack.c.l.b16 %v6002
    %v6138 = vunpack.c.l.b16 %v6003
    %v6139 = vunpack.c.l.b16 %v6004
    %v6140 = vunpack.c.l.b16 %v6005
    %v6141 = vunpack.c.l.b16 %v6006
    %v6142 = vunpack.c.l.b16 %v6007
    %v6143 = vpack.c.b16 %v6080, %v6079
    %v6144 = vpack.c.b16 %v6082, %v6081
    %v6145 = vpack.c.b16 %v6084, %v6083
    %v6146 = vpack.c.b16 %v6086, %v6085
    %v6147 = vpack.c.b16 %v6088, %v6087
    %v6148 = vpack.c.b16 %v6090, %v6089
    %v6149 = vpack.c.b16 %v6092, %v6091
    %v6150 = vpack.c.b16 %v6094, %v6093
    %v6151 = vpack.c.b16 %v6096, %v6095
    %v6152 = vpack.c.b16 %v6098, %v6097
    %v6153 = vpack.c.b16 %v6100, %v6099
    %v6154 = vpack.c.b16 %v6102, %v6101
    %v6155 = vpack.c.b16 %v6104, %v6103
    %v6156 = vpack.c.b16 %v6106, %v6105
    %v6157 = vpack.c.b16 %v6108, %v6107
    %v6158 = vpack.c.b16 %v6110, %v6109
    %v6159 = vpack.c.b16 %v6112, %v6111
    %v6160 = vpack.c.b16 %v6114, %v6113
    %v6161 = vpack.c.b16 %v6116, %v6115
    %v6162 = vpack.c.b16 %v6118, %v6117
    %v6163 = vpack.c.b16 %v6120, %v6119
    %v6164 = vpack.c.b16 %v6122, %v6121
    %v6165 = vpack.c.b16 %v6124, %v6123
    %v6166 = vpack.c.b16 %v6126, %v6125
    %v6167 = vpack.c.b16 %v6128, %v6127
    %v6168 = vpack.c.b16 %v6130, %v6129
    %v6169 = vpack.c.b16 %v6132, %v6131
    %v6170 = vpack.c.b16 %v6134, %v6133
    %v6171 = vpack.c.b16 %v6136, %v6135
    %v6172 = vpack.c.b16 %v6138, %v6137
    %v6173 = vpack.c.b16 %v6140, %v6139
    %v6174 = vpack.c.b16 %v6142, %v6141
    %6207 = vmatprep.subr.bf16.mxu0 0
    %6208 = vmatpush1.bf16.msra.mxu0 %v6143
    %6209 = vmatprep.subr.bf16.mxu0 0
    %6210 = vmatpush1.bf16.msra.mxu0 %v6144
    %6211 = vmatprep.subr.bf16.mxu0 0
    %6212 = vmatpush1.bf16.msra.mxu0 %v6145
    %6213 = vmatprep.subr.bf16.mxu0 0
    %6214 = vmatpush1.bf16.msra.mxu0 %v6146
    %6215 = vmatprep.subr.bf16.mxu0 0
    %6216 = vmatpush1.bf16.msra.mxu0 %v6147
    %6217 = vmatprep.subr.bf16.mxu0 0
    %6218 = vmatpush1.bf16.msra.mxu0 %v6148
    %6219 = vmatprep.subr.bf16.mxu0 0
    %6220 = vmatpush1.bf16.msra.mxu0 %v6149
    %6221 = vmatprep.subr.bf16.mxu0 0
    %6222 = vmatpush1.bf16.msra.mxu0 %v6150
    %6223 = vmatprep.subr.bf16.mxu0 0
    %6224 = vmatpush1.bf16.msra.mxu0 %v6151
    %6225 = vmatprep.subr.bf16.mxu0 0
    %6226 = vmatpush1.bf16.msra.mxu0 %v6152
    %6227 = vmatprep.subr.bf16.mxu0 0
    %6228 = vmatpush1.bf16.msra.mxu0 %v6153
    %6229 = vmatprep.subr.bf16.mxu0 0
    %6230 = vmatpush1.bf16.msra.mxu0 %v6154
    %6231 = vmatprep.subr.bf16.mxu0 0
    %6232 = vmatpush1.bf16.msra.mxu0 %v6155
    %6233 = vmatprep.subr.bf16.mxu0 0
    %6234 = vmatpush1.bf16.msra.mxu0 %v6156
    %6235 = vmatprep.subr.bf16.mxu0 0
    %6236 = vmatpush1.bf16.msra.mxu0 %v6157
    %6237 = vmatprep.subr.bf16.mxu0 0
    %6238 = vmatpush1.bf16.msra.mxu0 %v6158
    %6239 = vmatprep.mubr.bf16.mxu0 %v5941
    %6240 = vmatmul.mubr.bf16.gmra.mrb[0].mxu0 %v5940
    %v6241 = vpop.f32.mrb[0].mxu0
    %v6242 = vadd.f32 %v6013, %v6241
    %v6243 = vpop.f32.mrb[0].mxu0
    %v6244 = vpop.f32.mrb[0].mxu0
    %v6245 = vpop.f32.mrb[0].mxu0
    %6246 = vdwg.mxu0
    %6247 = vmatprep.subr.bf16.mxu0 0
    %6248 = vmatpush1.bf16.msra.mxu0 %v6159
    %6249 = vmatprep.subr.bf16.mxu0 0
    %6250 = vmatpush1.bf16.msra.mxu0 %v6160
    %6251 = vmatprep.subr.bf16.mxu0 0
    %6252 = vmatpush1.bf16.msra.mxu0 %v6161
    %6253 = vmatprep.subr.bf16.mxu0 0
    %6254 = vmatpush1.bf16.msra.mxu0 %v6162
    %6255 = vmatprep.subr.bf16.mxu0 0
    %6256 = vmatpush1.bf16.msra.mxu0 %v6163
    %6257 = vmatprep.subr.bf16.mxu0 0
    %6258 = vmatpush1.bf16.msra.mxu0 %v6164
    %6259 = vmatprep.subr.bf16.mxu0 0
    %6260 = vmatpush1.bf16.msra.mxu0 %v6165
    %6261 = vmatprep.subr.bf16.mxu0 0
    %6262 = vmatpush1.bf16.msra.mxu0 %v6166
    %6263 = vmatprep.subr.bf16.mxu0 0
    %6264 = vmatpush1.bf16.msra.mxu0 %v6167
    %6265 = vmatprep.subr.bf16.mxu0 0
    %6266 = vmatpush1.bf16.msra.mxu0 %v6168
    %6267 = vmatprep.subr.bf16.mxu0 0
    %6268 = vmatpush1.bf16.msra.mxu0 %v6169
    %6269 = vmatprep.subr.bf16.mxu0 0
    %6270 = vmatpush1.bf16.msra.mxu0 %v6170
    %6271 = vmatprep.subr.bf16.mxu0 0
    %6272 = vmatpush1.bf16.msra.mxu0 %v6171
    %6273 = vmatprep.subr.bf16.mxu0 0
    %6274 = vmatpush1.bf16.msra.mxu0 %v6172
    %6275 = vmatprep.subr.bf16.mxu0 0
    %6276 = vmatpush1.bf16.msra.mxu0 %v6173
    %6277 = vmatprep.subr.bf16.mxu0 0
    %6278 = vmatpush1.bf16.msra.mxu0 %v6174
    %6279 = vmatprep.mubr.bf16.mxu0 %v5943
    %6280 = vmatmul.mubr.bf16.gmra.mrb[0].mxu0 %v5942
    %v6281 = vpop.f32.mrb[0].mxu0
    %v6282 = vadd.f32 %v6242, %v6281
    %v6283 = vpop.f32.mrb[0].mxu0
    %v6284 = vpop.f32.mrb[0].mxu0
    %v6285 = vpop.f32.mrb[0].mxu0
    %6286 = vdwg.mxu0
    %6287 = vst [vmem:[#allocation2] sm:$0x3] %v6282
    // Predicated region
    $region82: #{summarizing_model_forward.1} parent=1 // pred_check
      _
    $region83: #{summarizing_model_forward.1} parent=1 // pred_check_branch
      %6289 = sbr.rel (0) target = $region85
    $region84: #{summarizing_model_forward.1} parent=1 // pred_region
      _
    $region85: #{summarizing_model_forward.1} parent=1 // pred_fallthru
      _
    // Predicated region
    $region86: #{summarizing_model_forward.1} parent=1 // pred_check
      _
    $region87: #{summarizing_model_forward.1} parent=1 // pred_check_branch
      %6291 = sbr.rel (0) target = $region89
    $region88: #{summarizing_model_forward.1} parent=1 // pred_region
      %s6293 = ssub.s32 32, 32
      %6294 = vsyncadd [#allocation3], %s6293
      %s6296 = sshll.u32 [#allocation2], 4
      %s6297 = int_to_ptr.vmem [resolvable:$true] %s6296
      %6299 = dma.vmem_to_hbm [thread:$0]  %s6297, 32, %s21, [#allocation3]
    $region89: #{summarizing_model_forward.1} parent=1 // pred_fallthru
      _
    // Predicated region
    $region90: #{summarizing_model_forward.1} parent=1 // pred_check
      _
    $region91: #{summarizing_model_forward.1} parent=1 // pred_check_branch
      %6301 = sbr.rel (0) target = $region93
    $region92: #{summarizing_model_forward.1} parent=1 // pred_region
      _
    $region93: #{summarizing_model_forward.1} parent=1 // pred_fallthru
      _
    // Predicated region
    $region94: #{summarizing_model_forward.1} parent=1 // pred_check
      _
    $region95: #{summarizing_model_forward.1} parent=1 // pred_check_branch
      %6303 = sbr.rel (0) target = $region97
    $region96: #{summarizing_model_forward.1} parent=1 // pred_region
      %6304 = dma.done [#allocation3], 32
    $region97: #{summarizing_model_forward.1} parent=1 // pred_fallthru
      _
    %6305 = vsyncpa [#allocation3], 1

</llo_original>
